<compile_context>
chip_gen: v5e
topology: v5e:2x2
jax: 0.10.0
libtpu: 0.0.40
codegen_flags: <defaults>
</compile_context>

<pallas_src>
import functools

import jax
import jax.numpy as jnp
from jax.experimental import pallas as pl
from jax.experimental.pallas import tpu as pltpu

NEG_SLOPE = 0.01  # F.leaky_relu default negative_slope


def _leaky(x):
    return jnp.where(x >= 0, x, NEG_SLOPE * x)


# ----------------------------------------------------------------------------
# Fused Conv2d(3x3, pad=1) + leaky_relu + MaxPool2d(2, return_indices) kernel.
#
#   pat_ref : (4, K, P) bf16   patches, q = wy*2+wx (pool-window position),
#                              k = ci*9 + ky*3 + kx, p = b*H2*W2 + i*W2 + j
#   w_ref   : (Cblk, K) bf16   torch weight.reshape(Cout, Cin*9), Cout-block
#   b_ref   : (Cblk, 1) f32
#   base_ref: (1, P)   int32   flat plane index (2i)*W + 2j of window top-left
#   val_ref : (Cblk, P) f32    pooled activations
#   idx_ref : (Cblk, P) int32  PyTorch-style flat indices into the HxW plane
# ----------------------------------------------------------------------------
def _conv_pool_kernel(pat_ref, w_ref, b_ref, base_ref, val_ref, idx_ref, *, plane_w):
    w = w_ref[...]
    bias = b_ref[...]
    base = base_ref[...]

    def branch(q):
        acc = jnp.dot(w, pat_ref[q], preferred_element_type=jnp.float32)
        return _leaky(acc + bias)

    o0 = branch(0)
    o1 = branch(1)
    o2 = branch(2)
    o3 = branch(3)

    i0 = base
    i1 = base + 1
    i2 = base + plane_w
    i3 = base + plane_w + 1

    # first-max tie-breaking (strict '>' keeps the earlier index), like torch.
    m01 = jnp.maximum(o0, o1)
    s01 = jnp.where(o1 > o0, i1, i0)
    m23 = jnp.maximum(o2, o3)
    s23 = jnp.where(o3 > o2, i3, i2)

    val_ref[...] = jnp.maximum(m01, m23)
    idx_ref[...] = jnp.where(m23 > m01, s23, s01)


def conv3x3_leaky_pool(x, w, bias):
    """x: (B, Cin, H, W) f32; w: (Cout, Cin, 3, 3); bias: (Cout,).

    Returns (pooled (B, Cout, H/2, W/2) f32, indices (B, Cout, H/2, W/2) int32).
    """
    B, Cin, H, W = x.shape
    Cout = w.shape[0]
    H2, W2 = H // 2, W // 2
    K = Cin * 9
    P = B * H2 * W2

    # Lane-dense, pool-grouped im2col (built once in XLA; arrays are < 1 MB).
    xp = jnp.pad(x.astype(jnp.bfloat16), ((0, 0), (0, 0), (1, 1), (1, 1)))
    cols = [xp[:, :, ky:ky + H, kx:kx + W] for ky in range(3) for kx in range(3)]
    pat = jnp.stack(cols, axis=2)                       # (B, Cin, 9, H, W)
    pat = pat.reshape(B, Cin, 9, H2, 2, W2, 2)          # split H=(i,wy), W=(j,wx)
    pat = pat.transpose(4, 6, 1, 2, 0, 3, 5)            # (wy, wx, Cin, 9, B, H2, W2)
    pat = pat.reshape(4, K, P)                          # q-major, k, p

    wmat = w.reshape(Cout, K).astype(jnp.bfloat16)      # torch flatten ordering
    bias2 = bias.reshape(Cout, 1).astype(jnp.float32)

    ii = jnp.arange(H2, dtype=jnp.int32)
    jj = jnp.arange(W2, dtype=jnp.int32)
    base = (2 * ii[:, None]) * W + 2 * jj[None, :]      # (H2, W2)
    base = jnp.broadcast_to(base[None], (B, H2, W2)).reshape(1, P)

    cout_blocks = 2                                     # 2 parallel blocks (v7x: 2 TCs)
    cblk = Cout // cout_blocks

    kernel = functools.partial(_conv_pool_kernel, plane_w=W)
    vals, idx = pl.pallas_call(
        kernel,
        out_shape=(
            jax.ShapeDtypeStruct((Cout, P), jnp.float32),
            jax.ShapeDtypeStruct((Cout, P), jnp.int32),
        ),
        grid=(cout_blocks,),
        in_specs=[
            pl.BlockSpec((4, K, P), lambda i: (0, 0, 0)),
            pl.BlockSpec((cblk, K), lambda i: (i, 0)),
            pl.BlockSpec((cblk, 1), lambda i: (i, 0)),
            pl.BlockSpec((1, P), lambda i: (0, 0)),
        ],
        out_specs=(
            pl.BlockSpec((cblk, P), lambda i: (i, 0)),
            pl.BlockSpec((cblk, P), lambda i: (i, 0)),
        ),
        compiler_params=pltpu.CompilerParams(
            dimension_semantics=("parallel",)),
    )(pat, wmat, bias2, base)

    vals = vals.reshape(Cout, B, H2, W2).transpose(1, 0, 2, 3)
    idx = idx.reshape(Cout, B, H2, W2).transpose(1, 0, 2, 3)
    return vals, idx


# ----------------------------------------------------------------------------
# Fused MLP head: leaky_relu(x @ W1^T + b1) -> sigmoid(h @ W2^T + b2).
# ----------------------------------------------------------------------------
def _mlp_kernel(x_ref, w1_ref, b1_ref, w2_ref, b2_ref, o_ref):
    h = jnp.dot(x_ref[...], w1_ref[...], preferred_element_type=jnp.float32)
    h = _leaky(h + b1_ref[...])
    o = jnp.dot(h.astype(jnp.bfloat16), w2_ref[...],
                preferred_element_type=jnp.float32)
    o = o + b2_ref[...]
    o_ref[...] = jax.nn.sigmoid(o)


def mlp_head(x, w1, b1, w2, b2):
    """x: (B, in_f); w1: (hid_f, in_f); w2: (out_f, hid_f) (torch Linear layout)."""
    B, in_f = x.shape
    hid_f = w1.shape[0]
    out_f = w2.shape[0]
    return pl.pallas_call(
        _mlp_kernel,
        out_shape=jax.ShapeDtypeStruct((B, out_f), jnp.float32),
        grid=(1,),
        in_specs=[
            pl.BlockSpec((B, in_f), lambda i: (0, 0)),
            pl.BlockSpec((in_f, hid_f), lambda i: (0, 0)),
            pl.BlockSpec((1, hid_f), lambda i: (0, 0)),
            pl.BlockSpec((hid_f, out_f), lambda i: (0, 0)),
            pl.BlockSpec((1, out_f), lambda i: (0, 0)),
        ],
        out_specs=pl.BlockSpec((B, out_f), lambda i: (0, 0)),
        compiler_params=pltpu.CompilerParams(
            dimension_semantics=("arbitrary",)),
    )(x.astype(jnp.bfloat16),
      w1.T.astype(jnp.bfloat16), b1.reshape(1, hid_f).astype(jnp.float32),
      w2.T.astype(jnp.bfloat16), b2.reshape(1, out_f).astype(jnp.float32))


# ----------------------------------------------------------------------------
# Parameters (deterministic, synthetic) and full forward pass.
# ----------------------------------------------------------------------------
def init_params(key, emb_dim):
    ks = jax.random.split(key, 10)

    def conv_w(k, cout, cin):
        return jax.random.normal(k, (cout, cin, 3, 3), jnp.float32) / jnp.sqrt(cin * 9.0)

    def lin_w(k, out_f, in_f):
        return jax.random.normal(k, (out_f, in_f), jnp.float32) / jnp.sqrt(float(in_f))

    return {
        "conv1_w": conv_w(ks[0], 16, 3),
        "conv1_b": 0.01 * jax.random.normal(ks[1], (16,), jnp.float32),
        "conv2_w": conv_w(ks[2], 32, 16),
        "conv2_b": 0.01 * jax.random.normal(ks[3], (32,), jnp.float32),
        "conv3_w": conv_w(ks[4], 64, 32),
        "conv3_b": 0.01 * jax.random.normal(ks[5], (64,), jnp.float32),
        "lin1_w": lin_w(ks[6], emb_dim * 3, 64 * 7 * 7),   # torch Linear: (out, in)
        "lin1_b": 0.01 * jax.random.normal(ks[7], (emb_dim * 3,), jnp.float32),
        "lin2_w": lin_w(ks[8], emb_dim, emb_dim * 3),
        "lin2_b": 0.01 * jax.random.normal(ks[9], (emb_dim,), jnp.float32),
    }


def encoder_forward(params, x):
    x, idx1 = conv3x3_leaky_pool(x, params["conv1_w"], params["conv1_b"])
    x, idx2 = conv3x3_leaky_pool(x, params["conv2_w"], params["conv2_b"])
    x, idx3 = conv3x3_leaky_pool(x, params["conv3_w"], params["conv3_b"])
    x = x.reshape(x.shape[0], -1)                 # NCHW flatten, matches torch
    out = mlp_head(x, params["lin1_w"], params["lin1_b"],
                   params["lin2_w"], params["lin2_b"])
    return out, [idx1, idx2, idx3]


if __name__ == "__main__":
    emb_dim = 16
    key = jax.random.PRNGKey(0)
    kp, kx = jax.random.split(key)
    params = init_params(kp, emb_dim)
    # Input must be 56x56 so that after three 2x2 pools we reach 64*7*7 for linear1.
    x = jax.random.normal(kx, (2, 3, 56, 56), jnp.float32)

    fwd = jax.jit(functools.partial(encoder_forward, params))
    out, indices = fwd(x)
    jax.block_until_ready(out)
    jax.block_until_ready(indices)

    assert out.shape == (2, emb_dim) and out.dtype == jnp.float32
    assert indices[0].shape == (2, 16, 28, 28) and indices[0].dtype == jnp.int32
    assert indices[1].shape == (2, 32, 14, 14)
    assert indices[2].shape == (2, 64, 7, 7)
    assert bool(jnp.all((out >= 0) & (out <= 1)))            # sigmoid output range
    assert bool(jnp.all((indices[0] >= 0) & (indices[0] < 56 * 56)))
    assert bool(jnp.all((indices[1] >= 0) & (indices[1] < 28 * 28)))
    assert bool(jnp.all((indices[2] >= 0) & (indices[2] < 14 * 14)))
    print("KERNEL_OK")
</pallas_src>

<mosaic_0001>
module attributes {stable_mosaic.version = 11 : i64} {
  func.func @_conv_pool_kernel(%arg0: i32, %arg1: memref<4x27x1568xbf16, #tpu.memory_space<vmem>>, %arg2: memref<8x27xbf16, #tpu.memory_space<vmem>>, %arg3: memref<8x1xf32, #tpu.memory_space<vmem>>, %arg4: memref<1x1568xi32, #tpu.memory_space<vmem>>, %arg5: memref<8x1568xf32, #tpu.memory_space<vmem>>, %arg6: memref<8x1568xi32, #tpu.memory_space<vmem>>) attributes {dimension_semantics = [#tpu.dimension_semantics<parallel>], iteration_bounds = array<i64: 2>, scalar_prefetch = 0 : i64, scratch_operands = 0 : i64, tpu.core_type = #tpu.core_type<tc>, window_params = [{pipeline_mode = #tpu.pipeline_mode<synchronous>, transform_indices = @transform_0, window_bounds = array<i64: 4, 27, 1568>}, {transform_indices = @transform_1, window_bounds = array<i64: 8, 27>}, {transform_indices = @transform_2, window_bounds = array<i64: 8, 1>}, {pipeline_mode = #tpu.pipeline_mode<synchronous>, transform_indices = @transform_3, window_bounds = array<i64: 1, 1568>}, {transform_indices = @transform_4, window_bounds = array<i64: 8, 1568>}, {transform_indices = @transform_5, window_bounds = array<i64: 8, 1568>}]} {
    %c0 = arith.constant 0 : index
    %c0_0 = arith.constant 0 : index
    %0 = vector.load %arg2[%c0, %c0_0] : memref<8x27xbf16, #tpu.memory_space<vmem>>, vector<8x27xbf16>
    %c0_1 = arith.constant 0 : index
    %c0_2 = arith.constant 0 : index
    %1 = vector.load %arg3[%c0_1, %c0_2] : memref<8x1xf32, #tpu.memory_space<vmem>>, vector<8x1xf32>
    %c0_3 = arith.constant 0 : index
    %c0_4 = arith.constant 0 : index
    %2 = vector.load %arg4[%c0_3, %c0_4] : memref<1x1568xi32, #tpu.memory_space<vmem>>, vector<1x1568xi32>
    %c0_5 = arith.constant 0 : index
    %c0_6 = arith.constant 0 : index
    %c0_7 = arith.constant 0 : index
    %3 = vector.load %arg1[%c0_5, %c0_6, %c0_7] : memref<4x27x1568xbf16, #tpu.memory_space<vmem>>, vector<1x27x1568xbf16>
    %4 = vector.shape_cast %3 : vector<1x27x1568xbf16> to vector<27x1568xbf16>
    %cst = arith.constant dense<0.000000e+00> : vector<8x1568xf32>
    %5 = tpu.matmul %0, %4, %cst {dimension_numbers = #tpu.dot_dimension_numbers<[1], [0], [0], [1], [0, 0, 1, 1], [], []>} : vector<8x27xbf16>, vector<27x1568xbf16>, vector<8x1568xf32> -> vector<8x1568xf32>
    %6 = vector.broadcast %1 : vector<8x1xf32> to vector<8x1568xf32>
    %7 = arith.addf %5, %6 : vector<8x1568xf32>
    %cst_8 = arith.constant 0.000000e+00 : f32
    %8 = vector.broadcast %cst_8 : f32 to vector<8x1568xf32>
    %9 = arith.cmpf oge, %7, %8 : vector<8x1568xf32>
    %cst_9 = arith.constant 0.00999999977 : f32
    %10 = vector.broadcast %cst_9 : f32 to vector<8x1568xf32>
    %11 = arith.mulf %10, %7 : vector<8x1568xf32>
    %12 = arith.select %9, %7, %11 : vector<8x1568xi1>, vector<8x1568xf32>
    %c1 = arith.constant 1 : index
    %c0_10 = arith.constant 0 : index
    %c0_11 = arith.constant 0 : index
    %13 = vector.load %arg1[%c1, %c0_10, %c0_11] : memref<4x27x1568xbf16, #tpu.memory_space<vmem>>, vector<1x27x1568xbf16>
    %14 = vector.shape_cast %13 : vector<1x27x1568xbf16> to vector<27x1568xbf16>
    %cst_12 = arith.constant dense<0.000000e+00> : vector<8x1568xf32>
    %15 = tpu.matmul %0, %14, %cst_12 {dimension_numbers = #tpu.dot_dimension_numbers<[1], [0], [0], [1], [0, 0, 1, 1], [], []>} : vector<8x27xbf16>, vector<27x1568xbf16>, vector<8x1568xf32> -> vector<8x1568xf32>
    %16 = vector.broadcast %1 : vector<8x1xf32> to vector<8x1568xf32>
    %17 = arith.addf %15, %16 : vector<8x1568xf32>
    %cst_13 = arith.constant 0.000000e+00 : f32
    %18 = vector.broadcast %cst_13 : f32 to vector<8x1568xf32>
    %19 = arith.cmpf oge, %17, %18 : vector<8x1568xf32>
    %cst_14 = arith.constant 0.00999999977 : f32
    %20 = vector.broadcast %cst_14 : f32 to vector<8x1568xf32>
    %21 = arith.mulf %20, %17 : vector<8x1568xf32>
    %22 = arith.select %19, %17, %21 : vector<8x1568xi1>, vector<8x1568xf32>
    %c2 = arith.constant 2 : index
    %c0_15 = arith.constant 0 : index
    %c0_16 = arith.constant 0 : index
    %23 = vector.load %arg1[%c2, %c0_15, %c0_16] : memref<4x27x1568xbf16, #tpu.memory_space<vmem>>, vector<1x27x1568xbf16>
    %24 = vector.shape_cast %23 : vector<1x27x1568xbf16> to vector<27x1568xbf16>
    %cst_17 = arith.constant dense<0.000000e+00> : vector<8x1568xf32>
    %25 = tpu.matmul %0, %24, %cst_17 {dimension_numbers = #tpu.dot_dimension_numbers<[1], [0], [0], [1], [0, 0, 1, 1], [], []>} : vector<8x27xbf16>, vector<27x1568xbf16>, vector<8x1568xf32> -> vector<8x1568xf32>
    %26 = vector.broadcast %1 : vector<8x1xf32> to vector<8x1568xf32>
    %27 = arith.addf %25, %26 : vector<8x1568xf32>
    %cst_18 = arith.constant 0.000000e+00 : f32
    %28 = vector.broadcast %cst_18 : f32 to vector<8x1568xf32>
    %29 = arith.cmpf oge, %27, %28 : vector<8x1568xf32>
    %cst_19 = arith.constant 0.00999999977 : f32
    %30 = vector.broadcast %cst_19 : f32 to vector<8x1568xf32>
    %31 = arith.mulf %30, %27 : vector<8x1568xf32>
    %32 = arith.select %29, %27, %31 : vector<8x1568xi1>, vector<8x1568xf32>
    %c3 = arith.constant 3 : index
    %c0_20 = arith.constant 0 : index
    %c0_21 = arith.constant 0 : index
    %33 = vector.load %arg1[%c3, %c0_20, %c0_21] : memref<4x27x1568xbf16, #tpu.memory_space<vmem>>, vector<1x27x1568xbf16>
    %34 = vector.shape_cast %33 : vector<1x27x1568xbf16> to vector<27x1568xbf16>
    %cst_22 = arith.constant dense<0.000000e+00> : vector<8x1568xf32>
    %35 = tpu.matmul %0, %34, %cst_22 {dimension_numbers = #tpu.dot_dimension_numbers<[1], [0], [0], [1], [0, 0, 1, 1], [], []>} : vector<8x27xbf16>, vector<27x1568xbf16>, vector<8x1568xf32> -> vector<8x1568xf32>
    %36 = vector.broadcast %1 : vector<8x1xf32> to vector<8x1568xf32>
    %37 = arith.addf %35, %36 : vector<8x1568xf32>
    %cst_23 = arith.constant 0.000000e+00 : f32
    %38 = vector.broadcast %cst_23 : f32 to vector<8x1568xf32>
    %39 = arith.cmpf oge, %37, %38 : vector<8x1568xf32>
    %cst_24 = arith.constant 0.00999999977 : f32
    %40 = vector.broadcast %cst_24 : f32 to vector<8x1568xf32>
    %41 = arith.mulf %40, %37 : vector<8x1568xf32>
    %42 = arith.select %39, %37, %41 : vector<8x1568xi1>, vector<8x1568xf32>
    %c1_i32 = arith.constant 1 : i32
    %43 = vector.broadcast %c1_i32 : i32 to vector<1x1568xi32>
    %44 = arith.addi %2, %43 : vector<1x1568xi32>
    %c56_i32 = arith.constant 56 : i32
    %45 = vector.broadcast %c56_i32 : i32 to vector<1x1568xi32>
    %46 = arith.addi %2, %45 : vector<1x1568xi32>
    %c56_i32_25 = arith.constant 56 : i32
    %47 = vector.broadcast %c56_i32_25 : i32 to vector<1x1568xi32>
    %48 = arith.addi %2, %47 : vector<1x1568xi32>
    %c1_i32_26 = arith.constant 1 : i32
    %49 = vector.broadcast %c1_i32_26 : i32 to vector<1x1568xi32>
    %50 = arith.addi %48, %49 : vector<1x1568xi32>
    %51 = arith.maximumf %12, %22 : vector<8x1568xf32>
    %52 = arith.cmpf ogt, %22, %12 : vector<8x1568xf32>
    %53 = vector.shape_cast %44 : vector<1x1568xi32> to vector<1x1568xi32>
    %54 = vector.broadcast %53 : vector<1x1568xi32> to vector<8x1568xi32>
    %55 = vector.shape_cast %2 : vector<1x1568xi32> to vector<1x1568xi32>
    %56 = vector.broadcast %55 : vector<1x1568xi32> to vector<8x1568xi32>
    %57 = arith.select %52, %54, %56 : vector<8x1568xi1>, vector<8x1568xi32>
    %58 = arith.maximumf %32, %42 : vector<8x1568xf32>
    %59 = arith.cmpf ogt, %42, %32 : vector<8x1568xf32>
    %60 = vector.shape_cast %50 : vector<1x1568xi32> to vector<1x1568xi32>
    %61 = vector.broadcast %60 : vector<1x1568xi32> to vector<8x1568xi32>
    %62 = vector.shape_cast %46 : vector<1x1568xi32> to vector<1x1568xi32>
    %63 = vector.broadcast %62 : vector<1x1568xi32> to vector<8x1568xi32>
    %64 = arith.select %59, %61, %63 : vector<8x1568xi1>, vector<8x1568xi32>
    %65 = arith.maximumf %51, %58 : vector<8x1568xf32>
    %c0_27 = arith.constant 0 : index
    %c0_28 = arith.constant 0 : index
    %66 = vector.load %arg5[%c0_27, %c0_28] : memref<8x1568xf32, #tpu.memory_space<vmem>>, vector<8x1568xf32>
    tpu.vector_store %arg5[%c0_27, %c0_28], %65 {strides = array<i32>} : memref<8x1568xf32, #tpu.memory_space<vmem>>, vector<8x1568xf32>,
    %67 = arith.cmpf ogt, %58, %51 : vector<8x1568xf32>
    %68 = arith.select %67, %64, %57 : vector<8x1568xi1>, vector<8x1568xi32>
    %c0_29 = arith.constant 0 : index
    %c0_30 = arith.constant 0 : index
    %69 = vector.load %arg6[%c0_29, %c0_30] : memref<8x1568xi32, #tpu.memory_space<vmem>>, vector<8x1568xi32>
    tpu.vector_store %arg6[%c0_29, %c0_30], %68 {strides = array<i32>} : memref<8x1568xi32, #tpu.memory_space<vmem>>, vector<8x1568xi32>,
    return
  }
  func.func @transform_0(%arg0: i32) -> (i32, i32, i32) {
    %c0_i32 = arith.constant 0 : i32
    %c0_i32_0 = arith.constant 0 : i32
    %c0_i32_1 = arith.constant 0 : i32
    %c0_i32_2 = arith.constant 0 : i32
    return %c0_i32, %c0_i32_0, %c0_i32_1 : i32, i32, i32
  }
  func.func @transform_1(%arg0: i32) -> (i32, i32) {
    %c0_i32 = arith.constant 0 : i32
    %c0_i32_0 = arith.constant 0 : i32
    return %arg0, %c0_i32 : i32, i32
  }
  func.func @transform_2(%arg0: i32) -> (i32, i32) {
    %c0_i32 = arith.constant 0 : i32
    %c0_i32_0 = arith.constant 0 : i32
    return %arg0, %c0_i32 : i32, i32
  }
  func.func @transform_3(%arg0: i32) -> (i32, i32) {
    %c0_i32 = arith.constant 0 : i32
    %c0_i32_0 = arith.constant 0 : i32
    %c0_i32_1 = arith.constant 0 : i32
    return %c0_i32, %c0_i32_0 : i32, i32
  }
  func.func @transform_4(%arg0: i32) -> (i32, i32) {
    %c0_i32 = arith.constant 0 : i32
    %c0_i32_0 = arith.constant 0 : i32
    return %arg0, %c0_i32 : i32, i32
  }
  func.func @transform_5(%arg0: i32) -> (i32, i32) {
    %c0_i32 = arith.constant 0 : i32
    %c0_i32_0 = arith.constant 0 : i32
    return %arg0, %c0_i32 : i32, i32
  }
}

module attributes {stable_mosaic.version = 11 : i64} {
  func.func @_conv_pool_kernel(%arg0: i32, %arg1: memref<4x144x392xbf16, #tpu.memory_space<vmem>>, %arg2: memref<16x144xbf16, #tpu.memory_space<vmem>>, %arg3: memref<16x1xf32, #tpu.memory_space<vmem>>, %arg4: memref<1x392xi32, #tpu.memory_space<vmem>>, %arg5: memref<16x392xf32, #tpu.memory_space<vmem>>, %arg6: memref<16x392xi32, #tpu.memory_space<vmem>>) attributes {dimension_semantics = [#tpu.dimension_semantics<parallel>], iteration_bounds = array<i64: 2>, scalar_prefetch = 0 : i64, scratch_operands = 0 : i64, tpu.core_type = #tpu.core_type<tc>, window_params = [{pipeline_mode = #tpu.pipeline_mode<synchronous>, transform_indices = @transform_0, window_bounds = array<i64: 4, 144, 392>}, {transform_indices = @transform_1, window_bounds = array<i64: 16, 144>}, {transform_indices = @transform_2, window_bounds = array<i64: 16, 1>}, {pipeline_mode = #tpu.pipeline_mode<synchronous>, transform_indices = @transform_3, window_bounds = array<i64: 1, 392>}, {transform_indices = @transform_4, window_bounds = array<i64: 16, 392>}, {transform_indices = @transform_5, window_bounds = array<i64: 16, 392>}]} {
    %c0 = arith.constant 0 : index
    %c0_0 = arith.constant 0 : index
    %0 = vector.load %arg2[%c0, %c0_0] : memref<16x144xbf16, #tpu.memory_space<vmem>>, vector<16x144xbf16>
    %c0_1 = arith.constant 0 : index
    %c0_2 = arith.constant 0 : index
    %1 = vector.load %arg3[%c0_1, %c0_2] : memref<16x1xf32, #tpu.memory_space<vmem>>, vector<16x1xf32>
    %c0_3 = arith.constant 0 : index
    %c0_4 = arith.constant 0 : index
    %2 = vector.load %arg4[%c0_3, %c0_4] : memref<1x392xi32, #tpu.memory_space<vmem>>, vector<1x392xi32>
    %c0_5 = arith.constant 0 : index
    %c0_6 = arith.constant 0 : index
    %c0_7 = arith.constant 0 : index
    %3 = vector.load %arg1[%c0_5, %c0_6, %c0_7] : memref<4x144x392xbf16, #tpu.memory_space<vmem>>, vector<1x144x392xbf16>
    %4 = vector.shape_cast %3 : vector<1x144x392xbf16> to vector<144x392xbf16>
    %cst = arith.constant dense<0.000000e+00> : vector<16x392xf32>
    %5 = tpu.matmul %0, %4, %cst {dimension_numbers = #tpu.dot_dimension_numbers<[1], [0], [0], [1], [0, 0, 1, 1], [], []>} : vector<16x144xbf16>, vector<144x392xbf16>, vector<16x392xf32> -> vector<16x392xf32>
    %6 = vector.broadcast %1 : vector<16x1xf32> to vector<16x392xf32>
    %7 = arith.addf %5, %6 : vector<16x392xf32>
    %cst_8 = arith.constant 0.000000e+00 : f32
    %8 = vector.broadcast %cst_8 : f32 to vector<16x392xf32>
    %9 = arith.cmpf oge, %7, %8 : vector<16x392xf32>
    %cst_9 = arith.constant 0.00999999977 : f32
    %10 = vector.broadcast %cst_9 : f32 to vector<16x392xf32>
    %11 = arith.mulf %10, %7 : vector<16x392xf32>
    %12 = arith.select %9, %7, %11 : vector<16x392xi1>, vector<16x392xf32>
    %c1 = arith.constant 1 : index
    %c0_10 = arith.constant 0 : index
    %c0_11 = arith.constant 0 : index
    %13 = vector.load %arg1[%c1, %c0_10, %c0_11] : memref<4x144x392xbf16, #tpu.memory_space<vmem>>, vector<1x144x392xbf16>
    %14 = vector.shape_cast %13 : vector<1x144x392xbf16> to vector<144x392xbf16>
    %cst_12 = arith.constant dense<0.000000e+00> : vector<16x392xf32>
    %15 = tpu.matmul %0, %14, %cst_12 {dimension_numbers = #tpu.dot_dimension_numbers<[1], [0], [0], [1], [0, 0, 1, 1], [], []>} : vector<16x144xbf16>, vector<144x392xbf16>, vector<16x392xf32> -> vector<16x392xf32>
    %16 = vector.broadcast %1 : vector<16x1xf32> to vector<16x392xf32>
    %17 = arith.addf %15, %16 : vector<16x392xf32>
    %cst_13 = arith.constant 0.000000e+00 : f32
    %18 = vector.broadcast %cst_13 : f32 to vector<16x392xf32>
    %19 = arith.cmpf oge, %17, %18 : vector<16x392xf32>
    %cst_14 = arith.constant 0.00999999977 : f32
    %20 = vector.broadcast %cst_14 : f32 to vector<16x392xf32>
    %21 = arith.mulf %20, %17 : vector<16x392xf32>
    %22 = arith.select %19, %17, %21 : vector<16x392xi1>, vector<16x392xf32>
    %c2 = arith.constant 2 : index
    %c0_15 = arith.constant 0 : index
    %c0_16 = arith.constant 0 : index
    %23 = vector.load %arg1[%c2, %c0_15, %c0_16] : memref<4x144x392xbf16, #tpu.memory_space<vmem>>, vector<1x144x392xbf16>
    %24 = vector.shape_cast %23 : vector<1x144x392xbf16> to vector<144x392xbf16>
    %cst_17 = arith.constant dense<0.000000e+00> : vector<16x392xf32>
    %25 = tpu.matmul %0, %24, %cst_17 {dimension_numbers = #tpu.dot_dimension_numbers<[1], [0], [0], [1], [0, 0, 1, 1], [], []>} : vector<16x144xbf16>, vector<144x392xbf16>, vector<16x392xf32> -> vector<16x392xf32>
    %26 = vector.broadcast %1 : vector<16x1xf32> to vector<16x392xf32>
    %27 = arith.addf %25, %26 : vector<16x392xf32>
    %cst_18 = arith.constant 0.000000e+00 : f32
    %28 = vector.broadcast %cst_18 : f32 to vector<16x392xf32>
    %29 = arith.cmpf oge, %27, %28 : vector<16x392xf32>
    %cst_19 = arith.constant 0.00999999977 : f32
    %30 = vector.broadcast %cst_19 : f32 to vector<16x392xf32>
    %31 = arith.mulf %30, %27 : vector<16x392xf32>
    %32 = arith.select %29, %27, %31 : vector<16x392xi1>, vector<16x392xf32>
    %c3 = arith.constant 3 : index
    %c0_20 = arith.constant 0 : index
    %c0_21 = arith.constant 0 : index
    %33 = vector.load %arg1[%c3, %c0_20, %c0_21] : memref<4x144x392xbf16, #tpu.memory_space<vmem>>, vector<1x144x392xbf16>
    %34 = vector.shape_cast %33 : vector<1x144x392xbf16> to vector<144x392xbf16>
    %cst_22 = arith.constant dense<0.000000e+00> : vector<16x392xf32>
    %35 = tpu.matmul %0, %34, %cst_22 {dimension_numbers = #tpu.dot_dimension_numbers<[1], [0], [0], [1], [0, 0, 1, 1], [], []>} : vector<16x144xbf16>, vector<144x392xbf16>, vector<16x392xf32> -> vector<16x392xf32>
    %36 = vector.broadcast %1 : vector<16x1xf32> to vector<16x392xf32>
    %37 = arith.addf %35, %36 : vector<16x392xf32>
    %cst_23 = arith.constant 0.000000e+00 : f32
    %38 = vector.broadcast %cst_23 : f32 to vector<16x392xf32>
    %39 = arith.cmpf oge, %37, %38 : vector<16x392xf32>
    %cst_24 = arith.constant 0.00999999977 : f32
    %40 = vector.broadcast %cst_24 : f32 to vector<16x392xf32>
    %41 = arith.mulf %40, %37 : vector<16x392xf32>
    %42 = arith.select %39, %37, %41 : vector<16x392xi1>, vector<16x392xf32>
    %c1_i32 = arith.constant 1 : i32
    %43 = vector.broadcast %c1_i32 : i32 to vector<1x392xi32>
    %44 = arith.addi %2, %43 : vector<1x392xi32>
    %c28_i32 = arith.constant 28 : i32
    %45 = vector.broadcast %c28_i32 : i32 to vector<1x392xi32>
    %46 = arith.addi %2, %45 : vector<1x392xi32>
    %c28_i32_25 = arith.constant 28 : i32
    %47 = vector.broadcast %c28_i32_25 : i32 to vector<1x392xi32>
    %48 = arith.addi %2, %47 : vector<1x392xi32>
    %c1_i32_26 = arith.constant 1 : i32
    %49 = vector.broadcast %c1_i32_26 : i32 to vector<1x392xi32>
    %50 = arith.addi %48, %49 : vector<1x392xi32>
    %51 = arith.maximumf %12, %22 : vector<16x392xf32>
    %52 = arith.cmpf ogt, %22, %12 : vector<16x392xf32>
    %53 = vector.shape_cast %44 : vector<1x392xi32> to vector<1x392xi32>
    %54 = vector.broadcast %53 : vector<1x392xi32> to vector<16x392xi32>
    %55 = vector.shape_cast %2 : vector<1x392xi32> to vector<1x392xi32>
    %56 = vector.broadcast %55 : vector<1x392xi32> to vector<16x392xi32>
    %57 = arith.select %52, %54, %56 : vector<16x392xi1>, vector<16x392xi32>
    %58 = arith.maximumf %32, %42 : vector<16x392xf32>
    %59 = arith.cmpf ogt, %42, %32 : vector<16x392xf32>
    %60 = vector.shape_cast %50 : vector<1x392xi32> to vector<1x392xi32>
    %61 = vector.broadcast %60 : vector<1x392xi32> to vector<16x392xi32>
    %62 = vector.shape_cast %46 : vector<1x392xi32> to vector<1x392xi32>
    %63 = vector.broadcast %62 : vector<1x392xi32> to vector<16x392xi32>
    %64 = arith.select %59, %61, %63 : vector<16x392xi1>, vector<16x392xi32>
    %65 = arith.maximumf %51, %58 : vector<16x392xf32>
    %c0_27 = arith.constant 0 : index
    %c0_28 = arith.constant 0 : index
    %66 = vector.load %arg5[%c0_27, %c0_28] : memref<16x392xf32, #tpu.memory_space<vmem>>, vector<16x392xf32>
    tpu.vector_store %arg5[%c0_27, %c0_28], %65 {strides = array<i32>} : memref<16x392xf32, #tpu.memory_space<vmem>>, vector<16x392xf32>,
    %67 = arith.cmpf ogt, %58, %51 : vector<16x392xf32>
    %68 = arith.select %67, %64, %57 : vector<16x392xi1>, vector<16x392xi32>
    %c0_29 = arith.constant 0 : index
    %c0_30 = arith.constant 0 : index
    %69 = vector.load %arg6[%c0_29, %c0_30] : memref<16x392xi32, #tpu.memory_space<vmem>>, vector<16x392xi32>
    tpu.vector_store %arg6[%c0_29, %c0_30], %68 {strides = array<i32>} : memref<16x392xi32, #tpu.memory_space<vmem>>, vector<16x392xi32>,
    return
  }
  func.func @transform_0(%arg0: i32) -> (i32, i32, i32) {
    %c0_i32 = arith.constant 0 : i32
    %c0_i32_0 = arith.constant 0 : i32
    %c0_i32_1 = arith.constant 0 : i32
    %c0_i32_2 = arith.constant 0 : i32
    return %c0_i32, %c0_i32_0, %c0_i32_1 : i32, i32, i32
  }
  func.func @transform_1(%arg0: i32) -> (i32, i32) {
    %c0_i32 = arith.constant 0 : i32
    %c0_i32_0 = arith.constant 0 : i32
    return %arg0, %c0_i32 : i32, i32
  }
  func.func @transform_2(%arg0: i32) -> (i32, i32) {
    %c0_i32 = arith.constant 0 : i32
    %c0_i32_0 = arith.constant 0 : i32
    return %arg0, %c0_i32 : i32, i32
  }
  func.func @transform_3(%arg0: i32) -> (i32, i32) {
    %c0_i32 = arith.constant 0 : i32
    %c0_i32_0 = arith.constant 0 : i32
    %c0_i32_1 = arith.constant 0 : i32
    return %c0_i32, %c0_i32_0 : i32, i32
  }
  func.func @transform_4(%arg0: i32) -> (i32, i32) {
    %c0_i32 = arith.constant 0 : i32
    %c0_i32_0 = arith.constant 0 : i32
    return %arg0, %c0_i32 : i32, i32
  }
  func.func @transform_5(%arg0: i32) -> (i32, i32) {
    %c0_i32 = arith.constant 0 : i32
    %c0_i32_0 = arith.constant 0 : i32
    return %arg0, %c0_i32 : i32, i32
  }
}

module attributes {stable_mosaic.version = 11 : i64} {
  func.func @_conv_pool_kernel(%arg0: i32, %arg1: memref<4x288x98xbf16, #tpu.memory_space<vmem>>, %arg2: memref<32x288xbf16, #tpu.memory_space<vmem>>, %arg3: memref<32x1xf32, #tpu.memory_space<vmem>>, %arg4: memref<1x98xi32, #tpu.memory_space<vmem>>, %arg5: memref<32x98xf32, #tpu.memory_space<vmem>>, %arg6: memref<32x98xi32, #tpu.memory_space<vmem>>) attributes {dimension_semantics = [#tpu.dimension_semantics<parallel>], iteration_bounds = array<i64: 2>, scalar_prefetch = 0 : i64, scratch_operands = 0 : i64, tpu.core_type = #tpu.core_type<tc>, window_params = [{pipeline_mode = #tpu.pipeline_mode<synchronous>, transform_indices = @transform_0, window_bounds = array<i64: 4, 288, 98>}, {transform_indices = @transform_1, window_bounds = array<i64: 32, 288>}, {transform_indices = @transform_2, window_bounds = array<i64: 32, 1>}, {pipeline_mode = #tpu.pipeline_mode<synchronous>, transform_indices = @transform_3, window_bounds = array<i64: 1, 98>}, {transform_indices = @transform_4, window_bounds = array<i64: 32, 98>}, {transform_indices = @transform_5, window_bounds = array<i64: 32, 98>}]} {
    %c0 = arith.constant 0 : index
    %c0_0 = arith.constant 0 : index
    %0 = vector.load %arg2[%c0, %c0_0] : memref<32x288xbf16, #tpu.memory_space<vmem>>, vector<32x288xbf16>
    %c0_1 = arith.constant 0 : index
    %c0_2 = arith.constant 0 : index
    %1 = vector.load %arg3[%c0_1, %c0_2] : memref<32x1xf32, #tpu.memory_space<vmem>>, vector<32x1xf32>
    %c0_3 = arith.constant 0 : index
    %c0_4 = arith.constant 0 : index
    %2 = vector.load %arg4[%c0_3, %c0_4] : memref<1x98xi32, #tpu.memory_space<vmem>>, vector<1x98xi32>
    %c0_5 = arith.constant 0 : index
    %c0_6 = arith.constant 0 : index
    %c0_7 = arith.constant 0 : index
    %3 = vector.load %arg1[%c0_5, %c0_6, %c0_7] : memref<4x288x98xbf16, #tpu.memory_space<vmem>>, vector<1x288x98xbf16>
    %4 = vector.shape_cast %3 : vector<1x288x98xbf16> to vector<288x98xbf16>
    %cst = arith.constant dense<0.000000e+00> : vector<32x98xf32>
    %5 = tpu.matmul %0, %4, %cst {dimension_numbers = #tpu.dot_dimension_numbers<[1], [0], [0], [1], [0, 0, 1, 1], [], []>} : vector<32x288xbf16>, vector<288x98xbf16>, vector<32x98xf32> -> vector<32x98xf32>
    %6 = vector.broadcast %1 : vector<32x1xf32> to vector<32x98xf32>
    %7 = arith.addf %5, %6 : vector<32x98xf32>
    %cst_8 = arith.constant 0.000000e+00 : f32
    %8 = vector.broadcast %cst_8 : f32 to vector<32x98xf32>
    %9 = arith.cmpf oge, %7, %8 : vector<32x98xf32>
    %cst_9 = arith.constant 0.00999999977 : f32
    %10 = vector.broadcast %cst_9 : f32 to vector<32x98xf32>
    %11 = arith.mulf %10, %7 : vector<32x98xf32>
    %12 = arith.select %9, %7, %11 : vector<32x98xi1>, vector<32x98xf32>
    %c1 = arith.constant 1 : index
    %c0_10 = arith.constant 0 : index
    %c0_11 = arith.constant 0 : index
    %13 = vector.load %arg1[%c1, %c0_10, %c0_11] : memref<4x288x98xbf16, #tpu.memory_space<vmem>>, vector<1x288x98xbf16>
    %14 = vector.shape_cast %13 : vector<1x288x98xbf16> to vector<288x98xbf16>
    %cst_12 = arith.constant dense<0.000000e+00> : vector<32x98xf32>
    %15 = tpu.matmul %0, %14, %cst_12 {dimension_numbers = #tpu.dot_dimension_numbers<[1], [0], [0], [1], [0, 0, 1, 1], [], []>} : vector<32x288xbf16>, vector<288x98xbf16>, vector<32x98xf32> -> vector<32x98xf32>
    %16 = vector.broadcast %1 : vector<32x1xf32> to vector<32x98xf32>
    %17 = arith.addf %15, %16 : vector<32x98xf32>
    %cst_13 = arith.constant 0.000000e+00 : f32
    %18 = vector.broadcast %cst_13 : f32 to vector<32x98xf32>
    %19 = arith.cmpf oge, %17, %18 : vector<32x98xf32>
    %cst_14 = arith.constant 0.00999999977 : f32
    %20 = vector.broadcast %cst_14 : f32 to vector<32x98xf32>
    %21 = arith.mulf %20, %17 : vector<32x98xf32>
    %22 = arith.select %19, %17, %21 : vector<32x98xi1>, vector<32x98xf32>
    %c2 = arith.constant 2 : index
    %c0_15 = arith.constant 0 : index
    %c0_16 = arith.constant 0 : index
    %23 = vector.load %arg1[%c2, %c0_15, %c0_16] : memref<4x288x98xbf16, #tpu.memory_space<vmem>>, vector<1x288x98xbf16>
    %24 = vector.shape_cast %23 : vector<1x288x98xbf16> to vector<288x98xbf16>
    %cst_17 = arith.constant dense<0.000000e+00> : vector<32x98xf32>
    %25 = tpu.matmul %0, %24, %cst_17 {dimension_numbers = #tpu.dot_dimension_numbers<[1], [0], [0], [1], [0, 0, 1, 1], [], []>} : vector<32x288xbf16>, vector<288x98xbf16>, vector<32x98xf32> -> vector<32x98xf32>
    %26 = vector.broadcast %1 : vector<32x1xf32> to vector<32x98xf32>
    %27 = arith.addf %25, %26 : vector<32x98xf32>
    %cst_18 = arith.constant 0.000000e+00 : f32
    %28 = vector.broadcast %cst_18 : f32 to vector<32x98xf32>
    %29 = arith.cmpf oge, %27, %28 : vector<32x98xf32>
    %cst_19 = arith.constant 0.00999999977 : f32
    %30 = vector.broadcast %cst_19 : f32 to vector<32x98xf32>
    %31 = arith.mulf %30, %27 : vector<32x98xf32>
    %32 = arith.select %29, %27, %31 : vector<32x98xi1>, vector<32x98xf32>
    %c3 = arith.constant 3 : index
    %c0_20 = arith.constant 0 : index
    %c0_21 = arith.constant 0 : index
    %33 = vector.load %arg1[%c3, %c0_20, %c0_21] : memref<4x288x98xbf16, #tpu.memory_space<vmem>>, vector<1x288x98xbf16>
    %34 = vector.shape_cast %33 : vector<1x288x98xbf16> to vector<288x98xbf16>
    %cst_22 = arith.constant dense<0.000000e+00> : vector<32x98xf32>
    %35 = tpu.matmul %0, %34, %cst_22 {dimension_numbers = #tpu.dot_dimension_numbers<[1], [0], [0], [1], [0, 0, 1, 1], [], []>} : vector<32x288xbf16>, vector<288x98xbf16>, vector<32x98xf32> -> vector<32x98xf32>
    %36 = vector.broadcast %1 : vector<32x1xf32> to vector<32x98xf32>
    %37 = arith.addf %35, %36 : vector<32x98xf32>
    %cst_23 = arith.constant 0.000000e+00 : f32
    %38 = vector.broadcast %cst_23 : f32 to vector<32x98xf32>
    %39 = arith.cmpf oge, %37, %38 : vector<32x98xf32>
    %cst_24 = arith.constant 0.00999999977 : f32
    %40 = vector.broadcast %cst_24 : f32 to vector<32x98xf32>
    %41 = arith.mulf %40, %37 : vector<32x98xf32>
    %42 = arith.select %39, %37, %41 : vector<32x98xi1>, vector<32x98xf32>
    %c1_i32 = arith.constant 1 : i32
    %43 = vector.broadcast %c1_i32 : i32 to vector<1x98xi32>
    %44 = arith.addi %2, %43 : vector<1x98xi32>
    %c14_i32 = arith.constant 14 : i32
    %45 = vector.broadcast %c14_i32 : i32 to vector<1x98xi32>
    %46 = arith.addi %2, %45 : vector<1x98xi32>
    %c14_i32_25 = arith.constant 14 : i32
    %47 = vector.broadcast %c14_i32_25 : i32 to vector<1x98xi32>
    %48 = arith.addi %2, %47 : vector<1x98xi32>
    %c1_i32_26 = arith.constant 1 : i32
    %49 = vector.broadcast %c1_i32_26 : i32 to vector<1x98xi32>
    %50 = arith.addi %48, %49 : vector<1x98xi32>
    %51 = arith.maximumf %12, %22 : vector<32x98xf32>
    %52 = arith.cmpf ogt, %22, %12 : vector<32x98xf32>
    %53 = vector.shape_cast %44 : vector<1x98xi32> to vector<1x98xi32>
    %54 = vector.broadcast %53 : vector<1x98xi32> to vector<32x98xi32>
    %55 = vector.shape_cast %2 : vector<1x98xi32> to vector<1x98xi32>
    %56 = vector.broadcast %55 : vector<1x98xi32> to vector<32x98xi32>
    %57 = arith.select %52, %54, %56 : vector<32x98xi1>, vector<32x98xi32>
    %58 = arith.maximumf %32, %42 : vector<32x98xf32>
    %59 = arith.cmpf ogt, %42, %32 : vector<32x98xf32>
    %60 = vector.shape_cast %50 : vector<1x98xi32> to vector<1x98xi32>
    %61 = vector.broadcast %60 : vector<1x98xi32> to vector<32x98xi32>
    %62 = vector.shape_cast %46 : vector<1x98xi32> to vector<1x98xi32>
    %63 = vector.broadcast %62 : vector<1x98xi32> to vector<32x98xi32>
    %64 = arith.select %59, %61, %63 : vector<32x98xi1>, vector<32x98xi32>
    %65 = arith.maximumf %51, %58 : vector<32x98xf32>
    %c0_27 = arith.constant 0 : index
    %c0_28 = arith.constant 0 : index
    %66 = vector.load %arg5[%c0_27, %c0_28] : memref<32x98xf32, #tpu.memory_space<vmem>>, vector<32x98xf32>
    tpu.vector_store %arg5[%c0_27, %c0_28], %65 {strides = array<i32>} : memref<32x98xf32, #tpu.memory_space<vmem>>, vector<32x98xf32>,
    %67 = arith.cmpf ogt, %58, %51 : vector<32x98xf32>
    %68 = arith.select %67, %64, %57 : vector<32x98xi1>, vector<32x98xi32>
    %c0_29 = arith.constant 0 : index
    %c0_30 = arith.constant 0 : index
    %69 = vector.load %arg6[%c0_29, %c0_30] : memref<32x98xi32, #tpu.memory_space<vmem>>, vector<32x98xi32>
    tpu.vector_store %arg6[%c0_29, %c0_30], %68 {strides = array<i32>} : memref<32x98xi32, #tpu.memory_space<vmem>>, vector<32x98xi32>,
    return
  }
  func.func @transform_0(%arg0: i32) -> (i32, i32, i32) {
    %c0_i32 = arith.constant 0 : i32
    %c0_i32_0 = arith.constant 0 : i32
    %c0_i32_1 = arith.constant 0 : i32
    %c0_i32_2 = arith.constant 0 : i32
    return %c0_i32, %c0_i32_0, %c0_i32_1 : i32, i32, i32
  }
  func.func @transform_1(%arg0: i32) -> (i32, i32) {
    %c0_i32 = arith.constant 0 : i32
    %c0_i32_0 = arith.constant 0 : i32
    return %arg0, %c0_i32 : i32, i32
  }
  func.func @transform_2(%arg0: i32) -> (i32, i32) {
    %c0_i32 = arith.constant 0 : i32
    %c0_i32_0 = arith.constant 0 : i32
    return %arg0, %c0_i32 : i32, i32
  }
  func.func @transform_3(%arg0: i32) -> (i32, i32) {
    %c0_i32 = arith.constant 0 : i32
    %c0_i32_0 = arith.constant 0 : i32
    %c0_i32_1 = arith.constant 0 : i32
    return %c0_i32, %c0_i32_0 : i32, i32
  }
  func.func @transform_4(%arg0: i32) -> (i32, i32) {
    %c0_i32 = arith.constant 0 : i32
    %c0_i32_0 = arith.constant 0 : i32
    return %arg0, %c0_i32 : i32, i32
  }
  func.func @transform_5(%arg0: i32) -> (i32, i32) {
    %c0_i32 = arith.constant 0 : i32
    %c0_i32_0 = arith.constant 0 : i32
    return %arg0, %c0_i32 : i32, i32
  }
}

module attributes {stable_mosaic.version = 11 : i64} {
  func.func @_mlp_kernel(%arg0: i32, %arg1: memref<2x3136xbf16, #tpu.memory_space<vmem>>, %arg2: memref<3136x48xbf16, #tpu.memory_space<vmem>>, %arg3: memref<1x48xf32, #tpu.memory_space<vmem>>, %arg4: memref<48x16xbf16, #tpu.memory_space<vmem>>, %arg5: memref<1x16xf32, #tpu.memory_space<vmem>>, %arg6: memref<2x16xf32, #tpu.memory_space<vmem>>) attributes {dimension_semantics = [#tpu.dimension_semantics<arbitrary>], iteration_bounds = array<i64: 1>, scalar_prefetch = 0 : i64, scratch_operands = 0 : i64, tpu.core_type = #tpu.core_type<tc>, window_params = [{pipeline_mode = #tpu.pipeline_mode<synchronous>, transform_indices = @transform_0, window_bounds = array<i64: 2, 3136>}, {pipeline_mode = #tpu.pipeline_mode<synchronous>, transform_indices = @transform_1, window_bounds = array<i64: 3136, 48>}, {pipeline_mode = #tpu.pipeline_mode<synchronous>, transform_indices = @transform_2, window_bounds = array<i64: 1, 48>}, {pipeline_mode = #tpu.pipeline_mode<synchronous>, transform_indices = @transform_3, window_bounds = array<i64: 48, 16>}, {pipeline_mode = #tpu.pipeline_mode<synchronous>, transform_indices = @transform_4, window_bounds = array<i64: 1, 16>}, {pipeline_mode = #tpu.pipeline_mode<synchronous>, transform_indices = @transform_5, window_bounds = array<i64: 2, 16>}]} {
    %c0 = arith.constant 0 : index
    %c0_0 = arith.constant 0 : index
    %0 = vector.load %arg1[%c0, %c0_0] : memref<2x3136xbf16, #tpu.memory_space<vmem>>, vector<2x3136xbf16>
    %c0_1 = arith.constant 0 : index
    %c0_2 = arith.constant 0 : index
    %1 = vector.load %arg2[%c0_1, %c0_2] : memref<3136x48xbf16, #tpu.memory_space<vmem>>, vector<3136x48xbf16>
    %cst = arith.constant dense<0.000000e+00> : vector<2x48xf32>
    %2 = tpu.matmul %0, %1, %cst {dimension_numbers = #tpu.dot_dimension_numbers<[1], [0], [0], [1], [0, 0, 1, 1], [], []>} : vector<2x3136xbf16>, vector<3136x48xbf16>, vector<2x48xf32> -> vector<2x48xf32>
    %c0_3 = arith.constant 0 : index
    %c0_4 = arith.constant 0 : index
    %3 = vector.load %arg3[%c0_3, %c0_4] : memref<1x48xf32, #tpu.memory_space<vmem>>, vector<1x48xf32>
    %4 = vector.broadcast %3 : vector<1x48xf32> to vector<2x48xf32>
    %5 = arith.addf %2, %4 : vector<2x48xf32>
    %cst_5 = arith.constant 0.000000e+00 : f32
    %6 = vector.broadcast %cst_5 : f32 to vector<2x48xf32>
    %7 = arith.cmpf oge, %5, %6 : vector<2x48xf32>
    %cst_6 = arith.constant 0.00999999977 : f32
    %8 = vector.broadcast %cst_6 : f32 to vector<2x48xf32>
    %9 = arith.mulf %8, %5 : vector<2x48xf32>
    %10 = arith.select %7, %5, %9 : vector<2x48xi1>, vector<2x48xf32>
    %11 = arith.truncf %10 : vector<2x48xf32> to vector<2x48xbf16>
    %c0_7 = arith.constant 0 : index
    %c0_8 = arith.constant 0 : index
    %12 = vector.load %arg4[%c0_7, %c0_8] : memref<48x16xbf16, #tpu.memory_space<vmem>>, vector<48x16xbf16>
    %cst_9 = arith.constant dense<0.000000e+00> : vector<2x16xf32>
    %13 = tpu.matmul %11, %12, %cst_9 {dimension_numbers = #tpu.dot_dimension_numbers<[1], [0], [0], [1], [0, 0, 1, 1], [], []>} : vector<2x48xbf16>, vector<48x16xbf16>, vector<2x16xf32> -> vector<2x16xf32>
    %c0_10 = arith.constant 0 : index
    %c0_11 = arith.constant 0 : index
    %14 = vector.load %arg5[%c0_10, %c0_11] : memref<1x16xf32, #tpu.memory_space<vmem>>, vector<1x16xf32>
    %15 = vector.broadcast %14 : vector<1x16xf32> to vector<2x16xf32>
    %16 = arith.addf %13, %15 : vector<2x16xf32>
    %17 = arith.negf %16 : vector<2x16xf32>
    %18 = math.exp %17 : vector<2x16xf32>
    %cst_12 = arith.constant 1.000000e+00 : f32
    %19 = vector.broadcast %cst_12 : f32 to vector<2x16xf32>
    %20 = arith.addf %19, %18 : vector<2x16xf32>
    %21 = arith.divf %19, %20 : vector<2x16xf32>
    %c0_13 = arith.constant 0 : index
    %c0_14 = arith.constant 0 : index
    %22 = vector.load %arg6[%c0_13, %c0_14] : memref<2x16xf32, #tpu.memory_space<vmem>>, vector<2x16xf32>
    tpu.vector_store %arg6[%c0_13, %c0_14], %21 {strides = array<i32>} : memref<2x16xf32, #tpu.memory_space<vmem>>, vector<2x16xf32>,
    return
  }
  func.func @transform_0(%arg0: i32) -> (i32, i32) {
    %c0_i32 = arith.constant 0 : i32
    %c0_i32_0 = arith.constant 0 : i32
    %c0_i32_1 = arith.constant 0 : i32
    return %c0_i32, %c0_i32_0 : i32, i32
  }
  func.func @transform_1(%arg0: i32) -> (i32, i32) {
    %c0_i32 = arith.constant 0 : i32
    %c0_i32_0 = arith.constant 0 : i32
    %c0_i32_1 = arith.constant 0 : i32
    return %c0_i32, %c0_i32_0 : i32, i32
  }
  func.func @transform_2(%arg0: i32) -> (i32, i32) {
    %c0_i32 = arith.constant 0 : i32
    %c0_i32_0 = arith.constant 0 : i32
    %c0_i32_1 = arith.constant 0 : i32
    return %c0_i32, %c0_i32_0 : i32, i32
  }
  func.func @transform_3(%arg0: i32) -> (i32, i32) {
    %c0_i32 = arith.constant 0 : i32
    %c0_i32_0 = arith.constant 0 : i32
    %c0_i32_1 = arith.constant 0 : i32
    return %c0_i32, %c0_i32_0 : i32, i32
  }
  func.func @transform_4(%arg0: i32) -> (i32, i32) {
    %c0_i32 = arith.constant 0 : i32
    %c0_i32_0 = arith.constant 0 : i32
    %c0_i32_1 = arith.constant 0 : i32
    return %c0_i32, %c0_i32_0 : i32, i32
  }
  func.func @transform_5(%arg0: i32) -> (i32, i32) {
    %c0_i32 = arith.constant 0 : i32
    %c0_i32_0 = arith.constant 0 : i32
    %c0_i32_1 = arith.constant 0 : i32
    return %c0_i32, %c0_i32_0 : i32, i32
  }
}

</mosaic_0001>

<llo_original>
// kernel: encoder_forward.4
$region0: #{encoder_forward.4}
  #allocation0 [shape = 'u32[]', space=smem, size = 0x4, offset = 0x4, fixed_abs, tag = 'smem constant byte address 0x4 - core index']
  #allocation1 [shape = 'u32[72,128]{1,0:T(1,128)}', space=vmem, size = 0x9000, scoped, tag = 'internal scratch']
  %s0 = inlined_call_operand.vmem [shape: bf16[4,27,1568], index: 0, kind: input, shape index: {}]
  %s1 = inlined_call_operand.vmem [shape: bf16[16,27], index: 1, kind: input, shape index: {}]
  %s2 = inlined_call_operand.vmem [shape: f32[16,1], index: 2, kind: input, shape index: {}]
  %s3 = inlined_call_operand.vmem [shape: s32[1,1568], index: 3, kind: input, shape index: {}]
  %s4 = inlined_call_operand.vmem [shape: f32[16,1568], index: 4, kind: output, shape index: {0}]
  %s5 = inlined_call_operand.vmem [shape: s32[16,1568], index: 5, kind: output, shape index: {1}]
  %6 = xla_tuple %s4, %s5
  %s7 = sld [smem:[#allocation0]]
  $region57: #{encoder_forward.4} parent=0
    _
  %s9 = ssub.s32 1, %s7
  %s10 = scalar_select 0, %s9, %s7
  loop: start=0, step=1, limit=4
  $region2: #{encoder_forward.4} parent=0 // loop_pre_header
    _
  $region3: #{encoder_forward.4} parent=0 // loop_header
    %s12 = sphi 0, %s16
    %p13 = scmp.ge.s32.totalorder %s12, 4
    %s20 = sphi 0, %s20
    %s22 = sphi 0, %s20
    %s23 = sphi 0, %s22
    %s37 = sphi 0, %s23
    %s43 = sphi 0, %s45
    %s46 = sphi 0, %s43
    %s47 = sphi 0, %s46
    %s63 = sphi 0, %s47
    %s69 = sphi 0, %s71
    %s72 = sphi 0, %s69
    %s73 = sphi 0, %s72
    %s89 = sphi 0, %s73
    %s93 = sphi 0, %s93
    %s95 = sphi 0, %s93
    %s96 = sphi 0, %s95
    %s110 = sphi 0, %s96
    %s116 = sphi 0, %s118
    %s119 = sphi 0, %s116
    %s120 = sphi 0, %s119
    %s136 = sphi 0, %s120
    %s142 = sphi 0, %s144
    %s145 = sphi 0, %s142
    %s146 = sphi 0, %s145
    %s162 = sphi 0, %s146
  $region4: #{encoder_forward.4} parent=0 // loop_header_branch
    %15 = sbr.rel (%p13) target = $region8
  $region5: #{encoder_forward.4} parent=0 // loop_body
    %s17 = ssub.s32 %s12, 1
    %s18 = ssub.s32 %s12, 2
    %s19 = sadd.s32 %s12, 1
    %s21 = sadd.s32 %s20, 1
    %p24 = scmp.eq.s32.totalorder %s12, 1
    %p25 = scmp.ne.s32.totalorder %s20, %s22
    %p26 = scmp.eq.s32.totalorder %s12, 0
    %p27 = por %p25, %p26
    %p28 = scmp.ne.s32.totalorder %s20, %s22
    %p29 = scmp.eq.s32.totalorder %s17, 1
    %p30 = por %p28, %p29
    %p31 = scmp.ne.s32.totalorder %s22, %s23
    %p32 = scmp.eq.s32.totalorder %s17, 0
    %p33 = por %p31, %p32
    %p34 = scmp.ne.s32.totalorder %s22, %s23
    %p35 = scmp.eq.s32.totalorder %s18, 1
    %p36 = por %p34, %p35
    %p38 = scmp.ne.s32.totalorder %s23, %s37
    %p39 = scmp.eq.s32.totalorder %s18, 0
    %p40 = por %p38, %p39
    %s41 = ssub.s32 %s12, %s19
    %p42 = scmp.eq.s32.totalorder %s41, 0
    %s44 = sadd.s32 %s43, 1
    %s45 = scalar_select %p42, %s43, %s44
    %p48 = pneg %p42
    %p49 = scmp.eq.s32.totalorder %s12, 1
    %p50 = por %p48, %p49
    %p51 = scmp.ne.s32.totalorder %s43, %s46
    %p52 = scmp.eq.s32.totalorder %s12, 0
    %p53 = por %p51, %p52
    %p54 = scmp.ne.s32.totalorder %s43, %s46
    %p55 = scmp.eq.s32.totalorder %s17, 1
    %p56 = por %p54, %p55
    %p57 = scmp.ne.s32.totalorder %s46, %s47
    %p58 = scmp.eq.s32.totalorder %s17, 0
    %p59 = por %p57, %p58
    %p60 = scmp.ne.s32.totalorder %s46, %s47
    %p61 = scmp.eq.s32.totalorder %s18, 1
    %p62 = por %p60, %p61
    %p64 = scmp.ne.s32.totalorder %s47, %s63
    %p65 = scmp.eq.s32.totalorder %s18, 0
    %p66 = por %p64, %p65
    %s67 = ssub.s32 %s12, %s19
    %p68 = scmp.eq.s32.totalorder %s67, 0
    %s70 = sadd.s32 %s69, 1
    %s71 = scalar_select %p68, %s69, %s70
    %p74 = pneg %p68
    %p75 = scmp.eq.s32.totalorder %s12, 1
    %p76 = por %p74, %p75
    %p77 = scmp.ne.s32.totalorder %s69, %s72
    %p78 = scmp.eq.s32.totalorder %s12, 0
    %p79 = por %p77, %p78
    %p80 = scmp.ne.s32.totalorder %s69, %s72
    %p81 = scmp.eq.s32.totalorder %s17, 1
    %p82 = por %p80, %p81
    %p83 = scmp.ne.s32.totalorder %s72, %s73
    %p84 = scmp.eq.s32.totalorder %s17, 0
    %p85 = por %p83, %p84
    %p86 = scmp.ne.s32.totalorder %s72, %s73
    %p87 = scmp.eq.s32.totalorder %s18, 1
    %p88 = por %p86, %p87
    %p90 = scmp.ne.s32.totalorder %s73, %s89
    %p91 = scmp.eq.s32.totalorder %s18, 0
    %p92 = por %p90, %p91
    %s94 = sadd.s32 %s93, 1
    %p97 = scmp.eq.s32.totalorder %s12, 1
    %p98 = scmp.ne.s32.totalorder %s93, %s95
    %p99 = scmp.eq.s32.totalorder %s12, 0
    %p100 = por %p98, %p99
    %p101 = scmp.ne.s32.totalorder %s93, %s95
    %p102 = scmp.eq.s32.totalorder %s17, 1
    %p103 = por %p101, %p102
    %p104 = scmp.ne.s32.totalorder %s95, %s96
    %p105 = scmp.eq.s32.totalorder %s17, 0
    %p106 = por %p104, %p105
    %p107 = scmp.ne.s32.totalorder %s95, %s96
    %p108 = scmp.eq.s32.totalorder %s18, 1
    %p109 = por %p107, %p108
    %p111 = scmp.ne.s32.totalorder %s96, %s110
    %p112 = scmp.eq.s32.totalorder %s18, 0
    %p113 = por %p111, %p112
    %s114 = ssub.s32 %s12, %s19
    %p115 = scmp.eq.s32.totalorder %s114, 0
    %s117 = sadd.s32 %s116, 1
    %s118 = scalar_select %p115, %s116, %s117
    %p121 = pneg %p115
    %p122 = scmp.eq.s32.totalorder %s12, 1
    %p123 = por %p121, %p122
    %p124 = scmp.ne.s32.totalorder %s116, %s119
    %p125 = scmp.eq.s32.totalorder %s12, 0
    %p126 = por %p124, %p125
    %p127 = scmp.ne.s32.totalorder %s116, %s119
    %p128 = scmp.eq.s32.totalorder %s17, 1
    %p129 = por %p127, %p128
    %p130 = scmp.ne.s32.totalorder %s119, %s120
    %p131 = scmp.eq.s32.totalorder %s17, 0
    %p132 = por %p130, %p131
    %p133 = scmp.ne.s32.totalorder %s119, %s120
    %p134 = scmp.eq.s32.totalorder %s18, 1
    %p135 = por %p133, %p134
    %p137 = scmp.ne.s32.totalorder %s120, %s136
    %p138 = scmp.eq.s32.totalorder %s18, 0
    %p139 = por %p137, %p138
    %s140 = ssub.s32 %s12, %s19
    %p141 = scmp.eq.s32.totalorder %s140, 0
    %s143 = sadd.s32 %s142, 1
    %s144 = scalar_select %p141, %s142, %s143
    %p147 = pneg %p141
    %p148 = scmp.eq.s32.totalorder %s12, 1
    %p149 = por %p147, %p148
    %p150 = scmp.ne.s32.totalorder %s142, %s145
    %p151 = scmp.eq.s32.totalorder %s12, 0
    %p152 = por %p150, %p151
    %p153 = scmp.ne.s32.totalorder %s142, %s145
    %p154 = scmp.eq.s32.totalorder %s17, 1
    %p155 = por %p153, %p154
    %p156 = scmp.ne.s32.totalorder %s145, %s146
    %p157 = scmp.eq.s32.totalorder %s17, 0
    %p158 = por %p156, %p157
    %p159 = scmp.ne.s32.totalorder %s145, %s146
    %p160 = scmp.eq.s32.totalorder %s18, 1
    %p161 = por %p159, %p160
    %p163 = scmp.ne.s32.totalorder %s146, %s162
    %p164 = scmp.eq.s32.totalorder %s18, 0
    %p165 = por %p163, %p164
    %p166 = scmp.le.s32.totalorder 1, %s12
    %p167 = scmp.lt.s32.totalorder %s12, 3
    %p168 = pnand %p166, %p167
    %p169 = pneg %p168
    // Predicated region
    $region9: #{encoder_forward.4} parent=5 // pred_check
      _
    $region10: #{encoder_forward.4} parent=5 // pred_check_branch
      %171 = sbr.rel (%p168) target = $region12
    $region11: #{encoder_forward.4} parent=5 // pred_region
      %s172 = ssub.s32 %s12, 1
      // Predicated region
      $region13: #{encoder_forward.4} parent=11 // pred_check
        %p173 = pneg %p33
      $region14: #{encoder_forward.4} parent=11 // pred_check_branch
        %175 = sbr.rel (%p173) target = $region16
      $region15: #{encoder_forward.4} parent=11 // pred_region
        _
      $region16: #{encoder_forward.4} parent=11 // pred_fallthru
        _
      // Predicated region
      $region17: #{encoder_forward.4} parent=11 // pred_check
        %p176 = pneg %p106
      $region18: #{encoder_forward.4} parent=11 // pred_check_branch
        %178 = sbr.rel (%p176) target = $region20
      $region19: #{encoder_forward.4} parent=11 // pred_region
        _
      $region20: #{encoder_forward.4} parent=11 // pred_fallthru
        _
    $region12: #{encoder_forward.4} parent=5 // pred_fallthru
      _
    %p179 = scmp.lt.s32.totalorder %s12, 2
    // Predicated region
    $region21: #{encoder_forward.4} parent=5 // pred_check
      %p180 = pneg %p179
    $region22: #{encoder_forward.4} parent=5 // pred_check_branch
      %182 = sbr.rel (%p180) target = $region24
    $region23: #{encoder_forward.4} parent=5 // pred_region
      // Predicated region
      $region25: #{encoder_forward.4} parent=23 // pred_check
        %p183 = pneg %p53
      $region26: #{encoder_forward.4} parent=23 // pred_check_branch
        %185 = sbr.rel (%p183) target = $region28
      $region27: #{encoder_forward.4} parent=23 // pred_region
        %p186 = scmp.lt.s32.totalorder %s12, 1
        %s187 = scalar_select %p186, %s12, 1
        %s188 = smul.addr %s187, 4
        %s189 = scalar_lea.vmem %s1, %s188
      $region28: #{encoder_forward.4} parent=23 // pred_fallthru
        _
      // Predicated region
      $region29: #{encoder_forward.4} parent=23 // pred_check
        %p190 = pneg %p79
      $region30: #{encoder_forward.4} parent=23 // pred_check_branch
        %192 = sbr.rel (%p190) target = $region32
      $region31: #{encoder_forward.4} parent=23 // pred_region
        %p193 = scmp.lt.s32.totalorder %s12, 1
        %s194 = scalar_select %p193, %s12, 1
        %s195 = smul.addr %s194, 8
        %s196 = scalar_lea.vmem %s2, %s195
      $region32: #{encoder_forward.4} parent=23 // pred_fallthru
        _
    $region24: #{encoder_forward.4} parent=5 // pred_fallthru
      _
    %p197 = scmp.le.s32.totalorder 1, %s12
    %p198 = scmp.lt.s32.totalorder %s12, 3
    %p199 = pnand %p197, %p198
    %p200 = pneg %p199
    // Predicated region
    $region33: #{encoder_forward.4} parent=5 // pred_check
      _
    $region34: #{encoder_forward.4} parent=5 // pred_check_branch
      %202 = sbr.rel (%p199) target = $region36
    $region35: #{encoder_forward.4} parent=5 // pred_region
      %s203 = ssub.s32 %s12, 1
      %p204 = pneg %p33
      %p205 = pneg %p30
      %p206 = scmp.lt.s32.totalorder %s17, 1
      %s207 = scalar_select %p206, %s17, 1
      %s208 = smul.addr %s207, 4
      %s209 = scalar_lea.vmem %s1, %s208
      %p210 = pneg %p59
      %p211 = pneg %p56
      %p212 = scmp.lt.s32.totalorder %s17, 1
      %s213 = scalar_select %p212, %s17, 1
      %s214 = smul.addr %s213, 8
      %s215 = scalar_lea.vmem %s2, %s214
      %p216 = pneg %p85
      %p217 = pneg %p82
      %p218 = pneg %p106
      %p219 = pneg %p103
      %p220 = pneg %p132
      %p221 = pneg %p129
      %p222 = scmp.lt.s32.totalorder %s17, 1
      %s223 = scalar_select %p222, %s17, 1
      %s224 = smul.addr %s223, 13
      %s225 = smul.addr %s224, 8
      %s226 = scalar_lea.vmem %s4, %s225
      %p227 = pneg %p158
      %p228 = pneg %p155
      %p229 = scmp.lt.s32.totalorder %s17, 1
      %s230 = scalar_select %p229, %s17, 1
      %s231 = smul.addr %s230, 13
      %s232 = smul.addr %s231, 8
      %s233 = scalar_lea.vmem %s5, %s232
      %p234 = scmp.lt.s32.totalorder %s17, 1
      %s235 = scalar_select %p234, %s17, 1
      %s236 = smul.addr %s235, 4
      %s237 = scalar_lea.vmem %s1, %s236
      %p238 = scmp.lt.s32.totalorder %s17, 1
      %s239 = scalar_select %p238, %s17, 1
      %s240 = smul.addr %s239, 8
      %s241 = scalar_lea.vmem %s2, %s240
      %p242 = scmp.lt.s32.totalorder %s17, 1
      %s243 = scalar_select %p242, %s17, 1
      %s244 = smul.addr %s243, 13
      %s245 = smul.addr %s244, 8
      %s246 = scalar_lea.vmem %s4, %s245
      %p247 = scmp.lt.s32.totalorder %s17, 1
      %s248 = scalar_select %p247, %s17, 1
      %s249 = smul.addr %s248, 13
      %s250 = smul.addr %s249, 8
      %s251 = scalar_lea.vmem %s5, %s250
      %v253 = vld [vmem:[%s237] sm:$0xf]
      %v254 = vld [vmem:[%s241] sm:$0xff]
      %v255 = vld [vmem:[%s3] sm:$0xff]
      %v256 = vld [vmem:[%s3 + $0x8] sm:$0x1f]
      %v257 = vld [vmem:[%s0] sm:$0xff]
      %v258 = vld [vmem:[%s0 + $0x8] sm:$0xff]
      %v259 = vld [vmem:[%s0 + $0x10] sm:$0xff]
      %v260 = vld [vmem:[%s0 + $0x18] sm:$0xff]
      %v261 = vld [vmem:[%s0 + $0x20] sm:$0xff]
      %v262 = vld [vmem:[%s0 + $0x28] sm:$0xff]
      %v263 = vld [vmem:[%s0 + $0x30] sm:$0xf]
      %v264 = vld [vmem:[%s0 + $0x34] sm:$0xff]
      %v265 = vld [vmem:[%s0 + $0x3c] sm:$0xff]
      %v266 = vld [vmem:[%s0 + $0x44] sm:$0xff]
      %v267 = vld [vmem:[%s0 + $0x4c] sm:$0xff]
      %v268 = vld [vmem:[%s0 + $0x54] sm:$0xff]
      %v269 = vld [vmem:[%s0 + $0x5c] sm:$0xff]
      %v270 = vld [vmem:[%s0 + $0x64] sm:$0xf]
      %v271 = vld [vmem:[%s0 + $0x68] sm:$0xff]
      %v272 = vld [vmem:[%s0 + $0x70] sm:$0xff]
      %v273 = vld [vmem:[%s0 + $0x78] sm:$0xff]
      %v274 = vld [vmem:[%s0 + $0x80] sm:$0xff]
      %v275 = vld [vmem:[%s0 + $0x88] sm:$0xff]
      %v276 = vld [vmem:[%s0 + $0x90] sm:$0xff]
      %v277 = vld [vmem:[%s0 + $0x98] sm:$0xf]
      %v278 = vld [vmem:[%s0 + $0x9c] sm:$0x33]
      %v279 = vld [vmem:[%s0 + $0xa4] sm:$0x33]
      %v280 = vld [vmem:[%s0 + $0xac] sm:$0x33]
      %v281 = vld [vmem:[%s0 + $0xb4] sm:$0x33]
      %v282 = vld [vmem:[%s0 + $0xbc] sm:$0x33]
      %v283 = vld [vmem:[%s0 + $0xc4] sm:$0x33]
      %v284 = vld [vmem:[%s0 + $0xcc] sm:$0x3]
      %286 = vset.pattern.permute.xlu0 0
      %287 = vperm.xlu0 %286, %v254
      %v288 = vpop.permute.xlu0 %287
      %v318 = vunpack.c.l.b16 %v257
      %v319 = vunpack.c.h.b16 %v257
      %v320 = vunpack.c.l.b16 %v258
      %v321 = vunpack.c.h.b16 %v258
      %v322 = vunpack.c.l.b16 %v259
      %v323 = vunpack.c.h.b16 %v259
      %v324 = vunpack.c.l.b16 %v260
      %v325 = vunpack.c.h.b16 %v260
      %v326 = vunpack.c.l.b16 %v261
      %v327 = vunpack.c.h.b16 %v261
      %v328 = vunpack.c.l.b16 %v262
      %v329 = vunpack.c.h.b16 %v262
      %v330 = vunpack.c.l.b16 %v263
      %v331 = vunpack.c.l.b16 %v264
      %v332 = vunpack.c.h.b16 %v264
      %v333 = vunpack.c.l.b16 %v265
      %v334 = vunpack.c.h.b16 %v265
      %v335 = vunpack.c.l.b16 %v266
      %v336 = vunpack.c.h.b16 %v266
      %v337 = vunpack.c.l.b16 %v267
      %v338 = vunpack.c.h.b16 %v267
      %v339 = vunpack.c.l.b16 %v268
      %v340 = vunpack.c.h.b16 %v268
      %v341 = vunpack.c.l.b16 %v269
      %v342 = vunpack.c.h.b16 %v269
      %v343 = vunpack.c.l.b16 %v270
      %v344 = vunpack.c.l.b16 %v271
      %v345 = vunpack.c.h.b16 %v271
      %v346 = vunpack.c.l.b16 %v272
      %v347 = vunpack.c.h.b16 %v272
      %v348 = vunpack.c.l.b16 %v273
      %v349 = vunpack.c.h.b16 %v273
      %v350 = vunpack.c.l.b16 %v274
      %v351 = vunpack.c.h.b16 %v274
      %v352 = vunpack.c.l.b16 %v275
      %v353 = vunpack.c.h.b16 %v275
      %v354 = vunpack.c.l.b16 %v276
      %v355 = vunpack.c.h.b16 %v276
      %v356 = vunpack.c.l.b16 %v277
      %v357 = vunpack.c.l.b16 %v278
      %v358 = vunpack.c.h.b16 %v278
      %v359 = vunpack.c.l.b16 %v279
      %v360 = vunpack.c.h.b16 %v279
      %v361 = vunpack.c.l.b16 %v280
      %v362 = vunpack.c.h.b16 %v280
      %v363 = vunpack.c.l.b16 %v281
      %v364 = vunpack.c.h.b16 %v281
      %v365 = vunpack.c.l.b16 %v282
      %v366 = vunpack.c.h.b16 %v282
      %v367 = vunpack.c.l.b16 %v283
      %v368 = vunpack.c.h.b16 %v283
      %v369 = vunpack.c.l.b16 %v284
      %v370 = vpack.c.b16 %v331, %v318
      %v371 = vpack.c.b16 %v332, %v319
      %v372 = vpack.c.b16 %v333, %v320
      %v373 = vpack.c.b16 %v334, %v321
      %v374 = vpack.c.b16 %v335, %v322
      %v375 = vpack.c.b16 %v336, %v323
      %v376 = vpack.c.b16 %v337, %v324
      %v377 = vpack.c.b16 %v338, %v325
      %v378 = vpack.c.b16 %v339, %v326
      %v379 = vpack.c.b16 %v340, %v327
      %v380 = vpack.c.b16 %v341, %v328
      %v381 = vpack.c.b16 %v342, %v329
      %v382 = vpack.c.b16 %v343, %v330
      %v383 = vpack.c.b16 %v357, %v344
      %v384 = vpack.c.b16 %v358, %v345
      %v385 = vpack.c.b16 %v359, %v346
      %v386 = vpack.c.b16 %v360, %v347
      %v387 = vpack.c.b16 %v361, %v348
      %v388 = vpack.c.b16 %v362, %v349
      %v389 = vpack.c.b16 %v363, %v350
      %v390 = vpack.c.b16 %v364, %v351
      %v391 = vpack.c.b16 %v365, %v352
      %v392 = vpack.c.b16 %v366, %v353
      %v393 = vpack.c.b16 %v367, %v354
      %v394 = vpack.c.b16 %v368, %v355
      %v395 = vpack.c.b16 %v369, %v356
      %vm409 = vcmask 220160
      %v411 = vsel %vm409, %v253, 0
      %vm413 = vcmask 1044480
      %vm414 = vcmask 1045504
      %v415 = vsel %vm413, 4294967295, 65535
      %v416 = vsel %vm414, %v415, 0
      %v418 = vand.u32 %v383, %v416
      %v421 = vand.u32 %v384, %v416
      %v424 = vand.u32 %v385, %v416
      %v427 = vand.u32 %v386, %v416
      %v430 = vand.u32 %v387, %v416
      %v433 = vand.u32 %v388, %v416
      %v436 = vand.u32 %v389, %v416
      %v439 = vand.u32 %v390, %v416
      %v442 = vand.u32 %v391, %v416
      %v445 = vand.u32 %v392, %v416
      %v448 = vand.u32 %v393, %v416
      %v451 = vand.u32 %v394, %v416
      %v454 = vand.u32 %v395, %v416
      %456 = vmatpush.bf16.msra.mxu0 0
      %457 = vmatpush.bf16.msra.mxu0 0
      %458 = vmatpush.bf16.msra.mxu0 0
      %459 = vmatpush.bf16.msra.mxu0 0
      %460 = vmatpush.bf16.msra.mxu0 0
      %461 = vmatpush.bf16.msra.mxu0 0
      %462 = vmatpush.bf16.msra.mxu0 %v418
      %463 = vmatpush.bf16.msra.mxu0 %v370
      %464 = vmatmul.bf16.gmra.mxu0 %v411
      %v465 = vpop.f32.mrf.mxu0
      %v466 = vadd.f32 %v288, %v465
      %v467 = vpop.f32.mrf.mxu0
      %468 = vdwg.mxu0
      %469 = vmatpush.bf16.msra.mxu0 0
      %470 = vmatpush.bf16.msra.mxu0 0
      %471 = vmatpush.bf16.msra.mxu0 0
      %472 = vmatpush.bf16.msra.mxu0 0
      %473 = vmatpush.bf16.msra.mxu0 0
      %474 = vmatpush.bf16.msra.mxu0 0
      %475 = vmatpush.bf16.msra.mxu0 %v421
      %476 = vmatpush.bf16.msra.mxu0 %v371
      %477 = vmatmul.bf16.gmra.mxu0 %v411
      %v478 = vpop.f32.mrf.mxu0
      %v479 = vadd.f32 %v288, %v478
      %v480 = vpop.f32.mrf.mxu0
      %481 = vdwg.mxu0
      %482 = vmatpush.bf16.msra.mxu0 0
      %483 = vmatpush.bf16.msra.mxu0 0
      %484 = vmatpush.bf16.msra.mxu0 0
      %485 = vmatpush.bf16.msra.mxu0 0
      %486 = vmatpush.bf16.msra.mxu0 0
      %487 = vmatpush.bf16.msra.mxu0 0
      %488 = vmatpush.bf16.msra.mxu0 %v424
      %489 = vmatpush.bf16.msra.mxu0 %v372
      %490 = vmatmul.bf16.gmra.mxu0 %v411
      %v491 = vpop.f32.mrf.mxu0
      %v492 = vadd.f32 %v288, %v491
      %v493 = vpop.f32.mrf.mxu0
      %494 = vdwg.mxu0
      %495 = vmatpush.bf16.msra.mxu0 0
      %496 = vmatpush.bf16.msra.mxu0 0
      %497 = vmatpush.bf16.msra.mxu0 0
      %498 = vmatpush.bf16.msra.mxu0 0
      %499 = vmatpush.bf16.msra.mxu0 0
      %500 = vmatpush.bf16.msra.mxu0 0
      %501 = vmatpush.bf16.msra.mxu0 %v427
      %502 = vmatpush.bf16.msra.mxu0 %v373
      %503 = vmatmul.bf16.gmra.mxu0 %v411
      %v504 = vpop.f32.mrf.mxu0
      %v505 = vadd.f32 %v288, %v504
      %v506 = vpop.f32.mrf.mxu0
      %507 = vdwg.mxu0
      %508 = vmatpush.bf16.msra.mxu0 0
      %509 = vmatpush.bf16.msra.mxu0 0
      %510 = vmatpush.bf16.msra.mxu0 0
      %511 = vmatpush.bf16.msra.mxu0 0
      %512 = vmatpush.bf16.msra.mxu0 0
      %513 = vmatpush.bf16.msra.mxu0 0
      %514 = vmatpush.bf16.msra.mxu0 %v430
      %515 = vmatpush.bf16.msra.mxu0 %v374
      %516 = vmatmul.bf16.gmra.mxu0 %v411
      %v517 = vpop.f32.mrf.mxu0
      %v518 = vadd.f32 %v288, %v517
      %v519 = vpop.f32.mrf.mxu0
      %520 = vdwg.mxu0
      %521 = vmatpush.bf16.msra.mxu0 0
      %522 = vmatpush.bf16.msra.mxu0 0
      %523 = vmatpush.bf16.msra.mxu0 0
      %524 = vmatpush.bf16.msra.mxu0 0
      %525 = vmatpush.bf16.msra.mxu0 0
      %526 = vmatpush.bf16.msra.mxu0 0
      %527 = vmatpush.bf16.msra.mxu0 %v433
      %528 = vmatpush.bf16.msra.mxu0 %v375
      %529 = vmatmul.bf16.gmra.mxu0 %v411
      %v530 = vpop.f32.mrf.mxu0
      %v531 = vadd.f32 %v288, %v530
      %v532 = vpop.f32.mrf.mxu0
      %533 = vdwg.mxu0
      %534 = vmatpush.bf16.msra.mxu0 0
      %535 = vmatpush.bf16.msra.mxu0 0
      %536 = vmatpush.bf16.msra.mxu0 0
      %537 = vmatpush.bf16.msra.mxu0 0
      %538 = vmatpush.bf16.msra.mxu0 0
      %539 = vmatpush.bf16.msra.mxu0 0
      %540 = vmatpush.bf16.msra.mxu0 %v436
      %541 = vmatpush.bf16.msra.mxu0 %v376
      %542 = vmatmul.bf16.gmra.mxu0 %v411
      %v543 = vpop.f32.mrf.mxu0
      %v544 = vadd.f32 %v288, %v543
      %v545 = vpop.f32.mrf.mxu0
      %546 = vdwg.mxu0
      %547 = vmatpush.bf16.msra.mxu0 0
      %548 = vmatpush.bf16.msra.mxu0 0
      %549 = vmatpush.bf16.msra.mxu0 0
      %550 = vmatpush.bf16.msra.mxu0 0
      %551 = vmatpush.bf16.msra.mxu0 0
      %552 = vmatpush.bf16.msra.mxu0 0
      %553 = vmatpush.bf16.msra.mxu0 %v439
      %554 = vmatpush.bf16.msra.mxu0 %v377
      %555 = vmatmul.bf16.gmra.mxu0 %v411
      %v556 = vpop.f32.mrf.mxu0
      %v557 = vadd.f32 %v288, %v556
      %v558 = vpop.f32.mrf.mxu0
      %559 = vdwg.mxu0
      %560 = vmatpush.bf16.msra.mxu0 0
      %561 = vmatpush.bf16.msra.mxu0 0
      %562 = vmatpush.bf16.msra.mxu0 0
      %563 = vmatpush.bf16.msra.mxu0 0
      %564 = vmatpush.bf16.msra.mxu0 0
      %565 = vmatpush.bf16.msra.mxu0 0
      %566 = vmatpush.bf16.msra.mxu0 %v442
      %567 = vmatpush.bf16.msra.mxu0 %v378
      %568 = vmatmul.bf16.gmra.mxu0 %v411
      %v569 = vpop.f32.mrf.mxu0
      %v570 = vadd.f32 %v288, %v569
      %v571 = vpop.f32.mrf.mxu0
      %572 = vdwg.mxu0
      %573 = vmatpush.bf16.msra.mxu0 0
      %574 = vmatpush.bf16.msra.mxu0 0
      %575 = vmatpush.bf16.msra.mxu0 0
      %576 = vmatpush.bf16.msra.mxu0 0
      %577 = vmatpush.bf16.msra.mxu0 0
      %578 = vmatpush.bf16.msra.mxu0 0
      %579 = vmatpush.bf16.msra.mxu0 %v445
      %580 = vmatpush.bf16.msra.mxu0 %v379
      %581 = vmatmul.bf16.gmra.mxu0 %v411
      %v582 = vpop.f32.mrf.mxu0
      %v583 = vadd.f32 %v288, %v582
      %v584 = vpop.f32.mrf.mxu0
      %585 = vdwg.mxu0
      %586 = vmatpush.bf16.msra.mxu0 0
      %587 = vmatpush.bf16.msra.mxu0 0
      %588 = vmatpush.bf16.msra.mxu0 0
      %589 = vmatpush.bf16.msra.mxu0 0
      %590 = vmatpush.bf16.msra.mxu0 0
      %591 = vmatpush.bf16.msra.mxu0 0
      %592 = vmatpush.bf16.msra.mxu0 %v448
      %593 = vmatpush.bf16.msra.mxu0 %v380
      %594 = vmatmul.bf16.gmra.mxu0 %v411
      %v595 = vpop.f32.mrf.mxu0
      %v596 = vadd.f32 %v288, %v595
      %v597 = vpop.f32.mrf.mxu0
      %598 = vdwg.mxu0
      %599 = vmatpush.bf16.msra.mxu0 0
      %600 = vmatpush.bf16.msra.mxu0 0
      %601 = vmatpush.bf16.msra.mxu0 0
      %602 = vmatpush.bf16.msra.mxu0 0
      %603 = vmatpush.bf16.msra.mxu0 0
      %604 = vmatpush.bf16.msra.mxu0 0
      %605 = vmatpush.bf16.msra.mxu0 %v451
      %606 = vmatpush.bf16.msra.mxu0 %v381
      %607 = vmatmul.bf16.gmra.mxu0 %v411
      %v608 = vpop.f32.mrf.mxu0
      %v609 = vadd.f32 %v288, %v608
      %v610 = vpop.f32.mrf.mxu0
      %611 = vdwg.mxu0
      %612 = vmatpush.bf16.msra.mxu0 0
      %613 = vmatpush.bf16.msra.mxu0 0
      %614 = vmatpush.bf16.msra.mxu0 0
      %615 = vmatpush.bf16.msra.mxu0 0
      %616 = vmatpush.bf16.msra.mxu0 0
      %617 = vmatpush.bf16.msra.mxu0 0
      %618 = vmatpush.bf16.msra.mxu0 %v454
      %619 = vmatpush.bf16.msra.mxu0 %v382
      %620 = vmatmul.bf16.gmra.mxu0 %v411
      %v621 = vpop.f32.mrf.mxu0
      %v622 = vadd.f32 %v288, %v621
      %v623 = vpop.f32.mrf.mxu0
      %624 = vdwg.mxu0
      %vm625 = vcmp.ge.f32.partialorder %v466, 0.0
      %vm626 = vcmp.ge.f32.partialorder %v479, 0.0
      %vm627 = vcmp.ge.f32.partialorder %v492, 0.0
      %vm628 = vcmp.ge.f32.partialorder %v505, 0.0
      %vm629 = vcmp.ge.f32.partialorder %v518, 0.0
      %vm630 = vcmp.ge.f32.partialorder %v531, 0.0
      %vm631 = vcmp.ge.f32.partialorder %v544, 0.0
      %vm632 = vcmp.ge.f32.partialorder %v557, 0.0
      %vm633 = vcmp.ge.f32.partialorder %v570, 0.0
      %vm634 = vcmp.ge.f32.partialorder %v583, 0.0
      %vm635 = vcmp.ge.f32.partialorder %v596, 0.0
      %vm636 = vcmp.ge.f32.partialorder %v609, 0.0
      %vm637 = vcmp.ge.f32.partialorder %v622, 0.0
      %v638 = vmul.f32 %v466, 0.01
      %v639 = vmul.f32 %v479, 0.01
      %v640 = vmul.f32 %v492, 0.01
      %v641 = vmul.f32 %v505, 0.01
      %v642 = vmul.f32 %v518, 0.01
      %v643 = vmul.f32 %v531, 0.01
      %v644 = vmul.f32 %v544, 0.01
      %v645 = vmul.f32 %v557, 0.01
      %v646 = vmul.f32 %v570, 0.01
      %v647 = vmul.f32 %v583, 0.01
      %v648 = vmul.f32 %v596, 0.01
      %v649 = vmul.f32 %v609, 0.01
      %v650 = vmul.f32 %v622, 0.01
      %v651 = vsel %vm625, %v466, %v638
      %v652 = vsel %vm626, %v479, %v639
      %v653 = vsel %vm627, %v492, %v640
      %v654 = vsel %vm628, %v505, %v641
      %v655 = vsel %vm629, %v518, %v642
      %v656 = vsel %vm630, %v531, %v643
      %v657 = vsel %vm631, %v544, %v644
      %v658 = vsel %vm632, %v557, %v645
      %v659 = vsel %vm633, %v570, %v646
      %v660 = vsel %vm634, %v583, %v647
      %v661 = vsel %vm635, %v596, %v648
      %v662 = vsel %vm636, %v609, %v649
      %v663 = vsel %vm637, %v622, %v650
      %s664 = scalar_lea.vmem %s0, 208
      %v665 = vld [vmem:[%s664] sm:$0xff]
      %v666 = vld [vmem:[%s664 + $0x8] sm:$0xff]
      %v667 = vld [vmem:[%s664 + $0x10] sm:$0xff]
      %v668 = vld [vmem:[%s664 + $0x18] sm:$0xff]
      %v669 = vld [vmem:[%s664 + $0x20] sm:$0xff]
      %v670 = vld [vmem:[%s664 + $0x28] sm:$0xff]
      %v671 = vld [vmem:[%s664 + $0x30] sm:$0xf]
      %v672 = vld [vmem:[%s664 + $0x34] sm:$0xff]
      %v673 = vld [vmem:[%s664 + $0x3c] sm:$0xff]
      %v674 = vld [vmem:[%s664 + $0x44] sm:$0xff]
      %v675 = vld [vmem:[%s664 + $0x4c] sm:$0xff]
      %v676 = vld [vmem:[%s664 + $0x54] sm:$0xff]
      %v677 = vld [vmem:[%s664 + $0x5c] sm:$0xff]
      %v678 = vld [vmem:[%s664 + $0x64] sm:$0xf]
      %v679 = vld [vmem:[%s664 + $0x68] sm:$0xff]
      %v680 = vld [vmem:[%s664 + $0x70] sm:$0xff]
      %v681 = vld [vmem:[%s664 + $0x78] sm:$0xff]
      %v682 = vld [vmem:[%s664 + $0x80] sm:$0xff]
      %v683 = vld [vmem:[%s664 + $0x88] sm:$0xff]
      %v684 = vld [vmem:[%s664 + $0x90] sm:$0xff]
      %v685 = vld [vmem:[%s664 + $0x98] sm:$0xf]
      %v686 = vld [vmem:[%s664 + $0x9c] sm:$0x33]
      %v687 = vld [vmem:[%s664 + $0xa4] sm:$0x33]
      %v688 = vld [vmem:[%s664 + $0xac] sm:$0x33]
      %v689 = vld [vmem:[%s664 + $0xb4] sm:$0x33]
      %v690 = vld [vmem:[%s664 + $0xbc] sm:$0x33]
      %v691 = vld [vmem:[%s664 + $0xc4] sm:$0x33]
      %v692 = vld [vmem:[%s664 + $0xcc] sm:$0x3]
      %v721 = vunpack.c.l.b16 %v665
      %v722 = vunpack.c.h.b16 %v665
      %v723 = vunpack.c.l.b16 %v666
      %v724 = vunpack.c.h.b16 %v666
      %v725 = vunpack.c.l.b16 %v667
      %v726 = vunpack.c.h.b16 %v667
      %v727 = vunpack.c.l.b16 %v668
      %v728 = vunpack.c.h.b16 %v668
      %v729 = vunpack.c.l.b16 %v669
      %v730 = vunpack.c.h.b16 %v669
      %v731 = vunpack.c.l.b16 %v670
      %v732 = vunpack.c.h.b16 %v670
      %v733 = vunpack.c.l.b16 %v671
      %v734 = vunpack.c.l.b16 %v672
      %v735 = vunpack.c.h.b16 %v672
      %v736 = vunpack.c.l.b16 %v673
      %v737 = vunpack.c.h.b16 %v673
      %v738 = vunpack.c.l.b16 %v674
      %v739 = vunpack.c.h.b16 %v674
      %v740 = vunpack.c.l.b16 %v675
      %v741 = vunpack.c.h.b16 %v675
      %v742 = vunpack.c.l.b16 %v676
      %v743 = vunpack.c.h.b16 %v676
      %v744 = vunpack.c.l.b16 %v677
      %v745 = vunpack.c.h.b16 %v677
      %v746 = vunpack.c.l.b16 %v678
      %v747 = vunpack.c.l.b16 %v679
      %v748 = vunpack.c.h.b16 %v679
      %v749 = vunpack.c.l.b16 %v680
      %v750 = vunpack.c.h.b16 %v680
      %v751 = vunpack.c.l.b16 %v681
      %v752 = vunpack.c.h.b16 %v681
      %v753 = vunpack.c.l.b16 %v682
      %v754 = vunpack.c.h.b16 %v682
      %v755 = vunpack.c.l.b16 %v683
      %v756 = vunpack.c.h.b16 %v683
      %v757 = vunpack.c.l.b16 %v684
      %v758 = vunpack.c.h.b16 %v684
      %v759 = vunpack.c.l.b16 %v685
      %v760 = vunpack.c.l.b16 %v686
      %v761 = vunpack.c.h.b16 %v686
      %v762 = vunpack.c.l.b16 %v687
      %v763 = vunpack.c.h.b16 %v687
      %v764 = vunpack.c.l.b16 %v688
      %v765 = vunpack.c.h.b16 %v688
      %v766 = vunpack.c.l.b16 %v689
      %v767 = vunpack.c.h.b16 %v689
      %v768 = vunpack.c.l.b16 %v690
      %v769 = vunpack.c.h.b16 %v690
      %v770 = vunpack.c.l.b16 %v691
      %v771 = vunpack.c.h.b16 %v691
      %v772 = vunpack.c.l.b16 %v692
      %v773 = vpack.c.b16 %v734, %v721
      %v774 = vpack.c.b16 %v735, %v722
      %v775 = vpack.c.b16 %v736, %v723
      %v776 = vpack.c.b16 %v737, %v724
      %v777 = vpack.c.b16 %v738, %v725
      %v778 = vpack.c.b16 %v739, %v726
      %v779 = vpack.c.b16 %v740, %v727
      %v780 = vpack.c.b16 %v741, %v728
      %v781 = vpack.c.b16 %v742, %v729
      %v782 = vpack.c.b16 %v743, %v730
      %v783 = vpack.c.b16 %v744, %v731
      %v784 = vpack.c.b16 %v745, %v732
      %v785 = vpack.c.b16 %v746, %v733
      %v786 = vpack.c.b16 %v760, %v747
      %v787 = vpack.c.b16 %v761, %v748
      %v788 = vpack.c.b16 %v762, %v749
      %v789 = vpack.c.b16 %v763, %v750
      %v790 = vpack.c.b16 %v764, %v751
      %v791 = vpack.c.b16 %v765, %v752
      %v792 = vpack.c.b16 %v766, %v753
      %v793 = vpack.c.b16 %v767, %v754
      %v794 = vpack.c.b16 %v768, %v755
      %v795 = vpack.c.b16 %v769, %v756
      %v796 = vpack.c.b16 %v770, %v757
      %v797 = vpack.c.b16 %v771, %v758
      %v798 = vpack.c.b16 %v772, %v759
      %v813 = vand.u32 %v786, %v416
      %v816 = vand.u32 %v787, %v416
      %v819 = vand.u32 %v788, %v416
      %v822 = vand.u32 %v789, %v416
      %v825 = vand.u32 %v790, %v416
      %v828 = vand.u32 %v791, %v416
      %v831 = vand.u32 %v792, %v416
      %v834 = vand.u32 %v793, %v416
      %v837 = vand.u32 %v794, %v416
      %v840 = vand.u32 %v795, %v416
      %v843 = vand.u32 %v796, %v416
      %v846 = vand.u32 %v797, %v416
      %v849 = vand.u32 %v798, %v416
      %851 = vmatpush.bf16.msra.mxu0 0
      %852 = vmatpush.bf16.msra.mxu0 0
      %853 = vmatpush.bf16.msra.mxu0 0
      %854 = vmatpush.bf16.msra.mxu0 0
      %855 = vmatpush.bf16.msra.mxu0 0
      %856 = vmatpush.bf16.msra.mxu0 0
      %857 = vmatpush.bf16.msra.mxu0 %v813
      %858 = vmatpush.bf16.msra.mxu0 %v773
      %859 = vmatmul.bf16.gmra.mxu0 %v411
      %v860 = vpop.f32.mrf.mxu0
      %v861 = vadd.f32 %v288, %v860
      %v862 = vpop.f32.mrf.mxu0
      %863 = vdwg.mxu0
      %864 = vmatpush.bf16.msra.mxu0 0
      %865 = vmatpush.bf16.msra.mxu0 0
      %866 = vmatpush.bf16.msra.mxu0 0
      %867 = vmatpush.bf16.msra.mxu0 0
      %868 = vmatpush.bf16.msra.mxu0 0
      %869 = vmatpush.bf16.msra.mxu0 0
      %870 = vmatpush.bf16.msra.mxu0 %v816
      %871 = vmatpush.bf16.msra.mxu0 %v774
      %872 = vmatmul.bf16.gmra.mxu0 %v411
      %v873 = vpop.f32.mrf.mxu0
      %v874 = vadd.f32 %v288, %v873
      %v875 = vpop.f32.mrf.mxu0
      %876 = vdwg.mxu0
      %877 = vmatpush.bf16.msra.mxu0 0
      %878 = vmatpush.bf16.msra.mxu0 0
      %879 = vmatpush.bf16.msra.mxu0 0
      %880 = vmatpush.bf16.msra.mxu0 0
      %881 = vmatpush.bf16.msra.mxu0 0
      %882 = vmatpush.bf16.msra.mxu0 0
      %883 = vmatpush.bf16.msra.mxu0 %v819
      %884 = vmatpush.bf16.msra.mxu0 %v775
      %885 = vmatmul.bf16.gmra.mxu0 %v411
      %v886 = vpop.f32.mrf.mxu0
      %v887 = vadd.f32 %v288, %v886
      %v888 = vpop.f32.mrf.mxu0
      %889 = vdwg.mxu0
      %890 = vmatpush.bf16.msra.mxu0 0
      %891 = vmatpush.bf16.msra.mxu0 0
      %892 = vmatpush.bf16.msra.mxu0 0
      %893 = vmatpush.bf16.msra.mxu0 0
      %894 = vmatpush.bf16.msra.mxu0 0
      %895 = vmatpush.bf16.msra.mxu0 0
      %896 = vmatpush.bf16.msra.mxu0 %v822
      %897 = vmatpush.bf16.msra.mxu0 %v776
      %898 = vmatmul.bf16.gmra.mxu0 %v411
      %v899 = vpop.f32.mrf.mxu0
      %v900 = vadd.f32 %v288, %v899
      %v901 = vpop.f32.mrf.mxu0
      %902 = vdwg.mxu0
      %903 = vmatpush.bf16.msra.mxu0 0
      %904 = vmatpush.bf16.msra.mxu0 0
      %905 = vmatpush.bf16.msra.mxu0 0
      %906 = vmatpush.bf16.msra.mxu0 0
      %907 = vmatpush.bf16.msra.mxu0 0
      %908 = vmatpush.bf16.msra.mxu0 0
      %909 = vmatpush.bf16.msra.mxu0 %v825
      %910 = vmatpush.bf16.msra.mxu0 %v777
      %911 = vmatmul.bf16.gmra.mxu0 %v411
      %v912 = vpop.f32.mrf.mxu0
      %v913 = vadd.f32 %v288, %v912
      %v914 = vpop.f32.mrf.mxu0
      %915 = vdwg.mxu0
      %916 = vmatpush.bf16.msra.mxu0 0
      %917 = vmatpush.bf16.msra.mxu0 0
      %918 = vmatpush.bf16.msra.mxu0 0
      %919 = vmatpush.bf16.msra.mxu0 0
      %920 = vmatpush.bf16.msra.mxu0 0
      %921 = vmatpush.bf16.msra.mxu0 0
      %922 = vmatpush.bf16.msra.mxu0 %v828
      %923 = vmatpush.bf16.msra.mxu0 %v778
      %924 = vmatmul.bf16.gmra.mxu0 %v411
      %v925 = vpop.f32.mrf.mxu0
      %v926 = vadd.f32 %v288, %v925
      %v927 = vpop.f32.mrf.mxu0
      %928 = vdwg.mxu0
      %929 = vmatpush.bf16.msra.mxu0 0
      %930 = vmatpush.bf16.msra.mxu0 0
      %931 = vmatpush.bf16.msra.mxu0 0
      %932 = vmatpush.bf16.msra.mxu0 0
      %933 = vmatpush.bf16.msra.mxu0 0
      %934 = vmatpush.bf16.msra.mxu0 0
      %935 = vmatpush.bf16.msra.mxu0 %v831
      %936 = vmatpush.bf16.msra.mxu0 %v779
      %937 = vmatmul.bf16.gmra.mxu0 %v411
      %v938 = vpop.f32.mrf.mxu0
      %v939 = vadd.f32 %v288, %v938
      %v940 = vpop.f32.mrf.mxu0
      %941 = vdwg.mxu0
      %942 = vmatpush.bf16.msra.mxu0 0
      %943 = vmatpush.bf16.msra.mxu0 0
      %944 = vmatpush.bf16.msra.mxu0 0
      %945 = vmatpush.bf16.msra.mxu0 0
      %946 = vmatpush.bf16.msra.mxu0 0
      %947 = vmatpush.bf16.msra.mxu0 0
      %948 = vmatpush.bf16.msra.mxu0 %v834
      %949 = vmatpush.bf16.msra.mxu0 %v780
      %950 = vmatmul.bf16.gmra.mxu0 %v411
      %v951 = vpop.f32.mrf.mxu0
      %v952 = vadd.f32 %v288, %v951
      %v953 = vpop.f32.mrf.mxu0
      %954 = vdwg.mxu0
      %955 = vmatpush.bf16.msra.mxu0 0
      %956 = vmatpush.bf16.msra.mxu0 0
      %957 = vmatpush.bf16.msra.mxu0 0
      %958 = vmatpush.bf16.msra.mxu0 0
      %959 = vmatpush.bf16.msra.mxu0 0
      %960 = vmatpush.bf16.msra.mxu0 0
      %961 = vmatpush.bf16.msra.mxu0 %v837
      %962 = vmatpush.bf16.msra.mxu0 %v781
      %963 = vmatmul.bf16.gmra.mxu0 %v411
      %v964 = vpop.f32.mrf.mxu0
      %v965 = vadd.f32 %v288, %v964
      %v966 = vpop.f32.mrf.mxu0
      %967 = vdwg.mxu0
      %968 = vmatpush.bf16.msra.mxu0 0
      %969 = vmatpush.bf16.msra.mxu0 0
      %970 = vmatpush.bf16.msra.mxu0 0
      %971 = vmatpush.bf16.msra.mxu0 0
      %972 = vmatpush.bf16.msra.mxu0 0
      %973 = vmatpush.bf16.msra.mxu0 0
      %974 = vmatpush.bf16.msra.mxu0 %v840
      %975 = vmatpush.bf16.msra.mxu0 %v782
      %976 = vmatmul.bf16.gmra.mxu0 %v411
      %v977 = vpop.f32.mrf.mxu0
      %v978 = vadd.f32 %v288, %v977
      %v979 = vpop.f32.mrf.mxu0
      %980 = vdwg.mxu0
      %981 = vmatpush.bf16.msra.mxu0 0
      %982 = vmatpush.bf16.msra.mxu0 0
      %983 = vmatpush.bf16.msra.mxu0 0
      %984 = vmatpush.bf16.msra.mxu0 0
      %985 = vmatpush.bf16.msra.mxu0 0
      %986 = vmatpush.bf16.msra.mxu0 0
      %987 = vmatpush.bf16.msra.mxu0 %v843
      %988 = vmatpush.bf16.msra.mxu0 %v783
      %989 = vmatmul.bf16.gmra.mxu0 %v411
      %v990 = vpop.f32.mrf.mxu0
      %v991 = vadd.f32 %v288, %v990
      %v992 = vpop.f32.mrf.mxu0
      %993 = vdwg.mxu0
      %994 = vmatpush.bf16.msra.mxu0 0
      %995 = vmatpush.bf16.msra.mxu0 0
      %996 = vmatpush.bf16.msra.mxu0 0
      %997 = vmatpush.bf16.msra.mxu0 0
      %998 = vmatpush.bf16.msra.mxu0 0
      %999 = vmatpush.bf16.msra.mxu0 0
      %1000 = vmatpush.bf16.msra.mxu0 %v846
      %1001 = vmatpush.bf16.msra.mxu0 %v784
      %1002 = vmatmul.bf16.gmra.mxu0 %v411
      %v1003 = vpop.f32.mrf.mxu0
      %v1004 = vadd.f32 %v288, %v1003
      %v1005 = vpop.f32.mrf.mxu0
      %1006 = vdwg.mxu0
      %1007 = vmatpush.bf16.msra.mxu0 0
      %1008 = vmatpush.bf16.msra.mxu0 0
      %1009 = vmatpush.bf16.msra.mxu0 0
      %1010 = vmatpush.bf16.msra.mxu0 0
      %1011 = vmatpush.bf16.msra.mxu0 0
      %1012 = vmatpush.bf16.msra.mxu0 0
      %1013 = vmatpush.bf16.msra.mxu0 %v849
      %1014 = vmatpush.bf16.msra.mxu0 %v785
      %1015 = vmatmul.bf16.gmra.mxu0 %v411
      %v1016 = vpop.f32.mrf.mxu0
      %v1017 = vadd.f32 %v288, %v1016
      %v1018 = vpop.f32.mrf.mxu0
      %1019 = vdwg.mxu0
      %vm1020 = vcmp.ge.f32.partialorder %v861, 0.0
      %vm1021 = vcmp.ge.f32.partialorder %v874, 0.0
      %vm1022 = vcmp.ge.f32.partialorder %v887, 0.0
      %vm1023 = vcmp.ge.f32.partialorder %v900, 0.0
      %vm1024 = vcmp.ge.f32.partialorder %v913, 0.0
      %vm1025 = vcmp.ge.f32.partialorder %v926, 0.0
      %vm1026 = vcmp.ge.f32.partialorder %v939, 0.0
      %vm1027 = vcmp.ge.f32.partialorder %v952, 0.0
      %vm1028 = vcmp.ge.f32.partialorder %v965, 0.0
      %vm1029 = vcmp.ge.f32.partialorder %v978, 0.0
      %vm1030 = vcmp.ge.f32.partialorder %v991, 0.0
      %vm1031 = vcmp.ge.f32.partialorder %v1004, 0.0
      %vm1032 = vcmp.ge.f32.partialorder %v1017, 0.0
      %v1033 = vmul.f32 %v861, 0.01
      %v1034 = vmul.f32 %v874, 0.01
      %v1035 = vmul.f32 %v887, 0.01
      %v1036 = vmul.f32 %v900, 0.01
      %v1037 = vmul.f32 %v913, 0.01
      %v1038 = vmul.f32 %v926, 0.01
      %v1039 = vmul.f32 %v939, 0.01
      %v1040 = vmul.f32 %v952, 0.01
      %v1041 = vmul.f32 %v965, 0.01
      %v1042 = vmul.f32 %v978, 0.01
      %v1043 = vmul.f32 %v991, 0.01
      %v1044 = vmul.f32 %v1004, 0.01
      %v1045 = vmul.f32 %v1017, 0.01
      %v1046 = vsel %vm1020, %v861, %v1033
      %v1047 = vsel %vm1021, %v874, %v1034
      %v1048 = vsel %vm1022, %v887, %v1035
      %v1049 = vsel %vm1023, %v900, %v1036
      %v1050 = vsel %vm1024, %v913, %v1037
      %v1051 = vsel %vm1025, %v926, %v1038
      %v1052 = vsel %vm1026, %v939, %v1039
      %v1053 = vsel %vm1027, %v952, %v1040
      %v1054 = vsel %vm1028, %v965, %v1041
      %v1055 = vsel %vm1029, %v978, %v1042
      %v1056 = vsel %vm1030, %v991, %v1043
      %v1057 = vsel %vm1031, %v1004, %v1044
      %v1058 = vsel %vm1032, %v1017, %v1045
      %s1059 = scalar_lea.vmem %s0, 416
      %v1060 = vld [vmem:[%s1059] sm:$0xff]
      %v1061 = vld [vmem:[%s1059 + $0x8] sm:$0xff]
      %v1062 = vld [vmem:[%s1059 + $0x10] sm:$0xff]
      %v1063 = vld [vmem:[%s1059 + $0x18] sm:$0xff]
      %v1064 = vld [vmem:[%s1059 + $0x20] sm:$0xff]
      %v1065 = vld [vmem:[%s1059 + $0x28] sm:$0xff]
      %v1066 = vld [vmem:[%s1059 + $0x30] sm:$0xf]
      %v1067 = vld [vmem:[%s1059 + $0x34] sm:$0xff]
      %v1068 = vld [vmem:[%s1059 + $0x3c] sm:$0xff]
      %v1069 = vld [vmem:[%s1059 + $0x44] sm:$0xff]
      %v1070 = vld [vmem:[%s1059 + $0x4c] sm:$0xff]
      %v1071 = vld [vmem:[%s1059 + $0x54] sm:$0xff]
      %v1072 = vld [vmem:[%s1059 + $0x5c] sm:$0xff]
      %v1073 = vld [vmem:[%s1059 + $0x64] sm:$0xf]
      %v1074 = vld [vmem:[%s1059 + $0x68] sm:$0xff]
      %v1075 = vld [vmem:[%s1059 + $0x70] sm:$0xff]
      %v1076 = vld [vmem:[%s1059 + $0x78] sm:$0xff]
      %v1077 = vld [vmem:[%s1059 + $0x80] sm:$0xff]
      %v1078 = vld [vmem:[%s1059 + $0x88] sm:$0xff]
      %v1079 = vld [vmem:[%s1059 + $0x90] sm:$0xff]
      %v1080 = vld [vmem:[%s1059 + $0x98] sm:$0xf]
      %v1081 = vld [vmem:[%s1059 + $0x9c] sm:$0x33]
      %v1082 = vld [vmem:[%s1059 + $0xa4] sm:$0x33]
      %v1083 = vld [vmem:[%s1059 + $0xac] sm:$0x33]
      %v1084 = vld [vmem:[%s1059 + $0xb4] sm:$0x33]
      %v1085 = vld [vmem:[%s1059 + $0xbc] sm:$0x33]
      %v1086 = vld [vmem:[%s1059 + $0xc4] sm:$0x33]
      %v1087 = vld [vmem:[%s1059 + $0xcc] sm:$0x3]
      %v1116 = vunpack.c.l.b16 %v1060
      %v1117 = vunpack.c.h.b16 %v1060
      %v1118 = vunpack.c.l.b16 %v1061
      %v1119 = vunpack.c.h.b16 %v1061
      %v1120 = vunpack.c.l.b16 %v1062
      %v1121 = vunpack.c.h.b16 %v1062
      %v1122 = vunpack.c.l.b16 %v1063
      %v1123 = vunpack.c.h.b16 %v1063
      %v1124 = vunpack.c.l.b16 %v1064
      %v1125 = vunpack.c.h.b16 %v1064
      %v1126 = vunpack.c.l.b16 %v1065
      %v1127 = vunpack.c.h.b16 %v1065
      %v1128 = vunpack.c.l.b16 %v1066
      %v1129 = vunpack.c.l.b16 %v1067
      %v1130 = vunpack.c.h.b16 %v1067
      %v1131 = vunpack.c.l.b16 %v1068
      %v1132 = vunpack.c.h.b16 %v1068
      %v1133 = vunpack.c.l.b16 %v1069
      %v1134 = vunpack.c.h.b16 %v1069
      %v1135 = vunpack.c.l.b16 %v1070
      %v1136 = vunpack.c.h.b16 %v1070
      %v1137 = vunpack.c.l.b16 %v1071
      %v1138 = vunpack.c.h.b16 %v1071
      %v1139 = vunpack.c.l.b16 %v1072
      %v1140 = vunpack.c.h.b16 %v1072
      %v1141 = vunpack.c.l.b16 %v1073
      %v1142 = vunpack.c.l.b16 %v1074
      %v1143 = vunpack.c.h.b16 %v1074
      %v1144 = vunpack.c.l.b16 %v1075
      %v1145 = vunpack.c.h.b16 %v1075
      %v1146 = vunpack.c.l.b16 %v1076
      %v1147 = vunpack.c.h.b16 %v1076
      %v1148 = vunpack.c.l.b16 %v1077
      %v1149 = vunpack.c.h.b16 %v1077
      %v1150 = vunpack.c.l.b16 %v1078
      %v1151 = vunpack.c.h.b16 %v1078
      %v1152 = vunpack.c.l.b16 %v1079
      %v1153 = vunpack.c.h.b16 %v1079
      %v1154 = vunpack.c.l.b16 %v1080
      %v1155 = vunpack.c.l.b16 %v1081
      %v1156 = vunpack.c.h.b16 %v1081
      %v1157 = vunpack.c.l.b16 %v1082
      %v1158 = vunpack.c.h.b16 %v1082
      %v1159 = vunpack.c.l.b16 %v1083
      %v1160 = vunpack.c.h.b16 %v1083
      %v1161 = vunpack.c.l.b16 %v1084
      %v1162 = vunpack.c.h.b16 %v1084
      %v1163 = vunpack.c.l.b16 %v1085
      %v1164 = vunpack.c.h.b16 %v1085
      %v1165 = vunpack.c.l.b16 %v1086
      %v1166 = vunpack.c.h.b16 %v1086
      %v1167 = vunpack.c.l.b16 %v1087
      %v1168 = vpack.c.b16 %v1129, %v1116
      %v1169 = vpack.c.b16 %v1130, %v1117
      %v1170 = vpack.c.b16 %v1131, %v1118
      %v1171 = vpack.c.b16 %v1132, %v1119
      %v1172 = vpack.c.b16 %v1133, %v1120
      %v1173 = vpack.c.b16 %v1134, %v1121
      %v1174 = vpack.c.b16 %v1135, %v1122
      %v1175 = vpack.c.b16 %v1136, %v1123
      %v1176 = vpack.c.b16 %v1137, %v1124
      %v1177 = vpack.c.b16 %v1138, %v1125
      %v1178 = vpack.c.b16 %v1139, %v1126
      %v1179 = vpack.c.b16 %v1140, %v1127
      %v1180 = vpack.c.b16 %v1141, %v1128
      %v1181 = vpack.c.b16 %v1155, %v1142
      %v1182 = vpack.c.b16 %v1156, %v1143
      %v1183 = vpack.c.b16 %v1157, %v1144
      %v1184 = vpack.c.b16 %v1158, %v1145
      %v1185 = vpack.c.b16 %v1159, %v1146
      %v1186 = vpack.c.b16 %v1160, %v1147
      %v1187 = vpack.c.b16 %v1161, %v1148
      %v1188 = vpack.c.b16 %v1162, %v1149
      %v1189 = vpack.c.b16 %v1163, %v1150
      %v1190 = vpack.c.b16 %v1164, %v1151
      %v1191 = vpack.c.b16 %v1165, %v1152
      %v1192 = vpack.c.b16 %v1166, %v1153
      %v1193 = vpack.c.b16 %v1167, %v1154
      %v1208 = vand.u32 %v1181, %v416
      %v1211 = vand.u32 %v1182, %v416
      %v1214 = vand.u32 %v1183, %v416
      %v1217 = vand.u32 %v1184, %v416
      %v1220 = vand.u32 %v1185, %v416
      %v1223 = vand.u32 %v1186, %v416
      %v1226 = vand.u32 %v1187, %v416
      %v1229 = vand.u32 %v1188, %v416
      %v1232 = vand.u32 %v1189, %v416
      %v1235 = vand.u32 %v1190, %v416
      %v1238 = vand.u32 %v1191, %v416
      %v1241 = vand.u32 %v1192, %v416
      %v1244 = vand.u32 %v1193, %v416
      %1246 = vmatpush.bf16.msra.mxu0 0
      %1247 = vmatpush.bf16.msra.mxu0 0
      %1248 = vmatpush.bf16.msra.mxu0 0
      %1249 = vmatpush.bf16.msra.mxu0 0
      %1250 = vmatpush.bf16.msra.mxu0 0
      %1251 = vmatpush.bf16.msra.mxu0 0
      %1252 = vmatpush.bf16.msra.mxu0 %v1208
      %1253 = vmatpush.bf16.msra.mxu0 %v1168
      %1254 = vmatmul.bf16.gmra.mxu0 %v411
      %v1255 = vpop.f32.mrf.mxu0
      %v1256 = vadd.f32 %v288, %v1255
      %v1257 = vpop.f32.mrf.mxu0
      %1258 = vdwg.mxu0
      %1259 = vmatpush.bf16.msra.mxu0 0
      %1260 = vmatpush.bf16.msra.mxu0 0
      %1261 = vmatpush.bf16.msra.mxu0 0
      %1262 = vmatpush.bf16.msra.mxu0 0
      %1263 = vmatpush.bf16.msra.mxu0 0
      %1264 = vmatpush.bf16.msra.mxu0 0
      %1265 = vmatpush.bf16.msra.mxu0 %v1211
      %1266 = vmatpush.bf16.msra.mxu0 %v1169
      %1267 = vmatmul.bf16.gmra.mxu0 %v411
      %v1268 = vpop.f32.mrf.mxu0
      %v1269 = vadd.f32 %v288, %v1268
      %v1270 = vpop.f32.mrf.mxu0
      %1271 = vdwg.mxu0
      %1272 = vmatpush.bf16.msra.mxu0 0
      %1273 = vmatpush.bf16.msra.mxu0 0
      %1274 = vmatpush.bf16.msra.mxu0 0
      %1275 = vmatpush.bf16.msra.mxu0 0
      %1276 = vmatpush.bf16.msra.mxu0 0
      %1277 = vmatpush.bf16.msra.mxu0 0
      %1278 = vmatpush.bf16.msra.mxu0 %v1214
      %1279 = vmatpush.bf16.msra.mxu0 %v1170
      %1280 = vmatmul.bf16.gmra.mxu0 %v411
      %v1281 = vpop.f32.mrf.mxu0
      %v1282 = vadd.f32 %v288, %v1281
      %v1283 = vpop.f32.mrf.mxu0
      %1284 = vdwg.mxu0
      %1285 = vmatpush.bf16.msra.mxu0 0
      %1286 = vmatpush.bf16.msra.mxu0 0
      %1287 = vmatpush.bf16.msra.mxu0 0
      %1288 = vmatpush.bf16.msra.mxu0 0
      %1289 = vmatpush.bf16.msra.mxu0 0
      %1290 = vmatpush.bf16.msra.mxu0 0
      %1291 = vmatpush.bf16.msra.mxu0 %v1217
      %1292 = vmatpush.bf16.msra.mxu0 %v1171
      %1293 = vmatmul.bf16.gmra.mxu0 %v411
      %v1294 = vpop.f32.mrf.mxu0
      %v1295 = vadd.f32 %v288, %v1294
      %v1296 = vpop.f32.mrf.mxu0
      %1297 = vdwg.mxu0
      %1298 = vmatpush.bf16.msra.mxu0 0
      %1299 = vmatpush.bf16.msra.mxu0 0
      %1300 = vmatpush.bf16.msra.mxu0 0
      %1301 = vmatpush.bf16.msra.mxu0 0
      %1302 = vmatpush.bf16.msra.mxu0 0
      %1303 = vmatpush.bf16.msra.mxu0 0
      %1304 = vmatpush.bf16.msra.mxu0 %v1220
      %1305 = vmatpush.bf16.msra.mxu0 %v1172
      %1306 = vmatmul.bf16.gmra.mxu0 %v411
      %v1307 = vpop.f32.mrf.mxu0
      %v1308 = vadd.f32 %v288, %v1307
      %v1309 = vpop.f32.mrf.mxu0
      %1310 = vdwg.mxu0
      %1311 = vmatpush.bf16.msra.mxu0 0
      %1312 = vmatpush.bf16.msra.mxu0 0
      %1313 = vmatpush.bf16.msra.mxu0 0
      %1314 = vmatpush.bf16.msra.mxu0 0
      %1315 = vmatpush.bf16.msra.mxu0 0
      %1316 = vmatpush.bf16.msra.mxu0 0
      %1317 = vmatpush.bf16.msra.mxu0 %v1223
      %1318 = vmatpush.bf16.msra.mxu0 %v1173
      %1319 = vmatmul.bf16.gmra.mxu0 %v411
      %v1320 = vpop.f32.mrf.mxu0
      %v1321 = vadd.f32 %v288, %v1320
      %v1322 = vpop.f32.mrf.mxu0
      %1323 = vdwg.mxu0
      %1324 = vmatpush.bf16.msra.mxu0 0
      %1325 = vmatpush.bf16.msra.mxu0 0
      %1326 = vmatpush.bf16.msra.mxu0 0
      %1327 = vmatpush.bf16.msra.mxu0 0
      %1328 = vmatpush.bf16.msra.mxu0 0
      %1329 = vmatpush.bf16.msra.mxu0 0
      %1330 = vmatpush.bf16.msra.mxu0 %v1226
      %1331 = vmatpush.bf16.msra.mxu0 %v1174
      %1332 = vmatmul.bf16.gmra.mxu0 %v411
      %v1333 = vpop.f32.mrf.mxu0
      %v1334 = vadd.f32 %v288, %v1333
      %v1335 = vpop.f32.mrf.mxu0
      %1336 = vdwg.mxu0
      %1337 = vmatpush.bf16.msra.mxu0 0
      %1338 = vmatpush.bf16.msra.mxu0 0
      %1339 = vmatpush.bf16.msra.mxu0 0
      %1340 = vmatpush.bf16.msra.mxu0 0
      %1341 = vmatpush.bf16.msra.mxu0 0
      %1342 = vmatpush.bf16.msra.mxu0 0
      %1343 = vmatpush.bf16.msra.mxu0 %v1229
      %1344 = vmatpush.bf16.msra.mxu0 %v1175
      %1345 = vmatmul.bf16.gmra.mxu0 %v411
      %v1346 = vpop.f32.mrf.mxu0
      %v1347 = vadd.f32 %v288, %v1346
      %v1348 = vpop.f32.mrf.mxu0
      %1349 = vdwg.mxu0
      %1350 = vmatpush.bf16.msra.mxu0 0
      %1351 = vmatpush.bf16.msra.mxu0 0
      %1352 = vmatpush.bf16.msra.mxu0 0
      %1353 = vmatpush.bf16.msra.mxu0 0
      %1354 = vmatpush.bf16.msra.mxu0 0
      %1355 = vmatpush.bf16.msra.mxu0 0
      %1356 = vmatpush.bf16.msra.mxu0 %v1232
      %1357 = vmatpush.bf16.msra.mxu0 %v1176
      %1358 = vmatmul.bf16.gmra.mxu0 %v411
      %v1359 = vpop.f32.mrf.mxu0
      %v1360 = vadd.f32 %v288, %v1359
      %v1361 = vpop.f32.mrf.mxu0
      %1362 = vdwg.mxu0
      %1363 = vmatpush.bf16.msra.mxu0 0
      %1364 = vmatpush.bf16.msra.mxu0 0
      %1365 = vmatpush.bf16.msra.mxu0 0
      %1366 = vmatpush.bf16.msra.mxu0 0
      %1367 = vmatpush.bf16.msra.mxu0 0
      %1368 = vmatpush.bf16.msra.mxu0 0
      %1369 = vmatpush.bf16.msra.mxu0 %v1235
      %1370 = vmatpush.bf16.msra.mxu0 %v1177
      %1371 = vmatmul.bf16.gmra.mxu0 %v411
      %v1372 = vpop.f32.mrf.mxu0
      %v1373 = vadd.f32 %v288, %v1372
      %v1374 = vpop.f32.mrf.mxu0
      %1375 = vdwg.mxu0
      %1376 = vmatpush.bf16.msra.mxu0 0
      %1377 = vmatpush.bf16.msra.mxu0 0
      %1378 = vmatpush.bf16.msra.mxu0 0
      %1379 = vmatpush.bf16.msra.mxu0 0
      %1380 = vmatpush.bf16.msra.mxu0 0
      %1381 = vmatpush.bf16.msra.mxu0 0
      %1382 = vmatpush.bf16.msra.mxu0 %v1238
      %1383 = vmatpush.bf16.msra.mxu0 %v1178
      %1384 = vmatmul.bf16.gmra.mxu0 %v411
      %v1385 = vpop.f32.mrf.mxu0
      %v1386 = vadd.f32 %v288, %v1385
      %v1387 = vpop.f32.mrf.mxu0
      %1388 = vdwg.mxu0
      %1389 = vmatpush.bf16.msra.mxu0 0
      %1390 = vmatpush.bf16.msra.mxu0 0
      %1391 = vmatpush.bf16.msra.mxu0 0
      %1392 = vmatpush.bf16.msra.mxu0 0
      %1393 = vmatpush.bf16.msra.mxu0 0
      %1394 = vmatpush.bf16.msra.mxu0 0
      %1395 = vmatpush.bf16.msra.mxu0 %v1241
      %1396 = vmatpush.bf16.msra.mxu0 %v1179
      %1397 = vmatmul.bf16.gmra.mxu0 %v411
      %v1398 = vpop.f32.mrf.mxu0
      %v1399 = vadd.f32 %v288, %v1398
      %v1400 = vpop.f32.mrf.mxu0
      %1401 = vdwg.mxu0
      %1402 = vmatpush.bf16.msra.mxu0 0
      %1403 = vmatpush.bf16.msra.mxu0 0
      %1404 = vmatpush.bf16.msra.mxu0 0
      %1405 = vmatpush.bf16.msra.mxu0 0
      %1406 = vmatpush.bf16.msra.mxu0 0
      %1407 = vmatpush.bf16.msra.mxu0 0
      %1408 = vmatpush.bf16.msra.mxu0 %v1244
      %1409 = vmatpush.bf16.msra.mxu0 %v1180
      %1410 = vmatmul.bf16.gmra.mxu0 %v411
      %v1411 = vpop.f32.mrf.mxu0
      %v1412 = vadd.f32 %v288, %v1411
      %v1413 = vpop.f32.mrf.mxu0
      %1414 = vdwg.mxu0
      %vm1415 = vcmp.ge.f32.partialorder %v1256, 0.0
      %vm1416 = vcmp.ge.f32.partialorder %v1269, 0.0
      %vm1417 = vcmp.ge.f32.partialorder %v1282, 0.0
      %vm1418 = vcmp.ge.f32.partialorder %v1295, 0.0
      %vm1419 = vcmp.ge.f32.partialorder %v1308, 0.0
      %vm1420 = vcmp.ge.f32.partialorder %v1321, 0.0
      %vm1421 = vcmp.ge.f32.partialorder %v1334, 0.0
      %vm1422 = vcmp.ge.f32.partialorder %v1347, 0.0
      %vm1423 = vcmp.ge.f32.partialorder %v1360, 0.0
      %vm1424 = vcmp.ge.f32.partialorder %v1373, 0.0
      %vm1425 = vcmp.ge.f32.partialorder %v1386, 0.0
      %vm1426 = vcmp.ge.f32.partialorder %v1399, 0.0
      %vm1427 = vcmp.ge.f32.partialorder %v1412, 0.0
      %v1428 = vmul.f32 %v1256, 0.01
      %v1429 = vmul.f32 %v1269, 0.01
      %v1430 = vmul.f32 %v1282, 0.01
      %v1431 = vmul.f32 %v1295, 0.01
      %v1432 = vmul.f32 %v1308, 0.01
      %v1433 = vmul.f32 %v1321, 0.01
      %v1434 = vmul.f32 %v1334, 0.01
      %v1435 = vmul.f32 %v1347, 0.01
      %v1436 = vmul.f32 %v1360, 0.01
      %v1437 = vmul.f32 %v1373, 0.01
      %v1438 = vmul.f32 %v1386, 0.01
      %v1439 = vmul.f32 %v1399, 0.01
      %v1440 = vmul.f32 %v1412, 0.01
      %v1441 = vsel %vm1415, %v1256, %v1428
      %v1442 = vsel %vm1416, %v1269, %v1429
      %v1443 = vsel %vm1417, %v1282, %v1430
      %v1444 = vsel %vm1418, %v1295, %v1431
      %v1445 = vsel %vm1419, %v1308, %v1432
      %v1446 = vsel %vm1420, %v1321, %v1433
      %v1447 = vsel %vm1421, %v1334, %v1434
      %v1448 = vsel %vm1422, %v1347, %v1435
      %v1449 = vsel %vm1423, %v1360, %v1436
      %v1450 = vsel %vm1424, %v1373, %v1437
      %v1451 = vsel %vm1425, %v1386, %v1438
      %v1452 = vsel %vm1426, %v1399, %v1439
      %v1453 = vsel %vm1427, %v1412, %v1440
      %s1454 = scalar_lea.vmem %s0, 624
      %v1455 = vld [vmem:[%s1454] sm:$0xff]
      %v1456 = vld [vmem:[%s1454 + $0x8] sm:$0xff]
      %v1457 = vld [vmem:[%s1454 + $0x10] sm:$0xff]
      %v1458 = vld [vmem:[%s1454 + $0x18] sm:$0xff]
      %v1459 = vld [vmem:[%s1454 + $0x20] sm:$0xff]
      %v1460 = vld [vmem:[%s1454 + $0x28] sm:$0xff]
      %v1461 = vld [vmem:[%s1454 + $0x30] sm:$0xf]
      %v1462 = vld [vmem:[%s1454 + $0x34] sm:$0xff]
      %v1463 = vld [vmem:[%s1454 + $0x3c] sm:$0xff]
      %v1464 = vld [vmem:[%s1454 + $0x44] sm:$0xff]
      %v1465 = vld [vmem:[%s1454 + $0x4c] sm:$0xff]
      %v1466 = vld [vmem:[%s1454 + $0x54] sm:$0xff]
      %v1467 = vld [vmem:[%s1454 + $0x5c] sm:$0xff]
      %v1468 = vld [vmem:[%s1454 + $0x64] sm:$0xf]
      %v1469 = vld [vmem:[%s1454 + $0x68] sm:$0xff]
      %v1470 = vld [vmem:[%s1454 + $0x70] sm:$0xff]
      %v1471 = vld [vmem:[%s1454 + $0x78] sm:$0xff]
      %v1472 = vld [vmem:[%s1454 + $0x80] sm:$0xff]
      %v1473 = vld [vmem:[%s1454 + $0x88] sm:$0xff]
      %v1474 = vld [vmem:[%s1454 + $0x90] sm:$0xff]
      %v1475 = vld [vmem:[%s1454 + $0x98] sm:$0xf]
      %v1476 = vld [vmem:[%s1454 + $0x9c] sm:$0x33]
      %v1477 = vld [vmem:[%s1454 + $0xa4] sm:$0x33]
      %v1478 = vld [vmem:[%s1454 + $0xac] sm:$0x33]
      %v1479 = vld [vmem:[%s1454 + $0xb4] sm:$0x33]
      %v1480 = vld [vmem:[%s1454 + $0xbc] sm:$0x33]
      %v1481 = vld [vmem:[%s1454 + $0xc4] sm:$0x33]
      %v1482 = vld [vmem:[%s1454 + $0xcc] sm:$0x3]
      %v1511 = vunpack.c.l.b16 %v1455
      %v1512 = vunpack.c.h.b16 %v1455
      %v1513 = vunpack.c.l.b16 %v1456
      %v1514 = vunpack.c.h.b16 %v1456
      %v1515 = vunpack.c.l.b16 %v1457
      %v1516 = vunpack.c.h.b16 %v1457
      %v1517 = vunpack.c.l.b16 %v1458
      %v1518 = vunpack.c.h.b16 %v1458
      %v1519 = vunpack.c.l.b16 %v1459
      %v1520 = vunpack.c.h.b16 %v1459
      %v1521 = vunpack.c.l.b16 %v1460
      %v1522 = vunpack.c.h.b16 %v1460
      %v1523 = vunpack.c.l.b16 %v1461
      %v1524 = vunpack.c.l.b16 %v1462
      %v1525 = vunpack.c.h.b16 %v1462
      %v1526 = vunpack.c.l.b16 %v1463
      %v1527 = vunpack.c.h.b16 %v1463
      %v1528 = vunpack.c.l.b16 %v1464
      %v1529 = vunpack.c.h.b16 %v1464
      %v1530 = vunpack.c.l.b16 %v1465
      %v1531 = vunpack.c.h.b16 %v1465
      %v1532 = vunpack.c.l.b16 %v1466
      %v1533 = vunpack.c.h.b16 %v1466
      %v1534 = vunpack.c.l.b16 %v1467
      %v1535 = vunpack.c.h.b16 %v1467
      %v1536 = vunpack.c.l.b16 %v1468
      %v1537 = vunpack.c.l.b16 %v1469
      %v1538 = vunpack.c.h.b16 %v1469
      %v1539 = vunpack.c.l.b16 %v1470
      %v1540 = vunpack.c.h.b16 %v1470
      %v1541 = vunpack.c.l.b16 %v1471
      %v1542 = vunpack.c.h.b16 %v1471
      %v1543 = vunpack.c.l.b16 %v1472
      %v1544 = vunpack.c.h.b16 %v1472
      %v1545 = vunpack.c.l.b16 %v1473
      %v1546 = vunpack.c.h.b16 %v1473
      %v1547 = vunpack.c.l.b16 %v1474
      %v1548 = vunpack.c.h.b16 %v1474
      %v1549 = vunpack.c.l.b16 %v1475
      %v1550 = vunpack.c.l.b16 %v1476
      %v1551 = vunpack.c.h.b16 %v1476
      %v1552 = vunpack.c.l.b16 %v1477
      %v1553 = vunpack.c.h.b16 %v1477
      %v1554 = vunpack.c.l.b16 %v1478
      %v1555 = vunpack.c.h.b16 %v1478
      %v1556 = vunpack.c.l.b16 %v1479
      %v1557 = vunpack.c.h.b16 %v1479
      %v1558 = vunpack.c.l.b16 %v1480
      %v1559 = vunpack.c.h.b16 %v1480
      %v1560 = vunpack.c.l.b16 %v1481
      %v1561 = vunpack.c.h.b16 %v1481
      %v1562 = vunpack.c.l.b16 %v1482
      %v1563 = vpack.c.b16 %v1524, %v1511
      %v1564 = vpack.c.b16 %v1525, %v1512
      %v1565 = vpack.c.b16 %v1526, %v1513
      %v1566 = vpack.c.b16 %v1527, %v1514
      %v1567 = vpack.c.b16 %v1528, %v1515
      %v1568 = vpack.c.b16 %v1529, %v1516
      %v1569 = vpack.c.b16 %v1530, %v1517
      %v1570 = vpack.c.b16 %v1531, %v1518
      %v1571 = vpack.c.b16 %v1532, %v1519
      %v1572 = vpack.c.b16 %v1533, %v1520
      %v1573 = vpack.c.b16 %v1534, %v1521
      %v1574 = vpack.c.b16 %v1535, %v1522
      %v1575 = vpack.c.b16 %v1536, %v1523
      %v1576 = vpack.c.b16 %v1550, %v1537
      %v1577 = vpack.c.b16 %v1551, %v1538
      %v1578 = vpack.c.b16 %v1552, %v1539
      %v1579 = vpack.c.b16 %v1553, %v1540
      %v1580 = vpack.c.b16 %v1554, %v1541
      %v1581 = vpack.c.b16 %v1555, %v1542
      %v1582 = vpack.c.b16 %v1556, %v1543
      %v1583 = vpack.c.b16 %v1557, %v1544
      %v1584 = vpack.c.b16 %v1558, %v1545
      %v1585 = vpack.c.b16 %v1559, %v1546
      %v1586 = vpack.c.b16 %v1560, %v1547
      %v1587 = vpack.c.b16 %v1561, %v1548
      %v1588 = vpack.c.b16 %v1562, %v1549
      %v1603 = vand.u32 %v1576, %v416
      %v1606 = vand.u32 %v1577, %v416
      %v1609 = vand.u32 %v1578, %v416
      %v1612 = vand.u32 %v1579, %v416
      %v1615 = vand.u32 %v1580, %v416
      %v1618 = vand.u32 %v1581, %v416
      %v1621 = vand.u32 %v1582, %v416
      %v1624 = vand.u32 %v1583, %v416
      %v1627 = vand.u32 %v1584, %v416
      %v1630 = vand.u32 %v1585, %v416
      %v1633 = vand.u32 %v1586, %v416
      %v1636 = vand.u32 %v1587, %v416
      %v1639 = vand.u32 %v1588, %v416
      %1641 = vmatpush.bf16.msra.mxu0 0
      %1642 = vmatpush.bf16.msra.mxu0 0
      %1643 = vmatpush.bf16.msra.mxu0 0
      %1644 = vmatpush.bf16.msra.mxu0 0
      %1645 = vmatpush.bf16.msra.mxu0 0
      %1646 = vmatpush.bf16.msra.mxu0 0
      %1647 = vmatpush.bf16.msra.mxu0 %v1603
      %1648 = vmatpush.bf16.msra.mxu0 %v1563
      %1649 = vmatmul.bf16.gmra.mxu0 %v411
      %v1650 = vpop.f32.mrf.mxu0
      %v1651 = vadd.f32 %v288, %v1650
      %v1652 = vpop.f32.mrf.mxu0
      %1653 = vdwg.mxu0
      %1654 = vmatpush.bf16.msra.mxu0 0
      %1655 = vmatpush.bf16.msra.mxu0 0
      %1656 = vmatpush.bf16.msra.mxu0 0
      %1657 = vmatpush.bf16.msra.mxu0 0
      %1658 = vmatpush.bf16.msra.mxu0 0
      %1659 = vmatpush.bf16.msra.mxu0 0
      %1660 = vmatpush.bf16.msra.mxu0 %v1606
      %1661 = vmatpush.bf16.msra.mxu0 %v1564
      %1662 = vmatmul.bf16.gmra.mxu0 %v411
      %v1663 = vpop.f32.mrf.mxu0
      %v1664 = vadd.f32 %v288, %v1663
      %v1665 = vpop.f32.mrf.mxu0
      %1666 = vdwg.mxu0
      %1667 = vmatpush.bf16.msra.mxu0 0
      %1668 = vmatpush.bf16.msra.mxu0 0
      %1669 = vmatpush.bf16.msra.mxu0 0
      %1670 = vmatpush.bf16.msra.mxu0 0
      %1671 = vmatpush.bf16.msra.mxu0 0
      %1672 = vmatpush.bf16.msra.mxu0 0
      %1673 = vmatpush.bf16.msra.mxu0 %v1609
      %1674 = vmatpush.bf16.msra.mxu0 %v1565
      %1675 = vmatmul.bf16.gmra.mxu0 %v411
      %v1676 = vpop.f32.mrf.mxu0
      %v1677 = vadd.f32 %v288, %v1676
      %v1678 = vpop.f32.mrf.mxu0
      %1679 = vdwg.mxu0
      %1680 = vmatpush.bf16.msra.mxu0 0
      %1681 = vmatpush.bf16.msra.mxu0 0
      %1682 = vmatpush.bf16.msra.mxu0 0
      %1683 = vmatpush.bf16.msra.mxu0 0
      %1684 = vmatpush.bf16.msra.mxu0 0
      %1685 = vmatpush.bf16.msra.mxu0 0
      %1686 = vmatpush.bf16.msra.mxu0 %v1612
      %1687 = vmatpush.bf16.msra.mxu0 %v1566
      %1688 = vmatmul.bf16.gmra.mxu0 %v411
      %v1689 = vpop.f32.mrf.mxu0
      %v1690 = vadd.f32 %v288, %v1689
      %v1691 = vpop.f32.mrf.mxu0
      %1692 = vdwg.mxu0
      %1693 = vmatpush.bf16.msra.mxu0 0
      %1694 = vmatpush.bf16.msra.mxu0 0
      %1695 = vmatpush.bf16.msra.mxu0 0
      %1696 = vmatpush.bf16.msra.mxu0 0
      %1697 = vmatpush.bf16.msra.mxu0 0
      %1698 = vmatpush.bf16.msra.mxu0 0
      %1699 = vmatpush.bf16.msra.mxu0 %v1615
      %1700 = vmatpush.bf16.msra.mxu0 %v1567
      %1701 = vmatmul.bf16.gmra.mxu0 %v411
      %v1702 = vpop.f32.mrf.mxu0
      %v1703 = vadd.f32 %v288, %v1702
      %v1704 = vpop.f32.mrf.mxu0
      %1705 = vdwg.mxu0
      %1706 = vmatpush.bf16.msra.mxu0 0
      %1707 = vmatpush.bf16.msra.mxu0 0
      %1708 = vmatpush.bf16.msra.mxu0 0
      %1709 = vmatpush.bf16.msra.mxu0 0
      %1710 = vmatpush.bf16.msra.mxu0 0
      %1711 = vmatpush.bf16.msra.mxu0 0
      %1712 = vmatpush.bf16.msra.mxu0 %v1618
      %1713 = vmatpush.bf16.msra.mxu0 %v1568
      %1714 = vmatmul.bf16.gmra.mxu0 %v411
      %v1715 = vpop.f32.mrf.mxu0
      %v1716 = vadd.f32 %v288, %v1715
      %v1717 = vpop.f32.mrf.mxu0
      %1718 = vdwg.mxu0
      %1719 = vmatpush.bf16.msra.mxu0 0
      %1720 = vmatpush.bf16.msra.mxu0 0
      %1721 = vmatpush.bf16.msra.mxu0 0
      %1722 = vmatpush.bf16.msra.mxu0 0
      %1723 = vmatpush.bf16.msra.mxu0 0
      %1724 = vmatpush.bf16.msra.mxu0 0
      %1725 = vmatpush.bf16.msra.mxu0 %v1621
      %1726 = vmatpush.bf16.msra.mxu0 %v1569
      %1727 = vmatmul.bf16.gmra.mxu0 %v411
      %v1728 = vpop.f32.mrf.mxu0
      %v1729 = vadd.f32 %v288, %v1728
      %v1730 = vpop.f32.mrf.mxu0
      %1731 = vdwg.mxu0
      %1732 = vmatpush.bf16.msra.mxu0 0
      %1733 = vmatpush.bf16.msra.mxu0 0
      %1734 = vmatpush.bf16.msra.mxu0 0
      %1735 = vmatpush.bf16.msra.mxu0 0
      %1736 = vmatpush.bf16.msra.mxu0 0
      %1737 = vmatpush.bf16.msra.mxu0 0
      %1738 = vmatpush.bf16.msra.mxu0 %v1624
      %1739 = vmatpush.bf16.msra.mxu0 %v1570
      %1740 = vmatmul.bf16.gmra.mxu0 %v411
      %v1741 = vpop.f32.mrf.mxu0
      %v1742 = vadd.f32 %v288, %v1741
      %v1743 = vpop.f32.mrf.mxu0
      %1744 = vdwg.mxu0
      %1745 = vmatpush.bf16.msra.mxu0 0
      %1746 = vmatpush.bf16.msra.mxu0 0
      %1747 = vmatpush.bf16.msra.mxu0 0
      %1748 = vmatpush.bf16.msra.mxu0 0
      %1749 = vmatpush.bf16.msra.mxu0 0
      %1750 = vmatpush.bf16.msra.mxu0 0
      %1751 = vmatpush.bf16.msra.mxu0 %v1627
      %1752 = vmatpush.bf16.msra.mxu0 %v1571
      %1753 = vmatmul.bf16.gmra.mxu0 %v411
      %v1754 = vpop.f32.mrf.mxu0
      %v1755 = vadd.f32 %v288, %v1754
      %v1756 = vpop.f32.mrf.mxu0
      %1757 = vdwg.mxu0
      %1758 = vmatpush.bf16.msra.mxu0 0
      %1759 = vmatpush.bf16.msra.mxu0 0
      %1760 = vmatpush.bf16.msra.mxu0 0
      %1761 = vmatpush.bf16.msra.mxu0 0
      %1762 = vmatpush.bf16.msra.mxu0 0
      %1763 = vmatpush.bf16.msra.mxu0 0
      %1764 = vmatpush.bf16.msra.mxu0 %v1630
      %1765 = vmatpush.bf16.msra.mxu0 %v1572
      %1766 = vmatmul.bf16.gmra.mxu0 %v411
      %v1767 = vpop.f32.mrf.mxu0
      %v1768 = vadd.f32 %v288, %v1767
      %v1769 = vpop.f32.mrf.mxu0
      %1770 = vdwg.mxu0
      %1771 = vmatpush.bf16.msra.mxu0 0
      %1772 = vmatpush.bf16.msra.mxu0 0
      %1773 = vmatpush.bf16.msra.mxu0 0
      %1774 = vmatpush.bf16.msra.mxu0 0
      %1775 = vmatpush.bf16.msra.mxu0 0
      %1776 = vmatpush.bf16.msra.mxu0 0
      %1777 = vmatpush.bf16.msra.mxu0 %v1633
      %1778 = vmatpush.bf16.msra.mxu0 %v1573
      %1779 = vmatmul.bf16.gmra.mxu0 %v411
      %v1780 = vpop.f32.mrf.mxu0
      %v1781 = vadd.f32 %v288, %v1780
      %v1782 = vpop.f32.mrf.mxu0
      %1783 = vdwg.mxu0
      %1784 = vmatpush.bf16.msra.mxu0 0
      %1785 = vmatpush.bf16.msra.mxu0 0
      %1786 = vmatpush.bf16.msra.mxu0 0
      %1787 = vmatpush.bf16.msra.mxu0 0
      %1788 = vmatpush.bf16.msra.mxu0 0
      %1789 = vmatpush.bf16.msra.mxu0 0
      %1790 = vmatpush.bf16.msra.mxu0 %v1636
      %1791 = vmatpush.bf16.msra.mxu0 %v1574
      %1792 = vmatmul.bf16.gmra.mxu0 %v411
      %v1793 = vpop.f32.mrf.mxu0
      %v1794 = vadd.f32 %v288, %v1793
      %v1795 = vpop.f32.mrf.mxu0
      %1796 = vdwg.mxu0
      %1797 = vmatpush.bf16.msra.mxu0 0
      %1798 = vmatpush.bf16.msra.mxu0 0
      %1799 = vmatpush.bf16.msra.mxu0 0
      %1800 = vmatpush.bf16.msra.mxu0 0
      %1801 = vmatpush.bf16.msra.mxu0 0
      %1802 = vmatpush.bf16.msra.mxu0 0
      %1803 = vmatpush.bf16.msra.mxu0 %v1639
      %1804 = vmatpush.bf16.msra.mxu0 %v1575
      %1805 = vmatmul.bf16.gmra.mxu0 %v411
      %v1806 = vpop.f32.mrf.mxu0
      %v1807 = vadd.f32 %v288, %v1806
      %v1808 = vpop.f32.mrf.mxu0
      %1809 = vdwg.mxu0
      %vm1810 = vcmp.ge.f32.partialorder %v1651, 0.0
      %vm1811 = vcmp.ge.f32.partialorder %v1664, 0.0
      %vm1812 = vcmp.ge.f32.partialorder %v1677, 0.0
      %vm1813 = vcmp.ge.f32.partialorder %v1690, 0.0
      %vm1814 = vcmp.ge.f32.partialorder %v1703, 0.0
      %vm1815 = vcmp.ge.f32.partialorder %v1716, 0.0
      %vm1816 = vcmp.ge.f32.partialorder %v1729, 0.0
      %vm1817 = vcmp.ge.f32.partialorder %v1742, 0.0
      %vm1818 = vcmp.ge.f32.partialorder %v1755, 0.0
      %vm1819 = vcmp.ge.f32.partialorder %v1768, 0.0
      %vm1820 = vcmp.ge.f32.partialorder %v1781, 0.0
      %vm1821 = vcmp.ge.f32.partialorder %v1794, 0.0
      %vm1822 = vcmp.ge.f32.partialorder %v1807, 0.0
      %v1823 = vmul.f32 %v1651, 0.01
      %v1824 = vmul.f32 %v1664, 0.01
      %v1825 = vmul.f32 %v1677, 0.01
      %v1826 = vmul.f32 %v1690, 0.01
      %v1827 = vmul.f32 %v1703, 0.01
      %v1828 = vmul.f32 %v1716, 0.01
      %v1829 = vmul.f32 %v1729, 0.01
      %v1830 = vmul.f32 %v1742, 0.01
      %v1831 = vmul.f32 %v1755, 0.01
      %v1832 = vmul.f32 %v1768, 0.01
      %v1833 = vmul.f32 %v1781, 0.01
      %v1834 = vmul.f32 %v1794, 0.01
      %v1835 = vmul.f32 %v1807, 0.01
      %v1836 = vsel %vm1810, %v1651, %v1823
      %v1837 = vsel %vm1811, %v1664, %v1824
      %v1838 = vsel %vm1812, %v1677, %v1825
      %v1839 = vsel %vm1813, %v1690, %v1826
      %v1840 = vsel %vm1814, %v1703, %v1827
      %v1841 = vsel %vm1815, %v1716, %v1828
      %v1842 = vsel %vm1816, %v1729, %v1829
      %v1843 = vsel %vm1817, %v1742, %v1830
      %v1844 = vsel %vm1818, %v1755, %v1831
      %v1845 = vsel %vm1819, %v1768, %v1832
      %v1846 = vsel %vm1820, %v1781, %v1833
      %v1847 = vsel %vm1821, %v1794, %v1834
      %v1848 = vsel %vm1822, %v1807, %v1835
      %v1849 = vadd.s32 %v255, 1
      %v1850 = vadd.s32 %v256, 1
      %v1851 = vadd.s32 %v255, 56
      %v1852 = vadd.s32 %v256, 56
      %v1853 = vadd.s32 %v1851, 1
      %v1854 = vadd.s32 %v1852, 1
      %v1855 = vmax.f32 %v651, %v1046
      %v1856 = vmax.f32 %v652, %v1047
      %v1857 = vmax.f32 %v653, %v1048
      %v1858 = vmax.f32 %v654, %v1049
      %v1859 = vmax.f32 %v655, %v1050
      %v1860 = vmax.f32 %v656, %v1051
      %v1861 = vmax.f32 %v657, %v1052
      %v1862 = vmax.f32 %v658, %v1053
      %v1863 = vmax.f32 %v659, %v1054
      %v1864 = vmax.f32 %v660, %v1055
      %v1865 = vmax.f32 %v661, %v1056
      %v1866 = vmax.f32 %v662, %v1057
      %v1867 = vmax.f32 %v663, %v1058
      %vm1868 = vcmp.gt.f32.partialorder %v1046, %v651
      %vm1869 = vcmp.gt.f32.partialorder %v1047, %v652
      %vm1870 = vcmp.gt.f32.partialorder %v1048, %v653
      %vm1871 = vcmp.gt.f32.partialorder %v1049, %v654
      %vm1872 = vcmp.gt.f32.partialorder %v1050, %v655
      %vm1873 = vcmp.gt.f32.partialorder %v1051, %v656
      %vm1874 = vcmp.gt.f32.partialorder %v1052, %v657
      %vm1875 = vcmp.gt.f32.partialorder %v1053, %v658
      %vm1876 = vcmp.gt.f32.partialorder %v1054, %v659
      %vm1877 = vcmp.gt.f32.partialorder %v1055, %v660
      %vm1878 = vcmp.gt.f32.partialorder %v1056, %v661
      %vm1879 = vcmp.gt.f32.partialorder %v1057, %v662
      %vm1880 = vcmp.gt.f32.partialorder %v1058, %v663
      %v1881 = vperm.slane %v1849, 0
      %v1882 = vperm.slane %v1849, 1
      %v1883 = vperm.slane %v1849, 2
      %v1884 = vperm.slane %v1849, 3
      %v1885 = vperm.slane %v1849, 4
      %v1886 = vperm.slane %v1849, 5
      %v1887 = vperm.slane %v1849, 6
      %v1888 = vperm.slane %v1849, 7
      %v1889 = vperm.slane %v1850, 0
      %v1890 = vperm.slane %v1850, 1
      %v1891 = vperm.slane %v1850, 2
      %v1892 = vperm.slane %v1850, 3
      %v1893 = vperm.slane %v1850, 4
      %v1894 = vperm.slane %v255, 0
      %v1895 = vperm.slane %v255, 1
      %v1896 = vperm.slane %v255, 2
      %v1897 = vperm.slane %v255, 3
      %v1898 = vperm.slane %v255, 4
      %v1899 = vperm.slane %v255, 5
      %v1900 = vperm.slane %v255, 6
      %v1901 = vperm.slane %v255, 7
      %v1902 = vperm.slane %v256, 0
      %v1903 = vperm.slane %v256, 1
      %v1904 = vperm.slane %v256, 2
      %v1905 = vperm.slane %v256, 3
      %v1906 = vperm.slane %v256, 4
      %v1907 = vsel %vm1868, %v1881, %v1894
      %v1908 = vsel %vm1869, %v1882, %v1895
      %v1909 = vsel %vm1870, %v1883, %v1896
      %v1910 = vsel %vm1871, %v1884, %v1897
      %v1911 = vsel %vm1872, %v1885, %v1898
      %v1912 = vsel %vm1873, %v1886, %v1899
      %v1913 = vsel %vm1874, %v1887, %v1900
      %v1914 = vsel %vm1875, %v1888, %v1901
      %v1915 = vsel %vm1876, %v1889, %v1902
      %v1916 = vsel %vm1877, %v1890, %v1903
      %v1917 = vsel %vm1878, %v1891, %v1904
      %v1918 = vsel %vm1879, %v1892, %v1905
      %v1919 = vsel %vm1880, %v1893, %v1906
      %v1920 = vmax.f32 %v1441, %v1836
      %v1921 = vmax.f32 %v1442, %v1837
      %v1922 = vmax.f32 %v1443, %v1838
      %v1923 = vmax.f32 %v1444, %v1839
      %v1924 = vmax.f32 %v1445, %v1840
      %v1925 = vmax.f32 %v1446, %v1841
      %v1926 = vmax.f32 %v1447, %v1842
      %v1927 = vmax.f32 %v1448, %v1843
      %v1928 = vmax.f32 %v1449, %v1844
      %v1929 = vmax.f32 %v1450, %v1845
      %v1930 = vmax.f32 %v1451, %v1846
      %v1931 = vmax.f32 %v1452, %v1847
      %v1932 = vmax.f32 %v1453, %v1848
      %vm1933 = vcmp.gt.f32.partialorder %v1836, %v1441
      %vm1934 = vcmp.gt.f32.partialorder %v1837, %v1442
      %vm1935 = vcmp.gt.f32.partialorder %v1838, %v1443
      %vm1936 = vcmp.gt.f32.partialorder %v1839, %v1444
      %vm1937 = vcmp.gt.f32.partialorder %v1840, %v1445
      %vm1938 = vcmp.gt.f32.partialorder %v1841, %v1446
      %vm1939 = vcmp.gt.f32.partialorder %v1842, %v1447
      %vm1940 = vcmp.gt.f32.partialorder %v1843, %v1448
      %vm1941 = vcmp.gt.f32.partialorder %v1844, %v1449
      %vm1942 = vcmp.gt.f32.partialorder %v1845, %v1450
      %vm1943 = vcmp.gt.f32.partialorder %v1846, %v1451
      %vm1944 = vcmp.gt.f32.partialorder %v1847, %v1452
      %vm1945 = vcmp.gt.f32.partialorder %v1848, %v1453
      %v1946 = vperm.slane %v1853, 0
      %v1947 = vperm.slane %v1853, 1
      %v1948 = vperm.slane %v1853, 2
      %v1949 = vperm.slane %v1853, 3
      %v1950 = vperm.slane %v1853, 4
      %v1951 = vperm.slane %v1853, 5
      %v1952 = vperm.slane %v1853, 6
      %v1953 = vperm.slane %v1853, 7
      %v1954 = vperm.slane %v1854, 0
      %v1955 = vperm.slane %v1854, 1
      %v1956 = vperm.slane %v1854, 2
      %v1957 = vperm.slane %v1854, 3
      %v1958 = vperm.slane %v1854, 4
      %v1959 = vperm.slane %v1851, 0
      %v1960 = vperm.slane %v1851, 1
      %v1961 = vperm.slane %v1851, 2
      %v1962 = vperm.slane %v1851, 3
      %v1963 = vperm.slane %v1851, 4
      %v1964 = vperm.slane %v1851, 5
      %v1965 = vperm.slane %v1851, 6
      %v1966 = vperm.slane %v1851, 7
      %v1967 = vperm.slane %v1852, 0
      %v1968 = vperm.slane %v1852, 1
      %v1969 = vperm.slane %v1852, 2
      %v1970 = vperm.slane %v1852, 3
      %v1971 = vperm.slane %v1852, 4
      %v1972 = vsel %vm1933, %v1946, %v1959
      %v1973 = vsel %vm1934, %v1947, %v1960
      %v1974 = vsel %vm1935, %v1948, %v1961
      %v1975 = vsel %vm1936, %v1949, %v1962
      %v1976 = vsel %vm1937, %v1950, %v1963
      %v1977 = vsel %vm1938, %v1951, %v1964
      %v1978 = vsel %vm1939, %v1952, %v1965
      %v1979 = vsel %vm1940, %v1953, %v1966
      %v1980 = vsel %vm1941, %v1954, %v1967
      %v1981 = vsel %vm1942, %v1955, %v1968
      %v1982 = vsel %vm1943, %v1956, %v1969
      %v1983 = vsel %vm1944, %v1957, %v1970
      %v1984 = vsel %vm1945, %v1958, %v1971
      %v1985 = vmax.f32 %v1855, %v1920
      %v1986 = vmax.f32 %v1856, %v1921
      %v1987 = vmax.f32 %v1857, %v1922
      %v1988 = vmax.f32 %v1858, %v1923
      %v1989 = vmax.f32 %v1859, %v1924
      %v1990 = vmax.f32 %v1860, %v1925
      %v1991 = vmax.f32 %v1861, %v1926
      %v1992 = vmax.f32 %v1862, %v1927
      %v1993 = vmax.f32 %v1863, %v1928
      %v1994 = vmax.f32 %v1864, %v1929
      %v1995 = vmax.f32 %v1865, %v1930
      %v1996 = vmax.f32 %v1866, %v1931
      %v1997 = vmax.f32 %v1867, %v1932
      %1998 = vst [vmem:[%s246] sm:$0xff] %v1985
      %1999 = vst [vmem:[%s246 + $0x8] sm:$0xff] %v1986
      %2000 = vst [vmem:[%s246 + $0x10] sm:$0xff] %v1987
      %2001 = vst [vmem:[%s246 + $0x18] sm:$0xff] %v1988
      %2002 = vst [vmem:[%s246 + $0x20] sm:$0xff] %v1989
      %2003 = vst [vmem:[%s246 + $0x28] sm:$0xff] %v1990
      %2004 = vst [vmem:[%s246 + $0x30] sm:$0xff] %v1991
      %2005 = vst [vmem:[%s246 + $0x38] sm:$0xff] %v1992
      %2006 = vst [vmem:[%s246 + $0x40] sm:$0xff] %v1993
      %2007 = vst [vmem:[%s246 + $0x48] sm:$0xff] %v1994
      %2008 = vst [vmem:[%s246 + $0x50] sm:$0xff] %v1995
      %2009 = vst [vmem:[%s246 + $0x58] sm:$0xff] %v1996
      %vm2010 = vcmask 261120
      %2011 = vst.msk [vmem:[%s246 + $0x60] sm:$0xff] %vm2010, %v1997
      %vm2012 = vcmp.gt.f32.partialorder %v1920, %v1855
      %vm2013 = vcmp.gt.f32.partialorder %v1921, %v1856
      %vm2014 = vcmp.gt.f32.partialorder %v1922, %v1857
      %vm2015 = vcmp.gt.f32.partialorder %v1923, %v1858
      %vm2016 = vcmp.gt.f32.partialorder %v1924, %v1859
      %vm2017 = vcmp.gt.f32.partialorder %v1925, %v1860
      %vm2018 = vcmp.gt.f32.partialorder %v1926, %v1861
      %vm2019 = vcmp.gt.f32.partialorder %v1927, %v1862
      %vm2020 = vcmp.gt.f32.partialorder %v1928, %v1863
      %vm2021 = vcmp.gt.f32.partialorder %v1929, %v1864
      %vm2022 = vcmp.gt.f32.partialorder %v1930, %v1865
      %vm2023 = vcmp.gt.f32.partialorder %v1931, %v1866
      %vm2024 = vcmp.gt.f32.partialorder %v1932, %v1867
      %v2025 = vsel %vm2012, %v1972, %v1907
      %v2026 = vsel %vm2013, %v1973, %v1908
      %v2027 = vsel %vm2014, %v1974, %v1909
      %v2028 = vsel %vm2015, %v1975, %v1910
      %v2029 = vsel %vm2016, %v1976, %v1911
      %v2030 = vsel %vm2017, %v1977, %v1912
      %v2031 = vsel %vm2018, %v1978, %v1913
      %v2032 = vsel %vm2019, %v1979, %v1914
      %v2033 = vsel %vm2020, %v1980, %v1915
      %v2034 = vsel %vm2021, %v1981, %v1916
      %v2035 = vsel %vm2022, %v1982, %v1917
      %v2036 = vsel %vm2023, %v1983, %v1918
      %v2037 = vsel %vm2024, %v1984, %v1919
      %2038 = vst [vmem:[%s251] sm:$0xff] %v2025
      %2039 = vst [vmem:[%s251 + $0x8] sm:$0xff] %v2026
      %2040 = vst [vmem:[%s251 + $0x10] sm:$0xff] %v2027
      %2041 = vst [vmem:[%s251 + $0x18] sm:$0xff] %v2028
      %2042 = vst [vmem:[%s251 + $0x20] sm:$0xff] %v2029
      %2043 = vst [vmem:[%s251 + $0x28] sm:$0xff] %v2030
      %2044 = vst [vmem:[%s251 + $0x30] sm:$0xff] %v2031
      %2045 = vst [vmem:[%s251 + $0x38] sm:$0xff] %v2032
      %2046 = vst [vmem:[%s251 + $0x40] sm:$0xff] %v2033
      %2047 = vst [vmem:[%s251 + $0x48] sm:$0xff] %v2034
      %2048 = vst [vmem:[%s251 + $0x50] sm:$0xff] %v2035
      %2049 = vst [vmem:[%s251 + $0x58] sm:$0xff] %v2036
      %2050 = vst.msk [vmem:[%s251 + $0x60] sm:$0xff] %vm2010, %v2037
      %p2051 = scmp.lt.s32.totalorder %s17, 1
      %s2052 = scalar_select %p2051, %s17, 1
      %s2053 = smul.addr %s2052, 13
      %s2054 = smul.addr %s2053, 8
      %s2055 = scalar_lea.vmem %s4, %s2054
      %p2056 = scmp.lt.s32.totalorder %s17, 1
      %s2057 = scalar_select %p2056, %s17, 1
      %s2058 = smul.addr %s2057, 13
      %s2059 = smul.addr %s2058, 8
      %s2060 = scalar_lea.vmem %s5, %s2059
      // Predicated region
      $region37: #{encoder_forward.4} parent=35 // pred_check
        %p2061 = pneg %p129
      $region38: #{encoder_forward.4} parent=35 // pred_check_branch
        %2063 = sbr.rel (%p2061) target = $region40
      $region39: #{encoder_forward.4} parent=35 // pred_region
        _
      $region40: #{encoder_forward.4} parent=35 // pred_fallthru
        _
      // Predicated region
      $region41: #{encoder_forward.4} parent=35 // pred_check
        %p2064 = pneg %p155
      $region42: #{encoder_forward.4} parent=35 // pred_check_branch
        %2066 = sbr.rel (%p2064) target = $region44
      $region43: #{encoder_forward.4} parent=35 // pred_region
        _
      $region44: #{encoder_forward.4} parent=35 // pred_fallthru
        _
    $region36: #{encoder_forward.4} parent=5 // pred_fallthru
      _
    %p2067 = scmp.le.s32.totalorder 2, %s12
    // Predicated region
    $region45: #{encoder_forward.4} parent=5 // pred_check
      %p2068 = pneg %p2067
    $region46: #{encoder_forward.4} parent=5 // pred_check_branch
      %2070 = sbr.rel (%p2068) target = $region48
    $region47: #{encoder_forward.4} parent=5 // pred_region
      %s2071 = ssub.s32 %s12, 2
      // Predicated region
      $region49: #{encoder_forward.4} parent=47 // pred_check
        %p2072 = pneg %p135
      $region50: #{encoder_forward.4} parent=47 // pred_check_branch
        %2074 = sbr.rel (%p2072) target = $region52
      $region51: #{encoder_forward.4} parent=47 // pred_region
        %p2075 = scmp.lt.s32.totalorder %s18, 1
        %s2076 = scalar_select %p2075, %s18, 1
        %s2077 = smul.addr %s2076, 13
        %s2078 = smul.addr %s2077, 8
        %s2079 = scalar_lea.vmem %s4, %s2078
      $region52: #{encoder_forward.4} parent=47 // pred_fallthru
        _
      // Predicated region
      $region53: #{encoder_forward.4} parent=47 // pred_check
        %p2080 = pneg %p161
      $region54: #{encoder_forward.4} parent=47 // pred_check_branch
        %2082 = sbr.rel (%p2080) target = $region56
      $region55: #{encoder_forward.4} parent=47 // pred_region
        %p2083 = scmp.lt.s32.totalorder %s18, 1
        %s2084 = scalar_select %p2083, %s18, 1
        %s2085 = smul.addr %s2084, 13
        %s2086 = smul.addr %s2085, 8
        %s2087 = scalar_lea.vmem %s5, %s2086
      $region56: #{encoder_forward.4} parent=47 // pred_fallthru
        _
    $region48: #{encoder_forward.4} parent=5 // pred_fallthru
      _
  $region6: #{encoder_forward.4} parent=0 // loop_footer
    %s16 = sadd.s32 1, %s12
  $region7: #{encoder_forward.4} parent=0 // loop_footer_branch
    %11 = sbr.rel target = $region3
  $region8: #{encoder_forward.4} parent=0 // loop_exit
    _

// kernel: encoder_forward.5
$region0: #{encoder_forward.5}
  #allocation0 [shape = 'u32[]', space=smem, size = 0x4, offset = 0x4, fixed_abs, tag = 'smem constant byte address 0x4 - core index']
  #allocation1 [shape = 'u32[72,128]{1,0:T(1,128)}', space=vmem, size = 0x9000, scoped, tag = 'internal scratch']
  %s0 = inlined_call_operand.vmem [shape: bf16[4,144,392], index: 0, kind: input, shape index: {}]
  %s1 = inlined_call_operand.vmem [shape: bf16[32,144], index: 1, kind: input, shape index: {}]
  %s2 = inlined_call_operand.vmem [shape: f32[32,1], index: 2, kind: input, shape index: {}]
  %s3 = inlined_call_operand.vmem [shape: s32[1,392], index: 3, kind: input, shape index: {}]
  %s4 = inlined_call_operand.vmem [shape: f32[32,392], index: 4, kind: output, shape index: {0}]
  %s5 = inlined_call_operand.vmem [shape: s32[32,392], index: 5, kind: output, shape index: {1}]
  %6 = xla_tuple %s4, %s5
  %s7 = sld [smem:[#allocation0]]
  $region57: #{encoder_forward.5} parent=0
    _
  %s9 = ssub.s32 1, %s7
  %s10 = scalar_select 0, %s9, %s7
  loop: start=0, step=1, limit=4
  $region2: #{encoder_forward.5} parent=0 // loop_pre_header
    _
  $region3: #{encoder_forward.5} parent=0 // loop_header
    %s12 = sphi 0, %s16
    %p13 = scmp.ge.s32.totalorder %s12, 4
    %s20 = sphi 0, %s20
    %s22 = sphi 0, %s20
    %s23 = sphi 0, %s22
    %s37 = sphi 0, %s23
    %s43 = sphi 0, %s45
    %s46 = sphi 0, %s43
    %s47 = sphi 0, %s46
    %s63 = sphi 0, %s47
    %s69 = sphi 0, %s71
    %s72 = sphi 0, %s69
    %s73 = sphi 0, %s72
    %s89 = sphi 0, %s73
    %s93 = sphi 0, %s93
    %s95 = sphi 0, %s93
    %s96 = sphi 0, %s95
    %s110 = sphi 0, %s96
    %s116 = sphi 0, %s118
    %s119 = sphi 0, %s116
    %s120 = sphi 0, %s119
    %s136 = sphi 0, %s120
    %s142 = sphi 0, %s144
    %s145 = sphi 0, %s142
    %s146 = sphi 0, %s145
    %s162 = sphi 0, %s146
  $region4: #{encoder_forward.5} parent=0 // loop_header_branch
    %15 = sbr.rel (%p13) target = $region8
  $region5: #{encoder_forward.5} parent=0 // loop_body
    %s17 = ssub.s32 %s12, 1
    %s18 = ssub.s32 %s12, 2
    %s19 = sadd.s32 %s12, 1
    %s21 = sadd.s32 %s20, 1
    %p24 = scmp.eq.s32.totalorder %s12, 1
    %p25 = scmp.ne.s32.totalorder %s20, %s22
    %p26 = scmp.eq.s32.totalorder %s12, 0
    %p27 = por %p25, %p26
    %p28 = scmp.ne.s32.totalorder %s20, %s22
    %p29 = scmp.eq.s32.totalorder %s17, 1
    %p30 = por %p28, %p29
    %p31 = scmp.ne.s32.totalorder %s22, %s23
    %p32 = scmp.eq.s32.totalorder %s17, 0
    %p33 = por %p31, %p32
    %p34 = scmp.ne.s32.totalorder %s22, %s23
    %p35 = scmp.eq.s32.totalorder %s18, 1
    %p36 = por %p34, %p35
    %p38 = scmp.ne.s32.totalorder %s23, %s37
    %p39 = scmp.eq.s32.totalorder %s18, 0
    %p40 = por %p38, %p39
    %s41 = ssub.s32 %s12, %s19
    %p42 = scmp.eq.s32.totalorder %s41, 0
    %s44 = sadd.s32 %s43, 1
    %s45 = scalar_select %p42, %s43, %s44
    %p48 = pneg %p42
    %p49 = scmp.eq.s32.totalorder %s12, 1
    %p50 = por %p48, %p49
    %p51 = scmp.ne.s32.totalorder %s43, %s46
    %p52 = scmp.eq.s32.totalorder %s12, 0
    %p53 = por %p51, %p52
    %p54 = scmp.ne.s32.totalorder %s43, %s46
    %p55 = scmp.eq.s32.totalorder %s17, 1
    %p56 = por %p54, %p55
    %p57 = scmp.ne.s32.totalorder %s46, %s47
    %p58 = scmp.eq.s32.totalorder %s17, 0
    %p59 = por %p57, %p58
    %p60 = scmp.ne.s32.totalorder %s46, %s47
    %p61 = scmp.eq.s32.totalorder %s18, 1
    %p62 = por %p60, %p61
    %p64 = scmp.ne.s32.totalorder %s47, %s63
    %p65 = scmp.eq.s32.totalorder %s18, 0
    %p66 = por %p64, %p65
    %s67 = ssub.s32 %s12, %s19
    %p68 = scmp.eq.s32.totalorder %s67, 0
    %s70 = sadd.s32 %s69, 1
    %s71 = scalar_select %p68, %s69, %s70
    %p74 = pneg %p68
    %p75 = scmp.eq.s32.totalorder %s12, 1
    %p76 = por %p74, %p75
    %p77 = scmp.ne.s32.totalorder %s69, %s72
    %p78 = scmp.eq.s32.totalorder %s12, 0
    %p79 = por %p77, %p78
    %p80 = scmp.ne.s32.totalorder %s69, %s72
    %p81 = scmp.eq.s32.totalorder %s17, 1
    %p82 = por %p80, %p81
    %p83 = scmp.ne.s32.totalorder %s72, %s73
    %p84 = scmp.eq.s32.totalorder %s17, 0
    %p85 = por %p83, %p84
    %p86 = scmp.ne.s32.totalorder %s72, %s73
    %p87 = scmp.eq.s32.totalorder %s18, 1
    %p88 = por %p86, %p87
    %p90 = scmp.ne.s32.totalorder %s73, %s89
    %p91 = scmp.eq.s32.totalorder %s18, 0
    %p92 = por %p90, %p91
    %s94 = sadd.s32 %s93, 1
    %p97 = scmp.eq.s32.totalorder %s12, 1
    %p98 = scmp.ne.s32.totalorder %s93, %s95
    %p99 = scmp.eq.s32.totalorder %s12, 0
    %p100 = por %p98, %p99
    %p101 = scmp.ne.s32.totalorder %s93, %s95
    %p102 = scmp.eq.s32.totalorder %s17, 1
    %p103 = por %p101, %p102
    %p104 = scmp.ne.s32.totalorder %s95, %s96
    %p105 = scmp.eq.s32.totalorder %s17, 0
    %p106 = por %p104, %p105
    %p107 = scmp.ne.s32.totalorder %s95, %s96
    %p108 = scmp.eq.s32.totalorder %s18, 1
    %p109 = por %p107, %p108
    %p111 = scmp.ne.s32.totalorder %s96, %s110
    %p112 = scmp.eq.s32.totalorder %s18, 0
    %p113 = por %p111, %p112
    %s114 = ssub.s32 %s12, %s19
    %p115 = scmp.eq.s32.totalorder %s114, 0
    %s117 = sadd.s32 %s116, 1
    %s118 = scalar_select %p115, %s116, %s117
    %p121 = pneg %p115
    %p122 = scmp.eq.s32.totalorder %s12, 1
    %p123 = por %p121, %p122
    %p124 = scmp.ne.s32.totalorder %s116, %s119
    %p125 = scmp.eq.s32.totalorder %s12, 0
    %p126 = por %p124, %p125
    %p127 = scmp.ne.s32.totalorder %s116, %s119
    %p128 = scmp.eq.s32.totalorder %s17, 1
    %p129 = por %p127, %p128
    %p130 = scmp.ne.s32.totalorder %s119, %s120
    %p131 = scmp.eq.s32.totalorder %s17, 0
    %p132 = por %p130, %p131
    %p133 = scmp.ne.s32.totalorder %s119, %s120
    %p134 = scmp.eq.s32.totalorder %s18, 1
    %p135 = por %p133, %p134
    %p137 = scmp.ne.s32.totalorder %s120, %s136
    %p138 = scmp.eq.s32.totalorder %s18, 0
    %p139 = por %p137, %p138
    %s140 = ssub.s32 %s12, %s19
    %p141 = scmp.eq.s32.totalorder %s140, 0
    %s143 = sadd.s32 %s142, 1
    %s144 = scalar_select %p141, %s142, %s143
    %p147 = pneg %p141
    %p148 = scmp.eq.s32.totalorder %s12, 1
    %p149 = por %p147, %p148
    %p150 = scmp.ne.s32.totalorder %s142, %s145
    %p151 = scmp.eq.s32.totalorder %s12, 0
    %p152 = por %p150, %p151
    %p153 = scmp.ne.s32.totalorder %s142, %s145
    %p154 = scmp.eq.s32.totalorder %s17, 1
    %p155 = por %p153, %p154
    %p156 = scmp.ne.s32.totalorder %s145, %s146
    %p157 = scmp.eq.s32.totalorder %s17, 0
    %p158 = por %p156, %p157
    %p159 = scmp.ne.s32.totalorder %s145, %s146
    %p160 = scmp.eq.s32.totalorder %s18, 1
    %p161 = por %p159, %p160
    %p163 = scmp.ne.s32.totalorder %s146, %s162
    %p164 = scmp.eq.s32.totalorder %s18, 0
    %p165 = por %p163, %p164
    %p166 = scmp.le.s32.totalorder 1, %s12
    %p167 = scmp.lt.s32.totalorder %s12, 3
    %p168 = pnand %p166, %p167
    %p169 = pneg %p168
    // Predicated region
    $region9: #{encoder_forward.5} parent=5 // pred_check
      _
    $region10: #{encoder_forward.5} parent=5 // pred_check_branch
      %171 = sbr.rel (%p168) target = $region12
    $region11: #{encoder_forward.5} parent=5 // pred_region
      %s172 = ssub.s32 %s12, 1
      // Predicated region
      $region13: #{encoder_forward.5} parent=11 // pred_check
        %p173 = pneg %p33
      $region14: #{encoder_forward.5} parent=11 // pred_check_branch
        %175 = sbr.rel (%p173) target = $region16
      $region15: #{encoder_forward.5} parent=11 // pred_region
        _
      $region16: #{encoder_forward.5} parent=11 // pred_fallthru
        _
      // Predicated region
      $region17: #{encoder_forward.5} parent=11 // pred_check
        %p176 = pneg %p106
      $region18: #{encoder_forward.5} parent=11 // pred_check_branch
        %178 = sbr.rel (%p176) target = $region20
      $region19: #{encoder_forward.5} parent=11 // pred_region
        _
      $region20: #{encoder_forward.5} parent=11 // pred_fallthru
        _
    $region12: #{encoder_forward.5} parent=5 // pred_fallthru
      _
    %p179 = scmp.lt.s32.totalorder %s12, 2
    // Predicated region
    $region21: #{encoder_forward.5} parent=5 // pred_check
      %p180 = pneg %p179
    $region22: #{encoder_forward.5} parent=5 // pred_check_branch
      %182 = sbr.rel (%p180) target = $region24
    $region23: #{encoder_forward.5} parent=5 // pred_region
      // Predicated region
      $region25: #{encoder_forward.5} parent=23 // pred_check
        %p183 = pneg %p53
      $region26: #{encoder_forward.5} parent=23 // pred_check_branch
        %185 = sbr.rel (%p183) target = $region28
      $region27: #{encoder_forward.5} parent=23 // pred_region
        %s186 = smul.u32 2, %s12
        %p187 = scmp.lt.s32.totalorder %s186, 3
        %s188 = scalar_select %p187, %s186, 3
        %s189 = smul.addr %s188, 2
        %s190 = smul.addr %s189, 4
        %s191 = scalar_lea.vmem %s1, %s190
        %s192 = smul.u32 2, %s12
      $region28: #{encoder_forward.5} parent=23 // pred_fallthru
        _
      // Predicated region
      $region29: #{encoder_forward.5} parent=23 // pred_check
        %p193 = pneg %p79
      $region30: #{encoder_forward.5} parent=23 // pred_check_branch
        %195 = sbr.rel (%p193) target = $region32
      $region31: #{encoder_forward.5} parent=23 // pred_region
        %s196 = smul.u32 2, %s12
        %p197 = scmp.lt.s32.totalorder %s196, 3
        %s198 = scalar_select %p197, %s196, 3
        %s199 = smul.addr %s198, 8
        %s200 = scalar_lea.vmem %s2, %s199
        %s201 = smul.u32 2, %s12
      $region32: #{encoder_forward.5} parent=23 // pred_fallthru
        _
    $region24: #{encoder_forward.5} parent=5 // pred_fallthru
      _
    %p202 = scmp.le.s32.totalorder 1, %s12
    %p203 = scmp.lt.s32.totalorder %s12, 3
    %p204 = pnand %p202, %p203
    %p205 = pneg %p204
    // Predicated region
    $region33: #{encoder_forward.5} parent=5 // pred_check
      _
    $region34: #{encoder_forward.5} parent=5 // pred_check_branch
      %207 = sbr.rel (%p204) target = $region36
    $region35: #{encoder_forward.5} parent=5 // pred_region
      %s208 = ssub.s32 %s12, 1
      %p209 = pneg %p33
      %p210 = pneg %p30
      %s211 = smul.u32 2, %s17
      %p212 = scmp.lt.s32.totalorder %s211, 3
      %s213 = scalar_select %p212, %s211, 3
      %s214 = smul.addr %s213, 2
      %s215 = smul.addr %s214, 4
      %s216 = scalar_lea.vmem %s1, %s215
      %p217 = pneg %p59
      %p218 = pneg %p56
      %s219 = smul.u32 2, %s17
      %p220 = scmp.lt.s32.totalorder %s219, 3
      %s221 = scalar_select %p220, %s219, 3
      %s222 = smul.addr %s221, 8
      %s223 = scalar_lea.vmem %s2, %s222
      %p224 = pneg %p85
      %p225 = pneg %p82
      %p226 = pneg %p106
      %p227 = pneg %p103
      %p228 = pneg %p132
      %p229 = pneg %p129
      %s230 = smul.u32 2, %s17
      %p231 = scmp.lt.s32.totalorder %s230, 3
      %s232 = scalar_select %p231, %s230, 3
      %s233 = smul.addr %s232, 4
      %s234 = smul.addr %s233, 8
      %s235 = scalar_lea.vmem %s4, %s234
      %p236 = pneg %p158
      %p237 = pneg %p155
      %s238 = smul.u32 2, %s17
      %p239 = scmp.lt.s32.totalorder %s238, 3
      %s240 = scalar_select %p239, %s238, 3
      %s241 = smul.addr %s240, 4
      %s242 = smul.addr %s241, 8
      %s243 = scalar_lea.vmem %s5, %s242
      %s244 = smul.u32 2, %s17
      %p245 = scmp.lt.s32.totalorder %s244, 3
      %s246 = scalar_select %p245, %s244, 3
      %s247 = smul.addr %s246, 2
      %s248 = smul.addr %s247, 4
      %s249 = scalar_lea.vmem %s1, %s248
      %s250 = smul.u32 2, %s17
      %s251 = smul.u32 2, %s17
      %p252 = scmp.lt.s32.totalorder %s251, 3
      %s253 = scalar_select %p252, %s251, 3
      %s254 = smul.addr %s253, 8
      %s255 = scalar_lea.vmem %s2, %s254
      %s256 = smul.u32 2, %s17
      %s257 = smul.u32 2, %s17
      %p258 = scmp.lt.s32.totalorder %s257, 3
      %s259 = scalar_select %p258, %s257, 3
      %s260 = smul.addr %s259, 4
      %s261 = smul.addr %s260, 8
      %s262 = scalar_lea.vmem %s4, %s261
      %s263 = smul.u32 2, %s17
      %s264 = smul.u32 2, %s17
      %p265 = scmp.lt.s32.totalorder %s264, 3
      %s266 = scalar_select %p265, %s264, 3
      %s267 = smul.addr %s266, 4
      %s268 = smul.addr %s267, 8
      %s269 = scalar_lea.vmem %s5, %s268
      %s270 = smul.u32 2, %s17
      %v272 = vld [vmem:[%s249] sm:$0xff]
      %v273 = vld [vmem:[%s249 + $0x8] sm:$0xff]
      %v274 = vld [vmem:[%s255] sm:$0xff]
      %v275 = vld [vmem:[%s255 + $0x8] sm:$0xff]
      %v276 = vld [vmem:[%s3] sm:$0xf]
      %v277 = vld [vmem:[%s0] sm:$0xff]
      %v278 = vld [vmem:[%s0 + $0x8] sm:$0xff]
      %v279 = vld [vmem:[%s0 + $0x10] sm:$0xff]
      %v280 = vld [vmem:[%s0 + $0x18] sm:$0xff]
      %v281 = vld [vmem:[%s0 + $0x20] sm:$0xff]
      %v282 = vld [vmem:[%s0 + $0x28] sm:$0xff]
      %v283 = vld [vmem:[%s0 + $0x30] sm:$0xff]
      %v284 = vld [vmem:[%s0 + $0x38] sm:$0xff]
      %v285 = vld [vmem:[%s0 + $0x40] sm:$0xff]
      %v286 = vld [vmem:[%s0 + $0x48] sm:$0xff]
      %v287 = vld [vmem:[%s0 + $0x50] sm:$0xff]
      %v288 = vld [vmem:[%s0 + $0x58] sm:$0xff]
      %v289 = vld [vmem:[%s0 + $0x60] sm:$0xff]
      %v290 = vld [vmem:[%s0 + $0x68] sm:$0xff]
      %v291 = vld [vmem:[%s0 + $0x70] sm:$0xff]
      %v292 = vld [vmem:[%s0 + $0x78] sm:$0xff]
      %v293 = vld [vmem:[%s0 + $0x80] sm:$0xff]
      %v294 = vld [vmem:[%s0 + $0x88] sm:$0xff]
      %v295 = vld [vmem:[%s0 + $0x90] sm:$0xff]
      %v296 = vld [vmem:[%s0 + $0x98] sm:$0xff]
      %v297 = vld [vmem:[%s0 + $0xa0] sm:$0xff]
      %v298 = vld [vmem:[%s0 + $0xa8] sm:$0xff]
      %v299 = vld [vmem:[%s0 + $0xb0] sm:$0xff]
      %v300 = vld [vmem:[%s0 + $0xb8] sm:$0xff]
      %v301 = vld [vmem:[%s0 + $0xc0] sm:$0xff]
      %v302 = vld [vmem:[%s0 + $0xc8] sm:$0xff]
      %v303 = vld [vmem:[%s0 + $0xd0] sm:$0xff]
      %v304 = vld [vmem:[%s0 + $0xd8] sm:$0xff]
      %v305 = vld [vmem:[%s0 + $0xe0] sm:$0xff]
      %v306 = vld [vmem:[%s0 + $0xe8] sm:$0xff]
      %v307 = vld [vmem:[%s0 + $0xf0] sm:$0xff]
      %v308 = vld [vmem:[%s0 + $0xf8] sm:$0xff]
      %v309 = vld [vmem:[%s0 + $0x100] sm:$0xff]
      %v310 = vld [vmem:[%s0 + $0x108] sm:$0xff]
      %v311 = vld [vmem:[%s0 + $0x110] sm:$0xff]
      %v312 = vld [vmem:[%s0 + $0x118] sm:$0xff]
      %314 = vset.pattern.permute.xlu0 0
      %315 = vperm.xlu0 %314, %v274
      %v316 = vpop.permute.xlu0 %315
      %319 = vset.pattern.permute.xlu0 0
      %320 = vperm.xlu0 %319, %v275
      %v321 = vpop.permute.xlu0 %320
      %v325 = vunpack.c.l.b16 %v272
      %v326 = vunpack.c.h.b16 %v272
      %v327 = vunpack.c.l.b16 %v273
      %v328 = vunpack.c.h.b16 %v273
      %v329 = vpack.c.b16 %v327, %v325
      %v330 = vpack.c.b16 %v328, %v326
      %v368 = vunpack.c.l.b16 %v277
      %v369 = vunpack.c.h.b16 %v277
      %v370 = vunpack.c.l.b16 %v278
      %v371 = vunpack.c.h.b16 %v278
      %v372 = vunpack.c.l.b16 %v279
      %v373 = vunpack.c.h.b16 %v279
      %v374 = vunpack.c.l.b16 %v280
      %v375 = vunpack.c.h.b16 %v280
      %v376 = vunpack.c.l.b16 %v281
      %v377 = vunpack.c.h.b16 %v281
      %v378 = vunpack.c.l.b16 %v282
      %v379 = vunpack.c.h.b16 %v282
      %v380 = vunpack.c.l.b16 %v283
      %v381 = vunpack.c.h.b16 %v283
      %v382 = vunpack.c.l.b16 %v284
      %v383 = vunpack.c.h.b16 %v284
      %v384 = vunpack.c.l.b16 %v285
      %v385 = vunpack.c.h.b16 %v285
      %v386 = vunpack.c.l.b16 %v286
      %v387 = vunpack.c.h.b16 %v286
      %v388 = vunpack.c.l.b16 %v287
      %v389 = vunpack.c.h.b16 %v287
      %v390 = vunpack.c.l.b16 %v288
      %v391 = vunpack.c.h.b16 %v288
      %v392 = vunpack.c.l.b16 %v289
      %v393 = vunpack.c.h.b16 %v289
      %v394 = vunpack.c.l.b16 %v290
      %v395 = vunpack.c.h.b16 %v290
      %v396 = vunpack.c.l.b16 %v291
      %v397 = vunpack.c.h.b16 %v291
      %v398 = vunpack.c.l.b16 %v292
      %v399 = vunpack.c.h.b16 %v292
      %v400 = vunpack.c.l.b16 %v293
      %v401 = vunpack.c.h.b16 %v293
      %v402 = vunpack.c.l.b16 %v294
      %v403 = vunpack.c.h.b16 %v294
      %v404 = vunpack.c.l.b16 %v295
      %v405 = vunpack.c.h.b16 %v295
      %v406 = vunpack.c.l.b16 %v296
      %v407 = vunpack.c.h.b16 %v296
      %v408 = vunpack.c.l.b16 %v297
      %v409 = vunpack.c.h.b16 %v297
      %v410 = vunpack.c.l.b16 %v298
      %v411 = vunpack.c.h.b16 %v298
      %v412 = vunpack.c.l.b16 %v299
      %v413 = vunpack.c.h.b16 %v299
      %v414 = vunpack.c.l.b16 %v300
      %v415 = vunpack.c.h.b16 %v300
      %v416 = vunpack.c.l.b16 %v301
      %v417 = vunpack.c.h.b16 %v301
      %v418 = vunpack.c.l.b16 %v302
      %v419 = vunpack.c.h.b16 %v302
      %v420 = vunpack.c.l.b16 %v303
      %v421 = vunpack.c.h.b16 %v303
      %v422 = vunpack.c.l.b16 %v304
      %v423 = vunpack.c.h.b16 %v304
      %v424 = vunpack.c.l.b16 %v305
      %v425 = vunpack.c.h.b16 %v305
      %v426 = vunpack.c.l.b16 %v306
      %v427 = vunpack.c.h.b16 %v306
      %v428 = vunpack.c.l.b16 %v307
      %v429 = vunpack.c.h.b16 %v307
      %v430 = vunpack.c.l.b16 %v308
      %v431 = vunpack.c.h.b16 %v308
      %v432 = vunpack.c.l.b16 %v309
      %v433 = vunpack.c.h.b16 %v309
      %v434 = vunpack.c.l.b16 %v310
      %v435 = vunpack.c.h.b16 %v310
      %v436 = vunpack.c.l.b16 %v311
      %v437 = vunpack.c.h.b16 %v311
      %v438 = vunpack.c.l.b16 %v312
      %v439 = vunpack.c.h.b16 %v312
      %v440 = vpack.c.b16 %v372, %v368
      %v441 = vpack.c.b16 %v373, %v369
      %v442 = vpack.c.b16 %v374, %v370
      %v443 = vpack.c.b16 %v375, %v371
      %v444 = vpack.c.b16 %v380, %v376
      %v445 = vpack.c.b16 %v381, %v377
      %v446 = vpack.c.b16 %v382, %v378
      %v447 = vpack.c.b16 %v383, %v379
      %v448 = vpack.c.b16 %v388, %v384
      %v449 = vpack.c.b16 %v389, %v385
      %v450 = vpack.c.b16 %v390, %v386
      %v451 = vpack.c.b16 %v391, %v387
      %v452 = vpack.c.b16 %v396, %v392
      %v453 = vpack.c.b16 %v397, %v393
      %v454 = vpack.c.b16 %v398, %v394
      %v455 = vpack.c.b16 %v399, %v395
      %v456 = vpack.c.b16 %v404, %v400
      %v457 = vpack.c.b16 %v405, %v401
      %v458 = vpack.c.b16 %v406, %v402
      %v459 = vpack.c.b16 %v407, %v403
      %v460 = vpack.c.b16 %v412, %v408
      %v461 = vpack.c.b16 %v413, %v409
      %v462 = vpack.c.b16 %v414, %v410
      %v463 = vpack.c.b16 %v415, %v411
      %v464 = vpack.c.b16 %v420, %v416
      %v465 = vpack.c.b16 %v421, %v417
      %v466 = vpack.c.b16 %v422, %v418
      %v467 = vpack.c.b16 %v423, %v419
      %v468 = vpack.c.b16 %v428, %v424
      %v469 = vpack.c.b16 %v429, %v425
      %v470 = vpack.c.b16 %v430, %v426
      %v471 = vpack.c.b16 %v431, %v427
      %v472 = vpack.c.b16 %v436, %v432
      %v473 = vpack.c.b16 %v437, %v433
      %v474 = vpack.c.b16 %v438, %v434
      %v475 = vpack.c.b16 %v439, %v435
      %vm512 = vcmask 130048
      %v514 = vsel %vm512, %v330, 0
      %516 = vmatpush.bf16.msra.mxu0 %v468
      %517 = vmatpush.bf16.msra.mxu0 %v464
      %518 = vmatpush.bf16.msra.mxu0 %v460
      %519 = vmatpush.bf16.msra.mxu0 %v456
      %520 = vmatpush.bf16.msra.mxu0 %v452
      %521 = vmatpush.bf16.msra.mxu0 %v448
      %522 = vmatpush.bf16.msra.mxu0 %v444
      %523 = vmatpush.bf16.msra.mxu0 %v440
      %524 = vmatmul.bf16.gmra.mxu0 %v329
      %v525 = vpop.f32.mrf.mxu0
      %v526 = vadd.f32 %v316, %v525
      %v527 = vpop.f32.mrf.mxu0
      %v528 = vadd.f32 %v321, %v527
      %529 = vdwg.mxu0
      %530 = vmatpush.bf16.msra.mxu0 0
      %531 = vmatpush.bf16.msra.mxu0 0
      %532 = vmatpush.bf16.msra.mxu0 0
      %533 = vmatpush.bf16.msra.mxu0 0
      %534 = vmatpush.bf16.msra.mxu0 0
      %535 = vmatpush.bf16.msra.mxu0 0
      %536 = vmatpush.bf16.msra.mxu0 0
      %537 = vmatpush.bf16.msra.mxu0 %v472
      %538 = vmatmul.bf16.gmra.mxu0 %v514
      %v539 = vpop.f32.mrf.mxu0
      %v540 = vadd.f32 %v526, %v539
      %v541 = vpop.f32.mrf.mxu0
      %v542 = vadd.f32 %v528, %v541
      %543 = vdwg.mxu0
      %544 = vmatpush.bf16.msra.mxu0 %v469
      %545 = vmatpush.bf16.msra.mxu0 %v465
      %546 = vmatpush.bf16.msra.mxu0 %v461
      %547 = vmatpush.bf16.msra.mxu0 %v457
      %548 = vmatpush.bf16.msra.mxu0 %v453
      %549 = vmatpush.bf16.msra.mxu0 %v449
      %550 = vmatpush.bf16.msra.mxu0 %v445
      %551 = vmatpush.bf16.msra.mxu0 %v441
      %552 = vmatmul.bf16.gmra.mxu0 %v329
      %v553 = vpop.f32.mrf.mxu0
      %v554 = vadd.f32 %v316, %v553
      %v555 = vpop.f32.mrf.mxu0
      %v556 = vadd.f32 %v321, %v555
      %557 = vdwg.mxu0
      %558 = vmatpush.bf16.msra.mxu0 0
      %559 = vmatpush.bf16.msra.mxu0 0
      %560 = vmatpush.bf16.msra.mxu0 0
      %561 = vmatpush.bf16.msra.mxu0 0
      %562 = vmatpush.bf16.msra.mxu0 0
      %563 = vmatpush.bf16.msra.mxu0 0
      %564 = vmatpush.bf16.msra.mxu0 0
      %565 = vmatpush.bf16.msra.mxu0 %v473
      %566 = vmatmul.bf16.gmra.mxu0 %v514
      %v567 = vpop.f32.mrf.mxu0
      %v568 = vadd.f32 %v554, %v567
      %v569 = vpop.f32.mrf.mxu0
      %v570 = vadd.f32 %v556, %v569
      %571 = vdwg.mxu0
      %572 = vmatpush.bf16.msra.mxu0 %v470
      %573 = vmatpush.bf16.msra.mxu0 %v466
      %574 = vmatpush.bf16.msra.mxu0 %v462
      %575 = vmatpush.bf16.msra.mxu0 %v458
      %576 = vmatpush.bf16.msra.mxu0 %v454
      %577 = vmatpush.bf16.msra.mxu0 %v450
      %578 = vmatpush.bf16.msra.mxu0 %v446
      %579 = vmatpush.bf16.msra.mxu0 %v442
      %580 = vmatmul.bf16.gmra.mxu0 %v329
      %v581 = vpop.f32.mrf.mxu0
      %v582 = vadd.f32 %v316, %v581
      %v583 = vpop.f32.mrf.mxu0
      %v584 = vadd.f32 %v321, %v583
      %585 = vdwg.mxu0
      %586 = vmatpush.bf16.msra.mxu0 0
      %587 = vmatpush.bf16.msra.mxu0 0
      %588 = vmatpush.bf16.msra.mxu0 0
      %589 = vmatpush.bf16.msra.mxu0 0
      %590 = vmatpush.bf16.msra.mxu0 0
      %591 = vmatpush.bf16.msra.mxu0 0
      %592 = vmatpush.bf16.msra.mxu0 0
      %593 = vmatpush.bf16.msra.mxu0 %v474
      %594 = vmatmul.bf16.gmra.mxu0 %v514
      %v595 = vpop.f32.mrf.mxu0
      %v596 = vadd.f32 %v582, %v595
      %v597 = vpop.f32.mrf.mxu0
      %v598 = vadd.f32 %v584, %v597
      %599 = vdwg.mxu0
      %600 = vmatpush.bf16.msra.mxu0 %v471
      %601 = vmatpush.bf16.msra.mxu0 %v467
      %602 = vmatpush.bf16.msra.mxu0 %v463
      %603 = vmatpush.bf16.msra.mxu0 %v459
      %604 = vmatpush.bf16.msra.mxu0 %v455
      %605 = vmatpush.bf16.msra.mxu0 %v451
      %606 = vmatpush.bf16.msra.mxu0 %v447
      %607 = vmatpush.bf16.msra.mxu0 %v443
      %608 = vmatmul.bf16.gmra.mxu0 %v329
      %v609 = vpop.f32.mrf.mxu0
      %v610 = vadd.f32 %v316, %v609
      %v611 = vpop.f32.mrf.mxu0
      %v612 = vadd.f32 %v321, %v611
      %613 = vdwg.mxu0
      %614 = vmatpush.bf16.msra.mxu0 0
      %615 = vmatpush.bf16.msra.mxu0 0
      %616 = vmatpush.bf16.msra.mxu0 0
      %617 = vmatpush.bf16.msra.mxu0 0
      %618 = vmatpush.bf16.msra.mxu0 0
      %619 = vmatpush.bf16.msra.mxu0 0
      %620 = vmatpush.bf16.msra.mxu0 0
      %621 = vmatpush.bf16.msra.mxu0 %v475
      %622 = vmatmul.bf16.gmra.mxu0 %v514
      %v623 = vpop.f32.mrf.mxu0
      %v624 = vadd.f32 %v610, %v623
      %v625 = vpop.f32.mrf.mxu0
      %v626 = vadd.f32 %v612, %v625
      %627 = vdwg.mxu0
      %vm628 = vcmp.ge.f32.partialorder %v540, 0.0
      %vm629 = vcmp.ge.f32.partialorder %v568, 0.0
      %vm630 = vcmp.ge.f32.partialorder %v596, 0.0
      %vm631 = vcmp.ge.f32.partialorder %v624, 0.0
      %vm632 = vcmp.ge.f32.partialorder %v542, 0.0
      %vm633 = vcmp.ge.f32.partialorder %v570, 0.0
      %vm634 = vcmp.ge.f32.partialorder %v598, 0.0
      %vm635 = vcmp.ge.f32.partialorder %v626, 0.0
      %v636 = vmul.f32 %v540, 0.01
      %v637 = vmul.f32 %v568, 0.01
      %v638 = vmul.f32 %v596, 0.01
      %v639 = vmul.f32 %v624, 0.01
      %v640 = vmul.f32 %v542, 0.01
      %v641 = vmul.f32 %v570, 0.01
      %v642 = vmul.f32 %v598, 0.01
      %v643 = vmul.f32 %v626, 0.01
      %v644 = vsel %vm628, %v540, %v636
      %v645 = vsel %vm629, %v568, %v637
      %v646 = vsel %vm630, %v596, %v638
      %v647 = vsel %vm631, %v624, %v639
      %v648 = vsel %vm632, %v542, %v640
      %v649 = vsel %vm633, %v570, %v641
      %v650 = vsel %vm634, %v598, %v642
      %v651 = vsel %vm635, %v626, %v643
      %s652 = scalar_lea.vmem %s0, 288
      %v653 = vld [vmem:[%s652] sm:$0xff]
      %v654 = vld [vmem:[%s652 + $0x8] sm:$0xff]
      %v655 = vld [vmem:[%s652 + $0x10] sm:$0xff]
      %v656 = vld [vmem:[%s652 + $0x18] sm:$0xff]
      %v657 = vld [vmem:[%s652 + $0x20] sm:$0xff]
      %v658 = vld [vmem:[%s652 + $0x28] sm:$0xff]
      %v659 = vld [vmem:[%s652 + $0x30] sm:$0xff]
      %v660 = vld [vmem:[%s652 + $0x38] sm:$0xff]
      %v661 = vld [vmem:[%s652 + $0x40] sm:$0xff]
      %v662 = vld [vmem:[%s652 + $0x48] sm:$0xff]
      %v663 = vld [vmem:[%s652 + $0x50] sm:$0xff]
      %v664 = vld [vmem:[%s652 + $0x58] sm:$0xff]
      %v665 = vld [vmem:[%s652 + $0x60] sm:$0xff]
      %v666 = vld [vmem:[%s652 + $0x68] sm:$0xff]
      %v667 = vld [vmem:[%s652 + $0x70] sm:$0xff]
      %v668 = vld [vmem:[%s652 + $0x78] sm:$0xff]
      %v669 = vld [vmem:[%s652 + $0x80] sm:$0xff]
      %v670 = vld [vmem:[%s652 + $0x88] sm:$0xff]
      %v671 = vld [vmem:[%s652 + $0x90] sm:$0xff]
      %v672 = vld [vmem:[%s652 + $0x98] sm:$0xff]
      %v673 = vld [vmem:[%s652 + $0xa0] sm:$0xff]
      %v674 = vld [vmem:[%s652 + $0xa8] sm:$0xff]
      %v675 = vld [vmem:[%s652 + $0xb0] sm:$0xff]
      %v676 = vld [vmem:[%s652 + $0xb8] sm:$0xff]
      %v677 = vld [vmem:[%s652 + $0xc0] sm:$0xff]
      %v678 = vld [vmem:[%s652 + $0xc8] sm:$0xff]
      %v679 = vld [vmem:[%s652 + $0xd0] sm:$0xff]
      %v680 = vld [vmem:[%s652 + $0xd8] sm:$0xff]
      %v681 = vld [vmem:[%s652 + $0xe0] sm:$0xff]
      %v682 = vld [vmem:[%s652 + $0xe8] sm:$0xff]
      %v683 = vld [vmem:[%s652 + $0xf0] sm:$0xff]
      %v684 = vld [vmem:[%s652 + $0xf8] sm:$0xff]
      %v685 = vld [vmem:[%s652 + $0x100] sm:$0xff]
      %v686 = vld [vmem:[%s652 + $0x108] sm:$0xff]
      %v687 = vld [vmem:[%s652 + $0x110] sm:$0xff]
      %v688 = vld [vmem:[%s652 + $0x118] sm:$0xff]
      %v725 = vunpack.c.l.b16 %v653
      %v726 = vunpack.c.h.b16 %v653
      %v727 = vunpack.c.l.b16 %v654
      %v728 = vunpack.c.h.b16 %v654
      %v729 = vunpack.c.l.b16 %v655
      %v730 = vunpack.c.h.b16 %v655
      %v731 = vunpack.c.l.b16 %v656
      %v732 = vunpack.c.h.b16 %v656
      %v733 = vunpack.c.l.b16 %v657
      %v734 = vunpack.c.h.b16 %v657
      %v735 = vunpack.c.l.b16 %v658
      %v736 = vunpack.c.h.b16 %v658
      %v737 = vunpack.c.l.b16 %v659
      %v738 = vunpack.c.h.b16 %v659
      %v739 = vunpack.c.l.b16 %v660
      %v740 = vunpack.c.h.b16 %v660
      %v741 = vunpack.c.l.b16 %v661
      %v742 = vunpack.c.h.b16 %v661
      %v743 = vunpack.c.l.b16 %v662
      %v744 = vunpack.c.h.b16 %v662
      %v745 = vunpack.c.l.b16 %v663
      %v746 = vunpack.c.h.b16 %v663
      %v747 = vunpack.c.l.b16 %v664
      %v748 = vunpack.c.h.b16 %v664
      %v749 = vunpack.c.l.b16 %v665
      %v750 = vunpack.c.h.b16 %v665
      %v751 = vunpack.c.l.b16 %v666
      %v752 = vunpack.c.h.b16 %v666
      %v753 = vunpack.c.l.b16 %v667
      %v754 = vunpack.c.h.b16 %v667
      %v755 = vunpack.c.l.b16 %v668
      %v756 = vunpack.c.h.b16 %v668
      %v757 = vunpack.c.l.b16 %v669
      %v758 = vunpack.c.h.b16 %v669
      %v759 = vunpack.c.l.b16 %v670
      %v760 = vunpack.c.h.b16 %v670
      %v761 = vunpack.c.l.b16 %v671
      %v762 = vunpack.c.h.b16 %v671
      %v763 = vunpack.c.l.b16 %v672
      %v764 = vunpack.c.h.b16 %v672
      %v765 = vunpack.c.l.b16 %v673
      %v766 = vunpack.c.h.b16 %v673
      %v767 = vunpack.c.l.b16 %v674
      %v768 = vunpack.c.h.b16 %v674
      %v769 = vunpack.c.l.b16 %v675
      %v770 = vunpack.c.h.b16 %v675
      %v771 = vunpack.c.l.b16 %v676
      %v772 = vunpack.c.h.b16 %v676
      %v773 = vunpack.c.l.b16 %v677
      %v774 = vunpack.c.h.b16 %v677
      %v775 = vunpack.c.l.b16 %v678
      %v776 = vunpack.c.h.b16 %v678
      %v777 = vunpack.c.l.b16 %v679
      %v778 = vunpack.c.h.b16 %v679
      %v779 = vunpack.c.l.b16 %v680
      %v780 = vunpack.c.h.b16 %v680
      %v781 = vunpack.c.l.b16 %v681
      %v782 = vunpack.c.h.b16 %v681
      %v783 = vunpack.c.l.b16 %v682
      %v784 = vunpack.c.h.b16 %v682
      %v785 = vunpack.c.l.b16 %v683
      %v786 = vunpack.c.h.b16 %v683
      %v787 = vunpack.c.l.b16 %v684
      %v788 = vunpack.c.h.b16 %v684
      %v789 = vunpack.c.l.b16 %v685
      %v790 = vunpack.c.h.b16 %v685
      %v791 = vunpack.c.l.b16 %v686
      %v792 = vunpack.c.h.b16 %v686
      %v793 = vunpack.c.l.b16 %v687
      %v794 = vunpack.c.h.b16 %v687
      %v795 = vunpack.c.l.b16 %v688
      %v796 = vunpack.c.h.b16 %v688
      %v797 = vpack.c.b16 %v729, %v725
      %v798 = vpack.c.b16 %v730, %v726
      %v799 = vpack.c.b16 %v731, %v727
      %v800 = vpack.c.b16 %v732, %v728
      %v801 = vpack.c.b16 %v737, %v733
      %v802 = vpack.c.b16 %v738, %v734
      %v803 = vpack.c.b16 %v739, %v735
      %v804 = vpack.c.b16 %v740, %v736
      %v805 = vpack.c.b16 %v745, %v741
      %v806 = vpack.c.b16 %v746, %v742
      %v807 = vpack.c.b16 %v747, %v743
      %v808 = vpack.c.b16 %v748, %v744
      %v809 = vpack.c.b16 %v753, %v749
      %v810 = vpack.c.b16 %v754, %v750
      %v811 = vpack.c.b16 %v755, %v751
      %v812 = vpack.c.b16 %v756, %v752
      %v813 = vpack.c.b16 %v761, %v757
      %v814 = vpack.c.b16 %v762, %v758
      %v815 = vpack.c.b16 %v763, %v759
      %v816 = vpack.c.b16 %v764, %v760
      %v817 = vpack.c.b16 %v769, %v765
      %v818 = vpack.c.b16 %v770, %v766
      %v819 = vpack.c.b16 %v771, %v767
      %v820 = vpack.c.b16 %v772, %v768
      %v821 = vpack.c.b16 %v777, %v773
      %v822 = vpack.c.b16 %v778, %v774
      %v823 = vpack.c.b16 %v779, %v775
      %v824 = vpack.c.b16 %v780, %v776
      %v825 = vpack.c.b16 %v785, %v781
      %v826 = vpack.c.b16 %v786, %v782
      %v827 = vpack.c.b16 %v787, %v783
      %v828 = vpack.c.b16 %v788, %v784
      %v829 = vpack.c.b16 %v793, %v789
      %v830 = vpack.c.b16 %v794, %v790
      %v831 = vpack.c.b16 %v795, %v791
      %v832 = vpack.c.b16 %v796, %v792
      %869 = vmatpush.bf16.msra.mxu0 %v825
      %870 = vmatpush.bf16.msra.mxu0 %v821
      %871 = vmatpush.bf16.msra.mxu0 %v817
      %872 = vmatpush.bf16.msra.mxu0 %v813
      %873 = vmatpush.bf16.msra.mxu0 %v809
      %874 = vmatpush.bf16.msra.mxu0 %v805
      %875 = vmatpush.bf16.msra.mxu0 %v801
      %876 = vmatpush.bf16.msra.mxu0 %v797
      %877 = vmatmul.bf16.gmra.mxu0 %v329
      %v878 = vpop.f32.mrf.mxu0
      %v879 = vadd.f32 %v316, %v878
      %v880 = vpop.f32.mrf.mxu0
      %v881 = vadd.f32 %v321, %v880
      %882 = vdwg.mxu0
      %883 = vmatpush.bf16.msra.mxu0 0
      %884 = vmatpush.bf16.msra.mxu0 0
      %885 = vmatpush.bf16.msra.mxu0 0
      %886 = vmatpush.bf16.msra.mxu0 0
      %887 = vmatpush.bf16.msra.mxu0 0
      %888 = vmatpush.bf16.msra.mxu0 0
      %889 = vmatpush.bf16.msra.mxu0 0
      %890 = vmatpush.bf16.msra.mxu0 %v829
      %891 = vmatmul.bf16.gmra.mxu0 %v514
      %v892 = vpop.f32.mrf.mxu0
      %v893 = vadd.f32 %v879, %v892
      %v894 = vpop.f32.mrf.mxu0
      %v895 = vadd.f32 %v881, %v894
      %896 = vdwg.mxu0
      %897 = vmatpush.bf16.msra.mxu0 %v826
      %898 = vmatpush.bf16.msra.mxu0 %v822
      %899 = vmatpush.bf16.msra.mxu0 %v818
      %900 = vmatpush.bf16.msra.mxu0 %v814
      %901 = vmatpush.bf16.msra.mxu0 %v810
      %902 = vmatpush.bf16.msra.mxu0 %v806
      %903 = vmatpush.bf16.msra.mxu0 %v802
      %904 = vmatpush.bf16.msra.mxu0 %v798
      %905 = vmatmul.bf16.gmra.mxu0 %v329
      %v906 = vpop.f32.mrf.mxu0
      %v907 = vadd.f32 %v316, %v906
      %v908 = vpop.f32.mrf.mxu0
      %v909 = vadd.f32 %v321, %v908
      %910 = vdwg.mxu0
      %911 = vmatpush.bf16.msra.mxu0 0
      %912 = vmatpush.bf16.msra.mxu0 0
      %913 = vmatpush.bf16.msra.mxu0 0
      %914 = vmatpush.bf16.msra.mxu0 0
      %915 = vmatpush.bf16.msra.mxu0 0
      %916 = vmatpush.bf16.msra.mxu0 0
      %917 = vmatpush.bf16.msra.mxu0 0
      %918 = vmatpush.bf16.msra.mxu0 %v830
      %919 = vmatmul.bf16.gmra.mxu0 %v514
      %v920 = vpop.f32.mrf.mxu0
      %v921 = vadd.f32 %v907, %v920
      %v922 = vpop.f32.mrf.mxu0
      %v923 = vadd.f32 %v909, %v922
      %924 = vdwg.mxu0
      %925 = vmatpush.bf16.msra.mxu0 %v827
      %926 = vmatpush.bf16.msra.mxu0 %v823
      %927 = vmatpush.bf16.msra.mxu0 %v819
      %928 = vmatpush.bf16.msra.mxu0 %v815
      %929 = vmatpush.bf16.msra.mxu0 %v811
      %930 = vmatpush.bf16.msra.mxu0 %v807
      %931 = vmatpush.bf16.msra.mxu0 %v803
      %932 = vmatpush.bf16.msra.mxu0 %v799
      %933 = vmatmul.bf16.gmra.mxu0 %v329
      %v934 = vpop.f32.mrf.mxu0
      %v935 = vadd.f32 %v316, %v934
      %v936 = vpop.f32.mrf.mxu0
      %v937 = vadd.f32 %v321, %v936
      %938 = vdwg.mxu0
      %939 = vmatpush.bf16.msra.mxu0 0
      %940 = vmatpush.bf16.msra.mxu0 0
      %941 = vmatpush.bf16.msra.mxu0 0
      %942 = vmatpush.bf16.msra.mxu0 0
      %943 = vmatpush.bf16.msra.mxu0 0
      %944 = vmatpush.bf16.msra.mxu0 0
      %945 = vmatpush.bf16.msra.mxu0 0
      %946 = vmatpush.bf16.msra.mxu0 %v831
      %947 = vmatmul.bf16.gmra.mxu0 %v514
      %v948 = vpop.f32.mrf.mxu0
      %v949 = vadd.f32 %v935, %v948
      %v950 = vpop.f32.mrf.mxu0
      %v951 = vadd.f32 %v937, %v950
      %952 = vdwg.mxu0
      %953 = vmatpush.bf16.msra.mxu0 %v828
      %954 = vmatpush.bf16.msra.mxu0 %v824
      %955 = vmatpush.bf16.msra.mxu0 %v820
      %956 = vmatpush.bf16.msra.mxu0 %v816
      %957 = vmatpush.bf16.msra.mxu0 %v812
      %958 = vmatpush.bf16.msra.mxu0 %v808
      %959 = vmatpush.bf16.msra.mxu0 %v804
      %960 = vmatpush.bf16.msra.mxu0 %v800
      %961 = vmatmul.bf16.gmra.mxu0 %v329
      %v962 = vpop.f32.mrf.mxu0
      %v963 = vadd.f32 %v316, %v962
      %v964 = vpop.f32.mrf.mxu0
      %v965 = vadd.f32 %v321, %v964
      %966 = vdwg.mxu0
      %967 = vmatpush.bf16.msra.mxu0 0
      %968 = vmatpush.bf16.msra.mxu0 0
      %969 = vmatpush.bf16.msra.mxu0 0
      %970 = vmatpush.bf16.msra.mxu0 0
      %971 = vmatpush.bf16.msra.mxu0 0
      %972 = vmatpush.bf16.msra.mxu0 0
      %973 = vmatpush.bf16.msra.mxu0 0
      %974 = vmatpush.bf16.msra.mxu0 %v832
      %975 = vmatmul.bf16.gmra.mxu0 %v514
      %v976 = vpop.f32.mrf.mxu0
      %v977 = vadd.f32 %v963, %v976
      %v978 = vpop.f32.mrf.mxu0
      %v979 = vadd.f32 %v965, %v978
      %980 = vdwg.mxu0
      %vm981 = vcmp.ge.f32.partialorder %v893, 0.0
      %vm982 = vcmp.ge.f32.partialorder %v921, 0.0
      %vm983 = vcmp.ge.f32.partialorder %v949, 0.0
      %vm984 = vcmp.ge.f32.partialorder %v977, 0.0
      %vm985 = vcmp.ge.f32.partialorder %v895, 0.0
      %vm986 = vcmp.ge.f32.partialorder %v923, 0.0
      %vm987 = vcmp.ge.f32.partialorder %v951, 0.0
      %vm988 = vcmp.ge.f32.partialorder %v979, 0.0
      %v989 = vmul.f32 %v893, 0.01
      %v990 = vmul.f32 %v921, 0.01
      %v991 = vmul.f32 %v949, 0.01
      %v992 = vmul.f32 %v977, 0.01
      %v993 = vmul.f32 %v895, 0.01
      %v994 = vmul.f32 %v923, 0.01
      %v995 = vmul.f32 %v951, 0.01
      %v996 = vmul.f32 %v979, 0.01
      %v997 = vsel %vm981, %v893, %v989
      %v998 = vsel %vm982, %v921, %v990
      %v999 = vsel %vm983, %v949, %v991
      %v1000 = vsel %vm984, %v977, %v992
      %v1001 = vsel %vm985, %v895, %v993
      %v1002 = vsel %vm986, %v923, %v994
      %v1003 = vsel %vm987, %v951, %v995
      %v1004 = vsel %vm988, %v979, %v996
      %s1005 = scalar_lea.vmem %s0, 576
      %v1006 = vld [vmem:[%s1005] sm:$0xff]
      %v1007 = vld [vmem:[%s1005 + $0x8] sm:$0xff]
      %v1008 = vld [vmem:[%s1005 + $0x10] sm:$0xff]
      %v1009 = vld [vmem:[%s1005 + $0x18] sm:$0xff]
      %v1010 = vld [vmem:[%s1005 + $0x20] sm:$0xff]
      %v1011 = vld [vmem:[%s1005 + $0x28] sm:$0xff]
      %v1012 = vld [vmem:[%s1005 + $0x30] sm:$0xff]
      %v1013 = vld [vmem:[%s1005 + $0x38] sm:$0xff]
      %v1014 = vld [vmem:[%s1005 + $0x40] sm:$0xff]
      %v1015 = vld [vmem:[%s1005 + $0x48] sm:$0xff]
      %v1016 = vld [vmem:[%s1005 + $0x50] sm:$0xff]
      %v1017 = vld [vmem:[%s1005 + $0x58] sm:$0xff]
      %v1018 = vld [vmem:[%s1005 + $0x60] sm:$0xff]
      %v1019 = vld [vmem:[%s1005 + $0x68] sm:$0xff]
      %v1020 = vld [vmem:[%s1005 + $0x70] sm:$0xff]
      %v1021 = vld [vmem:[%s1005 + $0x78] sm:$0xff]
      %v1022 = vld [vmem:[%s1005 + $0x80] sm:$0xff]
      %v1023 = vld [vmem:[%s1005 + $0x88] sm:$0xff]
      %v1024 = vld [vmem:[%s1005 + $0x90] sm:$0xff]
      %v1025 = vld [vmem:[%s1005 + $0x98] sm:$0xff]
      %v1026 = vld [vmem:[%s1005 + $0xa0] sm:$0xff]
      %v1027 = vld [vmem:[%s1005 + $0xa8] sm:$0xff]
      %v1028 = vld [vmem:[%s1005 + $0xb0] sm:$0xff]
      %v1029 = vld [vmem:[%s1005 + $0xb8] sm:$0xff]
      %v1030 = vld [vmem:[%s1005 + $0xc0] sm:$0xff]
      %v1031 = vld [vmem:[%s1005 + $0xc8] sm:$0xff]
      %v1032 = vld [vmem:[%s1005 + $0xd0] sm:$0xff]
      %v1033 = vld [vmem:[%s1005 + $0xd8] sm:$0xff]
      %v1034 = vld [vmem:[%s1005 + $0xe0] sm:$0xff]
      %v1035 = vld [vmem:[%s1005 + $0xe8] sm:$0xff]
      %v1036 = vld [vmem:[%s1005 + $0xf0] sm:$0xff]
      %v1037 = vld [vmem:[%s1005 + $0xf8] sm:$0xff]
      %v1038 = vld [vmem:[%s1005 + $0x100] sm:$0xff]
      %v1039 = vld [vmem:[%s1005 + $0x108] sm:$0xff]
      %v1040 = vld [vmem:[%s1005 + $0x110] sm:$0xff]
      %v1041 = vld [vmem:[%s1005 + $0x118] sm:$0xff]
      %v1078 = vunpack.c.l.b16 %v1006
      %v1079 = vunpack.c.h.b16 %v1006
      %v1080 = vunpack.c.l.b16 %v1007
      %v1081 = vunpack.c.h.b16 %v1007
      %v1082 = vunpack.c.l.b16 %v1008
      %v1083 = vunpack.c.h.b16 %v1008
      %v1084 = vunpack.c.l.b16 %v1009
      %v1085 = vunpack.c.h.b16 %v1009
      %v1086 = vunpack.c.l.b16 %v1010
      %v1087 = vunpack.c.h.b16 %v1010
      %v1088 = vunpack.c.l.b16 %v1011
      %v1089 = vunpack.c.h.b16 %v1011
      %v1090 = vunpack.c.l.b16 %v1012
      %v1091 = vunpack.c.h.b16 %v1012
      %v1092 = vunpack.c.l.b16 %v1013
      %v1093 = vunpack.c.h.b16 %v1013
      %v1094 = vunpack.c.l.b16 %v1014
      %v1095 = vunpack.c.h.b16 %v1014
      %v1096 = vunpack.c.l.b16 %v1015
      %v1097 = vunpack.c.h.b16 %v1015
      %v1098 = vunpack.c.l.b16 %v1016
      %v1099 = vunpack.c.h.b16 %v1016
      %v1100 = vunpack.c.l.b16 %v1017
      %v1101 = vunpack.c.h.b16 %v1017
      %v1102 = vunpack.c.l.b16 %v1018
      %v1103 = vunpack.c.h.b16 %v1018
      %v1104 = vunpack.c.l.b16 %v1019
      %v1105 = vunpack.c.h.b16 %v1019
      %v1106 = vunpack.c.l.b16 %v1020
      %v1107 = vunpack.c.h.b16 %v1020
      %v1108 = vunpack.c.l.b16 %v1021
      %v1109 = vunpack.c.h.b16 %v1021
      %v1110 = vunpack.c.l.b16 %v1022
      %v1111 = vunpack.c.h.b16 %v1022
      %v1112 = vunpack.c.l.b16 %v1023
      %v1113 = vunpack.c.h.b16 %v1023
      %v1114 = vunpack.c.l.b16 %v1024
      %v1115 = vunpack.c.h.b16 %v1024
      %v1116 = vunpack.c.l.b16 %v1025
      %v1117 = vunpack.c.h.b16 %v1025
      %v1118 = vunpack.c.l.b16 %v1026
      %v1119 = vunpack.c.h.b16 %v1026
      %v1120 = vunpack.c.l.b16 %v1027
      %v1121 = vunpack.c.h.b16 %v1027
      %v1122 = vunpack.c.l.b16 %v1028
      %v1123 = vunpack.c.h.b16 %v1028
      %v1124 = vunpack.c.l.b16 %v1029
      %v1125 = vunpack.c.h.b16 %v1029
      %v1126 = vunpack.c.l.b16 %v1030
      %v1127 = vunpack.c.h.b16 %v1030
      %v1128 = vunpack.c.l.b16 %v1031
      %v1129 = vunpack.c.h.b16 %v1031
      %v1130 = vunpack.c.l.b16 %v1032
      %v1131 = vunpack.c.h.b16 %v1032
      %v1132 = vunpack.c.l.b16 %v1033
      %v1133 = vunpack.c.h.b16 %v1033
      %v1134 = vunpack.c.l.b16 %v1034
      %v1135 = vunpack.c.h.b16 %v1034
      %v1136 = vunpack.c.l.b16 %v1035
      %v1137 = vunpack.c.h.b16 %v1035
      %v1138 = vunpack.c.l.b16 %v1036
      %v1139 = vunpack.c.h.b16 %v1036
      %v1140 = vunpack.c.l.b16 %v1037
      %v1141 = vunpack.c.h.b16 %v1037
      %v1142 = vunpack.c.l.b16 %v1038
      %v1143 = vunpack.c.h.b16 %v1038
      %v1144 = vunpack.c.l.b16 %v1039
      %v1145 = vunpack.c.h.b16 %v1039
      %v1146 = vunpack.c.l.b16 %v1040
      %v1147 = vunpack.c.h.b16 %v1040
      %v1148 = vunpack.c.l.b16 %v1041
      %v1149 = vunpack.c.h.b16 %v1041
      %v1150 = vpack.c.b16 %v1082, %v1078
      %v1151 = vpack.c.b16 %v1083, %v1079
      %v1152 = vpack.c.b16 %v1084, %v1080
      %v1153 = vpack.c.b16 %v1085, %v1081
      %v1154 = vpack.c.b16 %v1090, %v1086
      %v1155 = vpack.c.b16 %v1091, %v1087
      %v1156 = vpack.c.b16 %v1092, %v1088
      %v1157 = vpack.c.b16 %v1093, %v1089
      %v1158 = vpack.c.b16 %v1098, %v1094
      %v1159 = vpack.c.b16 %v1099, %v1095
      %v1160 = vpack.c.b16 %v1100, %v1096
      %v1161 = vpack.c.b16 %v1101, %v1097
      %v1162 = vpack.c.b16 %v1106, %v1102
      %v1163 = vpack.c.b16 %v1107, %v1103
      %v1164 = vpack.c.b16 %v1108, %v1104
      %v1165 = vpack.c.b16 %v1109, %v1105
      %v1166 = vpack.c.b16 %v1114, %v1110
      %v1167 = vpack.c.b16 %v1115, %v1111
      %v1168 = vpack.c.b16 %v1116, %v1112
      %v1169 = vpack.c.b16 %v1117, %v1113
      %v1170 = vpack.c.b16 %v1122, %v1118
      %v1171 = vpack.c.b16 %v1123, %v1119
      %v1172 = vpack.c.b16 %v1124, %v1120
      %v1173 = vpack.c.b16 %v1125, %v1121
      %v1174 = vpack.c.b16 %v1130, %v1126
      %v1175 = vpack.c.b16 %v1131, %v1127
      %v1176 = vpack.c.b16 %v1132, %v1128
      %v1177 = vpack.c.b16 %v1133, %v1129
      %v1178 = vpack.c.b16 %v1138, %v1134
      %v1179 = vpack.c.b16 %v1139, %v1135
      %v1180 = vpack.c.b16 %v1140, %v1136
      %v1181 = vpack.c.b16 %v1141, %v1137
      %v1182 = vpack.c.b16 %v1146, %v1142
      %v1183 = vpack.c.b16 %v1147, %v1143
      %v1184 = vpack.c.b16 %v1148, %v1144
      %v1185 = vpack.c.b16 %v1149, %v1145
      %1222 = vmatpush.bf16.msra.mxu0 %v1178
      %1223 = vmatpush.bf16.msra.mxu0 %v1174
      %1224 = vmatpush.bf16.msra.mxu0 %v1170
      %1225 = vmatpush.bf16.msra.mxu0 %v1166
      %1226 = vmatpush.bf16.msra.mxu0 %v1162
      %1227 = vmatpush.bf16.msra.mxu0 %v1158
      %1228 = vmatpush.bf16.msra.mxu0 %v1154
      %1229 = vmatpush.bf16.msra.mxu0 %v1150
      %1230 = vmatmul.bf16.gmra.mxu0 %v329
      %v1231 = vpop.f32.mrf.mxu0
      %v1232 = vadd.f32 %v316, %v1231
      %v1233 = vpop.f32.mrf.mxu0
      %v1234 = vadd.f32 %v321, %v1233
      %1235 = vdwg.mxu0
      %1236 = vmatpush.bf16.msra.mxu0 0
      %1237 = vmatpush.bf16.msra.mxu0 0
      %1238 = vmatpush.bf16.msra.mxu0 0
      %1239 = vmatpush.bf16.msra.mxu0 0
      %1240 = vmatpush.bf16.msra.mxu0 0
      %1241 = vmatpush.bf16.msra.mxu0 0
      %1242 = vmatpush.bf16.msra.mxu0 0
      %1243 = vmatpush.bf16.msra.mxu0 %v1182
      %1244 = vmatmul.bf16.gmra.mxu0 %v514
      %v1245 = vpop.f32.mrf.mxu0
      %v1246 = vadd.f32 %v1232, %v1245
      %v1247 = vpop.f32.mrf.mxu0
      %v1248 = vadd.f32 %v1234, %v1247
      %1249 = vdwg.mxu0
      %1250 = vmatpush.bf16.msra.mxu0 %v1179
      %1251 = vmatpush.bf16.msra.mxu0 %v1175
      %1252 = vmatpush.bf16.msra.mxu0 %v1171
      %1253 = vmatpush.bf16.msra.mxu0 %v1167
      %1254 = vmatpush.bf16.msra.mxu0 %v1163
      %1255 = vmatpush.bf16.msra.mxu0 %v1159
      %1256 = vmatpush.bf16.msra.mxu0 %v1155
      %1257 = vmatpush.bf16.msra.mxu0 %v1151
      %1258 = vmatmul.bf16.gmra.mxu0 %v329
      %v1259 = vpop.f32.mrf.mxu0
      %v1260 = vadd.f32 %v316, %v1259
      %v1261 = vpop.f32.mrf.mxu0
      %v1262 = vadd.f32 %v321, %v1261
      %1263 = vdwg.mxu0
      %1264 = vmatpush.bf16.msra.mxu0 0
      %1265 = vmatpush.bf16.msra.mxu0 0
      %1266 = vmatpush.bf16.msra.mxu0 0
      %1267 = vmatpush.bf16.msra.mxu0 0
      %1268 = vmatpush.bf16.msra.mxu0 0
      %1269 = vmatpush.bf16.msra.mxu0 0
      %1270 = vmatpush.bf16.msra.mxu0 0
      %1271 = vmatpush.bf16.msra.mxu0 %v1183
      %1272 = vmatmul.bf16.gmra.mxu0 %v514
      %v1273 = vpop.f32.mrf.mxu0
      %v1274 = vadd.f32 %v1260, %v1273
      %v1275 = vpop.f32.mrf.mxu0
      %v1276 = vadd.f32 %v1262, %v1275
      %1277 = vdwg.mxu0
      %1278 = vmatpush.bf16.msra.mxu0 %v1180
      %1279 = vmatpush.bf16.msra.mxu0 %v1176
      %1280 = vmatpush.bf16.msra.mxu0 %v1172
      %1281 = vmatpush.bf16.msra.mxu0 %v1168
      %1282 = vmatpush.bf16.msra.mxu0 %v1164
      %1283 = vmatpush.bf16.msra.mxu0 %v1160
      %1284 = vmatpush.bf16.msra.mxu0 %v1156
      %1285 = vmatpush.bf16.msra.mxu0 %v1152
      %1286 = vmatmul.bf16.gmra.mxu0 %v329
      %v1287 = vpop.f32.mrf.mxu0
      %v1288 = vadd.f32 %v316, %v1287
      %v1289 = vpop.f32.mrf.mxu0
      %v1290 = vadd.f32 %v321, %v1289
      %1291 = vdwg.mxu0
      %1292 = vmatpush.bf16.msra.mxu0 0
      %1293 = vmatpush.bf16.msra.mxu0 0
      %1294 = vmatpush.bf16.msra.mxu0 0
      %1295 = vmatpush.bf16.msra.mxu0 0
      %1296 = vmatpush.bf16.msra.mxu0 0
      %1297 = vmatpush.bf16.msra.mxu0 0
      %1298 = vmatpush.bf16.msra.mxu0 0
      %1299 = vmatpush.bf16.msra.mxu0 %v1184
      %1300 = vmatmul.bf16.gmra.mxu0 %v514
      %v1301 = vpop.f32.mrf.mxu0
      %v1302 = vadd.f32 %v1288, %v1301
      %v1303 = vpop.f32.mrf.mxu0
      %v1304 = vadd.f32 %v1290, %v1303
      %1305 = vdwg.mxu0
      %1306 = vmatpush.bf16.msra.mxu0 %v1181
      %1307 = vmatpush.bf16.msra.mxu0 %v1177
      %1308 = vmatpush.bf16.msra.mxu0 %v1173
      %1309 = vmatpush.bf16.msra.mxu0 %v1169
      %1310 = vmatpush.bf16.msra.mxu0 %v1165
      %1311 = vmatpush.bf16.msra.mxu0 %v1161
      %1312 = vmatpush.bf16.msra.mxu0 %v1157
      %1313 = vmatpush.bf16.msra.mxu0 %v1153
      %1314 = vmatmul.bf16.gmra.mxu0 %v329
      %v1315 = vpop.f32.mrf.mxu0
      %v1316 = vadd.f32 %v316, %v1315
      %v1317 = vpop.f32.mrf.mxu0
      %v1318 = vadd.f32 %v321, %v1317
      %1319 = vdwg.mxu0
      %1320 = vmatpush.bf16.msra.mxu0 0
      %1321 = vmatpush.bf16.msra.mxu0 0
      %1322 = vmatpush.bf16.msra.mxu0 0
      %1323 = vmatpush.bf16.msra.mxu0 0
      %1324 = vmatpush.bf16.msra.mxu0 0
      %1325 = vmatpush.bf16.msra.mxu0 0
      %1326 = vmatpush.bf16.msra.mxu0 0
      %1327 = vmatpush.bf16.msra.mxu0 %v1185
      %1328 = vmatmul.bf16.gmra.mxu0 %v514
      %v1329 = vpop.f32.mrf.mxu0
      %v1330 = vadd.f32 %v1316, %v1329
      %v1331 = vpop.f32.mrf.mxu0
      %v1332 = vadd.f32 %v1318, %v1331
      %1333 = vdwg.mxu0
      %vm1334 = vcmp.ge.f32.partialorder %v1246, 0.0
      %vm1335 = vcmp.ge.f32.partialorder %v1274, 0.0
      %vm1336 = vcmp.ge.f32.partialorder %v1302, 0.0
      %vm1337 = vcmp.ge.f32.partialorder %v1330, 0.0
      %vm1338 = vcmp.ge.f32.partialorder %v1248, 0.0
      %vm1339 = vcmp.ge.f32.partialorder %v1276, 0.0
      %vm1340 = vcmp.ge.f32.partialorder %v1304, 0.0
      %vm1341 = vcmp.ge.f32.partialorder %v1332, 0.0
      %v1342 = vmul.f32 %v1246, 0.01
      %v1343 = vmul.f32 %v1274, 0.01
      %v1344 = vmul.f32 %v1302, 0.01
      %v1345 = vmul.f32 %v1330, 0.01
      %v1346 = vmul.f32 %v1248, 0.01
      %v1347 = vmul.f32 %v1276, 0.01
      %v1348 = vmul.f32 %v1304, 0.01
      %v1349 = vmul.f32 %v1332, 0.01
      %v1350 = vsel %vm1334, %v1246, %v1342
      %v1351 = vsel %vm1335, %v1274, %v1343
      %v1352 = vsel %vm1336, %v1302, %v1344
      %v1353 = vsel %vm1337, %v1330, %v1345
      %v1354 = vsel %vm1338, %v1248, %v1346
      %v1355 = vsel %vm1339, %v1276, %v1347
      %v1356 = vsel %vm1340, %v1304, %v1348
      %v1357 = vsel %vm1341, %v1332, %v1349
      %s1358 = scalar_lea.vmem %s0, 864
      %v1359 = vld [vmem:[%s1358] sm:$0xff]
      %v1360 = vld [vmem:[%s1358 + $0x8] sm:$0xff]
      %v1361 = vld [vmem:[%s1358 + $0x10] sm:$0xff]
      %v1362 = vld [vmem:[%s1358 + $0x18] sm:$0xff]
      %v1363 = vld [vmem:[%s1358 + $0x20] sm:$0xff]
      %v1364 = vld [vmem:[%s1358 + $0x28] sm:$0xff]
      %v1365 = vld [vmem:[%s1358 + $0x30] sm:$0xff]
      %v1366 = vld [vmem:[%s1358 + $0x38] sm:$0xff]
      %v1367 = vld [vmem:[%s1358 + $0x40] sm:$0xff]
      %v1368 = vld [vmem:[%s1358 + $0x48] sm:$0xff]
      %v1369 = vld [vmem:[%s1358 + $0x50] sm:$0xff]
      %v1370 = vld [vmem:[%s1358 + $0x58] sm:$0xff]
      %v1371 = vld [vmem:[%s1358 + $0x60] sm:$0xff]
      %v1372 = vld [vmem:[%s1358 + $0x68] sm:$0xff]
      %v1373 = vld [vmem:[%s1358 + $0x70] sm:$0xff]
      %v1374 = vld [vmem:[%s1358 + $0x78] sm:$0xff]
      %v1375 = vld [vmem:[%s1358 + $0x80] sm:$0xff]
      %v1376 = vld [vmem:[%s1358 + $0x88] sm:$0xff]
      %v1377 = vld [vmem:[%s1358 + $0x90] sm:$0xff]
      %v1378 = vld [vmem:[%s1358 + $0x98] sm:$0xff]
      %v1379 = vld [vmem:[%s1358 + $0xa0] sm:$0xff]
      %v1380 = vld [vmem:[%s1358 + $0xa8] sm:$0xff]
      %v1381 = vld [vmem:[%s1358 + $0xb0] sm:$0xff]
      %v1382 = vld [vmem:[%s1358 + $0xb8] sm:$0xff]
      %v1383 = vld [vmem:[%s1358 + $0xc0] sm:$0xff]
      %v1384 = vld [vmem:[%s1358 + $0xc8] sm:$0xff]
      %v1385 = vld [vmem:[%s1358 + $0xd0] sm:$0xff]
      %v1386 = vld [vmem:[%s1358 + $0xd8] sm:$0xff]
      %v1387 = vld [vmem:[%s1358 + $0xe0] sm:$0xff]
      %v1388 = vld [vmem:[%s1358 + $0xe8] sm:$0xff]
      %v1389 = vld [vmem:[%s1358 + $0xf0] sm:$0xff]
      %v1390 = vld [vmem:[%s1358 + $0xf8] sm:$0xff]
      %v1391 = vld [vmem:[%s1358 + $0x100] sm:$0xff]
      %v1392 = vld [vmem:[%s1358 + $0x108] sm:$0xff]
      %v1393 = vld [vmem:[%s1358 + $0x110] sm:$0xff]
      %v1394 = vld [vmem:[%s1358 + $0x118] sm:$0xff]
      %v1431 = vunpack.c.l.b16 %v1359
      %v1432 = vunpack.c.h.b16 %v1359
      %v1433 = vunpack.c.l.b16 %v1360
      %v1434 = vunpack.c.h.b16 %v1360
      %v1435 = vunpack.c.l.b16 %v1361
      %v1436 = vunpack.c.h.b16 %v1361
      %v1437 = vunpack.c.l.b16 %v1362
      %v1438 = vunpack.c.h.b16 %v1362
      %v1439 = vunpack.c.l.b16 %v1363
      %v1440 = vunpack.c.h.b16 %v1363
      %v1441 = vunpack.c.l.b16 %v1364
      %v1442 = vunpack.c.h.b16 %v1364
      %v1443 = vunpack.c.l.b16 %v1365
      %v1444 = vunpack.c.h.b16 %v1365
      %v1445 = vunpack.c.l.b16 %v1366
      %v1446 = vunpack.c.h.b16 %v1366
      %v1447 = vunpack.c.l.b16 %v1367
      %v1448 = vunpack.c.h.b16 %v1367
      %v1449 = vunpack.c.l.b16 %v1368
      %v1450 = vunpack.c.h.b16 %v1368
      %v1451 = vunpack.c.l.b16 %v1369
      %v1452 = vunpack.c.h.b16 %v1369
      %v1453 = vunpack.c.l.b16 %v1370
      %v1454 = vunpack.c.h.b16 %v1370
      %v1455 = vunpack.c.l.b16 %v1371
      %v1456 = vunpack.c.h.b16 %v1371
      %v1457 = vunpack.c.l.b16 %v1372
      %v1458 = vunpack.c.h.b16 %v1372
      %v1459 = vunpack.c.l.b16 %v1373
      %v1460 = vunpack.c.h.b16 %v1373
      %v1461 = vunpack.c.l.b16 %v1374
      %v1462 = vunpack.c.h.b16 %v1374
      %v1463 = vunpack.c.l.b16 %v1375
      %v1464 = vunpack.c.h.b16 %v1375
      %v1465 = vunpack.c.l.b16 %v1376
      %v1466 = vunpack.c.h.b16 %v1376
      %v1467 = vunpack.c.l.b16 %v1377
      %v1468 = vunpack.c.h.b16 %v1377
      %v1469 = vunpack.c.l.b16 %v1378
      %v1470 = vunpack.c.h.b16 %v1378
      %v1471 = vunpack.c.l.b16 %v1379
      %v1472 = vunpack.c.h.b16 %v1379
      %v1473 = vunpack.c.l.b16 %v1380
      %v1474 = vunpack.c.h.b16 %v1380
      %v1475 = vunpack.c.l.b16 %v1381
      %v1476 = vunpack.c.h.b16 %v1381
      %v1477 = vunpack.c.l.b16 %v1382
      %v1478 = vunpack.c.h.b16 %v1382
      %v1479 = vunpack.c.l.b16 %v1383
      %v1480 = vunpack.c.h.b16 %v1383
      %v1481 = vunpack.c.l.b16 %v1384
      %v1482 = vunpack.c.h.b16 %v1384
      %v1483 = vunpack.c.l.b16 %v1385
      %v1484 = vunpack.c.h.b16 %v1385
      %v1485 = vunpack.c.l.b16 %v1386
      %v1486 = vunpack.c.h.b16 %v1386
      %v1487 = vunpack.c.l.b16 %v1387
      %v1488 = vunpack.c.h.b16 %v1387
      %v1489 = vunpack.c.l.b16 %v1388
      %v1490 = vunpack.c.h.b16 %v1388
      %v1491 = vunpack.c.l.b16 %v1389
      %v1492 = vunpack.c.h.b16 %v1389
      %v1493 = vunpack.c.l.b16 %v1390
      %v1494 = vunpack.c.h.b16 %v1390
      %v1495 = vunpack.c.l.b16 %v1391
      %v1496 = vunpack.c.h.b16 %v1391
      %v1497 = vunpack.c.l.b16 %v1392
      %v1498 = vunpack.c.h.b16 %v1392
      %v1499 = vunpack.c.l.b16 %v1393
      %v1500 = vunpack.c.h.b16 %v1393
      %v1501 = vunpack.c.l.b16 %v1394
      %v1502 = vunpack.c.h.b16 %v1394
      %v1503 = vpack.c.b16 %v1435, %v1431
      %v1504 = vpack.c.b16 %v1436, %v1432
      %v1505 = vpack.c.b16 %v1437, %v1433
      %v1506 = vpack.c.b16 %v1438, %v1434
      %v1507 = vpack.c.b16 %v1443, %v1439
      %v1508 = vpack.c.b16 %v1444, %v1440
      %v1509 = vpack.c.b16 %v1445, %v1441
      %v1510 = vpack.c.b16 %v1446, %v1442
      %v1511 = vpack.c.b16 %v1451, %v1447
      %v1512 = vpack.c.b16 %v1452, %v1448
      %v1513 = vpack.c.b16 %v1453, %v1449
      %v1514 = vpack.c.b16 %v1454, %v1450
      %v1515 = vpack.c.b16 %v1459, %v1455
      %v1516 = vpack.c.b16 %v1460, %v1456
      %v1517 = vpack.c.b16 %v1461, %v1457
      %v1518 = vpack.c.b16 %v1462, %v1458
      %v1519 = vpack.c.b16 %v1467, %v1463
      %v1520 = vpack.c.b16 %v1468, %v1464
      %v1521 = vpack.c.b16 %v1469, %v1465
      %v1522 = vpack.c.b16 %v1470, %v1466
      %v1523 = vpack.c.b16 %v1475, %v1471
      %v1524 = vpack.c.b16 %v1476, %v1472
      %v1525 = vpack.c.b16 %v1477, %v1473
      %v1526 = vpack.c.b16 %v1478, %v1474
      %v1527 = vpack.c.b16 %v1483, %v1479
      %v1528 = vpack.c.b16 %v1484, %v1480
      %v1529 = vpack.c.b16 %v1485, %v1481
      %v1530 = vpack.c.b16 %v1486, %v1482
      %v1531 = vpack.c.b16 %v1491, %v1487
      %v1532 = vpack.c.b16 %v1492, %v1488
      %v1533 = vpack.c.b16 %v1493, %v1489
      %v1534 = vpack.c.b16 %v1494, %v1490
      %v1535 = vpack.c.b16 %v1499, %v1495
      %v1536 = vpack.c.b16 %v1500, %v1496
      %v1537 = vpack.c.b16 %v1501, %v1497
      %v1538 = vpack.c.b16 %v1502, %v1498
      %1575 = vmatpush.bf16.msra.mxu0 %v1531
      %1576 = vmatpush.bf16.msra.mxu0 %v1527
      %1577 = vmatpush.bf16.msra.mxu0 %v1523
      %1578 = vmatpush.bf16.msra.mxu0 %v1519
      %1579 = vmatpush.bf16.msra.mxu0 %v1515
      %1580 = vmatpush.bf16.msra.mxu0 %v1511
      %1581 = vmatpush.bf16.msra.mxu0 %v1507
      %1582 = vmatpush.bf16.msra.mxu0 %v1503
      %1583 = vmatmul.bf16.gmra.mxu0 %v329
      %v1584 = vpop.f32.mrf.mxu0
      %v1585 = vadd.f32 %v316, %v1584
      %v1586 = vpop.f32.mrf.mxu0
      %v1587 = vadd.f32 %v321, %v1586
      %1588 = vdwg.mxu0
      %1589 = vmatpush.bf16.msra.mxu0 0
      %1590 = vmatpush.bf16.msra.mxu0 0
      %1591 = vmatpush.bf16.msra.mxu0 0
      %1592 = vmatpush.bf16.msra.mxu0 0
      %1593 = vmatpush.bf16.msra.mxu0 0
      %1594 = vmatpush.bf16.msra.mxu0 0
      %1595 = vmatpush.bf16.msra.mxu0 0
      %1596 = vmatpush.bf16.msra.mxu0 %v1535
      %1597 = vmatmul.bf16.gmra.mxu0 %v514
      %v1598 = vpop.f32.mrf.mxu0
      %v1599 = vadd.f32 %v1585, %v1598
      %v1600 = vpop.f32.mrf.mxu0
      %v1601 = vadd.f32 %v1587, %v1600
      %1602 = vdwg.mxu0
      %1603 = vmatpush.bf16.msra.mxu0 %v1532
      %1604 = vmatpush.bf16.msra.mxu0 %v1528
      %1605 = vmatpush.bf16.msra.mxu0 %v1524
      %1606 = vmatpush.bf16.msra.mxu0 %v1520
      %1607 = vmatpush.bf16.msra.mxu0 %v1516
      %1608 = vmatpush.bf16.msra.mxu0 %v1512
      %1609 = vmatpush.bf16.msra.mxu0 %v1508
      %1610 = vmatpush.bf16.msra.mxu0 %v1504
      %1611 = vmatmul.bf16.gmra.mxu0 %v329
      %v1612 = vpop.f32.mrf.mxu0
      %v1613 = vadd.f32 %v316, %v1612
      %v1614 = vpop.f32.mrf.mxu0
      %v1615 = vadd.f32 %v321, %v1614
      %1616 = vdwg.mxu0
      %1617 = vmatpush.bf16.msra.mxu0 0
      %1618 = vmatpush.bf16.msra.mxu0 0
      %1619 = vmatpush.bf16.msra.mxu0 0
      %1620 = vmatpush.bf16.msra.mxu0 0
      %1621 = vmatpush.bf16.msra.mxu0 0
      %1622 = vmatpush.bf16.msra.mxu0 0
      %1623 = vmatpush.bf16.msra.mxu0 0
      %1624 = vmatpush.bf16.msra.mxu0 %v1536
      %1625 = vmatmul.bf16.gmra.mxu0 %v514
      %v1626 = vpop.f32.mrf.mxu0
      %v1627 = vadd.f32 %v1613, %v1626
      %v1628 = vpop.f32.mrf.mxu0
      %v1629 = vadd.f32 %v1615, %v1628
      %1630 = vdwg.mxu0
      %1631 = vmatpush.bf16.msra.mxu0 %v1533
      %1632 = vmatpush.bf16.msra.mxu0 %v1529
      %1633 = vmatpush.bf16.msra.mxu0 %v1525
      %1634 = vmatpush.bf16.msra.mxu0 %v1521
      %1635 = vmatpush.bf16.msra.mxu0 %v1517
      %1636 = vmatpush.bf16.msra.mxu0 %v1513
      %1637 = vmatpush.bf16.msra.mxu0 %v1509
      %1638 = vmatpush.bf16.msra.mxu0 %v1505
      %1639 = vmatmul.bf16.gmra.mxu0 %v329
      %v1640 = vpop.f32.mrf.mxu0
      %v1641 = vadd.f32 %v316, %v1640
      %v1642 = vpop.f32.mrf.mxu0
      %v1643 = vadd.f32 %v321, %v1642
      %1644 = vdwg.mxu0
      %1645 = vmatpush.bf16.msra.mxu0 0
      %1646 = vmatpush.bf16.msra.mxu0 0
      %1647 = vmatpush.bf16.msra.mxu0 0
      %1648 = vmatpush.bf16.msra.mxu0 0
      %1649 = vmatpush.bf16.msra.mxu0 0
      %1650 = vmatpush.bf16.msra.mxu0 0
      %1651 = vmatpush.bf16.msra.mxu0 0
      %1652 = vmatpush.bf16.msra.mxu0 %v1537
      %1653 = vmatmul.bf16.gmra.mxu0 %v514
      %v1654 = vpop.f32.mrf.mxu0
      %v1655 = vadd.f32 %v1641, %v1654
      %v1656 = vpop.f32.mrf.mxu0
      %v1657 = vadd.f32 %v1643, %v1656
      %1658 = vdwg.mxu0
      %1659 = vmatpush.bf16.msra.mxu0 %v1534
      %1660 = vmatpush.bf16.msra.mxu0 %v1530
      %1661 = vmatpush.bf16.msra.mxu0 %v1526
      %1662 = vmatpush.bf16.msra.mxu0 %v1522
      %1663 = vmatpush.bf16.msra.mxu0 %v1518
      %1664 = vmatpush.bf16.msra.mxu0 %v1514
      %1665 = vmatpush.bf16.msra.mxu0 %v1510
      %1666 = vmatpush.bf16.msra.mxu0 %v1506
      %1667 = vmatmul.bf16.gmra.mxu0 %v329
      %v1668 = vpop.f32.mrf.mxu0
      %v1669 = vadd.f32 %v316, %v1668
      %v1670 = vpop.f32.mrf.mxu0
      %v1671 = vadd.f32 %v321, %v1670
      %1672 = vdwg.mxu0
      %1673 = vmatpush.bf16.msra.mxu0 0
      %1674 = vmatpush.bf16.msra.mxu0 0
      %1675 = vmatpush.bf16.msra.mxu0 0
      %1676 = vmatpush.bf16.msra.mxu0 0
      %1677 = vmatpush.bf16.msra.mxu0 0
      %1678 = vmatpush.bf16.msra.mxu0 0
      %1679 = vmatpush.bf16.msra.mxu0 0
      %1680 = vmatpush.bf16.msra.mxu0 %v1538
      %1681 = vmatmul.bf16.gmra.mxu0 %v514
      %v1682 = vpop.f32.mrf.mxu0
      %v1683 = vadd.f32 %v1669, %v1682
      %v1684 = vpop.f32.mrf.mxu0
      %v1685 = vadd.f32 %v1671, %v1684
      %1686 = vdwg.mxu0
      %vm1687 = vcmp.ge.f32.partialorder %v1599, 0.0
      %vm1688 = vcmp.ge.f32.partialorder %v1627, 0.0
      %vm1689 = vcmp.ge.f32.partialorder %v1655, 0.0
      %vm1690 = vcmp.ge.f32.partialorder %v1683, 0.0
      %vm1691 = vcmp.ge.f32.partialorder %v1601, 0.0
      %vm1692 = vcmp.ge.f32.partialorder %v1629, 0.0
      %vm1693 = vcmp.ge.f32.partialorder %v1657, 0.0
      %vm1694 = vcmp.ge.f32.partialorder %v1685, 0.0
      %v1695 = vmul.f32 %v1599, 0.01
      %v1696 = vmul.f32 %v1627, 0.01
      %v1697 = vmul.f32 %v1655, 0.01
      %v1698 = vmul.f32 %v1683, 0.01
      %v1699 = vmul.f32 %v1601, 0.01
      %v1700 = vmul.f32 %v1629, 0.01
      %v1701 = vmul.f32 %v1657, 0.01
      %v1702 = vmul.f32 %v1685, 0.01
      %v1703 = vsel %vm1687, %v1599, %v1695
      %v1704 = vsel %vm1688, %v1627, %v1696
      %v1705 = vsel %vm1689, %v1655, %v1697
      %v1706 = vsel %vm1690, %v1683, %v1698
      %v1707 = vsel %vm1691, %v1601, %v1699
      %v1708 = vsel %vm1692, %v1629, %v1700
      %v1709 = vsel %vm1693, %v1657, %v1701
      %v1710 = vsel %vm1694, %v1685, %v1702
      %v1711 = vadd.s32 %v276, 1
      %v1712 = vadd.s32 %v276, 28
      %v1713 = vadd.s32 %v1712, 1
      %v1714 = vmax.f32 %v644, %v997
      %v1715 = vmax.f32 %v645, %v998
      %v1716 = vmax.f32 %v646, %v999
      %v1717 = vmax.f32 %v647, %v1000
      %v1718 = vmax.f32 %v648, %v1001
      %v1719 = vmax.f32 %v649, %v1002
      %v1720 = vmax.f32 %v650, %v1003
      %v1721 = vmax.f32 %v651, %v1004
      %vm1722 = vcmp.gt.f32.partialorder %v997, %v644
      %vm1723 = vcmp.gt.f32.partialorder %v998, %v645
      %vm1724 = vcmp.gt.f32.partialorder %v999, %v646
      %vm1725 = vcmp.gt.f32.partialorder %v1000, %v647
      %vm1726 = vcmp.gt.f32.partialorder %v1001, %v648
      %vm1727 = vcmp.gt.f32.partialorder %v1002, %v649
      %vm1728 = vcmp.gt.f32.partialorder %v1003, %v650
      %vm1729 = vcmp.gt.f32.partialorder %v1004, %v651
      %v1730 = vperm.slane %v1711, 0
      %v1731 = vperm.slane %v1711, 1
      %v1732 = vperm.slane %v1711, 2
      %v1733 = vperm.slane %v1711, 3
      %v1734 = vperm.slane %v276, 0
      %v1735 = vperm.slane %v276, 1
      %v1736 = vperm.slane %v276, 2
      %v1737 = vperm.slane %v276, 3
      %v1738 = vsel %vm1722, %v1730, %v1734
      %v1739 = vsel %vm1723, %v1731, %v1735
      %v1740 = vsel %vm1724, %v1732, %v1736
      %v1741 = vsel %vm1725, %v1733, %v1737
      %v1742 = vsel %vm1726, %v1730, %v1734
      %v1743 = vsel %vm1727, %v1731, %v1735
      %v1744 = vsel %vm1728, %v1732, %v1736
      %v1745 = vsel %vm1729, %v1733, %v1737
      %v1746 = vmax.f32 %v1350, %v1703
      %v1747 = vmax.f32 %v1351, %v1704
      %v1748 = vmax.f32 %v1352, %v1705
      %v1749 = vmax.f32 %v1353, %v1706
      %v1750 = vmax.f32 %v1354, %v1707
      %v1751 = vmax.f32 %v1355, %v1708
      %v1752 = vmax.f32 %v1356, %v1709
      %v1753 = vmax.f32 %v1357, %v1710
      %vm1754 = vcmp.gt.f32.partialorder %v1703, %v1350
      %vm1755 = vcmp.gt.f32.partialorder %v1704, %v1351
      %vm1756 = vcmp.gt.f32.partialorder %v1705, %v1352
      %vm1757 = vcmp.gt.f32.partialorder %v1706, %v1353
      %vm1758 = vcmp.gt.f32.partialorder %v1707, %v1354
      %vm1759 = vcmp.gt.f32.partialorder %v1708, %v1355
      %vm1760 = vcmp.gt.f32.partialorder %v1709, %v1356
      %vm1761 = vcmp.gt.f32.partialorder %v1710, %v1357
      %v1762 = vperm.slane %v1713, 0
      %v1763 = vperm.slane %v1713, 1
      %v1764 = vperm.slane %v1713, 2
      %v1765 = vperm.slane %v1713, 3
      %v1766 = vperm.slane %v1712, 0
      %v1767 = vperm.slane %v1712, 1
      %v1768 = vperm.slane %v1712, 2
      %v1769 = vperm.slane %v1712, 3
      %v1770 = vsel %vm1754, %v1762, %v1766
      %v1771 = vsel %vm1755, %v1763, %v1767
      %v1772 = vsel %vm1756, %v1764, %v1768
      %v1773 = vsel %vm1757, %v1765, %v1769
      %v1774 = vsel %vm1758, %v1762, %v1766
      %v1775 = vsel %vm1759, %v1763, %v1767
      %v1776 = vsel %vm1760, %v1764, %v1768
      %v1777 = vsel %vm1761, %v1765, %v1769
      %v1778 = vmax.f32 %v1714, %v1746
      %v1779 = vmax.f32 %v1715, %v1747
      %v1780 = vmax.f32 %v1716, %v1748
      %v1781 = vmax.f32 %v1717, %v1749
      %v1782 = vmax.f32 %v1718, %v1750
      %v1783 = vmax.f32 %v1719, %v1751
      %v1784 = vmax.f32 %v1720, %v1752
      %v1785 = vmax.f32 %v1721, %v1753
      %1786 = vst [vmem:[%s262] sm:$0xff] %v1778
      %1787 = vst [vmem:[%s262 + $0x8] sm:$0xff] %v1779
      %1788 = vst [vmem:[%s262 + $0x10] sm:$0xff] %v1780
      %vm1789 = vcmask 64512
      %1790 = vst.msk [vmem:[%s262 + $0x18] sm:$0xff] %vm1789, %v1781
      %1791 = vst [vmem:[%s262 + $0x20] sm:$0xff] %v1782
      %1792 = vst [vmem:[%s262 + $0x28] sm:$0xff] %v1783
      %1793 = vst [vmem:[%s262 + $0x30] sm:$0xff] %v1784
      %1794 = vst.msk [vmem:[%s262 + $0x38] sm:$0xff] %vm1789, %v1785
      %vm1795 = vcmp.gt.f32.partialorder %v1746, %v1714
      %vm1796 = vcmp.gt.f32.partialorder %v1747, %v1715
      %vm1797 = vcmp.gt.f32.partialorder %v1748, %v1716
      %vm1798 = vcmp.gt.f32.partialorder %v1749, %v1717
      %vm1799 = vcmp.gt.f32.partialorder %v1750, %v1718
      %vm1800 = vcmp.gt.f32.partialorder %v1751, %v1719
      %vm1801 = vcmp.gt.f32.partialorder %v1752, %v1720
      %vm1802 = vcmp.gt.f32.partialorder %v1753, %v1721
      %v1803 = vsel %vm1795, %v1770, %v1738
      %v1804 = vsel %vm1796, %v1771, %v1739
      %v1805 = vsel %vm1797, %v1772, %v1740
      %v1806 = vsel %vm1798, %v1773, %v1741
      %v1807 = vsel %vm1799, %v1774, %v1742
      %v1808 = vsel %vm1800, %v1775, %v1743
      %v1809 = vsel %vm1801, %v1776, %v1744
      %v1810 = vsel %vm1802, %v1777, %v1745
      %1811 = vst [vmem:[%s269] sm:$0xff] %v1803
      %1812 = vst [vmem:[%s269 + $0x8] sm:$0xff] %v1804
      %1813 = vst [vmem:[%s269 + $0x10] sm:$0xff] %v1805
      %1814 = vst.msk [vmem:[%s269 + $0x18] sm:$0xff] %vm1789, %v1806
      %1815 = vst [vmem:[%s269 + $0x20] sm:$0xff] %v1807
      %1816 = vst [vmem:[%s269 + $0x28] sm:$0xff] %v1808
      %1817 = vst [vmem:[%s269 + $0x30] sm:$0xff] %v1809
      %1818 = vst.msk [vmem:[%s269 + $0x38] sm:$0xff] %vm1789, %v1810
      %s1819 = smul.u32 2, %s17
      %p1820 = scmp.lt.s32.totalorder %s1819, 3
      %s1821 = scalar_select %p1820, %s1819, 3
      %s1822 = smul.addr %s1821, 4
      %s1823 = smul.addr %s1822, 8
      %s1824 = scalar_lea.vmem %s4, %s1823
      %s1825 = smul.u32 2, %s17
      %p1826 = scmp.lt.s32.totalorder %s1825, 3
      %s1827 = scalar_select %p1826, %s1825, 3
      %s1828 = smul.addr %s1827, 4
      %s1829 = smul.addr %s1828, 8
      %s1830 = scalar_lea.vmem %s5, %s1829
      // Predicated region
      $region37: #{encoder_forward.5} parent=35 // pred_check
        %p1831 = pneg %p129
      $region38: #{encoder_forward.5} parent=35 // pred_check_branch
        %1833 = sbr.rel (%p1831) target = $region40
      $region39: #{encoder_forward.5} parent=35 // pred_region
        %s1834 = smul.u32 2, %s17
      $region40: #{encoder_forward.5} parent=35 // pred_fallthru
        _
      // Predicated region
      $region41: #{encoder_forward.5} parent=35 // pred_check
        %p1835 = pneg %p155
      $region42: #{encoder_forward.5} parent=35 // pred_check_branch
        %1837 = sbr.rel (%p1835) target = $region44
      $region43: #{encoder_forward.5} parent=35 // pred_region
        %s1838 = smul.u32 2, %s17
      $region44: #{encoder_forward.5} parent=35 // pred_fallthru
        _
    $region36: #{encoder_forward.5} parent=5 // pred_fallthru
      _
    %p1839 = scmp.le.s32.totalorder 2, %s12
    // Predicated region
    $region45: #{encoder_forward.5} parent=5 // pred_check
      %p1840 = pneg %p1839
    $region46: #{encoder_forward.5} parent=5 // pred_check_branch
      %1842 = sbr.rel (%p1840) target = $region48
    $region47: #{encoder_forward.5} parent=5 // pred_region
      %s1843 = ssub.s32 %s12, 2
      // Predicated region
      $region49: #{encoder_forward.5} parent=47 // pred_check
        %p1844 = pneg %p135
      $region50: #{encoder_forward.5} parent=47 // pred_check_branch
        %1846 = sbr.rel (%p1844) target = $region52
      $region51: #{encoder_forward.5} parent=47 // pred_region
        %s1847 = smul.u32 2, %s18
        %p1848 = scmp.lt.s32.totalorder %s1847, 3
        %s1849 = scalar_select %p1848, %s1847, 3
        %s1850 = smul.addr %s1849, 4
        %s1851 = smul.addr %s1850, 8
        %s1852 = scalar_lea.vmem %s4, %s1851
      $region52: #{encoder_forward.5} parent=47 // pred_fallthru
        _
      // Predicated region
      $region53: #{encoder_forward.5} parent=47 // pred_check
        %p1853 = pneg %p161
      $region54: #{encoder_forward.5} parent=47 // pred_check_branch
        %1855 = sbr.rel (%p1853) target = $region56
      $region55: #{encoder_forward.5} parent=47 // pred_region
        %s1856 = smul.u32 2, %s18
        %p1857 = scmp.lt.s32.totalorder %s1856, 3
        %s1858 = scalar_select %p1857, %s1856, 3
        %s1859 = smul.addr %s1858, 4
        %s1860 = smul.addr %s1859, 8
        %s1861 = scalar_lea.vmem %s5, %s1860
      $region56: #{encoder_forward.5} parent=47 // pred_fallthru
        _
    $region48: #{encoder_forward.5} parent=5 // pred_fallthru
      _
  $region6: #{encoder_forward.5} parent=0 // loop_footer
    %s16 = sadd.s32 1, %s12
  $region7: #{encoder_forward.5} parent=0 // loop_footer_branch
    %11 = sbr.rel target = $region3
  $region8: #{encoder_forward.5} parent=0 // loop_exit
    _

// kernel: encoder_forward.6
$region0: #{encoder_forward.6}
  #allocation0 [shape = 'u32[]', space=smem, size = 0x4, offset = 0x4, fixed_abs, tag = 'smem constant byte address 0x4 - core index']
  #allocation1 [shape = 'u32[72,128]{1,0:T(1,128)}', space=vmem, size = 0x9000, scoped, tag = 'internal scratch']
  %s0 = inlined_call_operand.vmem [shape: bf16[4,288,98], index: 0, kind: input, shape index: {}]
  %s1 = inlined_call_operand.vmem [shape: bf16[64,288], index: 1, kind: input, shape index: {}]
  %s2 = inlined_call_operand.vmem [shape: f32[64,1], index: 2, kind: input, shape index: {}]
  %s3 = inlined_call_operand.vmem [shape: s32[1,98], index: 3, kind: input, shape index: {}]
  %s4 = inlined_call_operand.vmem [shape: f32[64,98], index: 4, kind: output, shape index: {0}]
  %s5 = inlined_call_operand.vmem [shape: s32[64,98], index: 5, kind: output, shape index: {1}]
  %6 = xla_tuple %s4, %s5
  %s7 = sld [smem:[#allocation0]]
  $region57: #{encoder_forward.6} parent=0
    _
  %s9 = ssub.s32 1, %s7
  %s10 = scalar_select 0, %s9, %s7
  loop: start=0, step=1, limit=4
  $region2: #{encoder_forward.6} parent=0 // loop_pre_header
    _
  $region3: #{encoder_forward.6} parent=0 // loop_header
    %s12 = sphi 0, %s16
    %p13 = scmp.ge.s32.totalorder %s12, 4
    %s20 = sphi 0, %s20
    %s22 = sphi 0, %s20
    %s23 = sphi 0, %s22
    %s37 = sphi 0, %s23
    %s43 = sphi 0, %s45
    %s46 = sphi 0, %s43
    %s47 = sphi 0, %s46
    %s63 = sphi 0, %s47
    %s69 = sphi 0, %s71
    %s72 = sphi 0, %s69
    %s73 = sphi 0, %s72
    %s89 = sphi 0, %s73
    %s93 = sphi 0, %s93
    %s95 = sphi 0, %s93
    %s96 = sphi 0, %s95
    %s110 = sphi 0, %s96
    %s116 = sphi 0, %s118
    %s119 = sphi 0, %s116
    %s120 = sphi 0, %s119
    %s136 = sphi 0, %s120
    %s142 = sphi 0, %s144
    %s145 = sphi 0, %s142
    %s146 = sphi 0, %s145
    %s162 = sphi 0, %s146
  $region4: #{encoder_forward.6} parent=0 // loop_header_branch
    %15 = sbr.rel (%p13) target = $region8
  $region5: #{encoder_forward.6} parent=0 // loop_body
    %s17 = ssub.s32 %s12, 1
    %s18 = ssub.s32 %s12, 2
    %s19 = sadd.s32 %s12, 1
    %s21 = sadd.s32 %s20, 1
    %p24 = scmp.eq.s32.totalorder %s12, 1
    %p25 = scmp.ne.s32.totalorder %s20, %s22
    %p26 = scmp.eq.s32.totalorder %s12, 0
    %p27 = por %p25, %p26
    %p28 = scmp.ne.s32.totalorder %s20, %s22
    %p29 = scmp.eq.s32.totalorder %s17, 1
    %p30 = por %p28, %p29
    %p31 = scmp.ne.s32.totalorder %s22, %s23
    %p32 = scmp.eq.s32.totalorder %s17, 0
    %p33 = por %p31, %p32
    %p34 = scmp.ne.s32.totalorder %s22, %s23
    %p35 = scmp.eq.s32.totalorder %s18, 1
    %p36 = por %p34, %p35
    %p38 = scmp.ne.s32.totalorder %s23, %s37
    %p39 = scmp.eq.s32.totalorder %s18, 0
    %p40 = por %p38, %p39
    %s41 = ssub.s32 %s12, %s19
    %p42 = scmp.eq.s32.totalorder %s41, 0
    %s44 = sadd.s32 %s43, 1
    %s45 = scalar_select %p42, %s43, %s44
    %p48 = pneg %p42
    %p49 = scmp.eq.s32.totalorder %s12, 1
    %p50 = por %p48, %p49
    %p51 = scmp.ne.s32.totalorder %s43, %s46
    %p52 = scmp.eq.s32.totalorder %s12, 0
    %p53 = por %p51, %p52
    %p54 = scmp.ne.s32.totalorder %s43, %s46
    %p55 = scmp.eq.s32.totalorder %s17, 1
    %p56 = por %p54, %p55
    %p57 = scmp.ne.s32.totalorder %s46, %s47
    %p58 = scmp.eq.s32.totalorder %s17, 0
    %p59 = por %p57, %p58
    %p60 = scmp.ne.s32.totalorder %s46, %s47
    %p61 = scmp.eq.s32.totalorder %s18, 1
    %p62 = por %p60, %p61
    %p64 = scmp.ne.s32.totalorder %s47, %s63
    %p65 = scmp.eq.s32.totalorder %s18, 0
    %p66 = por %p64, %p65
    %s67 = ssub.s32 %s12, %s19
    %p68 = scmp.eq.s32.totalorder %s67, 0
    %s70 = sadd.s32 %s69, 1
    %s71 = scalar_select %p68, %s69, %s70
    %p74 = pneg %p68
    %p75 = scmp.eq.s32.totalorder %s12, 1
    %p76 = por %p74, %p75
    %p77 = scmp.ne.s32.totalorder %s69, %s72
    %p78 = scmp.eq.s32.totalorder %s12, 0
    %p79 = por %p77, %p78
    %p80 = scmp.ne.s32.totalorder %s69, %s72
    %p81 = scmp.eq.s32.totalorder %s17, 1
    %p82 = por %p80, %p81
    %p83 = scmp.ne.s32.totalorder %s72, %s73
    %p84 = scmp.eq.s32.totalorder %s17, 0
    %p85 = por %p83, %p84
    %p86 = scmp.ne.s32.totalorder %s72, %s73
    %p87 = scmp.eq.s32.totalorder %s18, 1
    %p88 = por %p86, %p87
    %p90 = scmp.ne.s32.totalorder %s73, %s89
    %p91 = scmp.eq.s32.totalorder %s18, 0
    %p92 = por %p90, %p91
    %s94 = sadd.s32 %s93, 1
    %p97 = scmp.eq.s32.totalorder %s12, 1
    %p98 = scmp.ne.s32.totalorder %s93, %s95
    %p99 = scmp.eq.s32.totalorder %s12, 0
    %p100 = por %p98, %p99
    %p101 = scmp.ne.s32.totalorder %s93, %s95
    %p102 = scmp.eq.s32.totalorder %s17, 1
    %p103 = por %p101, %p102
    %p104 = scmp.ne.s32.totalorder %s95, %s96
    %p105 = scmp.eq.s32.totalorder %s17, 0
    %p106 = por %p104, %p105
    %p107 = scmp.ne.s32.totalorder %s95, %s96
    %p108 = scmp.eq.s32.totalorder %s18, 1
    %p109 = por %p107, %p108
    %p111 = scmp.ne.s32.totalorder %s96, %s110
    %p112 = scmp.eq.s32.totalorder %s18, 0
    %p113 = por %p111, %p112
    %s114 = ssub.s32 %s12, %s19
    %p115 = scmp.eq.s32.totalorder %s114, 0
    %s117 = sadd.s32 %s116, 1
    %s118 = scalar_select %p115, %s116, %s117
    %p121 = pneg %p115
    %p122 = scmp.eq.s32.totalorder %s12, 1
    %p123 = por %p121, %p122
    %p124 = scmp.ne.s32.totalorder %s116, %s119
    %p125 = scmp.eq.s32.totalorder %s12, 0
    %p126 = por %p124, %p125
    %p127 = scmp.ne.s32.totalorder %s116, %s119
    %p128 = scmp.eq.s32.totalorder %s17, 1
    %p129 = por %p127, %p128
    %p130 = scmp.ne.s32.totalorder %s119, %s120
    %p131 = scmp.eq.s32.totalorder %s17, 0
    %p132 = por %p130, %p131
    %p133 = scmp.ne.s32.totalorder %s119, %s120
    %p134 = scmp.eq.s32.totalorder %s18, 1
    %p135 = por %p133, %p134
    %p137 = scmp.ne.s32.totalorder %s120, %s136
    %p138 = scmp.eq.s32.totalorder %s18, 0
    %p139 = por %p137, %p138
    %s140 = ssub.s32 %s12, %s19
    %p141 = scmp.eq.s32.totalorder %s140, 0
    %s143 = sadd.s32 %s142, 1
    %s144 = scalar_select %p141, %s142, %s143
    %p147 = pneg %p141
    %p148 = scmp.eq.s32.totalorder %s12, 1
    %p149 = por %p147, %p148
    %p150 = scmp.ne.s32.totalorder %s142, %s145
    %p151 = scmp.eq.s32.totalorder %s12, 0
    %p152 = por %p150, %p151
    %p153 = scmp.ne.s32.totalorder %s142, %s145
    %p154 = scmp.eq.s32.totalorder %s17, 1
    %p155 = por %p153, %p154
    %p156 = scmp.ne.s32.totalorder %s145, %s146
    %p157 = scmp.eq.s32.totalorder %s17, 0
    %p158 = por %p156, %p157
    %p159 = scmp.ne.s32.totalorder %s145, %s146
    %p160 = scmp.eq.s32.totalorder %s18, 1
    %p161 = por %p159, %p160
    %p163 = scmp.ne.s32.totalorder %s146, %s162
    %p164 = scmp.eq.s32.totalorder %s18, 0
    %p165 = por %p163, %p164
    %p166 = scmp.le.s32.totalorder 1, %s12
    %p167 = scmp.lt.s32.totalorder %s12, 3
    %p168 = pnand %p166, %p167
    %p169 = pneg %p168
    // Predicated region
    $region9: #{encoder_forward.6} parent=5 // pred_check
      _
    $region10: #{encoder_forward.6} parent=5 // pred_check_branch
      %171 = sbr.rel (%p168) target = $region12
    $region11: #{encoder_forward.6} parent=5 // pred_region
      %s172 = ssub.s32 %s12, 1
      // Predicated region
      $region13: #{encoder_forward.6} parent=11 // pred_check
        %p173 = pneg %p33
      $region14: #{encoder_forward.6} parent=11 // pred_check_branch
        %175 = sbr.rel (%p173) target = $region16
      $region15: #{encoder_forward.6} parent=11 // pred_region
        _
      $region16: #{encoder_forward.6} parent=11 // pred_fallthru
        _
      // Predicated region
      $region17: #{encoder_forward.6} parent=11 // pred_check
        %p176 = pneg %p106
      $region18: #{encoder_forward.6} parent=11 // pred_check_branch
        %178 = sbr.rel (%p176) target = $region20
      $region19: #{encoder_forward.6} parent=11 // pred_region
        _
      $region20: #{encoder_forward.6} parent=11 // pred_fallthru
        _
    $region12: #{encoder_forward.6} parent=5 // pred_fallthru
      _
    %p179 = scmp.lt.s32.totalorder %s12, 2
    // Predicated region
    $region21: #{encoder_forward.6} parent=5 // pred_check
      %p180 = pneg %p179
    $region22: #{encoder_forward.6} parent=5 // pred_check_branch
      %182 = sbr.rel (%p180) target = $region24
    $region23: #{encoder_forward.6} parent=5 // pred_region
      // Predicated region
      $region25: #{encoder_forward.6} parent=23 // pred_check
        %p183 = pneg %p53
      $region26: #{encoder_forward.6} parent=23 // pred_check_branch
        %185 = sbr.rel (%p183) target = $region28
      $region27: #{encoder_forward.6} parent=23 // pred_region
        %s186 = smul.u32 4, %s12
        %p187 = scmp.lt.s32.totalorder %s186, 7
        %s188 = scalar_select %p187, %s186, 7
        %s189 = smul.addr %s188, 3
        %s190 = smul.addr %s189, 4
        %s191 = scalar_lea.vmem %s1, %s190
        %s192 = smul.u32 4, %s12
      $region28: #{encoder_forward.6} parent=23 // pred_fallthru
        _
      // Predicated region
      $region29: #{encoder_forward.6} parent=23 // pred_check
        %p193 = pneg %p79
      $region30: #{encoder_forward.6} parent=23 // pred_check_branch
        %195 = sbr.rel (%p193) target = $region32
      $region31: #{encoder_forward.6} parent=23 // pred_region
        %s196 = smul.u32 4, %s12
        %p197 = scmp.lt.s32.totalorder %s196, 7
        %s198 = scalar_select %p197, %s196, 7
        %s199 = smul.addr %s198, 8
        %s200 = scalar_lea.vmem %s2, %s199
        %s201 = smul.u32 4, %s12
      $region32: #{encoder_forward.6} parent=23 // pred_fallthru
        _
    $region24: #{encoder_forward.6} parent=5 // pred_fallthru
      _
    %p202 = scmp.le.s32.totalorder 1, %s12
    %p203 = scmp.lt.s32.totalorder %s12, 3
    %p204 = pnand %p202, %p203
    %p205 = pneg %p204
    // Predicated region
    $region33: #{encoder_forward.6} parent=5 // pred_check
      _
    $region34: #{encoder_forward.6} parent=5 // pred_check_branch
      %207 = sbr.rel (%p204) target = $region36
    $region35: #{encoder_forward.6} parent=5 // pred_region
      %s208 = ssub.s32 %s12, 1
      %p209 = pneg %p33
      %p210 = pneg %p30
      %s211 = smul.u32 4, %s17
      %p212 = scmp.lt.s32.totalorder %s211, 7
      %s213 = scalar_select %p212, %s211, 7
      %s214 = smul.addr %s213, 3
      %s215 = smul.addr %s214, 4
      %s216 = scalar_lea.vmem %s1, %s215
      %p217 = pneg %p59
      %p218 = pneg %p56
      %s219 = smul.u32 4, %s17
      %p220 = scmp.lt.s32.totalorder %s219, 7
      %s221 = scalar_select %p220, %s219, 7
      %s222 = smul.addr %s221, 8
      %s223 = scalar_lea.vmem %s2, %s222
      %p224 = pneg %p85
      %p225 = pneg %p82
      %p226 = pneg %p106
      %p227 = pneg %p103
      %p228 = pneg %p132
      %p229 = pneg %p129
      %s230 = smul.u32 4, %s17
      %p231 = scmp.lt.s32.totalorder %s230, 7
      %s232 = scalar_select %p231, %s230, 7
      %s233 = smul.addr %s232, 8
      %s234 = scalar_lea.vmem %s4, %s233
      %p235 = pneg %p158
      %p236 = pneg %p155
      %s237 = smul.u32 4, %s17
      %p238 = scmp.lt.s32.totalorder %s237, 7
      %s239 = scalar_select %p238, %s237, 7
      %s240 = smul.addr %s239, 8
      %s241 = scalar_lea.vmem %s5, %s240
      %s242 = smul.u32 4, %s17
      %p243 = scmp.lt.s32.totalorder %s242, 7
      %s244 = scalar_select %p243, %s242, 7
      %s245 = smul.addr %s244, 3
      %s246 = smul.addr %s245, 4
      %s247 = scalar_lea.vmem %s1, %s246
      %s248 = smul.u32 4, %s17
      %s249 = smul.u32 4, %s17
      %p250 = scmp.lt.s32.totalorder %s249, 7
      %s251 = scalar_select %p250, %s249, 7
      %s252 = smul.addr %s251, 8
      %s253 = scalar_lea.vmem %s2, %s252
      %s254 = smul.u32 4, %s17
      %s255 = smul.u32 4, %s17
      %p256 = scmp.lt.s32.totalorder %s255, 7
      %s257 = scalar_select %p256, %s255, 7
      %s258 = smul.addr %s257, 8
      %s259 = scalar_lea.vmem %s4, %s258
      %s260 = smul.u32 4, %s17
      %s261 = smul.u32 4, %s17
      %p262 = scmp.lt.s32.totalorder %s261, 7
      %s263 = scalar_select %p262, %s261, 7
      %s264 = smul.addr %s263, 8
      %s265 = scalar_lea.vmem %s5, %s264
      %s266 = smul.u32 4, %s17
      %v268 = vld [vmem:[%s247] sm:$0xff]
      %v269 = vld [vmem:[%s247 + $0x8] sm:$0xf]
      %v270 = vld [vmem:[%s247 + $0xc] sm:$0xff]
      %v271 = vld [vmem:[%s247 + $0x14] sm:$0xf]
      %v272 = vld [vmem:[%s247 + $0x18] sm:$0xff]
      %v273 = vld [vmem:[%s247 + $0x20] sm:$0xf]
      %v274 = vld [vmem:[%s247 + $0x24] sm:$0xff]
      %v275 = vld [vmem:[%s247 + $0x2c] sm:$0xf]
      %v276 = vld [vmem:[%s253] sm:$0xff]
      %v277 = vld [vmem:[%s253 + $0x8] sm:$0xff]
      %v278 = vld [vmem:[%s253 + $0x10] sm:$0xff]
      %v279 = vld [vmem:[%s253 + $0x18] sm:$0xff]
      %v280 = vld [vmem:[%s3] sm:$0x1]
      %v281 = vld [vmem:[%s0] sm:$0xf]
      %v282 = vld [vmem:[%s0 + $0x4] sm:$0xf]
      %v283 = vld [vmem:[%s0 + $0x8] sm:$0xf]
      %v284 = vld [vmem:[%s0 + $0xc] sm:$0xf]
      %v285 = vld [vmem:[%s0 + $0x10] sm:$0xf]
      %v286 = vld [vmem:[%s0 + $0x14] sm:$0xf]
      %v287 = vld [vmem:[%s0 + $0x18] sm:$0xf]
      %v288 = vld [vmem:[%s0 + $0x1c] sm:$0xf]
      %v289 = vld [vmem:[%s0 + $0x20] sm:$0xf]
      %v290 = vld [vmem:[%s0 + $0x24] sm:$0xf]
      %v291 = vld [vmem:[%s0 + $0x28] sm:$0xf]
      %v292 = vld [vmem:[%s0 + $0x2c] sm:$0xf]
      %v293 = vld [vmem:[%s0 + $0x30] sm:$0xf]
      %v294 = vld [vmem:[%s0 + $0x34] sm:$0xf]
      %v295 = vld [vmem:[%s0 + $0x38] sm:$0xf]
      %v296 = vld [vmem:[%s0 + $0x3c] sm:$0xf]
      %v297 = vld [vmem:[%s0 + $0x40] sm:$0xf]
      %v298 = vld [vmem:[%s0 + $0x44] sm:$0xf]
      %v299 = vld [vmem:[%s0 + $0x48] sm:$0xf]
      %v300 = vld [vmem:[%s0 + $0x4c] sm:$0xf]
      %v301 = vld [vmem:[%s0 + $0x50] sm:$0xf]
      %v302 = vld [vmem:[%s0 + $0x54] sm:$0xf]
      %v303 = vld [vmem:[%s0 + $0x58] sm:$0xf]
      %v304 = vld [vmem:[%s0 + $0x5c] sm:$0xf]
      %v305 = vld [vmem:[%s0 + $0x60] sm:$0xf]
      %v306 = vld [vmem:[%s0 + $0x64] sm:$0xf]
      %v307 = vld [vmem:[%s0 + $0x68] sm:$0xf]
      %v308 = vld [vmem:[%s0 + $0x6c] sm:$0xf]
      %v309 = vld [vmem:[%s0 + $0x70] sm:$0xf]
      %v310 = vld [vmem:[%s0 + $0x74] sm:$0xf]
      %v311 = vld [vmem:[%s0 + $0x78] sm:$0xf]
      %v312 = vld [vmem:[%s0 + $0x7c] sm:$0xf]
      %v313 = vld [vmem:[%s0 + $0x80] sm:$0xf]
      %v314 = vld [vmem:[%s0 + $0x84] sm:$0xf]
      %v315 = vld [vmem:[%s0 + $0x88] sm:$0xf]
      %v316 = vld [vmem:[%s0 + $0x8c] sm:$0xf]
      %318 = vset.pattern.permute.xlu0 0
      %319 = vperm.xlu0 %318, %v276
      %v320 = vpop.permute.xlu0 %319
      %323 = vset.pattern.permute.xlu0 0
      %324 = vperm.xlu0 %323, %v277
      %v325 = vpop.permute.xlu0 %324
      %328 = vset.pattern.permute.xlu0 0
      %329 = vperm.xlu0 %328, %v278
      %v330 = vpop.permute.xlu0 %329
      %333 = vset.pattern.permute.xlu0 0
      %334 = vperm.xlu0 %333, %v279
      %v335 = vpop.permute.xlu0 %334
      %v345 = vunpack.c.l.b16 %v268
      %v346 = vunpack.c.h.b16 %v268
      %v347 = vunpack.c.l.b16 %v269
      %v348 = vunpack.c.l.b16 %v270
      %v349 = vunpack.c.h.b16 %v270
      %v350 = vunpack.c.l.b16 %v271
      %v351 = vunpack.c.l.b16 %v272
      %v352 = vunpack.c.h.b16 %v272
      %v353 = vunpack.c.l.b16 %v273
      %v354 = vunpack.c.l.b16 %v274
      %v355 = vunpack.c.h.b16 %v274
      %v356 = vunpack.c.l.b16 %v275
      %v357 = vpack.c.b16 %v348, %v345
      %v358 = vpack.c.b16 %v349, %v346
      %v359 = vpack.c.b16 %v350, %v347
      %v360 = vpack.c.b16 %v354, %v351
      %v361 = vpack.c.b16 %v355, %v352
      %v362 = vpack.c.b16 %v356, %v353
      %v403 = vunpack.c.l.b16 %v281
      %v404 = vunpack.c.l.b16 %v282
      %v405 = vunpack.c.l.b16 %v283
      %v406 = vunpack.c.l.b16 %v284
      %v407 = vunpack.c.l.b16 %v285
      %v408 = vunpack.c.l.b16 %v286
      %v409 = vunpack.c.l.b16 %v287
      %v410 = vunpack.c.l.b16 %v288
      %v411 = vunpack.c.l.b16 %v289
      %v412 = vunpack.c.l.b16 %v290
      %v413 = vunpack.c.l.b16 %v291
      %v414 = vunpack.c.l.b16 %v292
      %v415 = vunpack.c.l.b16 %v293
      %v416 = vunpack.c.l.b16 %v294
      %v417 = vunpack.c.l.b16 %v295
      %v418 = vunpack.c.l.b16 %v296
      %v419 = vunpack.c.l.b16 %v297
      %v420 = vunpack.c.l.b16 %v298
      %v421 = vunpack.c.l.b16 %v299
      %v422 = vunpack.c.l.b16 %v300
      %v423 = vunpack.c.l.b16 %v301
      %v424 = vunpack.c.l.b16 %v302
      %v425 = vunpack.c.l.b16 %v303
      %v426 = vunpack.c.l.b16 %v304
      %v427 = vunpack.c.l.b16 %v305
      %v428 = vunpack.c.l.b16 %v306
      %v429 = vunpack.c.l.b16 %v307
      %v430 = vunpack.c.l.b16 %v308
      %v431 = vunpack.c.l.b16 %v309
      %v432 = vunpack.c.l.b16 %v310
      %v433 = vunpack.c.l.b16 %v311
      %v434 = vunpack.c.l.b16 %v312
      %v435 = vunpack.c.l.b16 %v313
      %v436 = vunpack.c.l.b16 %v314
      %v437 = vunpack.c.l.b16 %v315
      %v438 = vunpack.c.l.b16 %v316
      %v439 = vpack.c.b16 %v404, %v403
      %v440 = vpack.c.b16 %v406, %v405
      %v441 = vpack.c.b16 %v408, %v407
      %v442 = vpack.c.b16 %v410, %v409
      %v443 = vpack.c.b16 %v412, %v411
      %v444 = vpack.c.b16 %v414, %v413
      %v445 = vpack.c.b16 %v416, %v415
      %v446 = vpack.c.b16 %v418, %v417
      %v447 = vpack.c.b16 %v420, %v419
      %v448 = vpack.c.b16 %v422, %v421
      %v449 = vpack.c.b16 %v424, %v423
      %v450 = vpack.c.b16 %v426, %v425
      %v451 = vpack.c.b16 %v428, %v427
      %v452 = vpack.c.b16 %v430, %v429
      %v453 = vpack.c.b16 %v432, %v431
      %v454 = vpack.c.b16 %v434, %v433
      %v455 = vpack.c.b16 %v436, %v435
      %v456 = vpack.c.b16 %v438, %v437
      %vm475 = vcmask 261120
      %v477 = vsel %vm475, %v359, 0
      %v480 = vsel %vm475, %v362, 0
      %482 = vmatpush.bf16.msra.mxu0 %v446
      %483 = vmatpush.bf16.msra.mxu0 %v445
      %484 = vmatpush.bf16.msra.mxu0 %v444
      %485 = vmatpush.bf16.msra.mxu0 %v443
      %486 = vmatpush.bf16.msra.mxu0 %v442
      %487 = vmatpush.bf16.msra.mxu0 %v441
      %488 = vmatpush.bf16.msra.mxu0 %v440
      %489 = vmatpush.bf16.msra.mxu0 %v439
      %490 = vmatmul.bf16.gmra.mxu0 %v357
      %v491 = vpop.f32.mrf.mxu0
      %v492 = vadd.f32 %v320, %v491
      %v493 = vpop.f32.mrf.mxu0
      %v494 = vadd.f32 %v325, %v493
      %495 = vmatmul.bf16.gmra.mxu0 %v360
      %v496 = vpop.f32.mrf.mxu0
      %v497 = vadd.f32 %v330, %v496
      %v498 = vpop.f32.mrf.mxu0
      %v499 = vadd.f32 %v335, %v498
      %500 = vdwg.mxu0
      %501 = vmatpush.bf16.msra.mxu0 %v454
      %502 = vmatpush.bf16.msra.mxu0 %v453
      %503 = vmatpush.bf16.msra.mxu0 %v452
      %504 = vmatpush.bf16.msra.mxu0 %v451
      %505 = vmatpush.bf16.msra.mxu0 %v450
      %506 = vmatpush.bf16.msra.mxu0 %v449
      %507 = vmatpush.bf16.msra.mxu0 %v448
      %508 = vmatpush.bf16.msra.mxu0 %v447
      %509 = vmatmul.bf16.gmra.mxu0 %v358
      %v510 = vpop.f32.mrf.mxu0
      %v511 = vadd.f32 %v492, %v510
      %v512 = vpop.f32.mrf.mxu0
      %v513 = vadd.f32 %v494, %v512
      %514 = vmatmul.bf16.gmra.mxu0 %v361
      %v515 = vpop.f32.mrf.mxu0
      %v516 = vadd.f32 %v497, %v515
      %v517 = vpop.f32.mrf.mxu0
      %v518 = vadd.f32 %v499, %v517
      %519 = vdwg.mxu0
      %520 = vmatpush.bf16.msra.mxu0 0
      %521 = vmatpush.bf16.msra.mxu0 0
      %522 = vmatpush.bf16.msra.mxu0 0
      %523 = vmatpush.bf16.msra.mxu0 0
      %524 = vmatpush.bf16.msra.mxu0 0
      %525 = vmatpush.bf16.msra.mxu0 0
      %526 = vmatpush.bf16.msra.mxu0 %v456
      %527 = vmatpush.bf16.msra.mxu0 %v455
      %528 = vmatmul.bf16.gmra.mxu0 %v477
      %v529 = vpop.f32.mrf.mxu0
      %v530 = vadd.f32 %v511, %v529
      %v531 = vpop.f32.mrf.mxu0
      %v532 = vadd.f32 %v513, %v531
      %533 = vmatmul.bf16.gmra.mxu0 %v480
      %v534 = vpop.f32.mrf.mxu0
      %v535 = vadd.f32 %v516, %v534
      %v536 = vpop.f32.mrf.mxu0
      %v537 = vadd.f32 %v518, %v536
      %538 = vdwg.mxu0
      %vm539 = vcmp.ge.f32.partialorder %v530, 0.0
      %vm540 = vcmp.ge.f32.partialorder %v532, 0.0
      %vm541 = vcmp.ge.f32.partialorder %v535, 0.0
      %vm542 = vcmp.ge.f32.partialorder %v537, 0.0
      %v543 = vmul.f32 %v530, 0.01
      %v544 = vmul.f32 %v532, 0.01
      %v545 = vmul.f32 %v535, 0.01
      %v546 = vmul.f32 %v537, 0.01
      %v547 = vsel %vm539, %v530, %v543
      %v548 = vsel %vm540, %v532, %v544
      %v549 = vsel %vm541, %v535, %v545
      %v550 = vsel %vm542, %v537, %v546
      %s551 = scalar_lea.vmem %s0, 144
      %v552 = vld [vmem:[%s551] sm:$0xf]
      %v553 = vld [vmem:[%s551 + $0x4] sm:$0xf]
      %v554 = vld [vmem:[%s551 + $0x8] sm:$0xf]
      %v555 = vld [vmem:[%s551 + $0xc] sm:$0xf]
      %v556 = vld [vmem:[%s551 + $0x10] sm:$0xf]
      %v557 = vld [vmem:[%s551 + $0x14] sm:$0xf]
      %v558 = vld [vmem:[%s551 + $0x18] sm:$0xf]
      %v559 = vld [vmem:[%s551 + $0x1c] sm:$0xf]
      %v560 = vld [vmem:[%s551 + $0x20] sm:$0xf]
      %v561 = vld [vmem:[%s551 + $0x24] sm:$0xf]
      %v562 = vld [vmem:[%s551 + $0x28] sm:$0xf]
      %v563 = vld [vmem:[%s551 + $0x2c] sm:$0xf]
      %v564 = vld [vmem:[%s551 + $0x30] sm:$0xf]
      %v565 = vld [vmem:[%s551 + $0x34] sm:$0xf]
      %v566 = vld [vmem:[%s551 + $0x38] sm:$0xf]
      %v567 = vld [vmem:[%s551 + $0x3c] sm:$0xf]
      %v568 = vld [vmem:[%s551 + $0x40] sm:$0xf]
      %v569 = vld [vmem:[%s551 + $0x44] sm:$0xf]
      %v570 = vld [vmem:[%s551 + $0x48] sm:$0xf]
      %v571 = vld [vmem:[%s551 + $0x4c] sm:$0xf]
      %v572 = vld [vmem:[%s551 + $0x50] sm:$0xf]
      %v573 = vld [vmem:[%s551 + $0x54] sm:$0xf]
      %v574 = vld [vmem:[%s551 + $0x58] sm:$0xf]
      %v575 = vld [vmem:[%s551 + $0x5c] sm:$0xf]
      %v576 = vld [vmem:[%s551 + $0x60] sm:$0xf]
      %v577 = vld [vmem:[%s551 + $0x64] sm:$0xf]
      %v578 = vld [vmem:[%s551 + $0x68] sm:$0xf]
      %v579 = vld [vmem:[%s551 + $0x6c] sm:$0xf]
      %v580 = vld [vmem:[%s551 + $0x70] sm:$0xf]
      %v581 = vld [vmem:[%s551 + $0x74] sm:$0xf]
      %v582 = vld [vmem:[%s551 + $0x78] sm:$0xf]
      %v583 = vld [vmem:[%s551 + $0x7c] sm:$0xf]
      %v584 = vld [vmem:[%s551 + $0x80] sm:$0xf]
      %v585 = vld [vmem:[%s551 + $0x84] sm:$0xf]
      %v586 = vld [vmem:[%s551 + $0x88] sm:$0xf]
      %v587 = vld [vmem:[%s551 + $0x8c] sm:$0xf]
      %v624 = vunpack.c.l.b16 %v552
      %v625 = vunpack.c.l.b16 %v553
      %v626 = vunpack.c.l.b16 %v554
      %v627 = vunpack.c.l.b16 %v555
      %v628 = vunpack.c.l.b16 %v556
      %v629 = vunpack.c.l.b16 %v557
      %v630 = vunpack.c.l.b16 %v558
      %v631 = vunpack.c.l.b16 %v559
      %v632 = vunpack.c.l.b16 %v560
      %v633 = vunpack.c.l.b16 %v561
      %v634 = vunpack.c.l.b16 %v562
      %v635 = vunpack.c.l.b16 %v563
      %v636 = vunpack.c.l.b16 %v564
      %v637 = vunpack.c.l.b16 %v565
      %v638 = vunpack.c.l.b16 %v566
      %v639 = vunpack.c.l.b16 %v567
      %v640 = vunpack.c.l.b16 %v568
      %v641 = vunpack.c.l.b16 %v569
      %v642 = vunpack.c.l.b16 %v570
      %v643 = vunpack.c.l.b16 %v571
      %v644 = vunpack.c.l.b16 %v572
      %v645 = vunpack.c.l.b16 %v573
      %v646 = vunpack.c.l.b16 %v574
      %v647 = vunpack.c.l.b16 %v575
      %v648 = vunpack.c.l.b16 %v576
      %v649 = vunpack.c.l.b16 %v577
      %v650 = vunpack.c.l.b16 %v578
      %v651 = vunpack.c.l.b16 %v579
      %v652 = vunpack.c.l.b16 %v580
      %v653 = vunpack.c.l.b16 %v581
      %v654 = vunpack.c.l.b16 %v582
      %v655 = vunpack.c.l.b16 %v583
      %v656 = vunpack.c.l.b16 %v584
      %v657 = vunpack.c.l.b16 %v585
      %v658 = vunpack.c.l.b16 %v586
      %v659 = vunpack.c.l.b16 %v587
      %v660 = vpack.c.b16 %v625, %v624
      %v661 = vpack.c.b16 %v627, %v626
      %v662 = vpack.c.b16 %v629, %v628
      %v663 = vpack.c.b16 %v631, %v630
      %v664 = vpack.c.b16 %v633, %v632
      %v665 = vpack.c.b16 %v635, %v634
      %v666 = vpack.c.b16 %v637, %v636
      %v667 = vpack.c.b16 %v639, %v638
      %v668 = vpack.c.b16 %v641, %v640
      %v669 = vpack.c.b16 %v643, %v642
      %v670 = vpack.c.b16 %v645, %v644
      %v671 = vpack.c.b16 %v647, %v646
      %v672 = vpack.c.b16 %v649, %v648
      %v673 = vpack.c.b16 %v651, %v650
      %v674 = vpack.c.b16 %v653, %v652
      %v675 = vpack.c.b16 %v655, %v654
      %v676 = vpack.c.b16 %v657, %v656
      %v677 = vpack.c.b16 %v659, %v658
      %696 = vmatpush.bf16.msra.mxu0 %v667
      %697 = vmatpush.bf16.msra.mxu0 %v666
      %698 = vmatpush.bf16.msra.mxu0 %v665
      %699 = vmatpush.bf16.msra.mxu0 %v664
      %700 = vmatpush.bf16.msra.mxu0 %v663
      %701 = vmatpush.bf16.msra.mxu0 %v662
      %702 = vmatpush.bf16.msra.mxu0 %v661
      %703 = vmatpush.bf16.msra.mxu0 %v660
      %704 = vmatmul.bf16.gmra.mxu0 %v357
      %v705 = vpop.f32.mrf.mxu0
      %v706 = vadd.f32 %v320, %v705
      %v707 = vpop.f32.mrf.mxu0
      %v708 = vadd.f32 %v325, %v707
      %709 = vmatmul.bf16.gmra.mxu0 %v360
      %v710 = vpop.f32.mrf.mxu0
      %v711 = vadd.f32 %v330, %v710
      %v712 = vpop.f32.mrf.mxu0
      %v713 = vadd.f32 %v335, %v712
      %714 = vdwg.mxu0
      %715 = vmatpush.bf16.msra.mxu0 %v675
      %716 = vmatpush.bf16.msra.mxu0 %v674
      %717 = vmatpush.bf16.msra.mxu0 %v673
      %718 = vmatpush.bf16.msra.mxu0 %v672
      %719 = vmatpush.bf16.msra.mxu0 %v671
      %720 = vmatpush.bf16.msra.mxu0 %v670
      %721 = vmatpush.bf16.msra.mxu0 %v669
      %722 = vmatpush.bf16.msra.mxu0 %v668
      %723 = vmatmul.bf16.gmra.mxu0 %v358
      %v724 = vpop.f32.mrf.mxu0
      %v725 = vadd.f32 %v706, %v724
      %v726 = vpop.f32.mrf.mxu0
      %v727 = vadd.f32 %v708, %v726
      %728 = vmatmul.bf16.gmra.mxu0 %v361
      %v729 = vpop.f32.mrf.mxu0
      %v730 = vadd.f32 %v711, %v729
      %v731 = vpop.f32.mrf.mxu0
      %v732 = vadd.f32 %v713, %v731
      %733 = vdwg.mxu0
      %734 = vmatpush.bf16.msra.mxu0 0
      %735 = vmatpush.bf16.msra.mxu0 0
      %736 = vmatpush.bf16.msra.mxu0 0
      %737 = vmatpush.bf16.msra.mxu0 0
      %738 = vmatpush.bf16.msra.mxu0 0
      %739 = vmatpush.bf16.msra.mxu0 0
      %740 = vmatpush.bf16.msra.mxu0 %v677
      %741 = vmatpush.bf16.msra.mxu0 %v676
      %742 = vmatmul.bf16.gmra.mxu0 %v477
      %v743 = vpop.f32.mrf.mxu0
      %v744 = vadd.f32 %v725, %v743
      %v745 = vpop.f32.mrf.mxu0
      %v746 = vadd.f32 %v727, %v745
      %747 = vmatmul.bf16.gmra.mxu0 %v480
      %v748 = vpop.f32.mrf.mxu0
      %v749 = vadd.f32 %v730, %v748
      %v750 = vpop.f32.mrf.mxu0
      %v751 = vadd.f32 %v732, %v750
      %752 = vdwg.mxu0
      %vm753 = vcmp.ge.f32.partialorder %v744, 0.0
      %vm754 = vcmp.ge.f32.partialorder %v746, 0.0
      %vm755 = vcmp.ge.f32.partialorder %v749, 0.0
      %vm756 = vcmp.ge.f32.partialorder %v751, 0.0
      %v757 = vmul.f32 %v744, 0.01
      %v758 = vmul.f32 %v746, 0.01
      %v759 = vmul.f32 %v749, 0.01
      %v760 = vmul.f32 %v751, 0.01
      %v761 = vsel %vm753, %v744, %v757
      %v762 = vsel %vm754, %v746, %v758
      %v763 = vsel %vm755, %v749, %v759
      %v764 = vsel %vm756, %v751, %v760
      %s765 = scalar_lea.vmem %s0, 288
      %v766 = vld [vmem:[%s765] sm:$0xf]
      %v767 = vld [vmem:[%s765 + $0x4] sm:$0xf]
      %v768 = vld [vmem:[%s765 + $0x8] sm:$0xf]
      %v769 = vld [vmem:[%s765 + $0xc] sm:$0xf]
      %v770 = vld [vmem:[%s765 + $0x10] sm:$0xf]
      %v771 = vld [vmem:[%s765 + $0x14] sm:$0xf]
      %v772 = vld [vmem:[%s765 + $0x18] sm:$0xf]
      %v773 = vld [vmem:[%s765 + $0x1c] sm:$0xf]
      %v774 = vld [vmem:[%s765 + $0x20] sm:$0xf]
      %v775 = vld [vmem:[%s765 + $0x24] sm:$0xf]
      %v776 = vld [vmem:[%s765 + $0x28] sm:$0xf]
      %v777 = vld [vmem:[%s765 + $0x2c] sm:$0xf]
      %v778 = vld [vmem:[%s765 + $0x30] sm:$0xf]
      %v779 = vld [vmem:[%s765 + $0x34] sm:$0xf]
      %v780 = vld [vmem:[%s765 + $0x38] sm:$0xf]
      %v781 = vld [vmem:[%s765 + $0x3c] sm:$0xf]
      %v782 = vld [vmem:[%s765 + $0x40] sm:$0xf]
      %v783 = vld [vmem:[%s765 + $0x44] sm:$0xf]
      %v784 = vld [vmem:[%s765 + $0x48] sm:$0xf]
      %v785 = vld [vmem:[%s765 + $0x4c] sm:$0xf]
      %v786 = vld [vmem:[%s765 + $0x50] sm:$0xf]
      %v787 = vld [vmem:[%s765 + $0x54] sm:$0xf]
      %v788 = vld [vmem:[%s765 + $0x58] sm:$0xf]
      %v789 = vld [vmem:[%s765 + $0x5c] sm:$0xf]
      %v790 = vld [vmem:[%s765 + $0x60] sm:$0xf]
      %v791 = vld [vmem:[%s765 + $0x64] sm:$0xf]
      %v792 = vld [vmem:[%s765 + $0x68] sm:$0xf]
      %v793 = vld [vmem:[%s765 + $0x6c] sm:$0xf]
      %v794 = vld [vmem:[%s765 + $0x70] sm:$0xf]
      %v795 = vld [vmem:[%s765 + $0x74] sm:$0xf]
      %v796 = vld [vmem:[%s765 + $0x78] sm:$0xf]
      %v797 = vld [vmem:[%s765 + $0x7c] sm:$0xf]
      %v798 = vld [vmem:[%s765 + $0x80] sm:$0xf]
      %v799 = vld [vmem:[%s765 + $0x84] sm:$0xf]
      %v800 = vld [vmem:[%s765 + $0x88] sm:$0xf]
      %v801 = vld [vmem:[%s765 + $0x8c] sm:$0xf]
      %v838 = vunpack.c.l.b16 %v766
      %v839 = vunpack.c.l.b16 %v767
      %v840 = vunpack.c.l.b16 %v768
      %v841 = vunpack.c.l.b16 %v769
      %v842 = vunpack.c.l.b16 %v770
      %v843 = vunpack.c.l.b16 %v771
      %v844 = vunpack.c.l.b16 %v772
      %v845 = vunpack.c.l.b16 %v773
      %v846 = vunpack.c.l.b16 %v774
      %v847 = vunpack.c.l.b16 %v775
      %v848 = vunpack.c.l.b16 %v776
      %v849 = vunpack.c.l.b16 %v777
      %v850 = vunpack.c.l.b16 %v778
      %v851 = vunpack.c.l.b16 %v779
      %v852 = vunpack.c.l.b16 %v780
      %v853 = vunpack.c.l.b16 %v781
      %v854 = vunpack.c.l.b16 %v782
      %v855 = vunpack.c.l.b16 %v783
      %v856 = vunpack.c.l.b16 %v784
      %v857 = vunpack.c.l.b16 %v785
      %v858 = vunpack.c.l.b16 %v786
      %v859 = vunpack.c.l.b16 %v787
      %v860 = vunpack.c.l.b16 %v788
      %v861 = vunpack.c.l.b16 %v789
      %v862 = vunpack.c.l.b16 %v790
      %v863 = vunpack.c.l.b16 %v791
      %v864 = vunpack.c.l.b16 %v792
      %v865 = vunpack.c.l.b16 %v793
      %v866 = vunpack.c.l.b16 %v794
      %v867 = vunpack.c.l.b16 %v795
      %v868 = vunpack.c.l.b16 %v796
      %v869 = vunpack.c.l.b16 %v797
      %v870 = vunpack.c.l.b16 %v798
      %v871 = vunpack.c.l.b16 %v799
      %v872 = vunpack.c.l.b16 %v800
      %v873 = vunpack.c.l.b16 %v801
      %v874 = vpack.c.b16 %v839, %v838
      %v875 = vpack.c.b16 %v841, %v840
      %v876 = vpack.c.b16 %v843, %v842
      %v877 = vpack.c.b16 %v845, %v844
      %v878 = vpack.c.b16 %v847, %v846
      %v879 = vpack.c.b16 %v849, %v848
      %v880 = vpack.c.b16 %v851, %v850
      %v881 = vpack.c.b16 %v853, %v852
      %v882 = vpack.c.b16 %v855, %v854
      %v883 = vpack.c.b16 %v857, %v856
      %v884 = vpack.c.b16 %v859, %v858
      %v885 = vpack.c.b16 %v861, %v860
      %v886 = vpack.c.b16 %v863, %v862
      %v887 = vpack.c.b16 %v865, %v864
      %v888 = vpack.c.b16 %v867, %v866
      %v889 = vpack.c.b16 %v869, %v868
      %v890 = vpack.c.b16 %v871, %v870
      %v891 = vpack.c.b16 %v873, %v872
      %910 = vmatpush.bf16.msra.mxu0 %v881
      %911 = vmatpush.bf16.msra.mxu0 %v880
      %912 = vmatpush.bf16.msra.mxu0 %v879
      %913 = vmatpush.bf16.msra.mxu0 %v878
      %914 = vmatpush.bf16.msra.mxu0 %v877
      %915 = vmatpush.bf16.msra.mxu0 %v876
      %916 = vmatpush.bf16.msra.mxu0 %v875
      %917 = vmatpush.bf16.msra.mxu0 %v874
      %918 = vmatmul.bf16.gmra.mxu0 %v357
      %v919 = vpop.f32.mrf.mxu0
      %v920 = vadd.f32 %v320, %v919
      %v921 = vpop.f32.mrf.mxu0
      %v922 = vadd.f32 %v325, %v921
      %923 = vmatmul.bf16.gmra.mxu0 %v360
      %v924 = vpop.f32.mrf.mxu0
      %v925 = vadd.f32 %v330, %v924
      %v926 = vpop.f32.mrf.mxu0
      %v927 = vadd.f32 %v335, %v926
      %928 = vdwg.mxu0
      %929 = vmatpush.bf16.msra.mxu0 %v889
      %930 = vmatpush.bf16.msra.mxu0 %v888
      %931 = vmatpush.bf16.msra.mxu0 %v887
      %932 = vmatpush.bf16.msra.mxu0 %v886
      %933 = vmatpush.bf16.msra.mxu0 %v885
      %934 = vmatpush.bf16.msra.mxu0 %v884
      %935 = vmatpush.bf16.msra.mxu0 %v883
      %936 = vmatpush.bf16.msra.mxu0 %v882
      %937 = vmatmul.bf16.gmra.mxu0 %v358
      %v938 = vpop.f32.mrf.mxu0
      %v939 = vadd.f32 %v920, %v938
      %v940 = vpop.f32.mrf.mxu0
      %v941 = vadd.f32 %v922, %v940
      %942 = vmatmul.bf16.gmra.mxu0 %v361
      %v943 = vpop.f32.mrf.mxu0
      %v944 = vadd.f32 %v925, %v943
      %v945 = vpop.f32.mrf.mxu0
      %v946 = vadd.f32 %v927, %v945
      %947 = vdwg.mxu0
      %948 = vmatpush.bf16.msra.mxu0 0
      %949 = vmatpush.bf16.msra.mxu0 0
      %950 = vmatpush.bf16.msra.mxu0 0
      %951 = vmatpush.bf16.msra.mxu0 0
      %952 = vmatpush.bf16.msra.mxu0 0
      %953 = vmatpush.bf16.msra.mxu0 0
      %954 = vmatpush.bf16.msra.mxu0 %v891
      %955 = vmatpush.bf16.msra.mxu0 %v890
      %956 = vmatmul.bf16.gmra.mxu0 %v477
      %v957 = vpop.f32.mrf.mxu0
      %v958 = vadd.f32 %v939, %v957
      %v959 = vpop.f32.mrf.mxu0
      %v960 = vadd.f32 %v941, %v959
      %961 = vmatmul.bf16.gmra.mxu0 %v480
      %v962 = vpop.f32.mrf.mxu0
      %v963 = vadd.f32 %v944, %v962
      %v964 = vpop.f32.mrf.mxu0
      %v965 = vadd.f32 %v946, %v964
      %966 = vdwg.mxu0
      %vm967 = vcmp.ge.f32.partialorder %v958, 0.0
      %vm968 = vcmp.ge.f32.partialorder %v960, 0.0
      %vm969 = vcmp.ge.f32.partialorder %v963, 0.0
      %vm970 = vcmp.ge.f32.partialorder %v965, 0.0
      %v971 = vmul.f32 %v958, 0.01
      %v972 = vmul.f32 %v960, 0.01
      %v973 = vmul.f32 %v963, 0.01
      %v974 = vmul.f32 %v965, 0.01
      %v975 = vsel %vm967, %v958, %v971
      %v976 = vsel %vm968, %v960, %v972
      %v977 = vsel %vm969, %v963, %v973
      %v978 = vsel %vm970, %v965, %v974
      %s979 = scalar_lea.vmem %s0, 432
      %v980 = vld [vmem:[%s979] sm:$0xf]
      %v981 = vld [vmem:[%s979 + $0x4] sm:$0xf]
      %v982 = vld [vmem:[%s979 + $0x8] sm:$0xf]
      %v983 = vld [vmem:[%s979 + $0xc] sm:$0xf]
      %v984 = vld [vmem:[%s979 + $0x10] sm:$0xf]
      %v985 = vld [vmem:[%s979 + $0x14] sm:$0xf]
      %v986 = vld [vmem:[%s979 + $0x18] sm:$0xf]
      %v987 = vld [vmem:[%s979 + $0x1c] sm:$0xf]
      %v988 = vld [vmem:[%s979 + $0x20] sm:$0xf]
      %v989 = vld [vmem:[%s979 + $0x24] sm:$0xf]
      %v990 = vld [vmem:[%s979 + $0x28] sm:$0xf]
      %v991 = vld [vmem:[%s979 + $0x2c] sm:$0xf]
      %v992 = vld [vmem:[%s979 + $0x30] sm:$0xf]
      %v993 = vld [vmem:[%s979 + $0x34] sm:$0xf]
      %v994 = vld [vmem:[%s979 + $0x38] sm:$0xf]
      %v995 = vld [vmem:[%s979 + $0x3c] sm:$0xf]
      %v996 = vld [vmem:[%s979 + $0x40] sm:$0xf]
      %v997 = vld [vmem:[%s979 + $0x44] sm:$0xf]
      %v998 = vld [vmem:[%s979 + $0x48] sm:$0xf]
      %v999 = vld [vmem:[%s979 + $0x4c] sm:$0xf]
      %v1000 = vld [vmem:[%s979 + $0x50] sm:$0xf]
      %v1001 = vld [vmem:[%s979 + $0x54] sm:$0xf]
      %v1002 = vld [vmem:[%s979 + $0x58] sm:$0xf]
      %v1003 = vld [vmem:[%s979 + $0x5c] sm:$0xf]
      %v1004 = vld [vmem:[%s979 + $0x60] sm:$0xf]
      %v1005 = vld [vmem:[%s979 + $0x64] sm:$0xf]
      %v1006 = vld [vmem:[%s979 + $0x68] sm:$0xf]
      %v1007 = vld [vmem:[%s979 + $0x6c] sm:$0xf]
      %v1008 = vld [vmem:[%s979 + $0x70] sm:$0xf]
      %v1009 = vld [vmem:[%s979 + $0x74] sm:$0xf]
      %v1010 = vld [vmem:[%s979 + $0x78] sm:$0xf]
      %v1011 = vld [vmem:[%s979 + $0x7c] sm:$0xf]
      %v1012 = vld [vmem:[%s979 + $0x80] sm:$0xf]
      %v1013 = vld [vmem:[%s979 + $0x84] sm:$0xf]
      %v1014 = vld [vmem:[%s979 + $0x88] sm:$0xf]
      %v1015 = vld [vmem:[%s979 + $0x8c] sm:$0xf]
      %v1052 = vunpack.c.l.b16 %v980
      %v1053 = vunpack.c.l.b16 %v981
      %v1054 = vunpack.c.l.b16 %v982
      %v1055 = vunpack.c.l.b16 %v983
      %v1056 = vunpack.c.l.b16 %v984
      %v1057 = vunpack.c.l.b16 %v985
      %v1058 = vunpack.c.l.b16 %v986
      %v1059 = vunpack.c.l.b16 %v987
      %v1060 = vunpack.c.l.b16 %v988
      %v1061 = vunpack.c.l.b16 %v989
      %v1062 = vunpack.c.l.b16 %v990
      %v1063 = vunpack.c.l.b16 %v991
      %v1064 = vunpack.c.l.b16 %v992
      %v1065 = vunpack.c.l.b16 %v993
      %v1066 = vunpack.c.l.b16 %v994
      %v1067 = vunpack.c.l.b16 %v995
      %v1068 = vunpack.c.l.b16 %v996
      %v1069 = vunpack.c.l.b16 %v997
      %v1070 = vunpack.c.l.b16 %v998
      %v1071 = vunpack.c.l.b16 %v999
      %v1072 = vunpack.c.l.b16 %v1000
      %v1073 = vunpack.c.l.b16 %v1001
      %v1074 = vunpack.c.l.b16 %v1002
      %v1075 = vunpack.c.l.b16 %v1003
      %v1076 = vunpack.c.l.b16 %v1004
      %v1077 = vunpack.c.l.b16 %v1005
      %v1078 = vunpack.c.l.b16 %v1006
      %v1079 = vunpack.c.l.b16 %v1007
      %v1080 = vunpack.c.l.b16 %v1008
      %v1081 = vunpack.c.l.b16 %v1009
      %v1082 = vunpack.c.l.b16 %v1010
      %v1083 = vunpack.c.l.b16 %v1011
      %v1084 = vunpack.c.l.b16 %v1012
      %v1085 = vunpack.c.l.b16 %v1013
      %v1086 = vunpack.c.l.b16 %v1014
      %v1087 = vunpack.c.l.b16 %v1015
      %v1088 = vpack.c.b16 %v1053, %v1052
      %v1089 = vpack.c.b16 %v1055, %v1054
      %v1090 = vpack.c.b16 %v1057, %v1056
      %v1091 = vpack.c.b16 %v1059, %v1058
      %v1092 = vpack.c.b16 %v1061, %v1060
      %v1093 = vpack.c.b16 %v1063, %v1062
      %v1094 = vpack.c.b16 %v1065, %v1064
      %v1095 = vpack.c.b16 %v1067, %v1066
      %v1096 = vpack.c.b16 %v1069, %v1068
      %v1097 = vpack.c.b16 %v1071, %v1070
      %v1098 = vpack.c.b16 %v1073, %v1072
      %v1099 = vpack.c.b16 %v1075, %v1074
      %v1100 = vpack.c.b16 %v1077, %v1076
      %v1101 = vpack.c.b16 %v1079, %v1078
      %v1102 = vpack.c.b16 %v1081, %v1080
      %v1103 = vpack.c.b16 %v1083, %v1082
      %v1104 = vpack.c.b16 %v1085, %v1084
      %v1105 = vpack.c.b16 %v1087, %v1086
      %1124 = vmatpush.bf16.msra.mxu0 %v1095
      %1125 = vmatpush.bf16.msra.mxu0 %v1094
      %1126 = vmatpush.bf16.msra.mxu0 %v1093
      %1127 = vmatpush.bf16.msra.mxu0 %v1092
      %1128 = vmatpush.bf16.msra.mxu0 %v1091
      %1129 = vmatpush.bf16.msra.mxu0 %v1090
      %1130 = vmatpush.bf16.msra.mxu0 %v1089
      %1131 = vmatpush.bf16.msra.mxu0 %v1088
      %1132 = vmatmul.bf16.gmra.mxu0 %v357
      %v1133 = vpop.f32.mrf.mxu0
      %v1134 = vadd.f32 %v320, %v1133
      %v1135 = vpop.f32.mrf.mxu0
      %v1136 = vadd.f32 %v325, %v1135
      %1137 = vmatmul.bf16.gmra.mxu0 %v360
      %v1138 = vpop.f32.mrf.mxu0
      %v1139 = vadd.f32 %v330, %v1138
      %v1140 = vpop.f32.mrf.mxu0
      %v1141 = vadd.f32 %v335, %v1140
      %1142 = vdwg.mxu0
      %1143 = vmatpush.bf16.msra.mxu0 %v1103
      %1144 = vmatpush.bf16.msra.mxu0 %v1102
      %1145 = vmatpush.bf16.msra.mxu0 %v1101
      %1146 = vmatpush.bf16.msra.mxu0 %v1100
      %1147 = vmatpush.bf16.msra.mxu0 %v1099
      %1148 = vmatpush.bf16.msra.mxu0 %v1098
      %1149 = vmatpush.bf16.msra.mxu0 %v1097
      %1150 = vmatpush.bf16.msra.mxu0 %v1096
      %1151 = vmatmul.bf16.gmra.mxu0 %v358
      %v1152 = vpop.f32.mrf.mxu0
      %v1153 = vadd.f32 %v1134, %v1152
      %v1154 = vpop.f32.mrf.mxu0
      %v1155 = vadd.f32 %v1136, %v1154
      %1156 = vmatmul.bf16.gmra.mxu0 %v361
      %v1157 = vpop.f32.mrf.mxu0
      %v1158 = vadd.f32 %v1139, %v1157
      %v1159 = vpop.f32.mrf.mxu0
      %v1160 = vadd.f32 %v1141, %v1159
      %1161 = vdwg.mxu0
      %1162 = vmatpush.bf16.msra.mxu0 0
      %1163 = vmatpush.bf16.msra.mxu0 0
      %1164 = vmatpush.bf16.msra.mxu0 0
      %1165 = vmatpush.bf16.msra.mxu0 0
      %1166 = vmatpush.bf16.msra.mxu0 0
      %1167 = vmatpush.bf16.msra.mxu0 0
      %1168 = vmatpush.bf16.msra.mxu0 %v1105
      %1169 = vmatpush.bf16.msra.mxu0 %v1104
      %1170 = vmatmul.bf16.gmra.mxu0 %v477
      %v1171 = vpop.f32.mrf.mxu0
      %v1172 = vadd.f32 %v1153, %v1171
      %v1173 = vpop.f32.mrf.mxu0
      %v1174 = vadd.f32 %v1155, %v1173
      %1175 = vmatmul.bf16.gmra.mxu0 %v480
      %v1176 = vpop.f32.mrf.mxu0
      %v1177 = vadd.f32 %v1158, %v1176
      %v1178 = vpop.f32.mrf.mxu0
      %v1179 = vadd.f32 %v1160, %v1178
      %1180 = vdwg.mxu0
      %vm1181 = vcmp.ge.f32.partialorder %v1172, 0.0
      %vm1182 = vcmp.ge.f32.partialorder %v1174, 0.0
      %vm1183 = vcmp.ge.f32.partialorder %v1177, 0.0
      %vm1184 = vcmp.ge.f32.partialorder %v1179, 0.0
      %v1185 = vmul.f32 %v1172, 0.01
      %v1186 = vmul.f32 %v1174, 0.01
      %v1187 = vmul.f32 %v1177, 0.01
      %v1188 = vmul.f32 %v1179, 0.01
      %v1189 = vsel %vm1181, %v1172, %v1185
      %v1190 = vsel %vm1182, %v1174, %v1186
      %v1191 = vsel %vm1183, %v1177, %v1187
      %v1192 = vsel %vm1184, %v1179, %v1188
      %v1193 = vadd.s32 %v280, 1
      %v1194 = vadd.s32 %v280, 14
      %v1195 = vadd.s32 %v1194, 1
      %v1196 = vmax.f32 %v547, %v761
      %v1197 = vmax.f32 %v548, %v762
      %v1198 = vmax.f32 %v549, %v763
      %v1199 = vmax.f32 %v550, %v764
      %vm1200 = vcmp.gt.f32.partialorder %v761, %v547
      %vm1201 = vcmp.gt.f32.partialorder %v762, %v548
      %vm1202 = vcmp.gt.f32.partialorder %v763, %v549
      %vm1203 = vcmp.gt.f32.partialorder %v764, %v550
      %v1204 = vperm.slane %v1193, 0
      %v1205 = vperm.slane %v280, 0
      %v1206 = vsel %vm1200, %v1204, %v1205
      %v1207 = vsel %vm1201, %v1204, %v1205
      %v1208 = vsel %vm1202, %v1204, %v1205
      %v1209 = vsel %vm1203, %v1204, %v1205
      %v1210 = vmax.f32 %v975, %v1189
      %v1211 = vmax.f32 %v976, %v1190
      %v1212 = vmax.f32 %v977, %v1191
      %v1213 = vmax.f32 %v978, %v1192
      %vm1214 = vcmp.gt.f32.partialorder %v1189, %v975
      %vm1215 = vcmp.gt.f32.partialorder %v1190, %v976
      %vm1216 = vcmp.gt.f32.partialorder %v1191, %v977
      %vm1217 = vcmp.gt.f32.partialorder %v1192, %v978
      %v1218 = vperm.slane %v1195, 0
      %v1219 = vperm.slane %v1194, 0
      %v1220 = vsel %vm1214, %v1218, %v1219
      %v1221 = vsel %vm1215, %v1218, %v1219
      %v1222 = vsel %vm1216, %v1218, %v1219
      %v1223 = vsel %vm1217, %v1218, %v1219
      %v1224 = vmax.f32 %v1196, %v1210
      %v1225 = vmax.f32 %v1197, %v1211
      %v1226 = vmax.f32 %v1198, %v1212
      %v1227 = vmax.f32 %v1199, %v1213
      %vm1228 = vcmask 801792
      %1229 = vst.msk [vmem:[%s259] sm:$0xff] %vm1228, %v1224
      %1230 = vst.msk [vmem:[%s259 + $0x8] sm:$0xff] %vm1228, %v1225
      %1231 = vst.msk [vmem:[%s259 + $0x10] sm:$0xff] %vm1228, %v1226
      %1232 = vst.msk [vmem:[%s259 + $0x18] sm:$0xff] %vm1228, %v1227
      %vm1233 = vcmp.gt.f32.partialorder %v1210, %v1196
      %vm1234 = vcmp.gt.f32.partialorder %v1211, %v1197
      %vm1235 = vcmp.gt.f32.partialorder %v1212, %v1198
      %vm1236 = vcmp.gt.f32.partialorder %v1213, %v1199
      %v1237 = vsel %vm1233, %v1220, %v1206
      %v1238 = vsel %vm1234, %v1221, %v1207
      %v1239 = vsel %vm1235, %v1222, %v1208
      %v1240 = vsel %vm1236, %v1223, %v1209
      %1241 = vst.msk [vmem:[%s265] sm:$0xff] %vm1228, %v1237
      %1242 = vst.msk [vmem:[%s265 + $0x8] sm:$0xff] %vm1228, %v1238
      %1243 = vst.msk [vmem:[%s265 + $0x10] sm:$0xff] %vm1228, %v1239
      %1244 = vst.msk [vmem:[%s265 + $0x18] sm:$0xff] %vm1228, %v1240
      %s1245 = smul.u32 4, %s17
      %p1246 = scmp.lt.s32.totalorder %s1245, 7
      %s1247 = scalar_select %p1246, %s1245, 7
      %s1248 = smul.addr %s1247, 8
      %s1249 = scalar_lea.vmem %s4, %s1248
      %s1250 = smul.u32 4, %s17
      %p1251 = scmp.lt.s32.totalorder %s1250, 7
      %s1252 = scalar_select %p1251, %s1250, 7
      %s1253 = smul.addr %s1252, 8
      %s1254 = scalar_lea.vmem %s5, %s1253
      // Predicated region
      $region37: #{encoder_forward.6} parent=35 // pred_check
        %p1255 = pneg %p129
      $region38: #{encoder_forward.6} parent=35 // pred_check_branch
        %1257 = sbr.rel (%p1255) target = $region40
      $region39: #{encoder_forward.6} parent=35 // pred_region
        %s1258 = smul.u32 4, %s17
      $region40: #{encoder_forward.6} parent=35 // pred_fallthru
        _
      // Predicated region
      $region41: #{encoder_forward.6} parent=35 // pred_check
        %p1259 = pneg %p155
      $region42: #{encoder_forward.6} parent=35 // pred_check_branch
        %1261 = sbr.rel (%p1259) target = $region44
      $region43: #{encoder_forward.6} parent=35 // pred_region
        %s1262 = smul.u32 4, %s17
      $region44: #{encoder_forward.6} parent=35 // pred_fallthru
        _
    $region36: #{encoder_forward.6} parent=5 // pred_fallthru
      _
    %p1263 = scmp.le.s32.totalorder 2, %s12
    // Predicated region
    $region45: #{encoder_forward.6} parent=5 // pred_check
      %p1264 = pneg %p1263
    $region46: #{encoder_forward.6} parent=5 // pred_check_branch
      %1266 = sbr.rel (%p1264) target = $region48
    $region47: #{encoder_forward.6} parent=5 // pred_region
      %s1267 = ssub.s32 %s12, 2
      // Predicated region
      $region49: #{encoder_forward.6} parent=47 // pred_check
        %p1268 = pneg %p135
      $region50: #{encoder_forward.6} parent=47 // pred_check_branch
        %1270 = sbr.rel (%p1268) target = $region52
      $region51: #{encoder_forward.6} parent=47 // pred_region
        %s1271 = smul.u32 4, %s18
        %p1272 = scmp.lt.s32.totalorder %s1271, 7
        %s1273 = scalar_select %p1272, %s1271, 7
        %s1274 = smul.addr %s1273, 8
        %s1275 = scalar_lea.vmem %s4, %s1274
      $region52: #{encoder_forward.6} parent=47 // pred_fallthru
        _
      // Predicated region
      $region53: #{encoder_forward.6} parent=47 // pred_check
        %p1276 = pneg %p161
      $region54: #{encoder_forward.6} parent=47 // pred_check_branch
        %1278 = sbr.rel (%p1276) target = $region56
      $region55: #{encoder_forward.6} parent=47 // pred_region
        %s1279 = smul.u32 4, %s18
        %p1280 = scmp.lt.s32.totalorder %s1279, 7
        %s1281 = scalar_select %p1280, %s1279, 7
        %s1282 = smul.addr %s1281, 8
        %s1283 = scalar_lea.vmem %s5, %s1282
      $region56: #{encoder_forward.6} parent=47 // pred_fallthru
        _
    $region48: #{encoder_forward.6} parent=5 // pred_fallthru
      _
  $region6: #{encoder_forward.6} parent=0 // loop_footer
    %s16 = sadd.s32 1, %s12
  $region7: #{encoder_forward.6} parent=0 // loop_footer_branch
    %11 = sbr.rel target = $region3
  $region8: #{encoder_forward.6} parent=0 // loop_exit
    _

// kernel: encoder_forward.7
$region0: #{encoder_forward.7}
  #allocation0 [shape = 'u32[]', space=smem, size = 0x4, offset = 0x4, fixed_abs, tag = 'smem constant byte address 0x4 - core index']
  #allocation1 [shape = 'u32[72,128]{1,0:T(1,128)}', space=vmem, size = 0x9000, scoped, tag = 'internal scratch']
  %s0 = inlined_call_operand.vmem [shape: bf16[2,3136], index: 0, kind: input, shape index: {}]
  %s1 = inlined_call_operand.vmem [shape: bf16[3136,48], index: 1, kind: input, shape index: {}]
  %s2 = inlined_call_operand.vmem [shape: f32[1,48], index: 2, kind: input, shape index: {}]
  %s3 = inlined_call_operand.vmem [shape: bf16[48,16], index: 3, kind: input, shape index: {}]
  %s4 = inlined_call_operand.vmem [shape: f32[1,16], index: 4, kind: input, shape index: {}]
  %s5 = inlined_call_operand.hbm [shape: f32[2,16], index: 5, kind: output, shape index: {}]
  %s6 = sld [smem:[#allocation0]]
  $region30: #{encoder_forward.7} parent=0
    _
  %s8 = ssub.s32 1, %s6
  %s9 = scalar_select 0, %s8, %s6
  $region1: #{encoder_forward.7} parent=0
    #allocation2 [shape = 'u8[1024]{0}', space=vmem, size = 0x400, scoped, tag = 'output window, operand 0, single buffered']
    #allocation3 [shape = 's32[1]{0}', space=sflag, size = 0x4, scoped, tag = 'scoped memory for encoder_forward.7']
    %10 = vsyncpa [#allocation3], 0
    // Predicated region
    $region2: #{encoder_forward.7} parent=1 // pred_check
      _
    $region3: #{encoder_forward.7} parent=1 // pred_check_branch
      %12 = sbr.rel (0) target = $region5
    $region4: #{encoder_forward.7} parent=1 // pred_region
      _
    $region5: #{encoder_forward.7} parent=1 // pred_fallthru
      _
    // Predicated region
    $region6: #{encoder_forward.7} parent=1 // pred_check
      _
    $region7: #{encoder_forward.7} parent=1 // pred_check_branch
      %14 = sbr.rel (0) target = $region9
    $region8: #{encoder_forward.7} parent=1 // pred_region
      _
    $region9: #{encoder_forward.7} parent=1 // pred_fallthru
      _
    // Predicated region
    $region10: #{encoder_forward.7} parent=1 // pred_check
      _
    $region11: #{encoder_forward.7} parent=1 // pred_check_branch
      %16 = sbr.rel (0) target = $region13
    $region12: #{encoder_forward.7} parent=1 // pred_region
      _
    $region13: #{encoder_forward.7} parent=1 // pred_fallthru
      _
    // Predicated region
    $region14: #{encoder_forward.7} parent=1 // pred_check
      _
    $region15: #{encoder_forward.7} parent=1 // pred_check_branch
      %18 = sbr.rel (0) target = $region17
    $region16: #{encoder_forward.7} parent=1 // pred_region
      _
    $region17: #{encoder_forward.7} parent=1 // pred_fallthru
      _
    // Predicated region
    $region18: #{encoder_forward.7} parent=1 // pred_check
      _
    $region19: #{encoder_forward.7} parent=1 // pred_check_branch
      %20 = sbr.rel (0) target = $region21
    $region20: #{encoder_forward.7} parent=1 // pred_region
      _
    $region21: #{encoder_forward.7} parent=1 // pred_fallthru
      _
    %v22 = vld [vmem:[%s0] sm:$0xff]
    %v23 = vld [vmem:[%s0 + $0x8] sm:$0xff]
    %v24 = vld [vmem:[%s0 + $0x10] sm:$0xff]
    %v25 = vld [vmem:[%s0 + $0x18] sm:$0x1]
    %v26 = vld [vmem:[%s1] sm:$0xf]
    %v27 = vld [vmem:[%s1 + $0x4] sm:$0xf]
    %v28 = vld [vmem:[%s1 + $0x8] sm:$0xf]
    %v29 = vld [vmem:[%s1 + $0xc] sm:$0xf]
    %v30 = vld [vmem:[%s1 + $0x10] sm:$0xf]
    %v31 = vld [vmem:[%s1 + $0x14] sm:$0xf]
    %v32 = vld [vmem:[%s1 + $0x18] sm:$0xf]
    %v33 = vld [vmem:[%s1 + $0x1c] sm:$0xf]
    %v34 = vld [vmem:[%s1 + $0x20] sm:$0xf]
    %v35 = vld [vmem:[%s1 + $0x24] sm:$0xf]
    %v36 = vld [vmem:[%s1 + $0x28] sm:$0xf]
    %v37 = vld [vmem:[%s1 + $0x2c] sm:$0xf]
    %v38 = vld [vmem:[%s1 + $0x30] sm:$0xf]
    %v39 = vld [vmem:[%s1 + $0x34] sm:$0xf]
    %v40 = vld [vmem:[%s1 + $0x38] sm:$0xf]
    %v41 = vld [vmem:[%s1 + $0x3c] sm:$0xf]
    %v42 = vld [vmem:[%s1 + $0x40] sm:$0xf]
    %v43 = vld [vmem:[%s1 + $0x44] sm:$0xf]
    %v44 = vld [vmem:[%s1 + $0x48] sm:$0xf]
    %v45 = vld [vmem:[%s1 + $0x4c] sm:$0xf]
    %v46 = vld [vmem:[%s1 + $0x50] sm:$0xf]
    %v47 = vld [vmem:[%s1 + $0x54] sm:$0xf]
    %v48 = vld [vmem:[%s1 + $0x58] sm:$0xf]
    %v49 = vld [vmem:[%s1 + $0x5c] sm:$0xf]
    %v50 = vld [vmem:[%s1 + $0x60] sm:$0xf]
    %v51 = vld [vmem:[%s1 + $0x64] sm:$0xf]
    %v52 = vld [vmem:[%s1 + $0x68] sm:$0xf]
    %v53 = vld [vmem:[%s1 + $0x6c] sm:$0xf]
    %v54 = vld [vmem:[%s1 + $0x70] sm:$0xf]
    %v55 = vld [vmem:[%s1 + $0x74] sm:$0xf]
    %v56 = vld [vmem:[%s1 + $0x78] sm:$0xf]
    %v57 = vld [vmem:[%s1 + $0x7c] sm:$0xf]
    %v58 = vld [vmem:[%s1 + $0x80] sm:$0xf]
    %v59 = vld [vmem:[%s1 + $0x84] sm:$0xf]
    %v60 = vld [vmem:[%s1 + $0x88] sm:$0xf]
    %v61 = vld [vmem:[%s1 + $0x8c] sm:$0xf]
    %v62 = vld [vmem:[%s1 + $0x90] sm:$0xf]
    %v63 = vld [vmem:[%s1 + $0x94] sm:$0xf]
    %v64 = vld [vmem:[%s1 + $0x98] sm:$0xf]
    %v65 = vld [vmem:[%s1 + $0x9c] sm:$0xf]
    %v66 = vld [vmem:[%s1 + $0xa0] sm:$0xf]
    %v67 = vld [vmem:[%s1 + $0xa4] sm:$0xf]
    %v68 = vld [vmem:[%s1 + $0xa8] sm:$0xf]
    %v69 = vld [vmem:[%s1 + $0xac] sm:$0xf]
    %v70 = vld [vmem:[%s1 + $0xb0] sm:$0xf]
    %v71 = vld [vmem:[%s1 + $0xb4] sm:$0xf]
    %v72 = vld [vmem:[%s1 + $0xb8] sm:$0xf]
    %v73 = vld [vmem:[%s1 + $0xbc] sm:$0xf]
    %v74 = vld [vmem:[%s1 + $0xc0] sm:$0xf]
    %v75 = vld [vmem:[%s1 + $0xc4] sm:$0xf]
    %v76 = vld [vmem:[%s1 + $0xc8] sm:$0xf]
    %v77 = vld [vmem:[%s1 + $0xcc] sm:$0xf]
    %v78 = vld [vmem:[%s1 + $0xd0] sm:$0xf]
    %v79 = vld [vmem:[%s1 + $0xd4] sm:$0xf]
    %v80 = vld [vmem:[%s1 + $0xd8] sm:$0xf]
    %v81 = vld [vmem:[%s1 + $0xdc] sm:$0xf]
    %v82 = vld [vmem:[%s1 + $0xe0] sm:$0xf]
    %v83 = vld [vmem:[%s1 + $0xe4] sm:$0xf]
    %v84 = vld [vmem:[%s1 + $0xe8] sm:$0xf]
    %v85 = vld [vmem:[%s1 + $0xec] sm:$0xf]
    %v86 = vld [vmem:[%s1 + $0xf0] sm:$0xf]
    %v87 = vld [vmem:[%s1 + $0xf4] sm:$0xf]
    %v88 = vld [vmem:[%s1 + $0xf8] sm:$0xf]
    %v89 = vld [vmem:[%s1 + $0xfc] sm:$0xf]
    %v90 = vld [vmem:[%s1 + $0x100] sm:$0xf]
    %v91 = vld [vmem:[%s1 + $0x104] sm:$0xf]
    %v92 = vld [vmem:[%s1 + $0x108] sm:$0xf]
    %v93 = vld [vmem:[%s1 + $0x10c] sm:$0xf]
    %v94 = vld [vmem:[%s1 + $0x110] sm:$0xf]
    %v95 = vld [vmem:[%s1 + $0x114] sm:$0xf]
    %v96 = vld [vmem:[%s1 + $0x118] sm:$0xf]
    %v97 = vld [vmem:[%s1 + $0x11c] sm:$0xf]
    %v98 = vld [vmem:[%s1 + $0x120] sm:$0xf]
    %v99 = vld [vmem:[%s1 + $0x124] sm:$0xf]
    %v100 = vld [vmem:[%s1 + $0x128] sm:$0xf]
    %v101 = vld [vmem:[%s1 + $0x12c] sm:$0xf]
    %v102 = vld [vmem:[%s1 + $0x130] sm:$0xf]
    %v103 = vld [vmem:[%s1 + $0x134] sm:$0xf]
    %v104 = vld [vmem:[%s1 + $0x138] sm:$0xf]
    %v105 = vld [vmem:[%s1 + $0x13c] sm:$0xf]
    %v106 = vld [vmem:[%s1 + $0x140] sm:$0xf]
    %v107 = vld [vmem:[%s1 + $0x144] sm:$0xf]
    %v108 = vld [vmem:[%s1 + $0x148] sm:$0xf]
    %v109 = vld [vmem:[%s1 + $0x14c] sm:$0xf]
    %v110 = vld [vmem:[%s1 + $0x150] sm:$0xf]
    %v111 = vld [vmem:[%s1 + $0x154] sm:$0xf]
    %v112 = vld [vmem:[%s1 + $0x158] sm:$0xf]
    %v113 = vld [vmem:[%s1 + $0x15c] sm:$0xf]
    %v114 = vld [vmem:[%s1 + $0x160] sm:$0xf]
    %v115 = vld [vmem:[%s1 + $0x164] sm:$0xf]
    %v116 = vld [vmem:[%s1 + $0x168] sm:$0xf]
    %v117 = vld [vmem:[%s1 + $0x16c] sm:$0xf]
    %v118 = vld [vmem:[%s1 + $0x170] sm:$0xf]
    %v119 = vld [vmem:[%s1 + $0x174] sm:$0xf]
    %v120 = vld [vmem:[%s1 + $0x178] sm:$0xf]
    %v121 = vld [vmem:[%s1 + $0x17c] sm:$0xf]
    %v122 = vld [vmem:[%s1 + $0x180] sm:$0xf]
    %v123 = vld [vmem:[%s1 + $0x184] sm:$0xf]
    %v124 = vld [vmem:[%s1 + $0x188] sm:$0xf]
    %v125 = vld [vmem:[%s1 + $0x18c] sm:$0xf]
    %v126 = vld [vmem:[%s1 + $0x190] sm:$0xf]
    %v127 = vld [vmem:[%s1 + $0x194] sm:$0xf]
    %v128 = vld [vmem:[%s1 + $0x198] sm:$0xf]
    %v129 = vld [vmem:[%s1 + $0x19c] sm:$0xf]
    %v130 = vld [vmem:[%s1 + $0x1a0] sm:$0xf]
    %v131 = vld [vmem:[%s1 + $0x1a4] sm:$0xf]
    %v132 = vld [vmem:[%s1 + $0x1a8] sm:$0xf]
    %v133 = vld [vmem:[%s1 + $0x1ac] sm:$0xf]
    %v134 = vld [vmem:[%s1 + $0x1b0] sm:$0xf]
    %v135 = vld [vmem:[%s1 + $0x1b4] sm:$0xf]
    %v136 = vld [vmem:[%s1 + $0x1b8] sm:$0xf]
    %v137 = vld [vmem:[%s1 + $0x1bc] sm:$0xf]
    %v138 = vld [vmem:[%s1 + $0x1c0] sm:$0xf]
    %v139 = vld [vmem:[%s1 + $0x1c4] sm:$0xf]
    %v140 = vld [vmem:[%s1 + $0x1c8] sm:$0xf]
    %v141 = vld [vmem:[%s1 + $0x1cc] sm:$0xf]
    %v142 = vld [vmem:[%s1 + $0x1d0] sm:$0xf]
    %v143 = vld [vmem:[%s1 + $0x1d4] sm:$0xf]
    %v144 = vld [vmem:[%s1 + $0x1d8] sm:$0xf]
    %v145 = vld [vmem:[%s1 + $0x1dc] sm:$0xf]
    %v146 = vld [vmem:[%s1 + $0x1e0] sm:$0xf]
    %v147 = vld [vmem:[%s1 + $0x1e4] sm:$0xf]
    %v148 = vld [vmem:[%s1 + $0x1e8] sm:$0xf]
    %v149 = vld [vmem:[%s1 + $0x1ec] sm:$0xf]
    %v150 = vld [vmem:[%s1 + $0x1f0] sm:$0xf]
    %v151 = vld [vmem:[%s1 + $0x1f4] sm:$0xf]
    %v152 = vld [vmem:[%s1 + $0x1f8] sm:$0xf]
    %v153 = vld [vmem:[%s1 + $0x1fc] sm:$0xf]
    %v154 = vld [vmem:[%s1 + $0x200] sm:$0xf]
    %v155 = vld [vmem:[%s1 + $0x204] sm:$0xf]
    %v156 = vld [vmem:[%s1 + $0x208] sm:$0xf]
    %v157 = vld [vmem:[%s1 + $0x20c] sm:$0xf]
    %v158 = vld [vmem:[%s1 + $0x210] sm:$0xf]
    %v159 = vld [vmem:[%s1 + $0x214] sm:$0xf]
    %v160 = vld [vmem:[%s1 + $0x218] sm:$0xf]
    %v161 = vld [vmem:[%s1 + $0x21c] sm:$0xf]
    %v162 = vld [vmem:[%s1 + $0x220] sm:$0xf]
    %v163 = vld [vmem:[%s1 + $0x224] sm:$0xf]
    %v164 = vld [vmem:[%s1 + $0x228] sm:$0xf]
    %v165 = vld [vmem:[%s1 + $0x22c] sm:$0xf]
    %v166 = vld [vmem:[%s1 + $0x230] sm:$0xf]
    %v167 = vld [vmem:[%s1 + $0x234] sm:$0xf]
    %v168 = vld [vmem:[%s1 + $0x238] sm:$0xf]
    %v169 = vld [vmem:[%s1 + $0x23c] sm:$0xf]
    %v170 = vld [vmem:[%s1 + $0x240] sm:$0xf]
    %v171 = vld [vmem:[%s1 + $0x244] sm:$0xf]
    %v172 = vld [vmem:[%s1 + $0x248] sm:$0xf]
    %v173 = vld [vmem:[%s1 + $0x24c] sm:$0xf]
    %v174 = vld [vmem:[%s1 + $0x250] sm:$0xf]
    %v175 = vld [vmem:[%s1 + $0x254] sm:$0xf]
    %v176 = vld [vmem:[%s1 + $0x258] sm:$0xf]
    %v177 = vld [vmem:[%s1 + $0x25c] sm:$0xf]
    %v178 = vld [vmem:[%s1 + $0x260] sm:$0xf]
    %v179 = vld [vmem:[%s1 + $0x264] sm:$0xf]
    %v180 = vld [vmem:[%s1 + $0x268] sm:$0xf]
    %v181 = vld [vmem:[%s1 + $0x26c] sm:$0xf]
    %v182 = vld [vmem:[%s1 + $0x270] sm:$0xf]
    %v183 = vld [vmem:[%s1 + $0x274] sm:$0xf]
    %v184 = vld [vmem:[%s1 + $0x278] sm:$0xf]
    %v185 = vld [vmem:[%s1 + $0x27c] sm:$0xf]
    %v186 = vld [vmem:[%s1 + $0x280] sm:$0xf]
    %v187 = vld [vmem:[%s1 + $0x284] sm:$0xf]
    %v188 = vld [vmem:[%s1 + $0x288] sm:$0xf]
    %v189 = vld [vmem:[%s1 + $0x28c] sm:$0xf]
    %v190 = vld [vmem:[%s1 + $0x290] sm:$0xf]
    %v191 = vld [vmem:[%s1 + $0x294] sm:$0xf]
    %v192 = vld [vmem:[%s1 + $0x298] sm:$0xf]
    %v193 = vld [vmem:[%s1 + $0x29c] sm:$0xf]
    %v194 = vld [vmem:[%s1 + $0x2a0] sm:$0xf]
    %v195 = vld [vmem:[%s1 + $0x2a4] sm:$0xf]
    %v196 = vld [vmem:[%s1 + $0x2a8] sm:$0xf]
    %v197 = vld [vmem:[%s1 + $0x2ac] sm:$0xf]
    %v198 = vld [vmem:[%s1 + $0x2b0] sm:$0xf]
    %v199 = vld [vmem:[%s1 + $0x2b4] sm:$0xf]
    %v200 = vld [vmem:[%s1 + $0x2b8] sm:$0xf]
    %v201 = vld [vmem:[%s1 + $0x2bc] sm:$0xf]
    %v202 = vld [vmem:[%s1 + $0x2c0] sm:$0xf]
    %v203 = vld [vmem:[%s1 + $0x2c4] sm:$0xf]
    %v204 = vld [vmem:[%s1 + $0x2c8] sm:$0xf]
    %v205 = vld [vmem:[%s1 + $0x2cc] sm:$0xf]
    %v206 = vld [vmem:[%s1 + $0x2d0] sm:$0xf]
    %v207 = vld [vmem:[%s1 + $0x2d4] sm:$0xf]
    %v208 = vld [vmem:[%s1 + $0x2d8] sm:$0xf]
    %v209 = vld [vmem:[%s1 + $0x2dc] sm:$0xf]
    %v210 = vld [vmem:[%s1 + $0x2e0] sm:$0xf]
    %v211 = vld [vmem:[%s1 + $0x2e4] sm:$0xf]
    %v212 = vld [vmem:[%s1 + $0x2e8] sm:$0xf]
    %v213 = vld [vmem:[%s1 + $0x2ec] sm:$0xf]
    %v214 = vld [vmem:[%s1 + $0x2f0] sm:$0xf]
    %v215 = vld [vmem:[%s1 + $0x2f4] sm:$0xf]
    %v216 = vld [vmem:[%s1 + $0x2f8] sm:$0xf]
    %v217 = vld [vmem:[%s1 + $0x2fc] sm:$0xf]
    %v218 = vld [vmem:[%s1 + $0x300] sm:$0xf]
    %v219 = vld [vmem:[%s1 + $0x304] sm:$0xf]
    %v220 = vld [vmem:[%s1 + $0x308] sm:$0xf]
    %v221 = vld [vmem:[%s1 + $0x30c] sm:$0xf]
    %v222 = vld [vmem:[%s1 + $0x310] sm:$0xf]
    %v223 = vld [vmem:[%s1 + $0x314] sm:$0xf]
    %v224 = vld [vmem:[%s1 + $0x318] sm:$0xf]
    %v225 = vld [vmem:[%s1 + $0x31c] sm:$0xf]
    %v226 = vld [vmem:[%s1 + $0x320] sm:$0xf]
    %v227 = vld [vmem:[%s1 + $0x324] sm:$0xf]
    %v228 = vld [vmem:[%s1 + $0x328] sm:$0xf]
    %v229 = vld [vmem:[%s1 + $0x32c] sm:$0xf]
    %v230 = vld [vmem:[%s1 + $0x330] sm:$0xf]
    %v231 = vld [vmem:[%s1 + $0x334] sm:$0xf]
    %v232 = vld [vmem:[%s1 + $0x338] sm:$0xf]
    %v233 = vld [vmem:[%s1 + $0x33c] sm:$0xf]
    %v234 = vld [vmem:[%s1 + $0x340] sm:$0xf]
    %v235 = vld [vmem:[%s1 + $0x344] sm:$0xf]
    %v236 = vld [vmem:[%s1 + $0x348] sm:$0xf]
    %v237 = vld [vmem:[%s1 + $0x34c] sm:$0xf]
    %v238 = vld [vmem:[%s1 + $0x350] sm:$0xf]
    %v239 = vld [vmem:[%s1 + $0x354] sm:$0xf]
    %v240 = vld [vmem:[%s1 + $0x358] sm:$0xf]
    %v241 = vld [vmem:[%s1 + $0x35c] sm:$0xf]
    %v242 = vld [vmem:[%s1 + $0x360] sm:$0xf]
    %v243 = vld [vmem:[%s1 + $0x364] sm:$0xf]
    %v244 = vld [vmem:[%s1 + $0x368] sm:$0xf]
    %v245 = vld [vmem:[%s1 + $0x36c] sm:$0xf]
    %v246 = vld [vmem:[%s1 + $0x370] sm:$0xf]
    %v247 = vld [vmem:[%s1 + $0x374] sm:$0xf]
    %v248 = vld [vmem:[%s1 + $0x378] sm:$0xf]
    %v249 = vld [vmem:[%s1 + $0x37c] sm:$0xf]
    %v250 = vld [vmem:[%s1 + $0x380] sm:$0xf]
    %v251 = vld [vmem:[%s1 + $0x384] sm:$0xf]
    %v252 = vld [vmem:[%s1 + $0x388] sm:$0xf]
    %v253 = vld [vmem:[%s1 + $0x38c] sm:$0xf]
    %v254 = vld [vmem:[%s1 + $0x390] sm:$0xf]
    %v255 = vld [vmem:[%s1 + $0x394] sm:$0xf]
    %v256 = vld [vmem:[%s1 + $0x398] sm:$0xf]
    %v257 = vld [vmem:[%s1 + $0x39c] sm:$0xf]
    %v258 = vld [vmem:[%s1 + $0x3a0] sm:$0xf]
    %v259 = vld [vmem:[%s1 + $0x3a4] sm:$0xf]
    %v260 = vld [vmem:[%s1 + $0x3a8] sm:$0xf]
    %v261 = vld [vmem:[%s1 + $0x3ac] sm:$0xf]
    %v262 = vld [vmem:[%s1 + $0x3b0] sm:$0xf]
    %v263 = vld [vmem:[%s1 + $0x3b4] sm:$0xf]
    %v264 = vld [vmem:[%s1 + $0x3b8] sm:$0xf]
    %v265 = vld [vmem:[%s1 + $0x3bc] sm:$0xf]
    %v266 = vld [vmem:[%s1 + $0x3c0] sm:$0xf]
    %v267 = vld [vmem:[%s1 + $0x3c4] sm:$0xf]
    %v268 = vld [vmem:[%s1 + $0x3c8] sm:$0xf]
    %v269 = vld [vmem:[%s1 + $0x3cc] sm:$0xf]
    %v270 = vld [vmem:[%s1 + $0x3d0] sm:$0xf]
    %v271 = vld [vmem:[%s1 + $0x3d4] sm:$0xf]
    %v272 = vld [vmem:[%s1 + $0x3d8] sm:$0xf]
    %v273 = vld [vmem:[%s1 + $0x3dc] sm:$0xf]
    %v274 = vld [vmem:[%s1 + $0x3e0] sm:$0xf]
    %v275 = vld [vmem:[%s1 + $0x3e4] sm:$0xf]
    %v276 = vld [vmem:[%s1 + $0x3e8] sm:$0xf]
    %v277 = vld [vmem:[%s1 + $0x3ec] sm:$0xf]
    %v278 = vld [vmem:[%s1 + $0x3f0] sm:$0xf]
    %v279 = vld [vmem:[%s1 + $0x3f4] sm:$0xf]
    %v280 = vld [vmem:[%s1 + $0x3f8] sm:$0xf]
    %v281 = vld [vmem:[%s1 + $0x3fc] sm:$0xf]
    %v282 = vld [vmem:[%s1 + $0x400] sm:$0xf]
    %v283 = vld [vmem:[%s1 + $0x404] sm:$0xf]
    %v284 = vld [vmem:[%s1 + $0x408] sm:$0xf]
    %v285 = vld [vmem:[%s1 + $0x40c] sm:$0xf]
    %v286 = vld [vmem:[%s1 + $0x410] sm:$0xf]
    %v287 = vld [vmem:[%s1 + $0x414] sm:$0xf]
    %v288 = vld [vmem:[%s1 + $0x418] sm:$0xf]
    %v289 = vld [vmem:[%s1 + $0x41c] sm:$0xf]
    %v290 = vld [vmem:[%s1 + $0x420] sm:$0xf]
    %v291 = vld [vmem:[%s1 + $0x424] sm:$0xf]
    %v292 = vld [vmem:[%s1 + $0x428] sm:$0xf]
    %v293 = vld [vmem:[%s1 + $0x42c] sm:$0xf]
    %v294 = vld [vmem:[%s1 + $0x430] sm:$0xf]
    %v295 = vld [vmem:[%s1 + $0x434] sm:$0xf]
    %v296 = vld [vmem:[%s1 + $0x438] sm:$0xf]
    %v297 = vld [vmem:[%s1 + $0x43c] sm:$0xf]
    %v298 = vld [vmem:[%s1 + $0x440] sm:$0xf]
    %v299 = vld [vmem:[%s1 + $0x444] sm:$0xf]
    %v300 = vld [vmem:[%s1 + $0x448] sm:$0xf]
    %v301 = vld [vmem:[%s1 + $0x44c] sm:$0xf]
    %v302 = vld [vmem:[%s1 + $0x450] sm:$0xf]
    %v303 = vld [vmem:[%s1 + $0x454] sm:$0xf]
    %v304 = vld [vmem:[%s1 + $0x458] sm:$0xf]
    %v305 = vld [vmem:[%s1 + $0x45c] sm:$0xf]
    %v306 = vld [vmem:[%s1 + $0x460] sm:$0xf]
    %v307 = vld [vmem:[%s1 + $0x464] sm:$0xf]
    %v308 = vld [vmem:[%s1 + $0x468] sm:$0xf]
    %v309 = vld [vmem:[%s1 + $0x46c] sm:$0xf]
    %v310 = vld [vmem:[%s1 + $0x470] sm:$0xf]
    %v311 = vld [vmem:[%s1 + $0x474] sm:$0xf]
    %v312 = vld [vmem:[%s1 + $0x478] sm:$0xf]
    %v313 = vld [vmem:[%s1 + $0x47c] sm:$0xf]
    %v314 = vld [vmem:[%s1 + $0x480] sm:$0xf]
    %v315 = vld [vmem:[%s1 + $0x484] sm:$0xf]
    %v316 = vld [vmem:[%s1 + $0x488] sm:$0xf]
    %v317 = vld [vmem:[%s1 + $0x48c] sm:$0xf]
    %v318 = vld [vmem:[%s1 + $0x490] sm:$0xf]
    %v319 = vld [vmem:[%s1 + $0x494] sm:$0xf]
    %v320 = vld [vmem:[%s1 + $0x498] sm:$0xf]
    %v321 = vld [vmem:[%s1 + $0x49c] sm:$0xf]
    %v322 = vld [vmem:[%s1 + $0x4a0] sm:$0xf]
    %v323 = vld [vmem:[%s1 + $0x4a4] sm:$0xf]
    %v324 = vld [vmem:[%s1 + $0x4a8] sm:$0xf]
    %v325 = vld [vmem:[%s1 + $0x4ac] sm:$0xf]
    %v326 = vld [vmem:[%s1 + $0x4b0] sm:$0xf]
    %v327 = vld [vmem:[%s1 + $0x4b4] sm:$0xf]
    %v328 = vld [vmem:[%s1 + $0x4b8] sm:$0xf]
    %v329 = vld [vmem:[%s1 + $0x4bc] sm:$0xf]
    %v330 = vld [vmem:[%s1 + $0x4c0] sm:$0xf]
    %v331 = vld [vmem:[%s1 + $0x4c4] sm:$0xf]
    %v332 = vld [vmem:[%s1 + $0x4c8] sm:$0xf]
    %v333 = vld [vmem:[%s1 + $0x4cc] sm:$0xf]
    %v334 = vld [vmem:[%s1 + $0x4d0] sm:$0xf]
    %v335 = vld [vmem:[%s1 + $0x4d4] sm:$0xf]
    %v336 = vld [vmem:[%s1 + $0x4d8] sm:$0xf]
    %v337 = vld [vmem:[%s1 + $0x4dc] sm:$0xf]
    %v338 = vld [vmem:[%s1 + $0x4e0] sm:$0xf]
    %v339 = vld [vmem:[%s1 + $0x4e4] sm:$0xf]
    %v340 = vld [vmem:[%s1 + $0x4e8] sm:$0xf]
    %v341 = vld [vmem:[%s1 + $0x4ec] sm:$0xf]
    %v342 = vld [vmem:[%s1 + $0x4f0] sm:$0xf]
    %v343 = vld [vmem:[%s1 + $0x4f4] sm:$0xf]
    %v344 = vld [vmem:[%s1 + $0x4f8] sm:$0xf]
    %v345 = vld [vmem:[%s1 + $0x4fc] sm:$0xf]
    %v346 = vld [vmem:[%s1 + $0x500] sm:$0xf]
    %v347 = vld [vmem:[%s1 + $0x504] sm:$0xf]
    %v348 = vld [vmem:[%s1 + $0x508] sm:$0xf]
    %v349 = vld [vmem:[%s1 + $0x50c] sm:$0xf]
    %v350 = vld [vmem:[%s1 + $0x510] sm:$0xf]
    %v351 = vld [vmem:[%s1 + $0x514] sm:$0xf]
    %v352 = vld [vmem:[%s1 + $0x518] sm:$0xf]
    %v353 = vld [vmem:[%s1 + $0x51c] sm:$0xf]
    %v354 = vld [vmem:[%s1 + $0x520] sm:$0xf]
    %v355 = vld [vmem:[%s1 + $0x524] sm:$0xf]
    %v356 = vld [vmem:[%s1 + $0x528] sm:$0xf]
    %v357 = vld [vmem:[%s1 + $0x52c] sm:$0xf]
    %v358 = vld [vmem:[%s1 + $0x530] sm:$0xf]
    %v359 = vld [vmem:[%s1 + $0x534] sm:$0xf]
    %v360 = vld [vmem:[%s1 + $0x538] sm:$0xf]
    %v361 = vld [vmem:[%s1 + $0x53c] sm:$0xf]
    %v362 = vld [vmem:[%s1 + $0x540] sm:$0xf]
    %v363 = vld [vmem:[%s1 + $0x544] sm:$0xf]
    %v364 = vld [vmem:[%s1 + $0x548] sm:$0xf]
    %v365 = vld [vmem:[%s1 + $0x54c] sm:$0xf]
    %v366 = vld [vmem:[%s1 + $0x550] sm:$0xf]
    %v367 = vld [vmem:[%s1 + $0x554] sm:$0xf]
    %v368 = vld [vmem:[%s1 + $0x558] sm:$0xf]
    %v369 = vld [vmem:[%s1 + $0x55c] sm:$0xf]
    %v370 = vld [vmem:[%s1 + $0x560] sm:$0xf]
    %v371 = vld [vmem:[%s1 + $0x564] sm:$0xf]
    %v372 = vld [vmem:[%s1 + $0x568] sm:$0xf]
    %v373 = vld [vmem:[%s1 + $0x56c] sm:$0xf]
    %v374 = vld [vmem:[%s1 + $0x570] sm:$0xf]
    %v375 = vld [vmem:[%s1 + $0x574] sm:$0xf]
    %v376 = vld [vmem:[%s1 + $0x578] sm:$0xf]
    %v377 = vld [vmem:[%s1 + $0x57c] sm:$0xf]
    %v378 = vld [vmem:[%s1 + $0x580] sm:$0xf]
    %v379 = vld [vmem:[%s1 + $0x584] sm:$0xf]
    %v380 = vld [vmem:[%s1 + $0x588] sm:$0xf]
    %v381 = vld [vmem:[%s1 + $0x58c] sm:$0xf]
    %v382 = vld [vmem:[%s1 + $0x590] sm:$0xf]
    %v383 = vld [vmem:[%s1 + $0x594] sm:$0xf]
    %v384 = vld [vmem:[%s1 + $0x598] sm:$0xf]
    %v385 = vld [vmem:[%s1 + $0x59c] sm:$0xf]
    %v386 = vld [vmem:[%s1 + $0x5a0] sm:$0xf]
    %v387 = vld [vmem:[%s1 + $0x5a4] sm:$0xf]
    %v388 = vld [vmem:[%s1 + $0x5a8] sm:$0xf]
    %v389 = vld [vmem:[%s1 + $0x5ac] sm:$0xf]
    %v390 = vld [vmem:[%s1 + $0x5b0] sm:$0xf]
    %v391 = vld [vmem:[%s1 + $0x5b4] sm:$0xf]
    %v392 = vld [vmem:[%s1 + $0x5b8] sm:$0xf]
    %v393 = vld [vmem:[%s1 + $0x5bc] sm:$0xf]
    %v394 = vld [vmem:[%s1 + $0x5c0] sm:$0xf]
    %v395 = vld [vmem:[%s1 + $0x5c4] sm:$0xf]
    %v396 = vld [vmem:[%s1 + $0x5c8] sm:$0xf]
    %v397 = vld [vmem:[%s1 + $0x5cc] sm:$0xf]
    %v398 = vld [vmem:[%s1 + $0x5d0] sm:$0xf]
    %v399 = vld [vmem:[%s1 + $0x5d4] sm:$0xf]
    %v400 = vld [vmem:[%s1 + $0x5d8] sm:$0xf]
    %v401 = vld [vmem:[%s1 + $0x5dc] sm:$0xf]
    %v402 = vld [vmem:[%s1 + $0x5e0] sm:$0xf]
    %v403 = vld [vmem:[%s1 + $0x5e4] sm:$0xf]
    %v404 = vld [vmem:[%s1 + $0x5e8] sm:$0xf]
    %v405 = vld [vmem:[%s1 + $0x5ec] sm:$0xf]
    %v406 = vld [vmem:[%s1 + $0x5f0] sm:$0xf]
    %v407 = vld [vmem:[%s1 + $0x5f4] sm:$0xf]
    %v408 = vld [vmem:[%s1 + $0x5f8] sm:$0xf]
    %v409 = vld [vmem:[%s1 + $0x5fc] sm:$0xf]
    %v410 = vld [vmem:[%s1 + $0x600] sm:$0xf]
    %v411 = vld [vmem:[%s1 + $0x604] sm:$0xf]
    %v412 = vld [vmem:[%s1 + $0x608] sm:$0xf]
    %v413 = vld [vmem:[%s1 + $0x60c] sm:$0xf]
    %v414 = vld [vmem:[%s1 + $0x610] sm:$0xf]
    %v415 = vld [vmem:[%s1 + $0x614] sm:$0xf]
    %v416 = vld [vmem:[%s1 + $0x618] sm:$0xf]
    %v417 = vld [vmem:[%s1 + $0x61c] sm:$0xf]
    %v418 = vld [vmem:[%s2] sm:$0x1]
    %v420 = vperm.slane %v418, 0
    %423 = vst [vmem:[#allocation1] ss:$9 sm:$0xff] %v22
    %v424 = vld [vmem:[#allocation1] sm:$0xff]
    %v425 = vld [vmem:[#allocation1 + $0x9] sm:$0xff]
    %v426 = vld [vmem:[#allocation1 + $0x12] sm:$0xff]
    %v427 = vld [vmem:[#allocation1 + $0x1b] sm:$0xff]
    %v428 = vld [vmem:[#allocation1 + $0x24] sm:$0xff]
    %v429 = vld [vmem:[#allocation1 + $0x2d] sm:$0xff]
    %v430 = vld [vmem:[#allocation1 + $0x36] sm:$0xff]
    %v431 = vld [vmem:[#allocation1 + $0x3f] sm:$0xff]
    %433 = vst [vmem:[#allocation1] ss:$9 sm:$0xff] %v23
    %v434 = vld [vmem:[#allocation1] sm:$0xff]
    %v435 = vld [vmem:[#allocation1 + $0x9] sm:$0xff]
    %v436 = vld [vmem:[#allocation1 + $0x12] sm:$0xff]
    %v437 = vld [vmem:[#allocation1 + $0x1b] sm:$0xff]
    %v438 = vld [vmem:[#allocation1 + $0x24] sm:$0xff]
    %v439 = vld [vmem:[#allocation1 + $0x2d] sm:$0xff]
    %v440 = vld [vmem:[#allocation1 + $0x36] sm:$0xff]
    %v441 = vld [vmem:[#allocation1 + $0x3f] sm:$0xff]
    %443 = vst [vmem:[#allocation1] ss:$9 sm:$0xff] %v24
    %v444 = vld [vmem:[#allocation1] sm:$0xff]
    %v445 = vld [vmem:[#allocation1 + $0x9] sm:$0xff]
    %v446 = vld [vmem:[#allocation1 + $0x12] sm:$0xff]
    %v447 = vld [vmem:[#allocation1 + $0x1b] sm:$0xff]
    %v448 = vld [vmem:[#allocation1 + $0x24] sm:$0xff]
    %v449 = vld [vmem:[#allocation1 + $0x2d] sm:$0xff]
    %v450 = vld [vmem:[#allocation1 + $0x36] sm:$0xff]
    %v451 = vld [vmem:[#allocation1 + $0x3f] sm:$0xff]
    %453 = vst [vmem:[#allocation1] ss:$9 sm:$0xff] %v25
    %v454 = vld [vmem:[#allocation1] sm:$0xff]
    %v871 = vunpack.c.l.b16 %v26
    %v872 = vunpack.c.l.b16 %v27
    %v873 = vunpack.c.l.b16 %v28
    %v874 = vunpack.c.l.b16 %v29
    %v875 = vunpack.c.l.b16 %v30
    %v876 = vunpack.c.l.b16 %v31
    %v877 = vunpack.c.l.b16 %v32
    %v878 = vunpack.c.l.b16 %v33
    %v879 = vunpack.c.l.b16 %v34
    %v880 = vunpack.c.l.b16 %v35
    %v881 = vunpack.c.l.b16 %v36
    %v882 = vunpack.c.l.b16 %v37
    %v883 = vunpack.c.l.b16 %v38
    %v884 = vunpack.c.l.b16 %v39
    %v885 = vunpack.c.l.b16 %v40
    %v886 = vunpack.c.l.b16 %v41
    %v887 = vunpack.c.l.b16 %v42
    %v888 = vunpack.c.l.b16 %v43
    %v889 = vunpack.c.l.b16 %v44
    %v890 = vunpack.c.l.b16 %v45
    %v891 = vunpack.c.l.b16 %v46
    %v892 = vunpack.c.l.b16 %v47
    %v893 = vunpack.c.l.b16 %v48
    %v894 = vunpack.c.l.b16 %v49
    %v895 = vunpack.c.l.b16 %v50
    %v896 = vunpack.c.l.b16 %v51
    %v897 = vunpack.c.l.b16 %v52
    %v898 = vunpack.c.l.b16 %v53
    %v899 = vunpack.c.l.b16 %v54
    %v900 = vunpack.c.l.b16 %v55
    %v901 = vunpack.c.l.b16 %v56
    %v902 = vunpack.c.l.b16 %v57
    %v903 = vunpack.c.l.b16 %v58
    %v904 = vunpack.c.l.b16 %v59
    %v905 = vunpack.c.l.b16 %v60
    %v906 = vunpack.c.l.b16 %v61
    %v907 = vunpack.c.l.b16 %v62
    %v908 = vunpack.c.l.b16 %v63
    %v909 = vunpack.c.l.b16 %v64
    %v910 = vunpack.c.l.b16 %v65
    %v911 = vunpack.c.l.b16 %v66
    %v912 = vunpack.c.l.b16 %v67
    %v913 = vunpack.c.l.b16 %v68
    %v914 = vunpack.c.l.b16 %v69
    %v915 = vunpack.c.l.b16 %v70
    %v916 = vunpack.c.l.b16 %v71
    %v917 = vunpack.c.l.b16 %v72
    %v918 = vunpack.c.l.b16 %v73
    %v919 = vunpack.c.l.b16 %v74
    %v920 = vunpack.c.l.b16 %v75
    %v921 = vunpack.c.l.b16 %v76
    %v922 = vunpack.c.l.b16 %v77
    %v923 = vunpack.c.l.b16 %v78
    %v924 = vunpack.c.l.b16 %v79
    %v925 = vunpack.c.l.b16 %v80
    %v926 = vunpack.c.l.b16 %v81
    %v927 = vunpack.c.l.b16 %v82
    %v928 = vunpack.c.l.b16 %v83
    %v929 = vunpack.c.l.b16 %v84
    %v930 = vunpack.c.l.b16 %v85
    %v931 = vunpack.c.l.b16 %v86
    %v932 = vunpack.c.l.b16 %v87
    %v933 = vunpack.c.l.b16 %v88
    %v934 = vunpack.c.l.b16 %v89
    %v935 = vunpack.c.l.b16 %v90
    %v936 = vunpack.c.l.b16 %v91
    %v937 = vunpack.c.l.b16 %v92
    %v938 = vunpack.c.l.b16 %v93
    %v939 = vunpack.c.l.b16 %v94
    %v940 = vunpack.c.l.b16 %v95
    %v941 = vunpack.c.l.b16 %v96
    %v942 = vunpack.c.l.b16 %v97
    %v943 = vunpack.c.l.b16 %v98
    %v944 = vunpack.c.l.b16 %v99
    %v945 = vunpack.c.l.b16 %v100
    %v946 = vunpack.c.l.b16 %v101
    %v947 = vunpack.c.l.b16 %v102
    %v948 = vunpack.c.l.b16 %v103
    %v949 = vunpack.c.l.b16 %v104
    %v950 = vunpack.c.l.b16 %v105
    %v951 = vunpack.c.l.b16 %v106
    %v952 = vunpack.c.l.b16 %v107
    %v953 = vunpack.c.l.b16 %v108
    %v954 = vunpack.c.l.b16 %v109
    %v955 = vunpack.c.l.b16 %v110
    %v956 = vunpack.c.l.b16 %v111
    %v957 = vunpack.c.l.b16 %v112
    %v958 = vunpack.c.l.b16 %v113
    %v959 = vunpack.c.l.b16 %v114
    %v960 = vunpack.c.l.b16 %v115
    %v961 = vunpack.c.l.b16 %v116
    %v962 = vunpack.c.l.b16 %v117
    %v963 = vunpack.c.l.b16 %v118
    %v964 = vunpack.c.l.b16 %v119
    %v965 = vunpack.c.l.b16 %v120
    %v966 = vunpack.c.l.b16 %v121
    %v967 = vunpack.c.l.b16 %v122
    %v968 = vunpack.c.l.b16 %v123
    %v969 = vunpack.c.l.b16 %v124
    %v970 = vunpack.c.l.b16 %v125
    %v971 = vunpack.c.l.b16 %v126
    %v972 = vunpack.c.l.b16 %v127
    %v973 = vunpack.c.l.b16 %v128
    %v974 = vunpack.c.l.b16 %v129
    %v975 = vunpack.c.l.b16 %v130
    %v976 = vunpack.c.l.b16 %v131
    %v977 = vunpack.c.l.b16 %v132
    %v978 = vunpack.c.l.b16 %v133
    %v979 = vunpack.c.l.b16 %v134
    %v980 = vunpack.c.l.b16 %v135
    %v981 = vunpack.c.l.b16 %v136
    %v982 = vunpack.c.l.b16 %v137
    %v983 = vunpack.c.l.b16 %v138
    %v984 = vunpack.c.l.b16 %v139
    %v985 = vunpack.c.l.b16 %v140
    %v986 = vunpack.c.l.b16 %v141
    %v987 = vunpack.c.l.b16 %v142
    %v988 = vunpack.c.l.b16 %v143
    %v989 = vunpack.c.l.b16 %v144
    %v990 = vunpack.c.l.b16 %v145
    %v991 = vunpack.c.l.b16 %v146
    %v992 = vunpack.c.l.b16 %v147
    %v993 = vunpack.c.l.b16 %v148
    %v994 = vunpack.c.l.b16 %v149
    %v995 = vunpack.c.l.b16 %v150
    %v996 = vunpack.c.l.b16 %v151
    %v997 = vunpack.c.l.b16 %v152
    %v998 = vunpack.c.l.b16 %v153
    %v999 = vunpack.c.l.b16 %v154
    %v1000 = vunpack.c.l.b16 %v155
    %v1001 = vunpack.c.l.b16 %v156
    %v1002 = vunpack.c.l.b16 %v157
    %v1003 = vunpack.c.l.b16 %v158
    %v1004 = vunpack.c.l.b16 %v159
    %v1005 = vunpack.c.l.b16 %v160
    %v1006 = vunpack.c.l.b16 %v161
    %v1007 = vunpack.c.l.b16 %v162
    %v1008 = vunpack.c.l.b16 %v163
    %v1009 = vunpack.c.l.b16 %v164
    %v1010 = vunpack.c.l.b16 %v165
    %v1011 = vunpack.c.l.b16 %v166
    %v1012 = vunpack.c.l.b16 %v167
    %v1013 = vunpack.c.l.b16 %v168
    %v1014 = vunpack.c.l.b16 %v169
    %v1015 = vunpack.c.l.b16 %v170
    %v1016 = vunpack.c.l.b16 %v171
    %v1017 = vunpack.c.l.b16 %v172
    %v1018 = vunpack.c.l.b16 %v173
    %v1019 = vunpack.c.l.b16 %v174
    %v1020 = vunpack.c.l.b16 %v175
    %v1021 = vunpack.c.l.b16 %v176
    %v1022 = vunpack.c.l.b16 %v177
    %v1023 = vunpack.c.l.b16 %v178
    %v1024 = vunpack.c.l.b16 %v179
    %v1025 = vunpack.c.l.b16 %v180
    %v1026 = vunpack.c.l.b16 %v181
    %v1027 = vunpack.c.l.b16 %v182
    %v1028 = vunpack.c.l.b16 %v183
    %v1029 = vunpack.c.l.b16 %v184
    %v1030 = vunpack.c.l.b16 %v185
    %v1031 = vunpack.c.l.b16 %v186
    %v1032 = vunpack.c.l.b16 %v187
    %v1033 = vunpack.c.l.b16 %v188
    %v1034 = vunpack.c.l.b16 %v189
    %v1035 = vunpack.c.l.b16 %v190
    %v1036 = vunpack.c.l.b16 %v191
    %v1037 = vunpack.c.l.b16 %v192
    %v1038 = vunpack.c.l.b16 %v193
    %v1039 = vunpack.c.l.b16 %v194
    %v1040 = vunpack.c.l.b16 %v195
    %v1041 = vunpack.c.l.b16 %v196
    %v1042 = vunpack.c.l.b16 %v197
    %v1043 = vunpack.c.l.b16 %v198
    %v1044 = vunpack.c.l.b16 %v199
    %v1045 = vunpack.c.l.b16 %v200
    %v1046 = vunpack.c.l.b16 %v201
    %v1047 = vunpack.c.l.b16 %v202
    %v1048 = vunpack.c.l.b16 %v203
    %v1049 = vunpack.c.l.b16 %v204
    %v1050 = vunpack.c.l.b16 %v205
    %v1051 = vunpack.c.l.b16 %v206
    %v1052 = vunpack.c.l.b16 %v207
    %v1053 = vunpack.c.l.b16 %v208
    %v1054 = vunpack.c.l.b16 %v209
    %v1055 = vunpack.c.l.b16 %v210
    %v1056 = vunpack.c.l.b16 %v211
    %v1057 = vunpack.c.l.b16 %v212
    %v1058 = vunpack.c.l.b16 %v213
    %v1059 = vunpack.c.l.b16 %v214
    %v1060 = vunpack.c.l.b16 %v215
    %v1061 = vunpack.c.l.b16 %v216
    %v1062 = vunpack.c.l.b16 %v217
    %v1063 = vunpack.c.l.b16 %v218
    %v1064 = vunpack.c.l.b16 %v219
    %v1065 = vunpack.c.l.b16 %v220
    %v1066 = vunpack.c.l.b16 %v221
    %v1067 = vunpack.c.l.b16 %v222
    %v1068 = vunpack.c.l.b16 %v223
    %v1069 = vunpack.c.l.b16 %v224
    %v1070 = vunpack.c.l.b16 %v225
    %v1071 = vunpack.c.l.b16 %v226
    %v1072 = vunpack.c.l.b16 %v227
    %v1073 = vunpack.c.l.b16 %v228
    %v1074 = vunpack.c.l.b16 %v229
    %v1075 = vunpack.c.l.b16 %v230
    %v1076 = vunpack.c.l.b16 %v231
    %v1077 = vunpack.c.l.b16 %v232
    %v1078 = vunpack.c.l.b16 %v233
    %v1079 = vunpack.c.l.b16 %v234
    %v1080 = vunpack.c.l.b16 %v235
    %v1081 = vunpack.c.l.b16 %v236
    %v1082 = vunpack.c.l.b16 %v237
    %v1083 = vunpack.c.l.b16 %v238
    %v1084 = vunpack.c.l.b16 %v239
    %v1085 = vunpack.c.l.b16 %v240
    %v1086 = vunpack.c.l.b16 %v241
    %v1087 = vunpack.c.l.b16 %v242
    %v1088 = vunpack.c.l.b16 %v243
    %v1089 = vunpack.c.l.b16 %v244
    %v1090 = vunpack.c.l.b16 %v245
    %v1091 = vunpack.c.l.b16 %v246
    %v1092 = vunpack.c.l.b16 %v247
    %v1093 = vunpack.c.l.b16 %v248
    %v1094 = vunpack.c.l.b16 %v249
    %v1095 = vunpack.c.l.b16 %v250
    %v1096 = vunpack.c.l.b16 %v251
    %v1097 = vunpack.c.l.b16 %v252
    %v1098 = vunpack.c.l.b16 %v253
    %v1099 = vunpack.c.l.b16 %v254
    %v1100 = vunpack.c.l.b16 %v255
    %v1101 = vunpack.c.l.b16 %v256
    %v1102 = vunpack.c.l.b16 %v257
    %v1103 = vunpack.c.l.b16 %v258
    %v1104 = vunpack.c.l.b16 %v259
    %v1105 = vunpack.c.l.b16 %v260
    %v1106 = vunpack.c.l.b16 %v261
    %v1107 = vunpack.c.l.b16 %v262
    %v1108 = vunpack.c.l.b16 %v263
    %v1109 = vunpack.c.l.b16 %v264
    %v1110 = vunpack.c.l.b16 %v265
    %v1111 = vunpack.c.l.b16 %v266
    %v1112 = vunpack.c.l.b16 %v267
    %v1113 = vunpack.c.l.b16 %v268
    %v1114 = vunpack.c.l.b16 %v269
    %v1115 = vunpack.c.l.b16 %v270
    %v1116 = vunpack.c.l.b16 %v271
    %v1117 = vunpack.c.l.b16 %v272
    %v1118 = vunpack.c.l.b16 %v273
    %v1119 = vunpack.c.l.b16 %v274
    %v1120 = vunpack.c.l.b16 %v275
    %v1121 = vunpack.c.l.b16 %v276
    %v1122 = vunpack.c.l.b16 %v277
    %v1123 = vunpack.c.l.b16 %v278
    %v1124 = vunpack.c.l.b16 %v279
    %v1125 = vunpack.c.l.b16 %v280
    %v1126 = vunpack.c.l.b16 %v281
    %v1127 = vunpack.c.l.b16 %v282
    %v1128 = vunpack.c.l.b16 %v283
    %v1129 = vunpack.c.l.b16 %v284
    %v1130 = vunpack.c.l.b16 %v285
    %v1131 = vunpack.c.l.b16 %v286
    %v1132 = vunpack.c.l.b16 %v287
    %v1133 = vunpack.c.l.b16 %v288
    %v1134 = vunpack.c.l.b16 %v289
    %v1135 = vunpack.c.l.b16 %v290
    %v1136 = vunpack.c.l.b16 %v291
    %v1137 = vunpack.c.l.b16 %v292
    %v1138 = vunpack.c.l.b16 %v293
    %v1139 = vunpack.c.l.b16 %v294
    %v1140 = vunpack.c.l.b16 %v295
    %v1141 = vunpack.c.l.b16 %v296
    %v1142 = vunpack.c.l.b16 %v297
    %v1143 = vunpack.c.l.b16 %v298
    %v1144 = vunpack.c.l.b16 %v299
    %v1145 = vunpack.c.l.b16 %v300
    %v1146 = vunpack.c.l.b16 %v301
    %v1147 = vunpack.c.l.b16 %v302
    %v1148 = vunpack.c.l.b16 %v303
    %v1149 = vunpack.c.l.b16 %v304
    %v1150 = vunpack.c.l.b16 %v305
    %v1151 = vunpack.c.l.b16 %v306
    %v1152 = vunpack.c.l.b16 %v307
    %v1153 = vunpack.c.l.b16 %v308
    %v1154 = vunpack.c.l.b16 %v309
    %v1155 = vunpack.c.l.b16 %v310
    %v1156 = vunpack.c.l.b16 %v311
    %v1157 = vunpack.c.l.b16 %v312
    %v1158 = vunpack.c.l.b16 %v313
    %v1159 = vunpack.c.l.b16 %v314
    %v1160 = vunpack.c.l.b16 %v315
    %v1161 = vunpack.c.l.b16 %v316
    %v1162 = vunpack.c.l.b16 %v317
    %v1163 = vunpack.c.l.b16 %v318
    %v1164 = vunpack.c.l.b16 %v319
    %v1165 = vunpack.c.l.b16 %v320
    %v1166 = vunpack.c.l.b16 %v321
    %v1167 = vunpack.c.l.b16 %v322
    %v1168 = vunpack.c.l.b16 %v323
    %v1169 = vunpack.c.l.b16 %v324
    %v1170 = vunpack.c.l.b16 %v325
    %v1171 = vunpack.c.l.b16 %v326
    %v1172 = vunpack.c.l.b16 %v327
    %v1173 = vunpack.c.l.b16 %v328
    %v1174 = vunpack.c.l.b16 %v329
    %v1175 = vunpack.c.l.b16 %v330
    %v1176 = vunpack.c.l.b16 %v331
    %v1177 = vunpack.c.l.b16 %v332
    %v1178 = vunpack.c.l.b16 %v333
    %v1179 = vunpack.c.l.b16 %v334
    %v1180 = vunpack.c.l.b16 %v335
    %v1181 = vunpack.c.l.b16 %v336
    %v1182 = vunpack.c.l.b16 %v337
    %v1183 = vunpack.c.l.b16 %v338
    %v1184 = vunpack.c.l.b16 %v339
    %v1185 = vunpack.c.l.b16 %v340
    %v1186 = vunpack.c.l.b16 %v341
    %v1187 = vunpack.c.l.b16 %v342
    %v1188 = vunpack.c.l.b16 %v343
    %v1189 = vunpack.c.l.b16 %v344
    %v1190 = vunpack.c.l.b16 %v345
    %v1191 = vunpack.c.l.b16 %v346
    %v1192 = vunpack.c.l.b16 %v347
    %v1193 = vunpack.c.l.b16 %v348
    %v1194 = vunpack.c.l.b16 %v349
    %v1195 = vunpack.c.l.b16 %v350
    %v1196 = vunpack.c.l.b16 %v351
    %v1197 = vunpack.c.l.b16 %v352
    %v1198 = vunpack.c.l.b16 %v353
    %v1199 = vunpack.c.l.b16 %v354
    %v1200 = vunpack.c.l.b16 %v355
    %v1201 = vunpack.c.l.b16 %v356
    %v1202 = vunpack.c.l.b16 %v357
    %v1203 = vunpack.c.l.b16 %v358
    %v1204 = vunpack.c.l.b16 %v359
    %v1205 = vunpack.c.l.b16 %v360
    %v1206 = vunpack.c.l.b16 %v361
    %v1207 = vunpack.c.l.b16 %v362
    %v1208 = vunpack.c.l.b16 %v363
    %v1209 = vunpack.c.l.b16 %v364
    %v1210 = vunpack.c.l.b16 %v365
    %v1211 = vunpack.c.l.b16 %v366
    %v1212 = vunpack.c.l.b16 %v367
    %v1213 = vunpack.c.l.b16 %v368
    %v1214 = vunpack.c.l.b16 %v369
    %v1215 = vunpack.c.l.b16 %v370
    %v1216 = vunpack.c.l.b16 %v371
    %v1217 = vunpack.c.l.b16 %v372
    %v1218 = vunpack.c.l.b16 %v373
    %v1219 = vunpack.c.l.b16 %v374
    %v1220 = vunpack.c.l.b16 %v375
    %v1221 = vunpack.c.l.b16 %v376
    %v1222 = vunpack.c.l.b16 %v377
    %v1223 = vunpack.c.l.b16 %v378
    %v1224 = vunpack.c.l.b16 %v379
    %v1225 = vunpack.c.l.b16 %v380
    %v1226 = vunpack.c.l.b16 %v381
    %v1227 = vunpack.c.l.b16 %v382
    %v1228 = vunpack.c.l.b16 %v383
    %v1229 = vunpack.c.l.b16 %v384
    %v1230 = vunpack.c.l.b16 %v385
    %v1231 = vunpack.c.l.b16 %v386
    %v1232 = vunpack.c.l.b16 %v387
    %v1233 = vunpack.c.l.b16 %v388
    %v1234 = vunpack.c.l.b16 %v389
    %v1235 = vunpack.c.l.b16 %v390
    %v1236 = vunpack.c.l.b16 %v391
    %v1237 = vunpack.c.l.b16 %v392
    %v1238 = vunpack.c.l.b16 %v393
    %v1239 = vunpack.c.l.b16 %v394
    %v1240 = vunpack.c.l.b16 %v395
    %v1241 = vunpack.c.l.b16 %v396
    %v1242 = vunpack.c.l.b16 %v397
    %v1243 = vunpack.c.l.b16 %v398
    %v1244 = vunpack.c.l.b16 %v399
    %v1245 = vunpack.c.l.b16 %v400
    %v1246 = vunpack.c.l.b16 %v401
    %v1247 = vunpack.c.l.b16 %v402
    %v1248 = vunpack.c.l.b16 %v403
    %v1249 = vunpack.c.l.b16 %v404
    %v1250 = vunpack.c.l.b16 %v405
    %v1251 = vunpack.c.l.b16 %v406
    %v1252 = vunpack.c.l.b16 %v407
    %v1253 = vunpack.c.l.b16 %v408
    %v1254 = vunpack.c.l.b16 %v409
    %v1255 = vunpack.c.l.b16 %v410
    %v1256 = vunpack.c.l.b16 %v411
    %v1257 = vunpack.c.l.b16 %v412
    %v1258 = vunpack.c.l.b16 %v413
    %v1259 = vunpack.c.l.b16 %v414
    %v1260 = vunpack.c.l.b16 %v415
    %v1261 = vunpack.c.l.b16 %v416
    %v1262 = vunpack.c.l.b16 %v417
    %v1263 = vpack.c.b16 %v872, %v871
    %v1264 = vpack.c.b16 %v874, %v873
    %v1265 = vpack.c.b16 %v876, %v875
    %v1266 = vpack.c.b16 %v878, %v877
    %v1267 = vpack.c.b16 %v880, %v879
    %v1268 = vpack.c.b16 %v882, %v881
    %v1269 = vpack.c.b16 %v884, %v883
    %v1270 = vpack.c.b16 %v886, %v885
    %v1271 = vpack.c.b16 %v888, %v887
    %v1272 = vpack.c.b16 %v890, %v889
    %v1273 = vpack.c.b16 %v892, %v891
    %v1274 = vpack.c.b16 %v894, %v893
    %v1275 = vpack.c.b16 %v896, %v895
    %v1276 = vpack.c.b16 %v898, %v897
    %v1277 = vpack.c.b16 %v900, %v899
    %v1278 = vpack.c.b16 %v902, %v901
    %v1279 = vpack.c.b16 %v904, %v903
    %v1280 = vpack.c.b16 %v906, %v905
    %v1281 = vpack.c.b16 %v908, %v907
    %v1282 = vpack.c.b16 %v910, %v909
    %v1283 = vpack.c.b16 %v912, %v911
    %v1284 = vpack.c.b16 %v914, %v913
    %v1285 = vpack.c.b16 %v916, %v915
    %v1286 = vpack.c.b16 %v918, %v917
    %v1287 = vpack.c.b16 %v920, %v919
    %v1288 = vpack.c.b16 %v922, %v921
    %v1289 = vpack.c.b16 %v924, %v923
    %v1290 = vpack.c.b16 %v926, %v925
    %v1291 = vpack.c.b16 %v928, %v927
    %v1292 = vpack.c.b16 %v930, %v929
    %v1293 = vpack.c.b16 %v932, %v931
    %v1294 = vpack.c.b16 %v934, %v933
    %v1295 = vpack.c.b16 %v936, %v935
    %v1296 = vpack.c.b16 %v938, %v937
    %v1297 = vpack.c.b16 %v940, %v939
    %v1298 = vpack.c.b16 %v942, %v941
    %v1299 = vpack.c.b16 %v944, %v943
    %v1300 = vpack.c.b16 %v946, %v945
    %v1301 = vpack.c.b16 %v948, %v947
    %v1302 = vpack.c.b16 %v950, %v949
    %v1303 = vpack.c.b16 %v952, %v951
    %v1304 = vpack.c.b16 %v954, %v953
    %v1305 = vpack.c.b16 %v956, %v955
    %v1306 = vpack.c.b16 %v958, %v957
    %v1307 = vpack.c.b16 %v960, %v959
    %v1308 = vpack.c.b16 %v962, %v961
    %v1309 = vpack.c.b16 %v964, %v963
    %v1310 = vpack.c.b16 %v966, %v965
    %v1311 = vpack.c.b16 %v968, %v967
    %v1312 = vpack.c.b16 %v970, %v969
    %v1313 = vpack.c.b16 %v972, %v971
    %v1314 = vpack.c.b16 %v974, %v973
    %v1315 = vpack.c.b16 %v976, %v975
    %v1316 = vpack.c.b16 %v978, %v977
    %v1317 = vpack.c.b16 %v980, %v979
    %v1318 = vpack.c.b16 %v982, %v981
    %v1319 = vpack.c.b16 %v984, %v983
    %v1320 = vpack.c.b16 %v986, %v985
    %v1321 = vpack.c.b16 %v988, %v987
    %v1322 = vpack.c.b16 %v990, %v989
    %v1323 = vpack.c.b16 %v992, %v991
    %v1324 = vpack.c.b16 %v994, %v993
    %v1325 = vpack.c.b16 %v996, %v995
    %v1326 = vpack.c.b16 %v998, %v997
    %v1327 = vpack.c.b16 %v1000, %v999
    %v1328 = vpack.c.b16 %v1002, %v1001
    %v1329 = vpack.c.b16 %v1004, %v1003
    %v1330 = vpack.c.b16 %v1006, %v1005
    %v1331 = vpack.c.b16 %v1008, %v1007
    %v1332 = vpack.c.b16 %v1010, %v1009
    %v1333 = vpack.c.b16 %v1012, %v1011
    %v1334 = vpack.c.b16 %v1014, %v1013
    %v1335 = vpack.c.b16 %v1016, %v1015
    %v1336 = vpack.c.b16 %v1018, %v1017
    %v1337 = vpack.c.b16 %v1020, %v1019
    %v1338 = vpack.c.b16 %v1022, %v1021
    %v1339 = vpack.c.b16 %v1024, %v1023
    %v1340 = vpack.c.b16 %v1026, %v1025
    %v1341 = vpack.c.b16 %v1028, %v1027
    %v1342 = vpack.c.b16 %v1030, %v1029
    %v1343 = vpack.c.b16 %v1032, %v1031
    %v1344 = vpack.c.b16 %v1034, %v1033
    %v1345 = vpack.c.b16 %v1036, %v1035
    %v1346 = vpack.c.b16 %v1038, %v1037
    %v1347 = vpack.c.b16 %v1040, %v1039
    %v1348 = vpack.c.b16 %v1042, %v1041
    %v1349 = vpack.c.b16 %v1044, %v1043
    %v1350 = vpack.c.b16 %v1046, %v1045
    %v1351 = vpack.c.b16 %v1048, %v1047
    %v1352 = vpack.c.b16 %v1050, %v1049
    %v1353 = vpack.c.b16 %v1052, %v1051
    %v1354 = vpack.c.b16 %v1054, %v1053
    %v1355 = vpack.c.b16 %v1056, %v1055
    %v1356 = vpack.c.b16 %v1058, %v1057
    %v1357 = vpack.c.b16 %v1060, %v1059
    %v1358 = vpack.c.b16 %v1062, %v1061
    %v1359 = vpack.c.b16 %v1064, %v1063
    %v1360 = vpack.c.b16 %v1066, %v1065
    %v1361 = vpack.c.b16 %v1068, %v1067
    %v1362 = vpack.c.b16 %v1070, %v1069
    %v1363 = vpack.c.b16 %v1072, %v1071
    %v1364 = vpack.c.b16 %v1074, %v1073
    %v1365 = vpack.c.b16 %v1076, %v1075
    %v1366 = vpack.c.b16 %v1078, %v1077
    %v1367 = vpack.c.b16 %v1080, %v1079
    %v1368 = vpack.c.b16 %v1082, %v1081
    %v1369 = vpack.c.b16 %v1084, %v1083
    %v1370 = vpack.c.b16 %v1086, %v1085
    %v1371 = vpack.c.b16 %v1088, %v1087
    %v1372 = vpack.c.b16 %v1090, %v1089
    %v1373 = vpack.c.b16 %v1092, %v1091
    %v1374 = vpack.c.b16 %v1094, %v1093
    %v1375 = vpack.c.b16 %v1096, %v1095
    %v1376 = vpack.c.b16 %v1098, %v1097
    %v1377 = vpack.c.b16 %v1100, %v1099
    %v1378 = vpack.c.b16 %v1102, %v1101
    %v1379 = vpack.c.b16 %v1104, %v1103
    %v1380 = vpack.c.b16 %v1106, %v1105
    %v1381 = vpack.c.b16 %v1108, %v1107
    %v1382 = vpack.c.b16 %v1110, %v1109
    %v1383 = vpack.c.b16 %v1112, %v1111
    %v1384 = vpack.c.b16 %v1114, %v1113
    %v1385 = vpack.c.b16 %v1116, %v1115
    %v1386 = vpack.c.b16 %v1118, %v1117
    %v1387 = vpack.c.b16 %v1120, %v1119
    %v1388 = vpack.c.b16 %v1122, %v1121
    %v1389 = vpack.c.b16 %v1124, %v1123
    %v1390 = vpack.c.b16 %v1126, %v1125
    %v1391 = vpack.c.b16 %v1128, %v1127
    %v1392 = vpack.c.b16 %v1130, %v1129
    %v1393 = vpack.c.b16 %v1132, %v1131
    %v1394 = vpack.c.b16 %v1134, %v1133
    %v1395 = vpack.c.b16 %v1136, %v1135
    %v1396 = vpack.c.b16 %v1138, %v1137
    %v1397 = vpack.c.b16 %v1140, %v1139
    %v1398 = vpack.c.b16 %v1142, %v1141
    %v1399 = vpack.c.b16 %v1144, %v1143
    %v1400 = vpack.c.b16 %v1146, %v1145
    %v1401 = vpack.c.b16 %v1148, %v1147
    %v1402 = vpack.c.b16 %v1150, %v1149
    %v1403 = vpack.c.b16 %v1152, %v1151
    %v1404 = vpack.c.b16 %v1154, %v1153
    %v1405 = vpack.c.b16 %v1156, %v1155
    %v1406 = vpack.c.b16 %v1158, %v1157
    %v1407 = vpack.c.b16 %v1160, %v1159
    %v1408 = vpack.c.b16 %v1162, %v1161
    %v1409 = vpack.c.b16 %v1164, %v1163
    %v1410 = vpack.c.b16 %v1166, %v1165
    %v1411 = vpack.c.b16 %v1168, %v1167
    %v1412 = vpack.c.b16 %v1170, %v1169
    %v1413 = vpack.c.b16 %v1172, %v1171
    %v1414 = vpack.c.b16 %v1174, %v1173
    %v1415 = vpack.c.b16 %v1176, %v1175
    %v1416 = vpack.c.b16 %v1178, %v1177
    %v1417 = vpack.c.b16 %v1180, %v1179
    %v1418 = vpack.c.b16 %v1182, %v1181
    %v1419 = vpack.c.b16 %v1184, %v1183
    %v1420 = vpack.c.b16 %v1186, %v1185
    %v1421 = vpack.c.b16 %v1188, %v1187
    %v1422 = vpack.c.b16 %v1190, %v1189
    %v1423 = vpack.c.b16 %v1192, %v1191
    %v1424 = vpack.c.b16 %v1194, %v1193
    %v1425 = vpack.c.b16 %v1196, %v1195
    %v1426 = vpack.c.b16 %v1198, %v1197
    %v1427 = vpack.c.b16 %v1200, %v1199
    %v1428 = vpack.c.b16 %v1202, %v1201
    %v1429 = vpack.c.b16 %v1204, %v1203
    %v1430 = vpack.c.b16 %v1206, %v1205
    %v1431 = vpack.c.b16 %v1208, %v1207
    %v1432 = vpack.c.b16 %v1210, %v1209
    %v1433 = vpack.c.b16 %v1212, %v1211
    %v1434 = vpack.c.b16 %v1214, %v1213
    %v1435 = vpack.c.b16 %v1216, %v1215
    %v1436 = vpack.c.b16 %v1218, %v1217
    %v1437 = vpack.c.b16 %v1220, %v1219
    %v1438 = vpack.c.b16 %v1222, %v1221
    %v1439 = vpack.c.b16 %v1224, %v1223
    %v1440 = vpack.c.b16 %v1226, %v1225
    %v1441 = vpack.c.b16 %v1228, %v1227
    %v1442 = vpack.c.b16 %v1230, %v1229
    %v1443 = vpack.c.b16 %v1232, %v1231
    %v1444 = vpack.c.b16 %v1234, %v1233
    %v1445 = vpack.c.b16 %v1236, %v1235
    %v1446 = vpack.c.b16 %v1238, %v1237
    %v1447 = vpack.c.b16 %v1240, %v1239
    %v1448 = vpack.c.b16 %v1242, %v1241
    %v1449 = vpack.c.b16 %v1244, %v1243
    %v1450 = vpack.c.b16 %v1246, %v1245
    %v1451 = vpack.c.b16 %v1248, %v1247
    %v1452 = vpack.c.b16 %v1250, %v1249
    %v1453 = vpack.c.b16 %v1252, %v1251
    %v1454 = vpack.c.b16 %v1254, %v1253
    %v1455 = vpack.c.b16 %v1256, %v1255
    %v1456 = vpack.c.b16 %v1258, %v1257
    %v1457 = vpack.c.b16 %v1260, %v1259
    %v1458 = vpack.c.b16 %v1262, %v1261
    %vm1655 = vcmask 523264
    %v1656 = vsel %vm1655, %v454, 0
    %1658 = vmatpush.bf16.msra.mxu0 %v1270
    %1659 = vmatpush.bf16.msra.mxu0 %v1269
    %1660 = vmatpush.bf16.msra.mxu0 %v1268
    %1661 = vmatpush.bf16.msra.mxu0 %v1267
    %1662 = vmatpush.bf16.msra.mxu0 %v1266
    %1663 = vmatpush.bf16.msra.mxu0 %v1265
    %1664 = vmatpush.bf16.msra.mxu0 %v1264
    %1665 = vmatpush.bf16.msra.mxu0 %v1263
    %1666 = vmatmul.bf16.gmra.mxu0 %v424
    %v1667 = vpop.f32.mrf.mxu0
    %v1668 = vadd.f32 %v420, %v1667
    %v1669 = vpop.f32.mrf.mxu0
    %1670 = vdwg.mxu0
    %1671 = vmatpush.bf16.msra.mxu0 %v1278
    %1672 = vmatpush.bf16.msra.mxu0 %v1277
    %1673 = vmatpush.bf16.msra.mxu0 %v1276
    %1674 = vmatpush.bf16.msra.mxu0 %v1275
    %1675 = vmatpush.bf16.msra.mxu0 %v1274
    %1676 = vmatpush.bf16.msra.mxu0 %v1273
    %1677 = vmatpush.bf16.msra.mxu0 %v1272
    %1678 = vmatpush.bf16.msra.mxu0 %v1271
    %1679 = vmatmul.bf16.gmra.mxu0 %v425
    %v1680 = vpop.f32.mrf.mxu0
    %v1681 = vadd.f32 %v1668, %v1680
    %v1682 = vpop.f32.mrf.mxu0
    %1683 = vdwg.mxu0
    %1684 = vmatpush.bf16.msra.mxu0 %v1286
    %1685 = vmatpush.bf16.msra.mxu0 %v1285
    %1686 = vmatpush.bf16.msra.mxu0 %v1284
    %1687 = vmatpush.bf16.msra.mxu0 %v1283
    %1688 = vmatpush.bf16.msra.mxu0 %v1282
    %1689 = vmatpush.bf16.msra.mxu0 %v1281
    %1690 = vmatpush.bf16.msra.mxu0 %v1280
    %1691 = vmatpush.bf16.msra.mxu0 %v1279
    %1692 = vmatmul.bf16.gmra.mxu0 %v426
    %v1693 = vpop.f32.mrf.mxu0
    %v1694 = vadd.f32 %v1681, %v1693
    %v1695 = vpop.f32.mrf.mxu0
    %1696 = vdwg.mxu0
    %1697 = vmatpush.bf16.msra.mxu0 %v1294
    %1698 = vmatpush.bf16.msra.mxu0 %v1293
    %1699 = vmatpush.bf16.msra.mxu0 %v1292
    %1700 = vmatpush.bf16.msra.mxu0 %v1291
    %1701 = vmatpush.bf16.msra.mxu0 %v1290
    %1702 = vmatpush.bf16.msra.mxu0 %v1289
    %1703 = vmatpush.bf16.msra.mxu0 %v1288
    %1704 = vmatpush.bf16.msra.mxu0 %v1287
    %1705 = vmatmul.bf16.gmra.mxu0 %v427
    %v1706 = vpop.f32.mrf.mxu0
    %v1707 = vadd.f32 %v1694, %v1706
    %v1708 = vpop.f32.mrf.mxu0
    %1709 = vdwg.mxu0
    %1710 = vmatpush.bf16.msra.mxu0 %v1302
    %1711 = vmatpush.bf16.msra.mxu0 %v1301
    %1712 = vmatpush.bf16.msra.mxu0 %v1300
    %1713 = vmatpush.bf16.msra.mxu0 %v1299
    %1714 = vmatpush.bf16.msra.mxu0 %v1298
    %1715 = vmatpush.bf16.msra.mxu0 %v1297
    %1716 = vmatpush.bf16.msra.mxu0 %v1296
    %1717 = vmatpush.bf16.msra.mxu0 %v1295
    %1718 = vmatmul.bf16.gmra.mxu0 %v428
    %v1719 = vpop.f32.mrf.mxu0
    %v1720 = vadd.f32 %v1707, %v1719
    %v1721 = vpop.f32.mrf.mxu0
    %1722 = vdwg.mxu0
    %1723 = vmatpush.bf16.msra.mxu0 %v1310
    %1724 = vmatpush.bf16.msra.mxu0 %v1309
    %1725 = vmatpush.bf16.msra.mxu0 %v1308
    %1726 = vmatpush.bf16.msra.mxu0 %v1307
    %1727 = vmatpush.bf16.msra.mxu0 %v1306
    %1728 = vmatpush.bf16.msra.mxu0 %v1305
    %1729 = vmatpush.bf16.msra.mxu0 %v1304
    %1730 = vmatpush.bf16.msra.mxu0 %v1303
    %1731 = vmatmul.bf16.gmra.mxu0 %v429
    %v1732 = vpop.f32.mrf.mxu0
    %v1733 = vadd.f32 %v1720, %v1732
    %v1734 = vpop.f32.mrf.mxu0
    %1735 = vdwg.mxu0
    %1736 = vmatpush.bf16.msra.mxu0 %v1318
    %1737 = vmatpush.bf16.msra.mxu0 %v1317
    %1738 = vmatpush.bf16.msra.mxu0 %v1316
    %1739 = vmatpush.bf16.msra.mxu0 %v1315
    %1740 = vmatpush.bf16.msra.mxu0 %v1314
    %1741 = vmatpush.bf16.msra.mxu0 %v1313
    %1742 = vmatpush.bf16.msra.mxu0 %v1312
    %1743 = vmatpush.bf16.msra.mxu0 %v1311
    %1744 = vmatmul.bf16.gmra.mxu0 %v430
    %v1745 = vpop.f32.mrf.mxu0
    %v1746 = vadd.f32 %v1733, %v1745
    %v1747 = vpop.f32.mrf.mxu0
    %1748 = vdwg.mxu0
    %1749 = vmatpush.bf16.msra.mxu0 %v1326
    %1750 = vmatpush.bf16.msra.mxu0 %v1325
    %1751 = vmatpush.bf16.msra.mxu0 %v1324
    %1752 = vmatpush.bf16.msra.mxu0 %v1323
    %1753 = vmatpush.bf16.msra.mxu0 %v1322
    %1754 = vmatpush.bf16.msra.mxu0 %v1321
    %1755 = vmatpush.bf16.msra.mxu0 %v1320
    %1756 = vmatpush.bf16.msra.mxu0 %v1319
    %1757 = vmatmul.bf16.gmra.mxu0 %v431
    %v1758 = vpop.f32.mrf.mxu0
    %v1759 = vadd.f32 %v1746, %v1758
    %v1760 = vpop.f32.mrf.mxu0
    %1761 = vdwg.mxu0
    %1762 = vmatpush.bf16.msra.mxu0 %v1334
    %1763 = vmatpush.bf16.msra.mxu0 %v1333
    %1764 = vmatpush.bf16.msra.mxu0 %v1332
    %1765 = vmatpush.bf16.msra.mxu0 %v1331
    %1766 = vmatpush.bf16.msra.mxu0 %v1330
    %1767 = vmatpush.bf16.msra.mxu0 %v1329
    %1768 = vmatpush.bf16.msra.mxu0 %v1328
    %1769 = vmatpush.bf16.msra.mxu0 %v1327
    %1770 = vmatmul.bf16.gmra.mxu0 %v434
    %v1771 = vpop.f32.mrf.mxu0
    %v1772 = vadd.f32 %v1759, %v1771
    %v1773 = vpop.f32.mrf.mxu0
    %1774 = vdwg.mxu0
    %1775 = vmatpush.bf16.msra.mxu0 %v1342
    %1776 = vmatpush.bf16.msra.mxu0 %v1341
    %1777 = vmatpush.bf16.msra.mxu0 %v1340
    %1778 = vmatpush.bf16.msra.mxu0 %v1339
    %1779 = vmatpush.bf16.msra.mxu0 %v1338
    %1780 = vmatpush.bf16.msra.mxu0 %v1337
    %1781 = vmatpush.bf16.msra.mxu0 %v1336
    %1782 = vmatpush.bf16.msra.mxu0 %v1335
    %1783 = vmatmul.bf16.gmra.mxu0 %v435
    %v1784 = vpop.f32.mrf.mxu0
    %v1785 = vadd.f32 %v1772, %v1784
    %v1786 = vpop.f32.mrf.mxu0
    %1787 = vdwg.mxu0
    %1788 = vmatpush.bf16.msra.mxu0 %v1350
    %1789 = vmatpush.bf16.msra.mxu0 %v1349
    %1790 = vmatpush.bf16.msra.mxu0 %v1348
    %1791 = vmatpush.bf16.msra.mxu0 %v1347
    %1792 = vmatpush.bf16.msra.mxu0 %v1346
    %1793 = vmatpush.bf16.msra.mxu0 %v1345
    %1794 = vmatpush.bf16.msra.mxu0 %v1344
    %1795 = vmatpush.bf16.msra.mxu0 %v1343
    %1796 = vmatmul.bf16.gmra.mxu0 %v436
    %v1797 = vpop.f32.mrf.mxu0
    %v1798 = vadd.f32 %v1785, %v1797
    %v1799 = vpop.f32.mrf.mxu0
    %1800 = vdwg.mxu0
    %1801 = vmatpush.bf16.msra.mxu0 %v1358
    %1802 = vmatpush.bf16.msra.mxu0 %v1357
    %1803 = vmatpush.bf16.msra.mxu0 %v1356
    %1804 = vmatpush.bf16.msra.mxu0 %v1355
    %1805 = vmatpush.bf16.msra.mxu0 %v1354
    %1806 = vmatpush.bf16.msra.mxu0 %v1353
    %1807 = vmatpush.bf16.msra.mxu0 %v1352
    %1808 = vmatpush.bf16.msra.mxu0 %v1351
    %1809 = vmatmul.bf16.gmra.mxu0 %v437
    %v1810 = vpop.f32.mrf.mxu0
    %v1811 = vadd.f32 %v1798, %v1810
    %v1812 = vpop.f32.mrf.mxu0
    %1813 = vdwg.mxu0
    %1814 = vmatpush.bf16.msra.mxu0 %v1366
    %1815 = vmatpush.bf16.msra.mxu0 %v1365
    %1816 = vmatpush.bf16.msra.mxu0 %v1364
    %1817 = vmatpush.bf16.msra.mxu0 %v1363
    %1818 = vmatpush.bf16.msra.mxu0 %v1362
    %1819 = vmatpush.bf16.msra.mxu0 %v1361
    %1820 = vmatpush.bf16.msra.mxu0 %v1360
    %1821 = vmatpush.bf16.msra.mxu0 %v1359
    %1822 = vmatmul.bf16.gmra.mxu0 %v438
    %v1823 = vpop.f32.mrf.mxu0
    %v1824 = vadd.f32 %v1811, %v1823
    %v1825 = vpop.f32.mrf.mxu0
    %1826 = vdwg.mxu0
    %1827 = vmatpush.bf16.msra.mxu0 %v1374
    %1828 = vmatpush.bf16.msra.mxu0 %v1373
    %1829 = vmatpush.bf16.msra.mxu0 %v1372
    %1830 = vmatpush.bf16.msra.mxu0 %v1371
    %1831 = vmatpush.bf16.msra.mxu0 %v1370
    %1832 = vmatpush.bf16.msra.mxu0 %v1369
    %1833 = vmatpush.bf16.msra.mxu0 %v1368
    %1834 = vmatpush.bf16.msra.mxu0 %v1367
    %1835 = vmatmul.bf16.gmra.mxu0 %v439
    %v1836 = vpop.f32.mrf.mxu0
    %v1837 = vadd.f32 %v1824, %v1836
    %v1838 = vpop.f32.mrf.mxu0
    %1839 = vdwg.mxu0
    %1840 = vmatpush.bf16.msra.mxu0 %v1382
    %1841 = vmatpush.bf16.msra.mxu0 %v1381
    %1842 = vmatpush.bf16.msra.mxu0 %v1380
    %1843 = vmatpush.bf16.msra.mxu0 %v1379
    %1844 = vmatpush.bf16.msra.mxu0 %v1378
    %1845 = vmatpush.bf16.msra.mxu0 %v1377
    %1846 = vmatpush.bf16.msra.mxu0 %v1376
    %1847 = vmatpush.bf16.msra.mxu0 %v1375
    %1848 = vmatmul.bf16.gmra.mxu0 %v440
    %v1849 = vpop.f32.mrf.mxu0
    %v1850 = vadd.f32 %v1837, %v1849
    %v1851 = vpop.f32.mrf.mxu0
    %1852 = vdwg.mxu0
    %1853 = vmatpush.bf16.msra.mxu0 %v1390
    %1854 = vmatpush.bf16.msra.mxu0 %v1389
    %1855 = vmatpush.bf16.msra.mxu0 %v1388
    %1856 = vmatpush.bf16.msra.mxu0 %v1387
    %1857 = vmatpush.bf16.msra.mxu0 %v1386
    %1858 = vmatpush.bf16.msra.mxu0 %v1385
    %1859 = vmatpush.bf16.msra.mxu0 %v1384
    %1860 = vmatpush.bf16.msra.mxu0 %v1383
    %1861 = vmatmul.bf16.gmra.mxu0 %v441
    %v1862 = vpop.f32.mrf.mxu0
    %v1863 = vadd.f32 %v1850, %v1862
    %v1864 = vpop.f32.mrf.mxu0
    %1865 = vdwg.mxu0
    %1866 = vmatpush.bf16.msra.mxu0 %v1398
    %1867 = vmatpush.bf16.msra.mxu0 %v1397
    %1868 = vmatpush.bf16.msra.mxu0 %v1396
    %1869 = vmatpush.bf16.msra.mxu0 %v1395
    %1870 = vmatpush.bf16.msra.mxu0 %v1394
    %1871 = vmatpush.bf16.msra.mxu0 %v1393
    %1872 = vmatpush.bf16.msra.mxu0 %v1392
    %1873 = vmatpush.bf16.msra.mxu0 %v1391
    %1874 = vmatmul.bf16.gmra.mxu0 %v444
    %v1875 = vpop.f32.mrf.mxu0
    %v1876 = vadd.f32 %v1863, %v1875
    %v1877 = vpop.f32.mrf.mxu0
    %1878 = vdwg.mxu0
    %1879 = vmatpush.bf16.msra.mxu0 %v1406
    %1880 = vmatpush.bf16.msra.mxu0 %v1405
    %1881 = vmatpush.bf16.msra.mxu0 %v1404
    %1882 = vmatpush.bf16.msra.mxu0 %v1403
    %1883 = vmatpush.bf16.msra.mxu0 %v1402
    %1884 = vmatpush.bf16.msra.mxu0 %v1401
    %1885 = vmatpush.bf16.msra.mxu0 %v1400
    %1886 = vmatpush.bf16.msra.mxu0 %v1399
    %1887 = vmatmul.bf16.gmra.mxu0 %v445
    %v1888 = vpop.f32.mrf.mxu0
    %v1889 = vadd.f32 %v1876, %v1888
    %v1890 = vpop.f32.mrf.mxu0
    %1891 = vdwg.mxu0
    %1892 = vmatpush.bf16.msra.mxu0 %v1414
    %1893 = vmatpush.bf16.msra.mxu0 %v1413
    %1894 = vmatpush.bf16.msra.mxu0 %v1412
    %1895 = vmatpush.bf16.msra.mxu0 %v1411
    %1896 = vmatpush.bf16.msra.mxu0 %v1410
    %1897 = vmatpush.bf16.msra.mxu0 %v1409
    %1898 = vmatpush.bf16.msra.mxu0 %v1408
    %1899 = vmatpush.bf16.msra.mxu0 %v1407
    %1900 = vmatmul.bf16.gmra.mxu0 %v446
    %v1901 = vpop.f32.mrf.mxu0
    %v1902 = vadd.f32 %v1889, %v1901
    %v1903 = vpop.f32.mrf.mxu0
    %1904 = vdwg.mxu0
    %1905 = vmatpush.bf16.msra.mxu0 %v1422
    %1906 = vmatpush.bf16.msra.mxu0 %v1421
    %1907 = vmatpush.bf16.msra.mxu0 %v1420
    %1908 = vmatpush.bf16.msra.mxu0 %v1419
    %1909 = vmatpush.bf16.msra.mxu0 %v1418
    %1910 = vmatpush.bf16.msra.mxu0 %v1417
    %1911 = vmatpush.bf16.msra.mxu0 %v1416
    %1912 = vmatpush.bf16.msra.mxu0 %v1415
    %1913 = vmatmul.bf16.gmra.mxu0 %v447
    %v1914 = vpop.f32.mrf.mxu0
    %v1915 = vadd.f32 %v1902, %v1914
    %v1916 = vpop.f32.mrf.mxu0
    %1917 = vdwg.mxu0
    %1918 = vmatpush.bf16.msra.mxu0 %v1430
    %1919 = vmatpush.bf16.msra.mxu0 %v1429
    %1920 = vmatpush.bf16.msra.mxu0 %v1428
    %1921 = vmatpush.bf16.msra.mxu0 %v1427
    %1922 = vmatpush.bf16.msra.mxu0 %v1426
    %1923 = vmatpush.bf16.msra.mxu0 %v1425
    %1924 = vmatpush.bf16.msra.mxu0 %v1424
    %1925 = vmatpush.bf16.msra.mxu0 %v1423
    %1926 = vmatmul.bf16.gmra.mxu0 %v448
    %v1927 = vpop.f32.mrf.mxu0
    %v1928 = vadd.f32 %v1915, %v1927
    %v1929 = vpop.f32.mrf.mxu0
    %1930 = vdwg.mxu0
    %1931 = vmatpush.bf16.msra.mxu0 %v1438
    %1932 = vmatpush.bf16.msra.mxu0 %v1437
    %1933 = vmatpush.bf16.msra.mxu0 %v1436
    %1934 = vmatpush.bf16.msra.mxu0 %v1435
    %1935 = vmatpush.bf16.msra.mxu0 %v1434
    %1936 = vmatpush.bf16.msra.mxu0 %v1433
    %1937 = vmatpush.bf16.msra.mxu0 %v1432
    %1938 = vmatpush.bf16.msra.mxu0 %v1431
    %1939 = vmatmul.bf16.gmra.mxu0 %v449
    %v1940 = vpop.f32.mrf.mxu0
    %v1941 = vadd.f32 %v1928, %v1940
    %v1942 = vpop.f32.mrf.mxu0
    %1943 = vdwg.mxu0
    %1944 = vmatpush.bf16.msra.mxu0 %v1446
    %1945 = vmatpush.bf16.msra.mxu0 %v1445
    %1946 = vmatpush.bf16.msra.mxu0 %v1444
    %1947 = vmatpush.bf16.msra.mxu0 %v1443
    %1948 = vmatpush.bf16.msra.mxu0 %v1442
    %1949 = vmatpush.bf16.msra.mxu0 %v1441
    %1950 = vmatpush.bf16.msra.mxu0 %v1440
    %1951 = vmatpush.bf16.msra.mxu0 %v1439
    %1952 = vmatmul.bf16.gmra.mxu0 %v450
    %v1953 = vpop.f32.mrf.mxu0
    %v1954 = vadd.f32 %v1941, %v1953
    %v1955 = vpop.f32.mrf.mxu0
    %1956 = vdwg.mxu0
    %1957 = vmatpush.bf16.msra.mxu0 %v1454
    %1958 = vmatpush.bf16.msra.mxu0 %v1453
    %1959 = vmatpush.bf16.msra.mxu0 %v1452
    %1960 = vmatpush.bf16.msra.mxu0 %v1451
    %1961 = vmatpush.bf16.msra.mxu0 %v1450
    %1962 = vmatpush.bf16.msra.mxu0 %v1449
    %1963 = vmatpush.bf16.msra.mxu0 %v1448
    %1964 = vmatpush.bf16.msra.mxu0 %v1447
    %1965 = vmatmul.bf16.gmra.mxu0 %v451
    %v1966 = vpop.f32.mrf.mxu0
    %v1967 = vadd.f32 %v1954, %v1966
    %v1968 = vpop.f32.mrf.mxu0
    %1969 = vdwg.mxu0
    %1970 = vmatpush.bf16.msra.mxu0 0
    %1971 = vmatpush.bf16.msra.mxu0 0
    %1972 = vmatpush.bf16.msra.mxu0 0
    %1973 = vmatpush.bf16.msra.mxu0 0
    %1974 = vmatpush.bf16.msra.mxu0 %v1458
    %1975 = vmatpush.bf16.msra.mxu0 %v1457
    %1976 = vmatpush.bf16.msra.mxu0 %v1456
    %1977 = vmatpush.bf16.msra.mxu0 %v1455
    %1978 = vmatmul.bf16.gmra.mxu0 %v1656
    %v1979 = vpop.f32.mrf.mxu0
    %v1980 = vadd.f32 %v1967, %v1979
    %v1981 = vpop.f32.mrf.mxu0
    %1982 = vdwg.mxu0
    %vm1983 = vcmp.ge.f32.partialorder %v1980, 0.0
    %v1984 = vmul.f32 %v1980, 0.01
    %v1985 = vsel %vm1983, %v1980, %v1984
    %v1986 = vpack.c.bf16 %v1985, %v1985
    %v1987 = vld [vmem:[%s3] sm:$0xf]
    %v1988 = vld [vmem:[%s3 + $0x4] sm:$0xf]
    %v1989 = vld [vmem:[%s3 + $0x8] sm:$0xf]
    %v1990 = vld [vmem:[%s3 + $0xc] sm:$0xf]
    %v1991 = vld [vmem:[%s3 + $0x10] sm:$0xf]
    %v1992 = vld [vmem:[%s3 + $0x14] sm:$0xf]
    %v1993 = vld [vmem:[%s4] sm:$0x1]
    %v1995 = vperm.slane %v1993, 0
    %v2003 = vunpack.c.l.b16 %v1987
    %v2004 = vunpack.c.l.b16 %v1988
    %v2005 = vunpack.c.l.b16 %v1989
    %v2006 = vunpack.c.l.b16 %v1990
    %v2007 = vunpack.c.l.b16 %v1991
    %v2008 = vunpack.c.l.b16 %v1992
    %v2009 = vpack.c.b16 %v2004, %v2003
    %v2010 = vpack.c.b16 %v2006, %v2005
    %v2011 = vpack.c.b16 %v2008, %v2007
    %vm2015 = vcmask 392192
    %v2017 = vsel %vm2015, %v1986, 0
    %2019 = vmatpush.bf16.msra.mxu0 0
    %2020 = vmatpush.bf16.msra.mxu0 0
    %2021 = vmatpush.bf16.msra.mxu0 0
    %2022 = vmatpush.bf16.msra.mxu0 0
    %2023 = vmatpush.bf16.msra.mxu0 0
    %2024 = vmatpush.bf16.msra.mxu0 %v2011
    %2025 = vmatpush.bf16.msra.mxu0 %v2010
    %2026 = vmatpush.bf16.msra.mxu0 %v2009
    %2027 = vmatmul.bf16.gmra.mxu0 %v2017
    %v2028 = vpop.f32.mrf.mxu0
    %v2029 = vadd.f32 %v1995, %v2028
    %v2030 = vpop.f32.mrf.mxu0
    %2031 = vdwg.mxu0
    %v2032 = vxor.u32 %v2029, 2147483648
    %v2033 = vmul.f32 %v2032, 1.442695
    %v2034 = vpow.pop %v2033
    %v2035 = vadd.f32 %v2034, 1.0
    %v2036 = vrcp.pop %v2035
    %v2037 = vmul.f32 %v2035, %v2036
    %v2038 = vsub.f32 1.0, %v2037
    %v2039 = vmul.f32 %v2036, %v2038
    %v2040 = vadd.f32 %v2036, %v2039
    %vm2041 = vweird.f32 %v2035
    %vm2042 = vweird.f32 %v2036
    %vm2043 = vmor %vm2041, %vm2042
    %v2044 = vsel %vm2043, %v2036, %v2040
    %v2045 = vand.u32 2147483647, %v2035
    %vm2046 = vcmp.eq.f32.partialorder %v2045, 8.507059e+37
    %v2047 = vand.u32 %v2035, 2147483648
    %v2048 = vor.u32 1.1754944e-38, %v2047
    %v2049 = vsel %vm2046, %v2048, %v2044
    %v2050 = vmul.f32 1.0, %v2049
    %vm2051 = vcmask 123904
    %2052 = vst.msk [vmem:[#allocation2] sm:$0x3] %vm2051, %v2050
    // Predicated region
    $region22: #{encoder_forward.7} parent=1 // pred_check
      _
    $region23: #{encoder_forward.7} parent=1 // pred_check_branch
      %2054 = sbr.rel (0) target = $region25
    $region24: #{encoder_forward.7} parent=1 // pred_region
      %2056 = vsyncadd [#allocation3], 0
      %s2058 = sshll.u32 [#allocation2], 4
      %s2059 = int_to_ptr.vmem [resolvable:$true] %s2058
      %s2060 = sshll.u32 %s5, 4
      %s2061 = int_to_ptr.hbm [resolvable:$true] %s2060
      %2063 = dma.vmem_to_hbm [thread:$0]  %s2059, 32, %s2061, [#allocation3]
    $region25: #{encoder_forward.7} parent=1 // pred_fallthru
      _
    // Predicated region
    $region26: #{encoder_forward.7} parent=1 // pred_check
      _
    $region27: #{encoder_forward.7} parent=1 // pred_check_branch
      %2065 = sbr.rel (0) target = $region29
    $region28: #{encoder_forward.7} parent=1 // pred_region
      %2067 = dma.done [#allocation3], 32
    $region29: #{encoder_forward.7} parent=1 // pred_fallthru
      _
    %2068 = vsyncpa [#allocation3], 1

</llo_original>
